<compile_context>
chip_gen: v7x
topology: tpu7x:2x2x1
jax: 0.10.0
libtpu: 0.0.40
codegen_flags: <defaults>
</compile_context>

<pallas_src>
import functools
import math

import jax
import jax.numpy as jnp
from jax.experimental import pallas as pl
from jax.experimental.pallas import tpu as pltpu

NEG_INF = -1e9   # kept finite and added in f32 only (avoids NaNs on fully-masked rows)
LN_EPS = 1e-5
SLAB_W = 128     # lane width of the packed parameter-vector slabs


# ----------------------------- in-kernel helpers ----------------------------


def _ln(x, g, b, eps=LN_EPS):
    """LayerNorm in f32 over the last (lane) dim. x: (R, D) f32, g/b: (1, D)."""
    mu = jnp.mean(x, axis=-1, keepdims=True)
    xc = x - mu
    var = jnp.mean(xc * xc, axis=-1, keepdims=True)
    return xc * jax.lax.rsqrt(var + eps) * g + b


def _ffn(x, g, b, fc1w_ref, fc1b, fc2w_ref, fc2b):
    """LN -> fc1 -> GELU -> fc2 (bf16 MXU operands, f32 accumulation)."""
    h = _ln(x, g, b)
    h = jnp.dot(h.astype(jnp.bfloat16), fc1w_ref[...],
                preferred_element_type=jnp.float32) + fc1b
    h = jax.nn.gelu(h)
    return jnp.dot(h.astype(jnp.bfloat16), fc2w_ref[...],
                   preferred_element_type=jnp.float32) + fc2b


def _attention(q, blocks, *, heads, dh):
    """Multi-head attention on fused (already projected) q/k/v.

    q: (Lq, heads*dh) f32.
    blocks: list of (k, v, bias) with k/v (Lk_i, heads*dh) f32 and bias
      (Lq, Lk_i) f32 or None. Keys of all blocks are attended jointly via a
      two-pass online-softmax merge (== concatenation along keys, without any
      in-kernel sublane concatenation).
    Returns the head-concatenated context (Lq, heads*dh) f32, ready for a
    single fused output projection.
    """
    scale = 1.0 / math.sqrt(dh)
    outs = []
    # TODO(synk): at real Flamingo head counts (32+) replace this static unroll
    # with a head-batched einsum over an (H, L, dh) layout to keep the vreg
    # live set flat; at heads=4 the unroll is cheaper than the relayout.
    for h in range(heads):
        sl = slice(h * dh, (h + 1) * dh)
        q_h = q[:, sl].astype(jnp.bfloat16)
        scores = []
        for k, _v, bias in blocks:
            s = jax.lax.dot_general(
                q_h, k[:, sl].astype(jnp.bfloat16),
                dimension_numbers=(((1,), (1,)), ((), ())),   # contract last dims, no k.T
                preferred_element_type=jnp.float32) * scale
            if bias is not None:
                s = s + bias                                    # bias stays f32
            scores.append(s)
        m = scores[0].max(axis=-1, keepdims=True)
        for s in scores[1:]:
            m = jnp.maximum(m, s.max(axis=-1, keepdims=True))
        num = jnp.zeros((q.shape[0], dh), jnp.float32)
        den = jnp.zeros((q.shape[0], 1), jnp.float32)
        for s, (_k, v, _b) in zip(scores, blocks):
            p = jnp.exp(s - m)
            den = den + jnp.sum(p, axis=-1, keepdims=True)
            num = num + jnp.dot(p.astype(jnp.bfloat16), v[:, sl].astype(jnp.bfloat16),
                                preferred_element_type=jnp.float32)
        outs.append(num * pl.reciprocal(den, approx=True))      # EUP reciprocal (free slot)
    return jnp.concatenate(outs, axis=-1)                       # (Lq, heads*dh)


# ----------------------------- slab row layouts ------------------------------

# patch-embed slab rows
PE_B, PE_LN_G, PE_LN_B = range(3)

# perceiver-layer slab rows
(P_LN_M_G, P_LN_M_B, P_LN_L_G, P_LN_L_B, P_BQ, P_BKV, P_BO,
 P_FF_G, P_FF_B, P_FC1_B, P_FC2_B, P_NORM_G, P_NORM_B) = range(13)

# LM-layer slab rows
(L_XA_LN_G, L_XA_LN_B, L_XA_BQ, L_XA_BKV, L_XA_BO, L_XA_GATES,
 L_XA_FF_G, L_XA_FF_B, L_XA_FC1_B, L_XA_FC2_B,
 L_SA_LN_G, L_SA_LN_B, L_SA_BQKV, L_SA_BO,
 L_SA_FF_G, L_SA_FF_B, L_SA_FC1_B, L_SA_FC2_B,
 L_F_LN_G, L_F_LN_B, L_HEAD_B) = range(21)


# ----------------------------- fused Pallas kernels --------------------------


def _patch_embed_kernel(p_ref, w_ref, slab_ref, o_ref, *, d):
    """Patch "conv" (unfolded matmul) + LayerNorm in one kernel."""
    slab = slab_ref[...]
    x = jnp.dot(p_ref[...].astype(jnp.bfloat16), w_ref[...],
                preferred_element_type=jnp.float32) + slab[PE_B:PE_B + 1, 0:d]
    o_ref[...] = _ln(x, slab[PE_LN_G:PE_LN_G + 1, 0:d],
                     slab[PE_LN_B:PE_LN_B + 1, 0:d]).astype(o_ref.dtype)


def _perceiver_layer_kernel(x_ref, lat_ref, slab_ref, wq, wkv, wo, fc1, fc2, o_ref,
                            *, heads, dh, d, ff, apply_final_norm):
    """One PerceiverResampler layer (cross-attn + FF [+ final norm]) per grid step."""
    slab = slab_ref[...]
    row = lambda i, w: slab[i:i + 1, 0:w]
    HD = heads * dh
    x = x_ref[0].astype(jnp.float32)          # (M, d) media tokens
    lat = lat_ref[0].astype(jnp.float32)      # (R, d) latents

    xn = _ln(x, row(P_LN_M_G, d), row(P_LN_M_B, d))
    latn = _ln(lat, row(P_LN_L_G, d), row(P_LN_L_B, d))
    # fused projections: Q for all heads in one matmul; KV fused per context.
    # keys/values come from concat(media, latents): handled as two softmax
    # blocks (joint online softmax), so no sublane concat is needed in-kernel.
    q = jnp.dot(latn.astype(jnp.bfloat16), wq[...],
                preferred_element_type=jnp.float32) + row(P_BQ, HD)
    kv_m = jnp.dot(xn.astype(jnp.bfloat16), wkv[...],
                   preferred_element_type=jnp.float32) + row(P_BKV, 2 * HD)
    kv_l = jnp.dot(latn.astype(jnp.bfloat16), wkv[...],
                   preferred_element_type=jnp.float32) + row(P_BKV, 2 * HD)
    ctx = _attention(q, [(kv_m[:, :HD], kv_m[:, HD:], None),
                         (kv_l[:, :HD], kv_l[:, HD:], None)],
                     heads=heads, dh=dh)                                  # (R, HD)
    lat = lat + jnp.dot(ctx.astype(jnp.bfloat16), wo[...],
                        preferred_element_type=jnp.float32) + row(P_BO, d)
    lat = lat + _ffn(lat, row(P_FF_G, d), row(P_FF_B, d),
                     fc1, row(P_FC1_B, ff), fc2, row(P_FC2_B, d))
    if apply_final_norm:
        lat = _ln(lat, row(P_NORM_G, d), row(P_NORM_B, d))
    o_ref[0] = lat.astype(o_ref.dtype)


def _lm_layer_kernel(x_ref, media_ref, tt_ref, mask_ref, slab_ref,
                     xa_wq, xa_wkv, xa_wo, xa_fc1, xa_fc2,
                     sa_wqkv, sa_wo, sa_fc1, sa_fc2,
                     *rest, heads, dh, d, ff, vocab, lpm, is_last):
    """Fused LM layer: gated cross-attn block + decoder self-attn block
    (+ final LN + LM head when is_last). One batch element per grid step."""
    if is_last:
        head_w, o_ref = rest
    else:
        (o_ref,) = rest
    slab = slab_ref[...]
    row = lambda i, w: slab[i:i + 1, 0:w]
    HD = heads * dh
    x = x_ref[0].astype(jnp.float32)             # (L, d)
    media = media_ref[0].astype(jnp.bfloat16)    # (M, d_vis), already perceiver-normed
    tt = tt_ref[0]                               # (L, 1) int32 cumsum of <media> tokens
    pad = mask_ref[0]                            # (1, L) int32 padding mask
    L, M = x.shape[0], media.shape[0]

    # ---- gated cross-attention: LN -> fused Q / fused KV -> masked attn -> out -> gated FF
    xn = _ln(x, row(L_XA_LN_G, d), row(L_XA_LN_B, d))
    q = jnp.dot(xn.astype(jnp.bfloat16), xa_wq[...],
                preferred_element_type=jnp.float32) + row(L_XA_BQ, HD)
    kv = jnp.dot(media, xa_wkv[...],
                 preferred_element_type=jnp.float32) + row(L_XA_BKV, 2 * HD)
    col = jax.lax.broadcasted_iota(jnp.int32, (L, M), 1)
    if (lpm & (lpm - 1)) == 0:          # latents-per-media is a power of two: shift, not divide
        media_time = (col >> (lpm.bit_length() - 1)) + 1
    else:
        media_time = col // lpm + 1
    # only_attend_previous=True: a token attends to latents of any earlier <media> chunk
    bias = jnp.where(tt >= media_time, 0.0, NEG_INF).astype(jnp.float32)
    ctx = _attention(q, [(kv[:, :HD], kv[:, HD:], bias)], heads=heads, dh=dh)
    attn = jnp.dot(ctx.astype(jnp.bfloat16), xa_wo[...],
                   preferred_element_type=jnp.float32) + row(L_XA_BO, d)
    attn = attn * (tt > 0).astype(jnp.float32)          # zero tokens with no preceding <media>
    x = x + jnp.tanh(slab[L_XA_GATES:L_XA_GATES + 1, 0:1]) * attn
    x = x + jnp.tanh(slab[L_XA_GATES:L_XA_GATES + 1, 1:2]) * _ffn(
        x, row(L_XA_FF_G, d), row(L_XA_FF_B, d),
        xa_fc1, row(L_XA_FC1_B, ff), xa_fc2, row(L_XA_FC2_B, d))

    # ---- decoder self-attention layer: causal + padding mask built in-kernel
    xn = _ln(x, row(L_SA_LN_G, d), row(L_SA_LN_B, d))
    qkv = jnp.dot(xn.astype(jnp.bfloat16), sa_wqkv[...],
                  preferred_element_type=jnp.float32) + row(L_SA_BQKV, 3 * HD)
    rix = jax.lax.broadcasted_iota(jnp.int32, (L, L), 0)
    cix = jax.lax.broadcasted_iota(jnp.int32, (L, L), 1)
    sbias = jnp.where((rix >= cix) & (pad > 0), 0.0, NEG_INF).astype(jnp.float32)
    ctx = _attention(qkv[:, :HD], [(qkv[:, HD:2 * HD], qkv[:, 2 * HD:], sbias)],
                     heads=heads, dh=dh)
    x = x + jnp.dot(ctx.astype(jnp.bfloat16), sa_wo[...],
                    preferred_element_type=jnp.float32) + row(L_SA_BO, d)
    x = x + _ffn(x, row(L_SA_FF_G, d), row(L_SA_FF_B, d),
                 sa_fc1, row(L_SA_FC1_B, ff), sa_fc2, row(L_SA_FC2_B, d))

    if is_last:
        # final LayerNorm + LM head fused into the last layer (lane-dense vocab=128)
        xn = _ln(x, row(L_F_LN_G, d), row(L_F_LN_B, d))
        o_ref[0] = (jnp.dot(xn.astype(jnp.bfloat16), head_w[...],
                            preferred_element_type=jnp.float32)
                    + row(L_HEAD_B, vocab)).astype(o_ref.dtype)
    else:
        o_ref[0] = x.astype(o_ref.dtype)        # bf16 residual stream between layer kernels


# ----------------------------- pallas_call glue -------------------------------


def _bspec(shape):
    """Per-grid-element block along the leading (batch) dim."""
    n = len(shape) - 1

    def imap(i):
        return (i,) + (0,) * n

    return pl.BlockSpec((1,) + tuple(shape[1:]), imap)


def _wspec(shape):
    """Whole-array block, identical for every grid step (weights / params)."""
    n = len(shape)

    def imap(i):
        return (0,) * n

    return pl.BlockSpec(tuple(shape), imap)


# ----------------------------- parameter init --------------------------------


def _pack_rows(vecs, width=SLAB_W):
    """Pack small 1-D parameter vectors into one (rows, width) f32 slab."""
    rows = []
    for v in vecs:
        v = jnp.asarray(v, jnp.float32).reshape(-1)
        assert v.shape[0] <= width, (v.shape, width)
        rows.append(jnp.pad(v, (0, width - v.shape[0])))
    return jnp.stack(rows)


def _lin(key, d_in, d_out, scale=0.02):
    return (scale * jax.random.normal(key, (d_in, d_out), jnp.float32)).astype(jnp.bfloat16)


CFG = dict(
    B=2, T=1, F=1, C=3, H=16, W=16, patch=8,
    d_vis=32,               # model_config['image_size'] (perceiver dim / vis hidden size)
    perceiver_latents=8, perceiver_depth=2, perceiver_heads=4, perceiver_dim_head=8,
    vocab=128, seq_len=8, d_lm=32, lm_layers=1, lm_heads=4, lm_dim_head=8, ff_mult=4,
    media_token_id=3, end_chunk_token_id=4, cross_attn_every_n_layers=1,
)


def init_vision(key, cfg):
    kdim = cfg["C"] * cfg["patch"] * cfg["patch"]
    d = cfg["d_vis"]
    slab = _pack_rows([jnp.zeros((d,)), jnp.ones((d,)), jnp.zeros((d,))], width=d)
    return {"patch_w": _lin(key, kdim, d), "slab": slab}


def init_perceiver(key, cfg):
    d = cfg["d_vis"]
    h, dh = cfg["perceiver_heads"], cfg["perceiver_dim_head"]
    HD, ff = h * dh, d * cfg["ff_mult"]
    keys = jax.random.split(key, cfg["perceiver_depth"] + 2)
    latents = 0.02 * jax.random.normal(keys[0], (cfg["perceiver_latents"], d), jnp.float32)
    frame_emb = 0.02 * jax.random.normal(keys[1], (cfg["F"], d), jnp.float32)
    layers = []
    for i in range(cfg["perceiver_depth"]):
        lk = jax.random.split(keys[2 + i], 5)
        slab = _pack_rows([
            jnp.ones((d,)), jnp.zeros((d,)),        # ln_media g/b
            jnp.ones((d,)), jnp.zeros((d,)),        # ln_latents g/b
            jnp.zeros((HD,)), jnp.zeros((2 * HD,)), jnp.zeros((d,)),   # bq, bkv, bo
            jnp.ones((d,)), jnp.zeros((d,)),        # ff ln g/b
            jnp.zeros((ff,)), jnp.zeros((d,)),      # fc1_b, fc2_b
            jnp.ones((d,)), jnp.zeros((d,)),        # final norm g/b
        ])
        layers.append({"slab": slab,
                       "wq": _lin(lk[0], d, HD), "wkv": _lin(lk[1], d, 2 * HD),
                       "wo": _lin(lk[2], HD, d),
                       "fc1": _lin(lk[3], d, ff), "fc2": _lin(lk[4], ff, d)})
    return {"latents": latents, "frame_emb": frame_emb, "layers": layers}


def init_lm(key, cfg):
    d, d_vis = cfg["d_lm"], cfg["d_vis"]
    h, dh = cfg["lm_heads"], cfg["lm_dim_head"]
    HD, ff, vocab = h * dh, d * cfg["ff_mult"], cfg["vocab"]
    keys = jax.random.split(key, cfg["lm_layers"] + 3)
    emb = 0.02 * jax.random.normal(keys[0], (vocab, d), jnp.float32)
    pos = 0.02 * jax.random.normal(keys[1], (cfg["seq_len"], d), jnp.float32)
    layers = []
    for i in range(cfg["lm_layers"]):
        lk = jax.random.split(keys[2 + i], 9)
        # Flamingo initializes gates at tanh(0)=0; 0.5 here so the cross-attn
        # path is actually exercised in this synthetic test.
        gates = jnp.array([0.5, 0.5], jnp.float32)
        slab = _pack_rows([
            jnp.ones((d,)), jnp.zeros((d,)),                         # xattn ln g/b
            jnp.zeros((HD,)), jnp.zeros((2 * HD,)), jnp.zeros((d,)), # bq, bkv, bo
            gates,                                                   # [attn_gate, ff_gate]
            jnp.ones((d,)), jnp.zeros((d,)),                         # xattn ff ln g/b
            jnp.zeros((ff,)), jnp.zeros((d,)),                       # fc1_b, fc2_b
            jnp.ones((d,)), jnp.zeros((d,)),                         # self ln g/b
            jnp.zeros((3 * HD,)), jnp.zeros((d,)),                   # bqkv, bo
            jnp.ones((d,)), jnp.zeros((d,)),                         # self ff ln g/b
            jnp.zeros((ff,)), jnp.zeros((d,)),                       # fc1_b, fc2_b
            jnp.ones((d,)), jnp.zeros((d,)),                         # final ln g/b
            jnp.zeros((vocab,)),                                     # head bias
        ])
        layers.append({"slab": slab,
                       "xa_wq": _lin(lk[0], d, HD), "xa_wkv": _lin(lk[1], d_vis, 2 * HD),
                       "xa_wo": _lin(lk[2], HD, d),
                       "xa_fc1": _lin(lk[3], d, ff), "xa_fc2": _lin(lk[4], ff, d),
                       "sa_wqkv": _lin(lk[5], d, 3 * HD), "sa_wo": _lin(lk[6], HD, d),
                       "sa_fc1": _lin(lk[7], d, ff), "sa_fc2": _lin(lk[8], ff, d)})
    head_w = _lin(keys[-1], d, vocab)
    return {"emb": emb, "pos": pos, "layers": layers, "head_w": head_w}


def init_flamingo(key, cfg):
    kv, kp, kl = jax.random.split(key, 3)
    return {"vision": init_vision(kv, cfg),
            "perceiver": init_perceiver(kp, cfg),
            "lm": init_lm(kl, cfg)}


# ----------------------------- model blocks ----------------------------------


def vision_encoder(params, images, cfg):
    """images: (N, C, H, W) -> patch tokens (N, v, d_vis). One fused kernel."""
    N, C, H, W = images.shape
    P = cfg["patch"]
    gh, gw = H // P, W // P
    d = cfg["d_vis"]
    patches = images.reshape(N, C, gh, P, gw, P).transpose(0, 2, 4, 1, 3, 5)
    patches = patches.reshape(N * gh * gw, C * P * P)
    tokens = pl.pallas_call(
        functools.partial(_patch_embed_kernel, d=d),
        out_shape=jax.ShapeDtypeStruct((N * gh * gw, d), jnp.bfloat16),
    )(patches, params["patch_w"], params["slab"])
    return tokens.reshape(N, gh * gw, d)


def perceiver_resampler(params, vision_x, cfg):
    """vision_x: (B, T, F, v, d_vis) -> media latents (B, T, R, d_vis) bf16."""
    B, T, F, v, d = vision_x.shape
    R = cfg["perceiver_latents"]
    x = (vision_x + params["frame_emb"][None, None, :, None, :]).astype(jnp.bfloat16)
    x = x.reshape(B * T, F * v, d)
    lat = jnp.broadcast_to(params["latents"].astype(jnp.bfloat16)[None], (B * T, R, d))
    n = len(params["layers"])
    for li, layer in enumerate(params["layers"]):
        weights = (layer["slab"], layer["wq"], layer["wkv"], layer["wo"],
                   layer["fc1"], layer["fc2"])
        lat = pl.pallas_call(
            functools.partial(_perceiver_layer_kernel,
                              heads=cfg["perceiver_heads"], dh=cfg["perceiver_dim_head"],
                              d=d, ff=d * cfg["ff_mult"],
                              apply_final_norm=(li == n - 1)),
            grid=(B * T,),
            in_specs=[_bspec(x.shape), _bspec(lat.shape)] + [_wspec(w.shape) for w in weights],
            out_specs=_bspec((B * T, R, d)),
            out_shape=jax.ShapeDtypeStruct((B * T, R, d), jnp.bfloat16),
            # batch axis "parallel": v7x megacore shards the batch across its 2 TCs
            compiler_params=pltpu.CompilerParams(dimension_semantics=("parallel",)),
        )(x, lat, *weights)
    return lat.reshape(B, T, R, d)


def language_model(params, text_ids, attention_mask, media, cfg):
    B, L = text_ids.shape
    _, T, R, d_vis = media.shape
    d, vocab = cfg["d_lm"], cfg["vocab"]
    # TODO(synk): token-embedding gather stays a plain XLA gather at this scale.
    x = (jnp.take(params["emb"], text_ids, axis=0)
         + params["pos"][None, :L, :]).astype(jnp.bfloat16)
    media_flat = media.reshape(B, T * R, d_vis)                     # bf16 from perceiver
    text_time = jnp.cumsum((text_ids == cfg["media_token_id"]).astype(jnp.int32),
                           axis=1).reshape(B, L, 1)
    mask3 = attention_mask.astype(jnp.int32).reshape(B, 1, L)

    n = len(params["layers"])
    out = None
    for li, layer in enumerate(params["layers"]):
        is_last = (li == n - 1)
        weights = [layer["slab"],
                   layer["xa_wq"], layer["xa_wkv"], layer["xa_wo"],
                   layer["xa_fc1"], layer["xa_fc2"],
                   layer["sa_wqkv"], layer["sa_wo"], layer["sa_fc1"], layer["sa_fc2"]]
        if is_last:
            weights.append(params["head_w"])
            out_shape = jax.ShapeDtypeStruct((B, L, vocab), jnp.float32)
        else:
            out_shape = jax.ShapeDtypeStruct((B, L, d), jnp.bfloat16)
        result = pl.pallas_call(
            functools.partial(_lm_layer_kernel,
                              heads=cfg["lm_heads"], dh=cfg["lm_dim_head"], d=d,
                              ff=d * cfg["ff_mult"], vocab=vocab,
                              lpm=cfg["perceiver_latents"], is_last=is_last),
            grid=(B,),
            in_specs=([_bspec(x.shape), _bspec(media_flat.shape),
                       _bspec(text_time.shape), _bspec(mask3.shape)]
                      + [_wspec(w.shape) for w in weights]),
            out_specs=_bspec(out_shape.shape),
            out_shape=out_shape,
            compiler_params=pltpu.CompilerParams(dimension_semantics=("parallel",)),
        )(x, media_flat, text_time, mask3, *weights)
        if is_last:
            out = result
        else:
            x = result
    return out


def flamingo_forward(params, vision_inputs, text_inputs, attention_mask, cfg):
    """Mirrors FlamingoLMModel.forward (labels=None, past_key_values=None, use_cache=False)."""
    B, T, F, C, H, W = vision_inputs.shape
    assert F == 1, "Only single frame supported"
    imgs = vision_inputs.reshape(B * T * F, C, H, W)                 # (B T F) c h w
    vfeat = vision_encoder(params["vision"], imgs, cfg)              # (BTF, v, d_vis)
    v = vfeat.shape[1]
    vfeat = vfeat.reshape(B, T, F, v, cfg["d_vis"])                  # B T F v d
    media = perceiver_resampler(params["perceiver"], vfeat, cfg)     # B T R d (conditioned vis_x)
    logits = language_model(params["lm"], text_inputs, attention_mask, media, cfg)
    # lang_encoder.clear_conditioned_layers() is stateful bookkeeping -> no-op here.
    return logits


# TODO(synk): generate() (beam search / sampling), AlignDevicesHook, past_key_values
# caching and the labels-loss path have no clean single-kernel Pallas equivalent and
# are not implemented; only the forward() compute path is reproduced.


if __name__ == "__main__":
    cfg = CFG
    key = jax.random.PRNGKey(0)
    k_img, k_txt, k_par = jax.random.split(key, 3)

    vision_inputs = jax.random.normal(
        k_img, (cfg["B"], cfg["T"], cfg["F"], cfg["C"], cfg["H"], cfg["W"]), jnp.float32)
    text_inputs = jax.random.randint(
        k_txt, (cfg["B"], cfg["seq_len"]), 5, cfg["vocab"], dtype=jnp.int32)
    # put a <media> token at position 0 of every sequence
    text_inputs = text_inputs.at[:, 0].set(cfg["media_token_id"])
    attention_mask = jnp.ones((cfg["B"], cfg["seq_len"]), jnp.int32)

    params = init_flamingo(k_par, cfg)

    fwd = jax.jit(functools.partial(flamingo_forward, cfg=cfg))
    logits = fwd(params, vision_inputs, text_inputs, attention_mask)
    logits = jax.block_until_ready(logits)

    assert logits.shape == (cfg["B"], cfg["seq_len"], cfg["vocab"]), logits.shape
    assert bool(jnp.all(jnp.isfinite(logits)))
    print("KERNEL_OK")
</pallas_src>

<mosaic_0001>
module attributes {stable_mosaic.version = 11 : i64} {
  func.func @_patch_embed_kernel(%arg0: memref<8x192xf32, #tpu.memory_space<vmem>>, %arg1: memref<192x32xbf16, #tpu.memory_space<vmem>>, %arg2: memref<3x32xf32, #tpu.memory_space<vmem>>, %arg3: memref<8x32xbf16, #tpu.memory_space<vmem>>) attributes {dimension_semantics = [], scalar_prefetch = 0 : i64, scratch_operands = 0 : i64, tpu.core_type = #tpu.core_type<tc>} {
    %c0 = arith.constant 0 : index
    %c0_0 = arith.constant 0 : index
    %0 = vector.load %arg2[%c0, %c0_0] : memref<3x32xf32, #tpu.memory_space<vmem>>, vector<3x32xf32>
    %c0_1 = arith.constant 0 : index
    %c0_2 = arith.constant 0 : index
    %1 = vector.load %arg0[%c0_1, %c0_2] : memref<8x192xf32, #tpu.memory_space<vmem>>, vector<8x192xf32>
    %2 = arith.truncf %1 : vector<8x192xf32> to vector<8x192xbf16>
    %c0_3 = arith.constant 0 : index
    %c0_4 = arith.constant 0 : index
    %3 = vector.load %arg1[%c0_3, %c0_4] : memref<192x32xbf16, #tpu.memory_space<vmem>>, vector<192x32xbf16>
    %cst = arith.constant dense<0.000000e+00> : vector<8x32xf32>
    %4 = tpu.matmul %2, %3, %cst {dimension_numbers = #tpu.dot_dimension_numbers<[1], [0], [0], [1], [0, 0, 1, 1], [], []>} : vector<8x192xbf16>, vector<192x32xbf16>, vector<8x32xf32> -> vector<8x32xf32>
    %5 = vector.extract_strided_slice %0 {offsets = [0, 0], sizes = [1, 32], strides = [1, 1]} : vector<3x32xf32> to vector<1x32xf32>
    %6 = vector.broadcast %5 : vector<1x32xf32> to vector<8x32xf32>
    %7 = arith.addf %4, %6 : vector<8x32xf32>
    %8 = vector.extract_strided_slice %0 {offsets = [1, 0], sizes = [1, 32], strides = [1, 1]} : vector<3x32xf32> to vector<1x32xf32>
    %9 = vector.extract_strided_slice %0 {offsets = [2, 0], sizes = [1, 32], strides = [1, 1]} : vector<3x32xf32> to vector<1x32xf32>
    %cst_5 = arith.constant dense<0.000000e+00> : vector<8xf32>
    %10 = vector.multi_reduction <add>, %7, %cst_5 [1] : vector<8x32xf32> to vector<8xf32>
    %11 = vector.shape_cast %10 : vector<8xf32> to vector<8x1xf32>
    %cst_6 = arith.constant 3.200000e+01 : f32
    %12 = vector.broadcast %cst_6 : f32 to vector<8x1xf32>
    %13 = arith.divf %11, %12 : vector<8x1xf32>
    %14 = vector.broadcast %13 : vector<8x1xf32> to vector<8x32xf32>
    %15 = arith.subf %7, %14 : vector<8x32xf32>
    %16 = arith.mulf %15, %15 : vector<8x32xf32>
    %cst_7 = arith.constant dense<0.000000e+00> : vector<8xf32>
    %17 = vector.multi_reduction <add>, %16, %cst_7 [1] : vector<8x32xf32> to vector<8xf32>
    %18 = vector.shape_cast %17 : vector<8xf32> to vector<8x1xf32>
    %cst_8 = arith.constant 3.200000e+01 : f32
    %19 = vector.broadcast %cst_8 : f32 to vector<8x1xf32>
    %20 = arith.divf %18, %19 : vector<8x1xf32>
    %cst_9 = arith.constant 9.99999974E-6 : f32
    %21 = vector.broadcast %cst_9 : f32 to vector<8x1xf32>
    %22 = arith.addf %20, %21 : vector<8x1xf32>
    %23 = math.rsqrt %22 : vector<8x1xf32>
    %24 = vector.broadcast %23 : vector<8x1xf32> to vector<8x32xf32>
    %25 = arith.mulf %15, %24 : vector<8x32xf32>
    %26 = vector.broadcast %8 : vector<1x32xf32> to vector<8x32xf32>
    %27 = arith.mulf %25, %26 : vector<8x32xf32>
    %28 = vector.broadcast %9 : vector<1x32xf32> to vector<8x32xf32>
    %29 = arith.addf %27, %28 : vector<8x32xf32>
    %30 = arith.truncf %29 : vector<8x32xf32> to vector<8x32xbf16>
    %c0_10 = arith.constant 0 : index
    %c0_11 = arith.constant 0 : index
    %31 = vector.load %arg3[%c0_10, %c0_11] : memref<8x32xbf16, #tpu.memory_space<vmem>>, vector<8x32xbf16>
    tpu.vector_store %arg3[%c0_10, %c0_11], %30 {strides = array<i32>} : memref<8x32xbf16, #tpu.memory_space<vmem>>, vector<8x32xbf16>,
    return
  }
}

module attributes {stable_mosaic.version = 11 : i64} {
  func.func @_perceiver_layer_kernel(%arg0: i32, %arg1: memref<1x4x32xbf16, #tpu.memory_space<vmem>>, %arg2: memref<1x8x32xbf16, #tpu.memory_space<vmem>>, %arg3: memref<13x128xf32, #tpu.memory_space<vmem>>, %arg4: memref<32x32xbf16, #tpu.memory_space<vmem>>, %arg5: memref<32x64xbf16, #tpu.memory_space<vmem>>, %arg6: memref<32x32xbf16, #tpu.memory_space<vmem>>, %arg7: memref<32x128xbf16, #tpu.memory_space<vmem>>, %arg8: memref<128x32xbf16, #tpu.memory_space<vmem>>, %arg9: memref<1x8x32xbf16, #tpu.memory_space<vmem>>) attributes {dimension_semantics = [#tpu.dimension_semantics<parallel>], iteration_bounds = array<i64: 2>, scalar_prefetch = 0 : i64, scratch_operands = 0 : i64, tpu.core_type = #tpu.core_type<tc>, window_params = [{transform_indices = @transform_0, window_bounds = array<i64: 1, 4, 32>}, {transform_indices = @transform_1, window_bounds = array<i64: 1, 8, 32>}, {pipeline_mode = #tpu.pipeline_mode<synchronous>, transform_indices = @transform_2, window_bounds = array<i64: 13, 128>}, {pipeline_mode = #tpu.pipeline_mode<synchronous>, transform_indices = @transform_3, window_bounds = array<i64: 32, 32>}, {pipeline_mode = #tpu.pipeline_mode<synchronous>, transform_indices = @transform_4, window_bounds = array<i64: 32, 64>}, {pipeline_mode = #tpu.pipeline_mode<synchronous>, transform_indices = @transform_5, window_bounds = array<i64: 32, 32>}, {pipeline_mode = #tpu.pipeline_mode<synchronous>, transform_indices = @transform_6, window_bounds = array<i64: 32, 128>}, {pipeline_mode = #tpu.pipeline_mode<synchronous>, transform_indices = @transform_7, window_bounds = array<i64: 128, 32>}, {transform_indices = @transform_8, window_bounds = array<i64: 1, 8, 32>}]} {
    %c0 = arith.constant 0 : index
    %c0_0 = arith.constant 0 : index
    %0 = vector.load %arg3[%c0, %c0_0] : memref<13x128xf32, #tpu.memory_space<vmem>>, vector<13x128xf32>
    %c0_1 = arith.constant 0 : index
    %c0_2 = arith.constant 0 : index
    %c0_3 = arith.constant 0 : index
    %1 = vector.load %arg1[%c0_1, %c0_2, %c0_3] : memref<1x4x32xbf16, #tpu.memory_space<vmem>>, vector<1x4x32xbf16>
    %2 = vector.shape_cast %1 : vector<1x4x32xbf16> to vector<4x32xbf16>
    %3 = arith.extf %2 : vector<4x32xbf16> to vector<4x32xf32>
    %c0_4 = arith.constant 0 : index
    %c0_5 = arith.constant 0 : index
    %c0_6 = arith.constant 0 : index
    %4 = vector.load %arg2[%c0_4, %c0_5, %c0_6] : memref<1x8x32xbf16, #tpu.memory_space<vmem>>, vector<1x8x32xbf16>
    %5 = vector.shape_cast %4 : vector<1x8x32xbf16> to vector<8x32xbf16>
    %6 = arith.extf %5 : vector<8x32xbf16> to vector<8x32xf32>
    %7 = vector.extract_strided_slice %0 {offsets = [0, 0], sizes = [1, 32], strides = [1, 1]} : vector<13x128xf32> to vector<1x32xf32>
    %8 = vector.extract_strided_slice %0 {offsets = [1, 0], sizes = [1, 32], strides = [1, 1]} : vector<13x128xf32> to vector<1x32xf32>
    %cst = arith.constant dense<0.000000e+00> : vector<4xf32>
    %9 = vector.multi_reduction <add>, %3, %cst [1] : vector<4x32xf32> to vector<4xf32>
    %10 = vector.shape_cast %9 : vector<4xf32> to vector<4x1xf32>
    %cst_7 = arith.constant 3.200000e+01 : f32
    %11 = vector.broadcast %cst_7 : f32 to vector<4x1xf32>
    %12 = arith.divf %10, %11 : vector<4x1xf32>
    %13 = vector.broadcast %12 : vector<4x1xf32> to vector<4x32xf32>
    %14 = arith.subf %3, %13 : vector<4x32xf32>
    %15 = arith.mulf %14, %14 : vector<4x32xf32>
    %cst_8 = arith.constant dense<0.000000e+00> : vector<4xf32>
    %16 = vector.multi_reduction <add>, %15, %cst_8 [1] : vector<4x32xf32> to vector<4xf32>
    %17 = vector.shape_cast %16 : vector<4xf32> to vector<4x1xf32>
    %cst_9 = arith.constant 3.200000e+01 : f32
    %18 = vector.broadcast %cst_9 : f32 to vector<4x1xf32>
    %19 = arith.divf %17, %18 : vector<4x1xf32>
    %cst_10 = arith.constant 9.99999974E-6 : f32
    %20 = vector.broadcast %cst_10 : f32 to vector<4x1xf32>
    %21 = arith.addf %19, %20 : vector<4x1xf32>
    %22 = math.rsqrt %21 : vector<4x1xf32>
    %23 = vector.broadcast %22 : vector<4x1xf32> to vector<4x32xf32>
    %24 = arith.mulf %14, %23 : vector<4x32xf32>
    %25 = vector.broadcast %7 : vector<1x32xf32> to vector<4x32xf32>
    %26 = arith.mulf %24, %25 : vector<4x32xf32>
    %27 = vector.broadcast %8 : vector<1x32xf32> to vector<4x32xf32>
    %28 = arith.addf %26, %27 : vector<4x32xf32>
    %29 = vector.extract_strided_slice %0 {offsets = [2, 0], sizes = [1, 32], strides = [1, 1]} : vector<13x128xf32> to vector<1x32xf32>
    %30 = vector.extract_strided_slice %0 {offsets = [3, 0], sizes = [1, 32], strides = [1, 1]} : vector<13x128xf32> to vector<1x32xf32>
    %cst_11 = arith.constant dense<0.000000e+00> : vector<8xf32>
    %31 = vector.multi_reduction <add>, %6, %cst_11 [1] : vector<8x32xf32> to vector<8xf32>
    %32 = vector.shape_cast %31 : vector<8xf32> to vector<8x1xf32>
    %cst_12 = arith.constant 3.200000e+01 : f32
    %33 = vector.broadcast %cst_12 : f32 to vector<8x1xf32>
    %34 = arith.divf %32, %33 : vector<8x1xf32>
    %35 = vector.broadcast %34 : vector<8x1xf32> to vector<8x32xf32>
    %36 = arith.subf %6, %35 : vector<8x32xf32>
    %37 = arith.mulf %36, %36 : vector<8x32xf32>
    %cst_13 = arith.constant dense<0.000000e+00> : vector<8xf32>
    %38 = vector.multi_reduction <add>, %37, %cst_13 [1] : vector<8x32xf32> to vector<8xf32>
    %39 = vector.shape_cast %38 : vector<8xf32> to vector<8x1xf32>
    %cst_14 = arith.constant 3.200000e+01 : f32
    %40 = vector.broadcast %cst_14 : f32 to vector<8x1xf32>
    %41 = arith.divf %39, %40 : vector<8x1xf32>
    %cst_15 = arith.constant 9.99999974E-6 : f32
    %42 = vector.broadcast %cst_15 : f32 to vector<8x1xf32>
    %43 = arith.addf %41, %42 : vector<8x1xf32>
    %44 = math.rsqrt %43 : vector<8x1xf32>
    %45 = vector.broadcast %44 : vector<8x1xf32> to vector<8x32xf32>
    %46 = arith.mulf %36, %45 : vector<8x32xf32>
    %47 = vector.broadcast %29 : vector<1x32xf32> to vector<8x32xf32>
    %48 = arith.mulf %46, %47 : vector<8x32xf32>
    %49 = vector.broadcast %30 : vector<1x32xf32> to vector<8x32xf32>
    %50 = arith.addf %48, %49 : vector<8x32xf32>
    %51 = arith.truncf %50 : vector<8x32xf32> to vector<8x32xbf16>
    %c0_16 = arith.constant 0 : index
    %c0_17 = arith.constant 0 : index
    %52 = vector.load %arg4[%c0_16, %c0_17] : memref<32x32xbf16, #tpu.memory_space<vmem>>, vector<32x32xbf16>
    %cst_18 = arith.constant dense<0.000000e+00> : vector<8x32xf32>
    %53 = tpu.matmul %51, %52, %cst_18 {dimension_numbers = #tpu.dot_dimension_numbers<[1], [0], [0], [1], [0, 0, 1, 1], [], []>} : vector<8x32xbf16>, vector<32x32xbf16>, vector<8x32xf32> -> vector<8x32xf32>
    %54 = vector.extract_strided_slice %0 {offsets = [4, 0], sizes = [1, 32], strides = [1, 1]} : vector<13x128xf32> to vector<1x32xf32>
    %55 = vector.broadcast %54 : vector<1x32xf32> to vector<8x32xf32>
    %56 = arith.addf %53, %55 : vector<8x32xf32>
    %57 = arith.truncf %28 : vector<4x32xf32> to vector<4x32xbf16>
    %c0_19 = arith.constant 0 : index
    %c0_20 = arith.constant 0 : index
    %58 = vector.load %arg5[%c0_19, %c0_20] : memref<32x64xbf16, #tpu.memory_space<vmem>>, vector<32x64xbf16>
    %cst_21 = arith.constant dense<0.000000e+00> : vector<4x64xf32>
    %59 = tpu.matmul %57, %58, %cst_21 {dimension_numbers = #tpu.dot_dimension_numbers<[1], [0], [0], [1], [0, 0, 1, 1], [], []>} : vector<4x32xbf16>, vector<32x64xbf16>, vector<4x64xf32> -> vector<4x64xf32>
    %60 = vector.extract_strided_slice %0 {offsets = [5, 0], sizes = [1, 64], strides = [1, 1]} : vector<13x128xf32> to vector<1x64xf32>
    %61 = vector.broadcast %60 : vector<1x64xf32> to vector<4x64xf32>
    %62 = arith.addf %59, %61 : vector<4x64xf32>
    %63 = arith.truncf %50 : vector<8x32xf32> to vector<8x32xbf16>
    %c0_22 = arith.constant 0 : index
    %c0_23 = arith.constant 0 : index
    %64 = vector.load %arg5[%c0_22, %c0_23] : memref<32x64xbf16, #tpu.memory_space<vmem>>, vector<32x64xbf16>
    %cst_24 = arith.constant dense<0.000000e+00> : vector<8x64xf32>
    %65 = tpu.matmul %63, %64, %cst_24 {dimension_numbers = #tpu.dot_dimension_numbers<[1], [0], [0], [1], [0, 0, 1, 1], [], []>} : vector<8x32xbf16>, vector<32x64xbf16>, vector<8x64xf32> -> vector<8x64xf32>
    %66 = vector.extract_strided_slice %0 {offsets = [5, 0], sizes = [1, 64], strides = [1, 1]} : vector<13x128xf32> to vector<1x64xf32>
    %67 = vector.broadcast %66 : vector<1x64xf32> to vector<8x64xf32>
    %68 = arith.addf %65, %67 : vector<8x64xf32>
    %69 = vector.extract_strided_slice %62 {offsets = [0, 0], sizes = [4, 32], strides = [1, 1]} : vector<4x64xf32> to vector<4x32xf32>
    %70 = vector.extract_strided_slice %62 {offsets = [0, 32], sizes = [4, 32], strides = [1, 1]} : vector<4x64xf32> to vector<4x32xf32>
    %71 = vector.extract_strided_slice %68 {offsets = [0, 0], sizes = [8, 32], strides = [1, 1]} : vector<8x64xf32> to vector<8x32xf32>
    %72 = vector.extract_strided_slice %68 {offsets = [0, 32], sizes = [8, 32], strides = [1, 1]} : vector<8x64xf32> to vector<8x32xf32>
    %73 = vector.extract_strided_slice %56 {offsets = [0, 0], sizes = [8, 8], strides = [1, 1]} : vector<8x32xf32> to vector<8x8xf32>
    %74 = arith.truncf %73 : vector<8x8xf32> to vector<8x8xbf16>
    %75 = vector.extract_strided_slice %69 {offsets = [0, 0], sizes = [4, 8], strides = [1, 1]} : vector<4x32xf32> to vector<4x8xf32>
    %76 = arith.truncf %75 : vector<4x8xf32> to vector<4x8xbf16>
    %cst_25 = arith.constant dense<0.000000e+00> : vector<8x4xf32>
    %77 = tpu.matmul %74, %76, %cst_25 {dimension_numbers = #tpu.dot_dimension_numbers<[1], [1], [0], [0], [0, 0, 1, 0], [], []>} : vector<8x8xbf16>, vector<4x8xbf16>, vector<8x4xf32> -> vector<8x4xf32>
    %cst_26 = arith.constant 0.353553385 : f32
    %78 = vector.broadcast %cst_26 : f32 to vector<8x4xf32>
    %79 = arith.mulf %77, %78 : vector<8x4xf32>
    %80 = vector.extract_strided_slice %71 {offsets = [0, 0], sizes = [8, 8], strides = [1, 1]} : vector<8x32xf32> to vector<8x8xf32>
    %81 = arith.truncf %80 : vector<8x8xf32> to vector<8x8xbf16>
    %cst_27 = arith.constant dense<0.000000e+00> : vector<8x8xf32>
    %82 = tpu.matmul %74, %81, %cst_27 {dimension_numbers = #tpu.dot_dimension_numbers<[1], [1], [0], [0], [0, 0, 1, 0], [], []>} : vector<8x8xbf16>, vector<8x8xbf16>, vector<8x8xf32> -> vector<8x8xf32>
    %cst_28 = arith.constant 0.353553385 : f32
    %83 = vector.broadcast %cst_28 : f32 to vector<8x8xf32>
    %84 = arith.mulf %82, %83 : vector<8x8xf32>
    %cst_29 = arith.constant dense<0xFF800000> : vector<8xf32>
    %85 = vector.multi_reduction <maximumf>, %79, %cst_29 [1] : vector<8x4xf32> to vector<8xf32>
    %86 = vector.shape_cast %85 : vector<8xf32> to vector<8x1xf32>
    %cst_30 = arith.constant dense<0xFF800000> : vector<8xf32>
    %87 = vector.multi_reduction <maximumf>, %84, %cst_30 [1] : vector<8x8xf32> to vector<8xf32>
    %88 = vector.shape_cast %87 : vector<8xf32> to vector<8x1xf32>
    %89 = arith.maximumf %86, %88 : vector<8x1xf32>
    %cst_31 = arith.constant 0.000000e+00 : f32
    %90 = vector.broadcast %cst_31 : f32 to vector<8x8xf32>
    %cst_32 = arith.constant 0.000000e+00 : f32
    %91 = vector.broadcast %cst_32 : f32 to vector<8x1xf32>
    %92 = vector.broadcast %89 : vector<8x1xf32> to vector<8x4xf32>
    %93 = arith.subf %79, %92 : vector<8x4xf32>
    %94 = math.exp %93 : vector<8x4xf32>
    %cst_33 = arith.constant dense<0.000000e+00> : vector<8xf32>
    %95 = vector.multi_reduction <add>, %94, %cst_33 [1] : vector<8x4xf32> to vector<8xf32>
    %96 = vector.shape_cast %95 : vector<8xf32> to vector<8x1xf32>
    %97 = arith.addf %91, %96 : vector<8x1xf32>
    %98 = arith.truncf %94 : vector<8x4xf32> to vector<8x4xbf16>
    %99 = vector.extract_strided_slice %70 {offsets = [0, 0], sizes = [4, 8], strides = [1, 1]} : vector<4x32xf32> to vector<4x8xf32>
    %100 = arith.truncf %99 : vector<4x8xf32> to vector<4x8xbf16>
    %cst_34 = arith.constant dense<0.000000e+00> : vector<8x8xf32>
    %101 = tpu.matmul %98, %100, %cst_34 {dimension_numbers = #tpu.dot_dimension_numbers<[1], [0], [0], [1], [0, 0, 1, 1], [], []>} : vector<8x4xbf16>, vector<4x8xbf16>, vector<8x8xf32> -> vector<8x8xf32>
    %102 = arith.addf %90, %101 : vector<8x8xf32>
    %103 = vector.broadcast %89 : vector<8x1xf32> to vector<8x8xf32>
    %104 = arith.subf %84, %103 : vector<8x8xf32>
    %105 = math.exp %104 : vector<8x8xf32>
    %cst_35 = arith.constant dense<0.000000e+00> : vector<8xf32>
    %106 = vector.multi_reduction <add>, %105, %cst_35 [1] : vector<8x8xf32> to vector<8xf32>
    %107 = vector.shape_cast %106 : vector<8xf32> to vector<8x1xf32>
    %108 = arith.addf %97, %107 : vector<8x1xf32>
    %109 = arith.truncf %105 : vector<8x8xf32> to vector<8x8xbf16>
    %110 = vector.extract_strided_slice %72 {offsets = [0, 0], sizes = [8, 8], strides = [1, 1]} : vector<8x32xf32> to vector<8x8xf32>
    %111 = arith.truncf %110 : vector<8x8xf32> to vector<8x8xbf16>
    %cst_36 = arith.constant dense<0.000000e+00> : vector<8x8xf32>
    %112 = tpu.matmul %109, %111, %cst_36 {dimension_numbers = #tpu.dot_dimension_numbers<[1], [0], [0], [1], [0, 0, 1, 1], [], []>} : vector<8x8xbf16>, vector<8x8xbf16>, vector<8x8xf32> -> vector<8x8xf32>
    %113 = arith.addf %102, %112 : vector<8x8xf32>
    %114 = tpu.reciprocal %108 {approx = true} : vector<8x1xf32> -> vector<8x1xf32>
    %115 = vector.broadcast %114 : vector<8x1xf32> to vector<8x8xf32>
    %116 = arith.mulf %113, %115 : vector<8x8xf32>
    %117 = vector.extract_strided_slice %56 {offsets = [0, 8], sizes = [8, 8], strides = [1, 1]} : vector<8x32xf32> to vector<8x8xf32>
    %118 = arith.truncf %117 : vector<8x8xf32> to vector<8x8xbf16>
    %119 = vector.extract_strided_slice %69 {offsets = [0, 8], sizes = [4, 8], strides = [1, 1]} : vector<4x32xf32> to vector<4x8xf32>
    %120 = arith.truncf %119 : vector<4x8xf32> to vector<4x8xbf16>
    %cst_37 = arith.constant dense<0.000000e+00> : vector<8x4xf32>
    %121 = tpu.matmul %118, %120, %cst_37 {dimension_numbers = #tpu.dot_dimension_numbers<[1], [1], [0], [0], [0, 0, 1, 0], [], []>} : vector<8x8xbf16>, vector<4x8xbf16>, vector<8x4xf32> -> vector<8x4xf32>
    %cst_38 = arith.constant 0.353553385 : f32
    %122 = vector.broadcast %cst_38 : f32 to vector<8x4xf32>
    %123 = arith.mulf %121, %122 : vector<8x4xf32>
    %124 = vector.extract_strided_slice %71 {offsets = [0, 8], sizes = [8, 8], strides = [1, 1]} : vector<8x32xf32> to vector<8x8xf32>
    %125 = arith.truncf %124 : vector<8x8xf32> to vector<8x8xbf16>
    %cst_39 = arith.constant dense<0.000000e+00> : vector<8x8xf32>
    %126 = tpu.matmul %118, %125, %cst_39 {dimension_numbers = #tpu.dot_dimension_numbers<[1], [1], [0], [0], [0, 0, 1, 0], [], []>} : vector<8x8xbf16>, vector<8x8xbf16>, vector<8x8xf32> -> vector<8x8xf32>
    %cst_40 = arith.constant 0.353553385 : f32
    %127 = vector.broadcast %cst_40 : f32 to vector<8x8xf32>
    %128 = arith.mulf %126, %127 : vector<8x8xf32>
    %cst_41 = arith.constant dense<0xFF800000> : vector<8xf32>
    %129 = vector.multi_reduction <maximumf>, %123, %cst_41 [1] : vector<8x4xf32> to vector<8xf32>
    %130 = vector.shape_cast %129 : vector<8xf32> to vector<8x1xf32>
    %cst_42 = arith.constant dense<0xFF800000> : vector<8xf32>
    %131 = vector.multi_reduction <maximumf>, %128, %cst_42 [1] : vector<8x8xf32> to vector<8xf32>
    %132 = vector.shape_cast %131 : vector<8xf32> to vector<8x1xf32>
    %133 = arith.maximumf %130, %132 : vector<8x1xf32>
    %cst_43 = arith.constant 0.000000e+00 : f32
    %134 = vector.broadcast %cst_43 : f32 to vector<8x8xf32>
    %cst_44 = arith.constant 0.000000e+00 : f32
    %135 = vector.broadcast %cst_44 : f32 to vector<8x1xf32>
    %136 = vector.broadcast %133 : vector<8x1xf32> to vector<8x4xf32>
    %137 = arith.subf %123, %136 : vector<8x4xf32>
    %138 = math.exp %137 : vector<8x4xf32>
    %cst_45 = arith.constant dense<0.000000e+00> : vector<8xf32>
    %139 = vector.multi_reduction <add>, %138, %cst_45 [1] : vector<8x4xf32> to vector<8xf32>
    %140 = vector.shape_cast %139 : vector<8xf32> to vector<8x1xf32>
    %141 = arith.addf %135, %140 : vector<8x1xf32>
    %142 = arith.truncf %138 : vector<8x4xf32> to vector<8x4xbf16>
    %143 = vector.extract_strided_slice %70 {offsets = [0, 8], sizes = [4, 8], strides = [1, 1]} : vector<4x32xf32> to vector<4x8xf32>
    %144 = arith.truncf %143 : vector<4x8xf32> to vector<4x8xbf16>
    %cst_46 = arith.constant dense<0.000000e+00> : vector<8x8xf32>
    %145 = tpu.matmul %142, %144, %cst_46 {dimension_numbers = #tpu.dot_dimension_numbers<[1], [0], [0], [1], [0, 0, 1, 1], [], []>} : vector<8x4xbf16>, vector<4x8xbf16>, vector<8x8xf32> -> vector<8x8xf32>
    %146 = arith.addf %134, %145 : vector<8x8xf32>
    %147 = vector.broadcast %133 : vector<8x1xf32> to vector<8x8xf32>
    %148 = arith.subf %128, %147 : vector<8x8xf32>
    %149 = math.exp %148 : vector<8x8xf32>
    %cst_47 = arith.constant dense<0.000000e+00> : vector<8xf32>
    %150 = vector.multi_reduction <add>, %149, %cst_47 [1] : vector<8x8xf32> to vector<8xf32>
    %151 = vector.shape_cast %150 : vector<8xf32> to vector<8x1xf32>
    %152 = arith.addf %141, %151 : vector<8x1xf32>
    %153 = arith.truncf %149 : vector<8x8xf32> to vector<8x8xbf16>
    %154 = vector.extract_strided_slice %72 {offsets = [0, 8], sizes = [8, 8], strides = [1, 1]} : vector<8x32xf32> to vector<8x8xf32>
    %155 = arith.truncf %154 : vector<8x8xf32> to vector<8x8xbf16>
    %cst_48 = arith.constant dense<0.000000e+00> : vector<8x8xf32>
    %156 = tpu.matmul %153, %155, %cst_48 {dimension_numbers = #tpu.dot_dimension_numbers<[1], [0], [0], [1], [0, 0, 1, 1], [], []>} : vector<8x8xbf16>, vector<8x8xbf16>, vector<8x8xf32> -> vector<8x8xf32>
    %157 = arith.addf %146, %156 : vector<8x8xf32>
    %158 = tpu.reciprocal %152 {approx = true} : vector<8x1xf32> -> vector<8x1xf32>
    %159 = vector.broadcast %158 : vector<8x1xf32> to vector<8x8xf32>
    %160 = arith.mulf %157, %159 : vector<8x8xf32>
    %161 = vector.extract_strided_slice %56 {offsets = [0, 16], sizes = [8, 8], strides = [1, 1]} : vector<8x32xf32> to vector<8x8xf32>
    %162 = arith.truncf %161 : vector<8x8xf32> to vector<8x8xbf16>
    %163 = vector.extract_strided_slice %69 {offsets = [0, 16], sizes = [4, 8], strides = [1, 1]} : vector<4x32xf32> to vector<4x8xf32>
    %164 = arith.truncf %163 : vector<4x8xf32> to vector<4x8xbf16>
    %cst_49 = arith.constant dense<0.000000e+00> : vector<8x4xf32>
    %165 = tpu.matmul %162, %164, %cst_49 {dimension_numbers = #tpu.dot_dimension_numbers<[1], [1], [0], [0], [0, 0, 1, 0], [], []>} : vector<8x8xbf16>, vector<4x8xbf16>, vector<8x4xf32> -> vector<8x4xf32>
    %cst_50 = arith.constant 0.353553385 : f32
    %166 = vector.broadcast %cst_50 : f32 to vector<8x4xf32>
    %167 = arith.mulf %165, %166 : vector<8x4xf32>
    %168 = vector.extract_strided_slice %71 {offsets = [0, 16], sizes = [8, 8], strides = [1, 1]} : vector<8x32xf32> to vector<8x8xf32>
    %169 = arith.truncf %168 : vector<8x8xf32> to vector<8x8xbf16>
    %cst_51 = arith.constant dense<0.000000e+00> : vector<8x8xf32>
    %170 = tpu.matmul %162, %169, %cst_51 {dimension_numbers = #tpu.dot_dimension_numbers<[1], [1], [0], [0], [0, 0, 1, 0], [], []>} : vector<8x8xbf16>, vector<8x8xbf16>, vector<8x8xf32> -> vector<8x8xf32>
    %cst_52 = arith.constant 0.353553385 : f32
    %171 = vector.broadcast %cst_52 : f32 to vector<8x8xf32>
    %172 = arith.mulf %170, %171 : vector<8x8xf32>
    %cst_53 = arith.constant dense<0xFF800000> : vector<8xf32>
    %173 = vector.multi_reduction <maximumf>, %167, %cst_53 [1] : vector<8x4xf32> to vector<8xf32>
    %174 = vector.shape_cast %173 : vector<8xf32> to vector<8x1xf32>
    %cst_54 = arith.constant dense<0xFF800000> : vector<8xf32>
    %175 = vector.multi_reduction <maximumf>, %172, %cst_54 [1] : vector<8x8xf32> to vector<8xf32>
    %176 = vector.shape_cast %175 : vector<8xf32> to vector<8x1xf32>
    %177 = arith.maximumf %174, %176 : vector<8x1xf32>
    %cst_55 = arith.constant 0.000000e+00 : f32
    %178 = vector.broadcast %cst_55 : f32 to vector<8x8xf32>
    %cst_56 = arith.constant 0.000000e+00 : f32
    %179 = vector.broadcast %cst_56 : f32 to vector<8x1xf32>
    %180 = vector.broadcast %177 : vector<8x1xf32> to vector<8x4xf32>
    %181 = arith.subf %167, %180 : vector<8x4xf32>
    %182 = math.exp %181 : vector<8x4xf32>
    %cst_57 = arith.constant dense<0.000000e+00> : vector<8xf32>
    %183 = vector.multi_reduction <add>, %182, %cst_57 [1] : vector<8x4xf32> to vector<8xf32>
    %184 = vector.shape_cast %183 : vector<8xf32> to vector<8x1xf32>
    %185 = arith.addf %179, %184 : vector<8x1xf32>
    %186 = arith.truncf %182 : vector<8x4xf32> to vector<8x4xbf16>
    %187 = vector.extract_strided_slice %70 {offsets = [0, 16], sizes = [4, 8], strides = [1, 1]} : vector<4x32xf32> to vector<4x8xf32>
    %188 = arith.truncf %187 : vector<4x8xf32> to vector<4x8xbf16>
    %cst_58 = arith.constant dense<0.000000e+00> : vector<8x8xf32>
    %189 = tpu.matmul %186, %188, %cst_58 {dimension_numbers = #tpu.dot_dimension_numbers<[1], [0], [0], [1], [0, 0, 1, 1], [], []>} : vector<8x4xbf16>, vector<4x8xbf16>, vector<8x8xf32> -> vector<8x8xf32>
    %190 = arith.addf %178, %189 : vector<8x8xf32>
    %191 = vector.broadcast %177 : vector<8x1xf32> to vector<8x8xf32>
    %192 = arith.subf %172, %191 : vector<8x8xf32>
    %193 = math.exp %192 : vector<8x8xf32>
    %cst_59 = arith.constant dense<0.000000e+00> : vector<8xf32>
    %194 = vector.multi_reduction <add>, %193, %cst_59 [1] : vector<8x8xf32> to vector<8xf32>
    %195 = vector.shape_cast %194 : vector<8xf32> to vector<8x1xf32>
    %196 = arith.addf %185, %195 : vector<8x1xf32>
    %197 = arith.truncf %193 : vector<8x8xf32> to vector<8x8xbf16>
    %198 = vector.extract_strided_slice %72 {offsets = [0, 16], sizes = [8, 8], strides = [1, 1]} : vector<8x32xf32> to vector<8x8xf32>
    %199 = arith.truncf %198 : vector<8x8xf32> to vector<8x8xbf16>
    %cst_60 = arith.constant dense<0.000000e+00> : vector<8x8xf32>
    %200 = tpu.matmul %197, %199, %cst_60 {dimension_numbers = #tpu.dot_dimension_numbers<[1], [0], [0], [1], [0, 0, 1, 1], [], []>} : vector<8x8xbf16>, vector<8x8xbf16>, vector<8x8xf32> -> vector<8x8xf32>
    %201 = arith.addf %190, %200 : vector<8x8xf32>
    %202 = tpu.reciprocal %196 {approx = true} : vector<8x1xf32> -> vector<8x1xf32>
    %203 = vector.broadcast %202 : vector<8x1xf32> to vector<8x8xf32>
    %204 = arith.mulf %201, %203 : vector<8x8xf32>
    %205 = vector.extract_strided_slice %56 {offsets = [0, 24], sizes = [8, 8], strides = [1, 1]} : vector<8x32xf32> to vector<8x8xf32>
    %206 = arith.truncf %205 : vector<8x8xf32> to vector<8x8xbf16>
    %207 = vector.extract_strided_slice %69 {offsets = [0, 24], sizes = [4, 8], strides = [1, 1]} : vector<4x32xf32> to vector<4x8xf32>
    %208 = arith.truncf %207 : vector<4x8xf32> to vector<4x8xbf16>
    %cst_61 = arith.constant dense<0.000000e+00> : vector<8x4xf32>
    %209 = tpu.matmul %206, %208, %cst_61 {dimension_numbers = #tpu.dot_dimension_numbers<[1], [1], [0], [0], [0, 0, 1, 0], [], []>} : vector<8x8xbf16>, vector<4x8xbf16>, vector<8x4xf32> -> vector<8x4xf32>
    %cst_62 = arith.constant 0.353553385 : f32
    %210 = vector.broadcast %cst_62 : f32 to vector<8x4xf32>
    %211 = arith.mulf %209, %210 : vector<8x4xf32>
    %212 = vector.extract_strided_slice %71 {offsets = [0, 24], sizes = [8, 8], strides = [1, 1]} : vector<8x32xf32> to vector<8x8xf32>
    %213 = arith.truncf %212 : vector<8x8xf32> to vector<8x8xbf16>
    %cst_63 = arith.constant dense<0.000000e+00> : vector<8x8xf32>
    %214 = tpu.matmul %206, %213, %cst_63 {dimension_numbers = #tpu.dot_dimension_numbers<[1], [1], [0], [0], [0, 0, 1, 0], [], []>} : vector<8x8xbf16>, vector<8x8xbf16>, vector<8x8xf32> -> vector<8x8xf32>
    %cst_64 = arith.constant 0.353553385 : f32
    %215 = vector.broadcast %cst_64 : f32 to vector<8x8xf32>
    %216 = arith.mulf %214, %215 : vector<8x8xf32>
    %cst_65 = arith.constant dense<0xFF800000> : vector<8xf32>
    %217 = vector.multi_reduction <maximumf>, %211, %cst_65 [1] : vector<8x4xf32> to vector<8xf32>
    %218 = vector.shape_cast %217 : vector<8xf32> to vector<8x1xf32>
    %cst_66 = arith.constant dense<0xFF800000> : vector<8xf32>
    %219 = vector.multi_reduction <maximumf>, %216, %cst_66 [1] : vector<8x8xf32> to vector<8xf32>
    %220 = vector.shape_cast %219 : vector<8xf32> to vector<8x1xf32>
    %221 = arith.maximumf %218, %220 : vector<8x1xf32>
    %cst_67 = arith.constant 0.000000e+00 : f32
    %222 = vector.broadcast %cst_67 : f32 to vector<8x8xf32>
    %cst_68 = arith.constant 0.000000e+00 : f32
    %223 = vector.broadcast %cst_68 : f32 to vector<8x1xf32>
    %224 = vector.broadcast %221 : vector<8x1xf32> to vector<8x4xf32>
    %225 = arith.subf %211, %224 : vector<8x4xf32>
    %226 = math.exp %225 : vector<8x4xf32>
    %cst_69 = arith.constant dense<0.000000e+00> : vector<8xf32>
    %227 = vector.multi_reduction <add>, %226, %cst_69 [1] : vector<8x4xf32> to vector<8xf32>
    %228 = vector.shape_cast %227 : vector<8xf32> to vector<8x1xf32>
    %229 = arith.addf %223, %228 : vector<8x1xf32>
    %230 = arith.truncf %226 : vector<8x4xf32> to vector<8x4xbf16>
    %231 = vector.extract_strided_slice %70 {offsets = [0, 24], sizes = [4, 8], strides = [1, 1]} : vector<4x32xf32> to vector<4x8xf32>
    %232 = arith.truncf %231 : vector<4x8xf32> to vector<4x8xbf16>
    %cst_70 = arith.constant dense<0.000000e+00> : vector<8x8xf32>
    %233 = tpu.matmul %230, %232, %cst_70 {dimension_numbers = #tpu.dot_dimension_numbers<[1], [0], [0], [1], [0, 0, 1, 1], [], []>} : vector<8x4xbf16>, vector<4x8xbf16>, vector<8x8xf32> -> vector<8x8xf32>
    %234 = arith.addf %222, %233 : vector<8x8xf32>
    %235 = vector.broadcast %221 : vector<8x1xf32> to vector<8x8xf32>
    %236 = arith.subf %216, %235 : vector<8x8xf32>
    %237 = math.exp %236 : vector<8x8xf32>
    %cst_71 = arith.constant dense<0.000000e+00> : vector<8xf32>
    %238 = vector.multi_reduction <add>, %237, %cst_71 [1] : vector<8x8xf32> to vector<8xf32>
    %239 = vector.shape_cast %238 : vector<8xf32> to vector<8x1xf32>
    %240 = arith.addf %229, %239 : vector<8x1xf32>
    %241 = arith.truncf %237 : vector<8x8xf32> to vector<8x8xbf16>
    %242 = vector.extract_strided_slice %72 {offsets = [0, 24], sizes = [8, 8], strides = [1, 1]} : vector<8x32xf32> to vector<8x8xf32>
    %243 = arith.truncf %242 : vector<8x8xf32> to vector<8x8xbf16>
    %cst_72 = arith.constant dense<0.000000e+00> : vector<8x8xf32>
    %244 = tpu.matmul %241, %243, %cst_72 {dimension_numbers = #tpu.dot_dimension_numbers<[1], [0], [0], [1], [0, 0, 1, 1], [], []>} : vector<8x8xbf16>, vector<8x8xbf16>, vector<8x8xf32> -> vector<8x8xf32>
    %245 = arith.addf %234, %244 : vector<8x8xf32>
    %246 = tpu.reciprocal %240 {approx = true} : vector<8x1xf32> -> vector<8x1xf32>
    %247 = vector.broadcast %246 : vector<8x1xf32> to vector<8x8xf32>
    %248 = arith.mulf %245, %247 : vector<8x8xf32>
    %249 = tpu.concatenate %116, %160, %204, %248 in 1 : vector<8x8xf32>, vector<8x8xf32>, vector<8x8xf32>, vector<8x8xf32> -> vector<8x32xf32>
    %250 = arith.truncf %249 : vector<8x32xf32> to vector<8x32xbf16>
    %c0_73 = arith.constant 0 : index
    %c0_74 = arith.constant 0 : index
    %251 = vector.load %arg6[%c0_73, %c0_74] : memref<32x32xbf16, #tpu.memory_space<vmem>>, vector<32x32xbf16>
    %cst_75 = arith.constant dense<0.000000e+00> : vector<8x32xf32>
    %252 = tpu.matmul %250, %251, %cst_75 {dimension_numbers = #tpu.dot_dimension_numbers<[1], [0], [0], [1], [0, 0, 1, 1], [], []>} : vector<8x32xbf16>, vector<32x32xbf16>, vector<8x32xf32> -> vector<8x32xf32>
    %253 = arith.addf %6, %252 : vector<8x32xf32>
    %254 = vector.extract_strided_slice %0 {offsets = [6, 0], sizes = [1, 32], strides = [1, 1]} : vector<13x128xf32> to vector<1x32xf32>
    %255 = vector.broadcast %254 : vector<1x32xf32> to vector<8x32xf32>
    %256 = arith.addf %253, %255 : vector<8x32xf32>
    %257 = vector.extract_strided_slice %0 {offsets = [7, 0], sizes = [1, 32], strides = [1, 1]} : vector<13x128xf32> to vector<1x32xf32>
    %258 = vector.extract_strided_slice %0 {offsets = [8, 0], sizes = [1, 32], strides = [1, 1]} : vector<13x128xf32> to vector<1x32xf32>
    %259 = vector.extract_strided_slice %0 {offsets = [9, 0], sizes = [1, 128], strides = [1, 1]} : vector<13x128xf32> to vector<1x128xf32>
    %260 = vector.extract_strided_slice %0 {offsets = [10, 0], sizes = [1, 32], strides = [1, 1]} : vector<13x128xf32> to vector<1x32xf32>
    %cst_76 = arith.constant dense<0.000000e+00> : vector<8xf32>
    %261 = vector.multi_reduction <add>, %256, %cst_76 [1] : vector<8x32xf32> to vector<8xf32>
    %262 = vector.shape_cast %261 : vector<8xf32> to vector<8x1xf32>
    %cst_77 = arith.constant 3.200000e+01 : f32
    %263 = vector.broadcast %cst_77 : f32 to vector<8x1xf32>
    %264 = arith.divf %262, %263 : vector<8x1xf32>
    %265 = vector.broadcast %264 : vector<8x1xf32> to vector<8x32xf32>
    %266 = arith.subf %256, %265 : vector<8x32xf32>
    %267 = arith.mulf %266, %266 : vector<8x32xf32>
    %cst_78 = arith.constant dense<0.000000e+00> : vector<8xf32>
    %268 = vector.multi_reduction <add>, %267, %cst_78 [1] : vector<8x32xf32> to vector<8xf32>
    %269 = vector.shape_cast %268 : vector<8xf32> to vector<8x1xf32>
    %cst_79 = arith.constant 3.200000e+01 : f32
    %270 = vector.broadcast %cst_79 : f32 to vector<8x1xf32>
    %271 = arith.divf %269, %270 : vector<8x1xf32>
    %cst_80 = arith.constant 9.99999974E-6 : f32
    %272 = vector.broadcast %cst_80 : f32 to vector<8x1xf32>
    %273 = arith.addf %271, %272 : vector<8x1xf32>
    %274 = math.rsqrt %273 : vector<8x1xf32>
    %275 = vector.broadcast %274 : vector<8x1xf32> to vector<8x32xf32>
    %276 = arith.mulf %266, %275 : vector<8x32xf32>
    %277 = vector.broadcast %257 : vector<1x32xf32> to vector<8x32xf32>
    %278 = arith.mulf %276, %277 : vector<8x32xf32>
    %279 = vector.broadcast %258 : vector<1x32xf32> to vector<8x32xf32>
    %280 = arith.addf %278, %279 : vector<8x32xf32>
    %281 = arith.truncf %280 : vector<8x32xf32> to vector<8x32xbf16>
    %c0_81 = arith.constant 0 : index
    %c0_82 = arith.constant 0 : index
    %282 = vector.load %arg7[%c0_81, %c0_82] : memref<32x128xbf16, #tpu.memory_space<vmem>>, vector<32x128xbf16>
    %cst_83 = arith.constant dense<0.000000e+00> : vector<8x128xf32>
    %283 = tpu.matmul %281, %282, %cst_83 {dimension_numbers = #tpu.dot_dimension_numbers<[1], [0], [0], [1], [0, 0, 1, 1], [], []>} : vector<8x32xbf16>, vector<32x128xbf16>, vector<8x128xf32> -> vector<8x128xf32>
    %284 = vector.broadcast %259 : vector<1x128xf32> to vector<8x128xf32>
    %285 = arith.addf %283, %284 : vector<8x128xf32>
    %286 = arith.mulf %285, %285 : vector<8x128xf32>
    %287 = arith.mulf %285, %286 : vector<8x128xf32>
    %cst_84 = arith.constant 4.471500e-02 : f32
    %288 = vector.broadcast %cst_84 : f32 to vector<8x128xf32>
    %289 = arith.mulf %288, %287 : vector<8x128xf32>
    %290 = arith.addf %285, %289 : vector<8x128xf32>
    %cst_85 = arith.constant 0.797884583 : f32
    %291 = vector.broadcast %cst_85 : f32 to vector<8x128xf32>
    %292 = arith.mulf %291, %290 : vector<8x128xf32>
    %293 = math.tanh %292 : vector<8x128xf32>
    %cst_86 = arith.constant 1.000000e+00 : f32
    %294 = vector.broadcast %cst_86 : f32 to vector<8x128xf32>
    %295 = arith.addf %294, %293 : vector<8x128xf32>
    %cst_87 = arith.constant 5.000000e-01 : f32
    %296 = vector.broadcast %cst_87 : f32 to vector<8x128xf32>
    %297 = arith.mulf %296, %295 : vector<8x128xf32>
    %298 = arith.mulf %285, %297 : vector<8x128xf32>
    %299 = arith.truncf %298 : vector<8x128xf32> to vector<8x128xbf16>
    %c0_88 = arith.constant 0 : index
    %c0_89 = arith.constant 0 : index
    %300 = vector.load %arg8[%c0_88, %c0_89] : memref<128x32xbf16, #tpu.memory_space<vmem>>, vector<128x32xbf16>
    %cst_90 = arith.constant dense<0.000000e+00> : vector<8x32xf32>
    %301 = tpu.matmul %299, %300, %cst_90 {dimension_numbers = #tpu.dot_dimension_numbers<[1], [0], [0], [1], [0, 0, 1, 1], [], []>} : vector<8x128xbf16>, vector<128x32xbf16>, vector<8x32xf32> -> vector<8x32xf32>
    %302 = vector.broadcast %260 : vector<1x32xf32> to vector<8x32xf32>
    %303 = arith.addf %301, %302 : vector<8x32xf32>
    %304 = arith.addf %256, %303 : vector<8x32xf32>
    %305 = vector.extract_strided_slice %0 {offsets = [11, 0], sizes = [1, 32], strides = [1, 1]} : vector<13x128xf32> to vector<1x32xf32>
    %306 = vector.extract_strided_slice %0 {offsets = [12, 0], sizes = [1, 32], strides = [1, 1]} : vector<13x128xf32> to vector<1x32xf32>
    %cst_91 = arith.constant dense<0.000000e+00> : vector<8xf32>
    %307 = vector.multi_reduction <add>, %304, %cst_91 [1] : vector<8x32xf32> to vector<8xf32>
    %308 = vector.shape_cast %307 : vector<8xf32> to vector<8x1xf32>
    %cst_92 = arith.constant 3.200000e+01 : f32
    %309 = vector.broadcast %cst_92 : f32 to vector<8x1xf32>
    %310 = arith.divf %308, %309 : vector<8x1xf32>
    %311 = vector.broadcast %310 : vector<8x1xf32> to vector<8x32xf32>
    %312 = arith.subf %304, %311 : vector<8x32xf32>
    %313 = arith.mulf %312, %312 : vector<8x32xf32>
    %cst_93 = arith.constant dense<0.000000e+00> : vector<8xf32>
    %314 = vector.multi_reduction <add>, %313, %cst_93 [1] : vector<8x32xf32> to vector<8xf32>
    %315 = vector.shape_cast %314 : vector<8xf32> to vector<8x1xf32>
    %cst_94 = arith.constant 3.200000e+01 : f32
    %316 = vector.broadcast %cst_94 : f32 to vector<8x1xf32>
    %317 = arith.divf %315, %316 : vector<8x1xf32>
    %cst_95 = arith.constant 9.99999974E-6 : f32
    %318 = vector.broadcast %cst_95 : f32 to vector<8x1xf32>
    %319 = arith.addf %317, %318 : vector<8x1xf32>
    %320 = math.rsqrt %319 : vector<8x1xf32>
    %321 = vector.broadcast %320 : vector<8x1xf32> to vector<8x32xf32>
    %322 = arith.mulf %312, %321 : vector<8x32xf32>
    %323 = vector.broadcast %305 : vector<1x32xf32> to vector<8x32xf32>
    %324 = arith.mulf %322, %323 : vector<8x32xf32>
    %325 = vector.broadcast %306 : vector<1x32xf32> to vector<8x32xf32>
    %326 = arith.addf %324, %325 : vector<8x32xf32>
    %327 = arith.truncf %326 : vector<8x32xf32> to vector<8x32xbf16>
    %c0_96 = arith.constant 0 : index
    %c0_97 = arith.constant 0 : index
    %c0_98 = arith.constant 0 : index
    %328 = vector.load %arg9[%c0_96, %c0_97, %c0_98] : memref<1x8x32xbf16, #tpu.memory_space<vmem>>, vector<1x8x32xbf16>
    %329 = vector.shape_cast %328 : vector<1x8x32xbf16> to vector<8x32xbf16>
    %330 = vector.shape_cast %327 : vector<8x32xbf16> to vector<1x8x32xbf16>
    tpu.vector_store %arg9[%c0_96, %c0_97, %c0_98], %330 {strides = array<i32>} : memref<1x8x32xbf16, #tpu.memory_space<vmem>>, vector<1x8x32xbf16>,
    return
  }
  func.func @transform_0(%arg0: i32) -> (i32, i32, i32) {
    %c0_i32 = arith.constant 0 : i32
    %c0_i32_0 = arith.constant 0 : i32
    %c0_i32_1 = arith.constant 0 : i32
    return %arg0, %c0_i32, %c0_i32_0 : i32, i32, i32
  }
  func.func @transform_1(%arg0: i32) -> (i32, i32, i32) {
    %c0_i32 = arith.constant 0 : i32
    %c0_i32_0 = arith.constant 0 : i32
    %c0_i32_1 = arith.constant 0 : i32
    return %arg0, %c0_i32, %c0_i32_0 : i32, i32, i32
  }
  func.func @transform_2(%arg0: i32) -> (i32, i32) {
    %c0_i32 = arith.constant 0 : i32
    %c0_i32_0 = arith.constant 0 : i32
    %c0_i32_1 = arith.constant 0 : i32
    return %c0_i32, %c0_i32_0 : i32, i32
  }
  func.func @transform_3(%arg0: i32) -> (i32, i32) {
    %c0_i32 = arith.constant 0 : i32
    %c0_i32_0 = arith.constant 0 : i32
    %c0_i32_1 = arith.constant 0 : i32
    return %c0_i32, %c0_i32_0 : i32, i32
  }
  func.func @transform_4(%arg0: i32) -> (i32, i32) {
    %c0_i32 = arith.constant 0 : i32
    %c0_i32_0 = arith.constant 0 : i32
    %c0_i32_1 = arith.constant 0 : i32
    return %c0_i32, %c0_i32_0 : i32, i32
  }
  func.func @transform_5(%arg0: i32) -> (i32, i32) {
    %c0_i32 = arith.constant 0 : i32
    %c0_i32_0 = arith.constant 0 : i32
    %c0_i32_1 = arith.constant 0 : i32
    return %c0_i32, %c0_i32_0 : i32, i32
  }
  func.func @transform_6(%arg0: i32) -> (i32, i32) {
    %c0_i32 = arith.constant 0 : i32
    %c0_i32_0 = arith.constant 0 : i32
    %c0_i32_1 = arith.constant 0 : i32
    return %c0_i32, %c0_i32_0 : i32, i32
  }
  func.func @transform_7(%arg0: i32) -> (i32, i32) {
    %c0_i32 = arith.constant 0 : i32
    %c0_i32_0 = arith.constant 0 : i32
    %c0_i32_1 = arith.constant 0 : i32
    return %c0_i32, %c0_i32_0 : i32, i32
  }
  func.func @transform_8(%arg0: i32) -> (i32, i32, i32) {
    %c0_i32 = arith.constant 0 : i32
    %c0_i32_0 = arith.constant 0 : i32
    %c0_i32_1 = arith.constant 0 : i32
    return %arg0, %c0_i32, %c0_i32_0 : i32, i32, i32
  }
}

module attributes {stable_mosaic.version = 11 : i64} {
  func.func @_perceiver_layer_kernel(%arg0: i32, %arg1: memref<1x4x32xbf16, #tpu.memory_space<vmem>>, %arg2: memref<1x8x32xbf16, #tpu.memory_space<vmem>>, %arg3: memref<13x128xf32, #tpu.memory_space<vmem>>, %arg4: memref<32x32xbf16, #tpu.memory_space<vmem>>, %arg5: memref<32x64xbf16, #tpu.memory_space<vmem>>, %arg6: memref<32x32xbf16, #tpu.memory_space<vmem>>, %arg7: memref<32x128xbf16, #tpu.memory_space<vmem>>, %arg8: memref<128x32xbf16, #tpu.memory_space<vmem>>, %arg9: memref<1x8x32xbf16, #tpu.memory_space<vmem>>) attributes {dimension_semantics = [#tpu.dimension_semantics<parallel>], iteration_bounds = array<i64: 2>, scalar_prefetch = 0 : i64, scratch_operands = 0 : i64, tpu.core_type = #tpu.core_type<tc>, window_params = [{transform_indices = @transform_0, window_bounds = array<i64: 1, 4, 32>}, {transform_indices = @transform_1, window_bounds = array<i64: 1, 8, 32>}, {pipeline_mode = #tpu.pipeline_mode<synchronous>, transform_indices = @transform_2, window_bounds = array<i64: 13, 128>}, {pipeline_mode = #tpu.pipeline_mode<synchronous>, transform_indices = @transform_3, window_bounds = array<i64: 32, 32>}, {pipeline_mode = #tpu.pipeline_mode<synchronous>, transform_indices = @transform_4, window_bounds = array<i64: 32, 64>}, {pipeline_mode = #tpu.pipeline_mode<synchronous>, transform_indices = @transform_5, window_bounds = array<i64: 32, 32>}, {pipeline_mode = #tpu.pipeline_mode<synchronous>, transform_indices = @transform_6, window_bounds = array<i64: 32, 128>}, {pipeline_mode = #tpu.pipeline_mode<synchronous>, transform_indices = @transform_7, window_bounds = array<i64: 128, 32>}, {transform_indices = @transform_8, window_bounds = array<i64: 1, 8, 32>}]} {
    %c0 = arith.constant 0 : index
    %c0_0 = arith.constant 0 : index
    %0 = vector.load %arg3[%c0, %c0_0] : memref<13x128xf32, #tpu.memory_space<vmem>>, vector<13x128xf32>
    %c0_1 = arith.constant 0 : index
    %c0_2 = arith.constant 0 : index
    %c0_3 = arith.constant 0 : index
    %1 = vector.load %arg1[%c0_1, %c0_2, %c0_3] : memref<1x4x32xbf16, #tpu.memory_space<vmem>>, vector<1x4x32xbf16>
    %2 = vector.shape_cast %1 : vector<1x4x32xbf16> to vector<4x32xbf16>
    %3 = arith.extf %2 : vector<4x32xbf16> to vector<4x32xf32>
    %c0_4 = arith.constant 0 : index
    %c0_5 = arith.constant 0 : index
    %c0_6 = arith.constant 0 : index
    %4 = vector.load %arg2[%c0_4, %c0_5, %c0_6] : memref<1x8x32xbf16, #tpu.memory_space<vmem>>, vector<1x8x32xbf16>
    %5 = vector.shape_cast %4 : vector<1x8x32xbf16> to vector<8x32xbf16>
    %6 = arith.extf %5 : vector<8x32xbf16> to vector<8x32xf32>
    %7 = vector.extract_strided_slice %0 {offsets = [0, 0], sizes = [1, 32], strides = [1, 1]} : vector<13x128xf32> to vector<1x32xf32>
    %8 = vector.extract_strided_slice %0 {offsets = [1, 0], sizes = [1, 32], strides = [1, 1]} : vector<13x128xf32> to vector<1x32xf32>
    %cst = arith.constant dense<0.000000e+00> : vector<4xf32>
    %9 = vector.multi_reduction <add>, %3, %cst [1] : vector<4x32xf32> to vector<4xf32>
    %10 = vector.shape_cast %9 : vector<4xf32> to vector<4x1xf32>
    %cst_7 = arith.constant 3.200000e+01 : f32
    %11 = vector.broadcast %cst_7 : f32 to vector<4x1xf32>
    %12 = arith.divf %10, %11 : vector<4x1xf32>
    %13 = vector.broadcast %12 : vector<4x1xf32> to vector<4x32xf32>
    %14 = arith.subf %3, %13 : vector<4x32xf32>
    %15 = arith.mulf %14, %14 : vector<4x32xf32>
    %cst_8 = arith.constant dense<0.000000e+00> : vector<4xf32>
    %16 = vector.multi_reduction <add>, %15, %cst_8 [1] : vector<4x32xf32> to vector<4xf32>
    %17 = vector.shape_cast %16 : vector<4xf32> to vector<4x1xf32>
    %cst_9 = arith.constant 3.200000e+01 : f32
    %18 = vector.broadcast %cst_9 : f32 to vector<4x1xf32>
    %19 = arith.divf %17, %18 : vector<4x1xf32>
    %cst_10 = arith.constant 9.99999974E-6 : f32
    %20 = vector.broadcast %cst_10 : f32 to vector<4x1xf32>
    %21 = arith.addf %19, %20 : vector<4x1xf32>
    %22 = math.rsqrt %21 : vector<4x1xf32>
    %23 = vector.broadcast %22 : vector<4x1xf32> to vector<4x32xf32>
    %24 = arith.mulf %14, %23 : vector<4x32xf32>
    %25 = vector.broadcast %7 : vector<1x32xf32> to vector<4x32xf32>
    %26 = arith.mulf %24, %25 : vector<4x32xf32>
    %27 = vector.broadcast %8 : vector<1x32xf32> to vector<4x32xf32>
    %28 = arith.addf %26, %27 : vector<4x32xf32>
    %29 = vector.extract_strided_slice %0 {offsets = [2, 0], sizes = [1, 32], strides = [1, 1]} : vector<13x128xf32> to vector<1x32xf32>
    %30 = vector.extract_strided_slice %0 {offsets = [3, 0], sizes = [1, 32], strides = [1, 1]} : vector<13x128xf32> to vector<1x32xf32>
    %cst_11 = arith.constant dense<0.000000e+00> : vector<8xf32>
    %31 = vector.multi_reduction <add>, %6, %cst_11 [1] : vector<8x32xf32> to vector<8xf32>
    %32 = vector.shape_cast %31 : vector<8xf32> to vector<8x1xf32>
    %cst_12 = arith.constant 3.200000e+01 : f32
    %33 = vector.broadcast %cst_12 : f32 to vector<8x1xf32>
    %34 = arith.divf %32, %33 : vector<8x1xf32>
    %35 = vector.broadcast %34 : vector<8x1xf32> to vector<8x32xf32>
    %36 = arith.subf %6, %35 : vector<8x32xf32>
    %37 = arith.mulf %36, %36 : vector<8x32xf32>
    %cst_13 = arith.constant dense<0.000000e+00> : vector<8xf32>
    %38 = vector.multi_reduction <add>, %37, %cst_13 [1] : vector<8x32xf32> to vector<8xf32>
    %39 = vector.shape_cast %38 : vector<8xf32> to vector<8x1xf32>
    %cst_14 = arith.constant 3.200000e+01 : f32
    %40 = vector.broadcast %cst_14 : f32 to vector<8x1xf32>
    %41 = arith.divf %39, %40 : vector<8x1xf32>
    %cst_15 = arith.constant 9.99999974E-6 : f32
    %42 = vector.broadcast %cst_15 : f32 to vector<8x1xf32>
    %43 = arith.addf %41, %42 : vector<8x1xf32>
    %44 = math.rsqrt %43 : vector<8x1xf32>
    %45 = vector.broadcast %44 : vector<8x1xf32> to vector<8x32xf32>
    %46 = arith.mulf %36, %45 : vector<8x32xf32>
    %47 = vector.broadcast %29 : vector<1x32xf32> to vector<8x32xf32>
    %48 = arith.mulf %46, %47 : vector<8x32xf32>
    %49 = vector.broadcast %30 : vector<1x32xf32> to vector<8x32xf32>
    %50 = arith.addf %48, %49 : vector<8x32xf32>
    %51 = arith.truncf %50 : vector<8x32xf32> to vector<8x32xbf16>
    %c0_16 = arith.constant 0 : index
    %c0_17 = arith.constant 0 : index
    %52 = vector.load %arg4[%c0_16, %c0_17] : memref<32x32xbf16, #tpu.memory_space<vmem>>, vector<32x32xbf16>
    %cst_18 = arith.constant dense<0.000000e+00> : vector<8x32xf32>
    %53 = tpu.matmul %51, %52, %cst_18 {dimension_numbers = #tpu.dot_dimension_numbers<[1], [0], [0], [1], [0, 0, 1, 1], [], []>} : vector<8x32xbf16>, vector<32x32xbf16>, vector<8x32xf32> -> vector<8x32xf32>
    %54 = vector.extract_strided_slice %0 {offsets = [4, 0], sizes = [1, 32], strides = [1, 1]} : vector<13x128xf32> to vector<1x32xf32>
    %55 = vector.broadcast %54 : vector<1x32xf32> to vector<8x32xf32>
    %56 = arith.addf %53, %55 : vector<8x32xf32>
    %57 = arith.truncf %28 : vector<4x32xf32> to vector<4x32xbf16>
    %c0_19 = arith.constant 0 : index
    %c0_20 = arith.constant 0 : index
    %58 = vector.load %arg5[%c0_19, %c0_20] : memref<32x64xbf16, #tpu.memory_space<vmem>>, vector<32x64xbf16>
    %cst_21 = arith.constant dense<0.000000e+00> : vector<4x64xf32>
    %59 = tpu.matmul %57, %58, %cst_21 {dimension_numbers = #tpu.dot_dimension_numbers<[1], [0], [0], [1], [0, 0, 1, 1], [], []>} : vector<4x32xbf16>, vector<32x64xbf16>, vector<4x64xf32> -> vector<4x64xf32>
    %60 = vector.extract_strided_slice %0 {offsets = [5, 0], sizes = [1, 64], strides = [1, 1]} : vector<13x128xf32> to vector<1x64xf32>
    %61 = vector.broadcast %60 : vector<1x64xf32> to vector<4x64xf32>
    %62 = arith.addf %59, %61 : vector<4x64xf32>
    %63 = arith.truncf %50 : vector<8x32xf32> to vector<8x32xbf16>
    %c0_22 = arith.constant 0 : index
    %c0_23 = arith.constant 0 : index
    %64 = vector.load %arg5[%c0_22, %c0_23] : memref<32x64xbf16, #tpu.memory_space<vmem>>, vector<32x64xbf16>
    %cst_24 = arith.constant dense<0.000000e+00> : vector<8x64xf32>
    %65 = tpu.matmul %63, %64, %cst_24 {dimension_numbers = #tpu.dot_dimension_numbers<[1], [0], [0], [1], [0, 0, 1, 1], [], []>} : vector<8x32xbf16>, vector<32x64xbf16>, vector<8x64xf32> -> vector<8x64xf32>
    %66 = vector.extract_strided_slice %0 {offsets = [5, 0], sizes = [1, 64], strides = [1, 1]} : vector<13x128xf32> to vector<1x64xf32>
    %67 = vector.broadcast %66 : vector<1x64xf32> to vector<8x64xf32>
    %68 = arith.addf %65, %67 : vector<8x64xf32>
    %69 = vector.extract_strided_slice %62 {offsets = [0, 0], sizes = [4, 32], strides = [1, 1]} : vector<4x64xf32> to vector<4x32xf32>
    %70 = vector.extract_strided_slice %62 {offsets = [0, 32], sizes = [4, 32], strides = [1, 1]} : vector<4x64xf32> to vector<4x32xf32>
    %71 = vector.extract_strided_slice %68 {offsets = [0, 0], sizes = [8, 32], strides = [1, 1]} : vector<8x64xf32> to vector<8x32xf32>
    %72 = vector.extract_strided_slice %68 {offsets = [0, 32], sizes = [8, 32], strides = [1, 1]} : vector<8x64xf32> to vector<8x32xf32>
    %73 = vector.extract_strided_slice %56 {offsets = [0, 0], sizes = [8, 8], strides = [1, 1]} : vector<8x32xf32> to vector<8x8xf32>
    %74 = arith.truncf %73 : vector<8x8xf32> to vector<8x8xbf16>
    %75 = vector.extract_strided_slice %69 {offsets = [0, 0], sizes = [4, 8], strides = [1, 1]} : vector<4x32xf32> to vector<4x8xf32>
    %76 = arith.truncf %75 : vector<4x8xf32> to vector<4x8xbf16>
    %cst_25 = arith.constant dense<0.000000e+00> : vector<8x4xf32>
    %77 = tpu.matmul %74, %76, %cst_25 {dimension_numbers = #tpu.dot_dimension_numbers<[1], [1], [0], [0], [0, 0, 1, 0], [], []>} : vector<8x8xbf16>, vector<4x8xbf16>, vector<8x4xf32> -> vector<8x4xf32>
    %cst_26 = arith.constant 0.353553385 : f32
    %78 = vector.broadcast %cst_26 : f32 to vector<8x4xf32>
    %79 = arith.mulf %77, %78 : vector<8x4xf32>
    %80 = vector.extract_strided_slice %71 {offsets = [0, 0], sizes = [8, 8], strides = [1, 1]} : vector<8x32xf32> to vector<8x8xf32>
    %81 = arith.truncf %80 : vector<8x8xf32> to vector<8x8xbf16>
    %cst_27 = arith.constant dense<0.000000e+00> : vector<8x8xf32>
    %82 = tpu.matmul %74, %81, %cst_27 {dimension_numbers = #tpu.dot_dimension_numbers<[1], [1], [0], [0], [0, 0, 1, 0], [], []>} : vector<8x8xbf16>, vector<8x8xbf16>, vector<8x8xf32> -> vector<8x8xf32>
    %cst_28 = arith.constant 0.353553385 : f32
    %83 = vector.broadcast %cst_28 : f32 to vector<8x8xf32>
    %84 = arith.mulf %82, %83 : vector<8x8xf32>
    %cst_29 = arith.constant dense<0xFF800000> : vector<8xf32>
    %85 = vector.multi_reduction <maximumf>, %79, %cst_29 [1] : vector<8x4xf32> to vector<8xf32>
    %86 = vector.shape_cast %85 : vector<8xf32> to vector<8x1xf32>
    %cst_30 = arith.constant dense<0xFF800000> : vector<8xf32>
    %87 = vector.multi_reduction <maximumf>, %84, %cst_30 [1] : vector<8x8xf32> to vector<8xf32>
    %88 = vector.shape_cast %87 : vector<8xf32> to vector<8x1xf32>
    %89 = arith.maximumf %86, %88 : vector<8x1xf32>
    %cst_31 = arith.constant 0.000000e+00 : f32
    %90 = vector.broadcast %cst_31 : f32 to vector<8x8xf32>
    %cst_32 = arith.constant 0.000000e+00 : f32
    %91 = vector.broadcast %cst_32 : f32 to vector<8x1xf32>
    %92 = vector.broadcast %89 : vector<8x1xf32> to vector<8x4xf32>
    %93 = arith.subf %79, %92 : vector<8x4xf32>
    %94 = math.exp %93 : vector<8x4xf32>
    %cst_33 = arith.constant dense<0.000000e+00> : vector<8xf32>
    %95 = vector.multi_reduction <add>, %94, %cst_33 [1] : vector<8x4xf32> to vector<8xf32>
    %96 = vector.shape_cast %95 : vector<8xf32> to vector<8x1xf32>
    %97 = arith.addf %91, %96 : vector<8x1xf32>
    %98 = arith.truncf %94 : vector<8x4xf32> to vector<8x4xbf16>
    %99 = vector.extract_strided_slice %70 {offsets = [0, 0], sizes = [4, 8], strides = [1, 1]} : vector<4x32xf32> to vector<4x8xf32>
    %100 = arith.truncf %99 : vector<4x8xf32> to vector<4x8xbf16>
    %cst_34 = arith.constant dense<0.000000e+00> : vector<8x8xf32>
    %101 = tpu.matmul %98, %100, %cst_34 {dimension_numbers = #tpu.dot_dimension_numbers<[1], [0], [0], [1], [0, 0, 1, 1], [], []>} : vector<8x4xbf16>, vector<4x8xbf16>, vector<8x8xf32> -> vector<8x8xf32>
    %102 = arith.addf %90, %101 : vector<8x8xf32>
    %103 = vector.broadcast %89 : vector<8x1xf32> to vector<8x8xf32>
    %104 = arith.subf %84, %103 : vector<8x8xf32>
    %105 = math.exp %104 : vector<8x8xf32>
    %cst_35 = arith.constant dense<0.000000e+00> : vector<8xf32>
    %106 = vector.multi_reduction <add>, %105, %cst_35 [1] : vector<8x8xf32> to vector<8xf32>
    %107 = vector.shape_cast %106 : vector<8xf32> to vector<8x1xf32>
    %108 = arith.addf %97, %107 : vector<8x1xf32>
    %109 = arith.truncf %105 : vector<8x8xf32> to vector<8x8xbf16>
    %110 = vector.extract_strided_slice %72 {offsets = [0, 0], sizes = [8, 8], strides = [1, 1]} : vector<8x32xf32> to vector<8x8xf32>
    %111 = arith.truncf %110 : vector<8x8xf32> to vector<8x8xbf16>
    %cst_36 = arith.constant dense<0.000000e+00> : vector<8x8xf32>
    %112 = tpu.matmul %109, %111, %cst_36 {dimension_numbers = #tpu.dot_dimension_numbers<[1], [0], [0], [1], [0, 0, 1, 1], [], []>} : vector<8x8xbf16>, vector<8x8xbf16>, vector<8x8xf32> -> vector<8x8xf32>
    %113 = arith.addf %102, %112 : vector<8x8xf32>
    %114 = tpu.reciprocal %108 {approx = true} : vector<8x1xf32> -> vector<8x1xf32>
    %115 = vector.broadcast %114 : vector<8x1xf32> to vector<8x8xf32>
    %116 = arith.mulf %113, %115 : vector<8x8xf32>
    %117 = vector.extract_strided_slice %56 {offsets = [0, 8], sizes = [8, 8], strides = [1, 1]} : vector<8x32xf32> to vector<8x8xf32>
    %118 = arith.truncf %117 : vector<8x8xf32> to vector<8x8xbf16>
    %119 = vector.extract_strided_slice %69 {offsets = [0, 8], sizes = [4, 8], strides = [1, 1]} : vector<4x32xf32> to vector<4x8xf32>
    %120 = arith.truncf %119 : vector<4x8xf32> to vector<4x8xbf16>
    %cst_37 = arith.constant dense<0.000000e+00> : vector<8x4xf32>
    %121 = tpu.matmul %118, %120, %cst_37 {dimension_numbers = #tpu.dot_dimension_numbers<[1], [1], [0], [0], [0, 0, 1, 0], [], []>} : vector<8x8xbf16>, vector<4x8xbf16>, vector<8x4xf32> -> vector<8x4xf32>
    %cst_38 = arith.constant 0.353553385 : f32
    %122 = vector.broadcast %cst_38 : f32 to vector<8x4xf32>
    %123 = arith.mulf %121, %122 : vector<8x4xf32>
    %124 = vector.extract_strided_slice %71 {offsets = [0, 8], sizes = [8, 8], strides = [1, 1]} : vector<8x32xf32> to vector<8x8xf32>
    %125 = arith.truncf %124 : vector<8x8xf32> to vector<8x8xbf16>
    %cst_39 = arith.constant dense<0.000000e+00> : vector<8x8xf32>
    %126 = tpu.matmul %118, %125, %cst_39 {dimension_numbers = #tpu.dot_dimension_numbers<[1], [1], [0], [0], [0, 0, 1, 0], [], []>} : vector<8x8xbf16>, vector<8x8xbf16>, vector<8x8xf32> -> vector<8x8xf32>
    %cst_40 = arith.constant 0.353553385 : f32
    %127 = vector.broadcast %cst_40 : f32 to vector<8x8xf32>
    %128 = arith.mulf %126, %127 : vector<8x8xf32>
    %cst_41 = arith.constant dense<0xFF800000> : vector<8xf32>
    %129 = vector.multi_reduction <maximumf>, %123, %cst_41 [1] : vector<8x4xf32> to vector<8xf32>
    %130 = vector.shape_cast %129 : vector<8xf32> to vector<8x1xf32>
    %cst_42 = arith.constant dense<0xFF800000> : vector<8xf32>
    %131 = vector.multi_reduction <maximumf>, %128, %cst_42 [1] : vector<8x8xf32> to vector<8xf32>
    %132 = vector.shape_cast %131 : vector<8xf32> to vector<8x1xf32>
    %133 = arith.maximumf %130, %132 : vector<8x1xf32>
    %cst_43 = arith.constant 0.000000e+00 : f32
    %134 = vector.broadcast %cst_43 : f32 to vector<8x8xf32>
    %cst_44 = arith.constant 0.000000e+00 : f32
    %135 = vector.broadcast %cst_44 : f32 to vector<8x1xf32>
    %136 = vector.broadcast %133 : vector<8x1xf32> to vector<8x4xf32>
    %137 = arith.subf %123, %136 : vector<8x4xf32>
    %138 = math.exp %137 : vector<8x4xf32>
    %cst_45 = arith.constant dense<0.000000e+00> : vector<8xf32>
    %139 = vector.multi_reduction <add>, %138, %cst_45 [1] : vector<8x4xf32> to vector<8xf32>
    %140 = vector.shape_cast %139 : vector<8xf32> to vector<8x1xf32>
    %141 = arith.addf %135, %140 : vector<8x1xf32>
    %142 = arith.truncf %138 : vector<8x4xf32> to vector<8x4xbf16>
    %143 = vector.extract_strided_slice %70 {offsets = [0, 8], sizes = [4, 8], strides = [1, 1]} : vector<4x32xf32> to vector<4x8xf32>
    %144 = arith.truncf %143 : vector<4x8xf32> to vector<4x8xbf16>
    %cst_46 = arith.constant dense<0.000000e+00> : vector<8x8xf32>
    %145 = tpu.matmul %142, %144, %cst_46 {dimension_numbers = #tpu.dot_dimension_numbers<[1], [0], [0], [1], [0, 0, 1, 1], [], []>} : vector<8x4xbf16>, vector<4x8xbf16>, vector<8x8xf32> -> vector<8x8xf32>
    %146 = arith.addf %134, %145 : vector<8x8xf32>
    %147 = vector.broadcast %133 : vector<8x1xf32> to vector<8x8xf32>
    %148 = arith.subf %128, %147 : vector<8x8xf32>
    %149 = math.exp %148 : vector<8x8xf32>
    %cst_47 = arith.constant dense<0.000000e+00> : vector<8xf32>
    %150 = vector.multi_reduction <add>, %149, %cst_47 [1] : vector<8x8xf32> to vector<8xf32>
    %151 = vector.shape_cast %150 : vector<8xf32> to vector<8x1xf32>
    %152 = arith.addf %141, %151 : vector<8x1xf32>
    %153 = arith.truncf %149 : vector<8x8xf32> to vector<8x8xbf16>
    %154 = vector.extract_strided_slice %72 {offsets = [0, 8], sizes = [8, 8], strides = [1, 1]} : vector<8x32xf32> to vector<8x8xf32>
    %155 = arith.truncf %154 : vector<8x8xf32> to vector<8x8xbf16>
    %cst_48 = arith.constant dense<0.000000e+00> : vector<8x8xf32>
    %156 = tpu.matmul %153, %155, %cst_48 {dimension_numbers = #tpu.dot_dimension_numbers<[1], [0], [0], [1], [0, 0, 1, 1], [], []>} : vector<8x8xbf16>, vector<8x8xbf16>, vector<8x8xf32> -> vector<8x8xf32>
    %157 = arith.addf %146, %156 : vector<8x8xf32>
    %158 = tpu.reciprocal %152 {approx = true} : vector<8x1xf32> -> vector<8x1xf32>
    %159 = vector.broadcast %158 : vector<8x1xf32> to vector<8x8xf32>
    %160 = arith.mulf %157, %159 : vector<8x8xf32>
    %161 = vector.extract_strided_slice %56 {offsets = [0, 16], sizes = [8, 8], strides = [1, 1]} : vector<8x32xf32> to vector<8x8xf32>
    %162 = arith.truncf %161 : vector<8x8xf32> to vector<8x8xbf16>
    %163 = vector.extract_strided_slice %69 {offsets = [0, 16], sizes = [4, 8], strides = [1, 1]} : vector<4x32xf32> to vector<4x8xf32>
    %164 = arith.truncf %163 : vector<4x8xf32> to vector<4x8xbf16>
    %cst_49 = arith.constant dense<0.000000e+00> : vector<8x4xf32>
    %165 = tpu.matmul %162, %164, %cst_49 {dimension_numbers = #tpu.dot_dimension_numbers<[1], [1], [0], [0], [0, 0, 1, 0], [], []>} : vector<8x8xbf16>, vector<4x8xbf16>, vector<8x4xf32> -> vector<8x4xf32>
    %cst_50 = arith.constant 0.353553385 : f32
    %166 = vector.broadcast %cst_50 : f32 to vector<8x4xf32>
    %167 = arith.mulf %165, %166 : vector<8x4xf32>
    %168 = vector.extract_strided_slice %71 {offsets = [0, 16], sizes = [8, 8], strides = [1, 1]} : vector<8x32xf32> to vector<8x8xf32>
    %169 = arith.truncf %168 : vector<8x8xf32> to vector<8x8xbf16>
    %cst_51 = arith.constant dense<0.000000e+00> : vector<8x8xf32>
    %170 = tpu.matmul %162, %169, %cst_51 {dimension_numbers = #tpu.dot_dimension_numbers<[1], [1], [0], [0], [0, 0, 1, 0], [], []>} : vector<8x8xbf16>, vector<8x8xbf16>, vector<8x8xf32> -> vector<8x8xf32>
    %cst_52 = arith.constant 0.353553385 : f32
    %171 = vector.broadcast %cst_52 : f32 to vector<8x8xf32>
    %172 = arith.mulf %170, %171 : vector<8x8xf32>
    %cst_53 = arith.constant dense<0xFF800000> : vector<8xf32>
    %173 = vector.multi_reduction <maximumf>, %167, %cst_53 [1] : vector<8x4xf32> to vector<8xf32>
    %174 = vector.shape_cast %173 : vector<8xf32> to vector<8x1xf32>
    %cst_54 = arith.constant dense<0xFF800000> : vector<8xf32>
    %175 = vector.multi_reduction <maximumf>, %172, %cst_54 [1] : vector<8x8xf32> to vector<8xf32>
    %176 = vector.shape_cast %175 : vector<8xf32> to vector<8x1xf32>
    %177 = arith.maximumf %174, %176 : vector<8x1xf32>
    %cst_55 = arith.constant 0.000000e+00 : f32
    %178 = vector.broadcast %cst_55 : f32 to vector<8x8xf32>
    %cst_56 = arith.constant 0.000000e+00 : f32
    %179 = vector.broadcast %cst_56 : f32 to vector<8x1xf32>
    %180 = vector.broadcast %177 : vector<8x1xf32> to vector<8x4xf32>
    %181 = arith.subf %167, %180 : vector<8x4xf32>
    %182 = math.exp %181 : vector<8x4xf32>
    %cst_57 = arith.constant dense<0.000000e+00> : vector<8xf32>
    %183 = vector.multi_reduction <add>, %182, %cst_57 [1] : vector<8x4xf32> to vector<8xf32>
    %184 = vector.shape_cast %183 : vector<8xf32> to vector<8x1xf32>
    %185 = arith.addf %179, %184 : vector<8x1xf32>
    %186 = arith.truncf %182 : vector<8x4xf32> to vector<8x4xbf16>
    %187 = vector.extract_strided_slice %70 {offsets = [0, 16], sizes = [4, 8], strides = [1, 1]} : vector<4x32xf32> to vector<4x8xf32>
    %188 = arith.truncf %187 : vector<4x8xf32> to vector<4x8xbf16>
    %cst_58 = arith.constant dense<0.000000e+00> : vector<8x8xf32>
    %189 = tpu.matmul %186, %188, %cst_58 {dimension_numbers = #tpu.dot_dimension_numbers<[1], [0], [0], [1], [0, 0, 1, 1], [], []>} : vector<8x4xbf16>, vector<4x8xbf16>, vector<8x8xf32> -> vector<8x8xf32>
    %190 = arith.addf %178, %189 : vector<8x8xf32>
    %191 = vector.broadcast %177 : vector<8x1xf32> to vector<8x8xf32>
    %192 = arith.subf %172, %191 : vector<8x8xf32>
    %193 = math.exp %192 : vector<8x8xf32>
    %cst_59 = arith.constant dense<0.000000e+00> : vector<8xf32>
    %194 = vector.multi_reduction <add>, %193, %cst_59 [1] : vector<8x8xf32> to vector<8xf32>
    %195 = vector.shape_cast %194 : vector<8xf32> to vector<8x1xf32>
    %196 = arith.addf %185, %195 : vector<8x1xf32>
    %197 = arith.truncf %193 : vector<8x8xf32> to vector<8x8xbf16>
    %198 = vector.extract_strided_slice %72 {offsets = [0, 16], sizes = [8, 8], strides = [1, 1]} : vector<8x32xf32> to vector<8x8xf32>
    %199 = arith.truncf %198 : vector<8x8xf32> to vector<8x8xbf16>
    %cst_60 = arith.constant dense<0.000000e+00> : vector<8x8xf32>
    %200 = tpu.matmul %197, %199, %cst_60 {dimension_numbers = #tpu.dot_dimension_numbers<[1], [0], [0], [1], [0, 0, 1, 1], [], []>} : vector<8x8xbf16>, vector<8x8xbf16>, vector<8x8xf32> -> vector<8x8xf32>
    %201 = arith.addf %190, %200 : vector<8x8xf32>
    %202 = tpu.reciprocal %196 {approx = true} : vector<8x1xf32> -> vector<8x1xf32>
    %203 = vector.broadcast %202 : vector<8x1xf32> to vector<8x8xf32>
    %204 = arith.mulf %201, %203 : vector<8x8xf32>
    %205 = vector.extract_strided_slice %56 {offsets = [0, 24], sizes = [8, 8], strides = [1, 1]} : vector<8x32xf32> to vector<8x8xf32>
    %206 = arith.truncf %205 : vector<8x8xf32> to vector<8x8xbf16>
    %207 = vector.extract_strided_slice %69 {offsets = [0, 24], sizes = [4, 8], strides = [1, 1]} : vector<4x32xf32> to vector<4x8xf32>
    %208 = arith.truncf %207 : vector<4x8xf32> to vector<4x8xbf16>
    %cst_61 = arith.constant dense<0.000000e+00> : vector<8x4xf32>
    %209 = tpu.matmul %206, %208, %cst_61 {dimension_numbers = #tpu.dot_dimension_numbers<[1], [1], [0], [0], [0, 0, 1, 0], [], []>} : vector<8x8xbf16>, vector<4x8xbf16>, vector<8x4xf32> -> vector<8x4xf32>
    %cst_62 = arith.constant 0.353553385 : f32
    %210 = vector.broadcast %cst_62 : f32 to vector<8x4xf32>
    %211 = arith.mulf %209, %210 : vector<8x4xf32>
    %212 = vector.extract_strided_slice %71 {offsets = [0, 24], sizes = [8, 8], strides = [1, 1]} : vector<8x32xf32> to vector<8x8xf32>
    %213 = arith.truncf %212 : vector<8x8xf32> to vector<8x8xbf16>
    %cst_63 = arith.constant dense<0.000000e+00> : vector<8x8xf32>
    %214 = tpu.matmul %206, %213, %cst_63 {dimension_numbers = #tpu.dot_dimension_numbers<[1], [1], [0], [0], [0, 0, 1, 0], [], []>} : vector<8x8xbf16>, vector<8x8xbf16>, vector<8x8xf32> -> vector<8x8xf32>
    %cst_64 = arith.constant 0.353553385 : f32
    %215 = vector.broadcast %cst_64 : f32 to vector<8x8xf32>
    %216 = arith.mulf %214, %215 : vector<8x8xf32>
    %cst_65 = arith.constant dense<0xFF800000> : vector<8xf32>
    %217 = vector.multi_reduction <maximumf>, %211, %cst_65 [1] : vector<8x4xf32> to vector<8xf32>
    %218 = vector.shape_cast %217 : vector<8xf32> to vector<8x1xf32>
    %cst_66 = arith.constant dense<0xFF800000> : vector<8xf32>
    %219 = vector.multi_reduction <maximumf>, %216, %cst_66 [1] : vector<8x8xf32> to vector<8xf32>
    %220 = vector.shape_cast %219 : vector<8xf32> to vector<8x1xf32>
    %221 = arith.maximumf %218, %220 : vector<8x1xf32>
    %cst_67 = arith.constant 0.000000e+00 : f32
    %222 = vector.broadcast %cst_67 : f32 to vector<8x8xf32>
    %cst_68 = arith.constant 0.000000e+00 : f32
    %223 = vector.broadcast %cst_68 : f32 to vector<8x1xf32>
    %224 = vector.broadcast %221 : vector<8x1xf32> to vector<8x4xf32>
    %225 = arith.subf %211, %224 : vector<8x4xf32>
    %226 = math.exp %225 : vector<8x4xf32>
    %cst_69 = arith.constant dense<0.000000e+00> : vector<8xf32>
    %227 = vector.multi_reduction <add>, %226, %cst_69 [1] : vector<8x4xf32> to vector<8xf32>
    %228 = vector.shape_cast %227 : vector<8xf32> to vector<8x1xf32>
    %229 = arith.addf %223, %228 : vector<8x1xf32>
    %230 = arith.truncf %226 : vector<8x4xf32> to vector<8x4xbf16>
    %231 = vector.extract_strided_slice %70 {offsets = [0, 24], sizes = [4, 8], strides = [1, 1]} : vector<4x32xf32> to vector<4x8xf32>
    %232 = arith.truncf %231 : vector<4x8xf32> to vector<4x8xbf16>
    %cst_70 = arith.constant dense<0.000000e+00> : vector<8x8xf32>
    %233 = tpu.matmul %230, %232, %cst_70 {dimension_numbers = #tpu.dot_dimension_numbers<[1], [0], [0], [1], [0, 0, 1, 1], [], []>} : vector<8x4xbf16>, vector<4x8xbf16>, vector<8x8xf32> -> vector<8x8xf32>
    %234 = arith.addf %222, %233 : vector<8x8xf32>
    %235 = vector.broadcast %221 : vector<8x1xf32> to vector<8x8xf32>
    %236 = arith.subf %216, %235 : vector<8x8xf32>
    %237 = math.exp %236 : vector<8x8xf32>
    %cst_71 = arith.constant dense<0.000000e+00> : vector<8xf32>
    %238 = vector.multi_reduction <add>, %237, %cst_71 [1] : vector<8x8xf32> to vector<8xf32>
    %239 = vector.shape_cast %238 : vector<8xf32> to vector<8x1xf32>
    %240 = arith.addf %229, %239 : vector<8x1xf32>
    %241 = arith.truncf %237 : vector<8x8xf32> to vector<8x8xbf16>
    %242 = vector.extract_strided_slice %72 {offsets = [0, 24], sizes = [8, 8], strides = [1, 1]} : vector<8x32xf32> to vector<8x8xf32>
    %243 = arith.truncf %242 : vector<8x8xf32> to vector<8x8xbf16>
    %cst_72 = arith.constant dense<0.000000e+00> : vector<8x8xf32>
    %244 = tpu.matmul %241, %243, %cst_72 {dimension_numbers = #tpu.dot_dimension_numbers<[1], [0], [0], [1], [0, 0, 1, 1], [], []>} : vector<8x8xbf16>, vector<8x8xbf16>, vector<8x8xf32> -> vector<8x8xf32>
    %245 = arith.addf %234, %244 : vector<8x8xf32>
    %246 = tpu.reciprocal %240 {approx = true} : vector<8x1xf32> -> vector<8x1xf32>
    %247 = vector.broadcast %246 : vector<8x1xf32> to vector<8x8xf32>
    %248 = arith.mulf %245, %247 : vector<8x8xf32>
    %249 = tpu.concatenate %116, %160, %204, %248 in 1 : vector<8x8xf32>, vector<8x8xf32>, vector<8x8xf32>, vector<8x8xf32> -> vector<8x32xf32>
    %250 = arith.truncf %249 : vector<8x32xf32> to vector<8x32xbf16>
    %c0_73 = arith.constant 0 : index
    %c0_74 = arith.constant 0 : index
    %251 = vector.load %arg6[%c0_73, %c0_74] : memref<32x32xbf16, #tpu.memory_space<vmem>>, vector<32x32xbf16>
    %cst_75 = arith.constant dense<0.000000e+00> : vector<8x32xf32>
    %252 = tpu.matmul %250, %251, %cst_75 {dimension_numbers = #tpu.dot_dimension_numbers<[1], [0], [0], [1], [0, 0, 1, 1], [], []>} : vector<8x32xbf16>, vector<32x32xbf16>, vector<8x32xf32> -> vector<8x32xf32>
    %253 = arith.addf %6, %252 : vector<8x32xf32>
    %254 = vector.extract_strided_slice %0 {offsets = [6, 0], sizes = [1, 32], strides = [1, 1]} : vector<13x128xf32> to vector<1x32xf32>
    %255 = vector.broadcast %254 : vector<1x32xf32> to vector<8x32xf32>
    %256 = arith.addf %253, %255 : vector<8x32xf32>
    %257 = vector.extract_strided_slice %0 {offsets = [7, 0], sizes = [1, 32], strides = [1, 1]} : vector<13x128xf32> to vector<1x32xf32>
    %258 = vector.extract_strided_slice %0 {offsets = [8, 0], sizes = [1, 32], strides = [1, 1]} : vector<13x128xf32> to vector<1x32xf32>
    %259 = vector.extract_strided_slice %0 {offsets = [9, 0], sizes = [1, 128], strides = [1, 1]} : vector<13x128xf32> to vector<1x128xf32>
    %260 = vector.extract_strided_slice %0 {offsets = [10, 0], sizes = [1, 32], strides = [1, 1]} : vector<13x128xf32> to vector<1x32xf32>
    %cst_76 = arith.constant dense<0.000000e+00> : vector<8xf32>
    %261 = vector.multi_reduction <add>, %256, %cst_76 [1] : vector<8x32xf32> to vector<8xf32>
    %262 = vector.shape_cast %261 : vector<8xf32> to vector<8x1xf32>
    %cst_77 = arith.constant 3.200000e+01 : f32
    %263 = vector.broadcast %cst_77 : f32 to vector<8x1xf32>
    %264 = arith.divf %262, %263 : vector<8x1xf32>
    %265 = vector.broadcast %264 : vector<8x1xf32> to vector<8x32xf32>
    %266 = arith.subf %256, %265 : vector<8x32xf32>
    %267 = arith.mulf %266, %266 : vector<8x32xf32>
    %cst_78 = arith.constant dense<0.000000e+00> : vector<8xf32>
    %268 = vector.multi_reduction <add>, %267, %cst_78 [1] : vector<8x32xf32> to vector<8xf32>
    %269 = vector.shape_cast %268 : vector<8xf32> to vector<8x1xf32>
    %cst_79 = arith.constant 3.200000e+01 : f32
    %270 = vector.broadcast %cst_79 : f32 to vector<8x1xf32>
    %271 = arith.divf %269, %270 : vector<8x1xf32>
    %cst_80 = arith.constant 9.99999974E-6 : f32
    %272 = vector.broadcast %cst_80 : f32 to vector<8x1xf32>
    %273 = arith.addf %271, %272 : vector<8x1xf32>
    %274 = math.rsqrt %273 : vector<8x1xf32>
    %275 = vector.broadcast %274 : vector<8x1xf32> to vector<8x32xf32>
    %276 = arith.mulf %266, %275 : vector<8x32xf32>
    %277 = vector.broadcast %257 : vector<1x32xf32> to vector<8x32xf32>
    %278 = arith.mulf %276, %277 : vector<8x32xf32>
    %279 = vector.broadcast %258 : vector<1x32xf32> to vector<8x32xf32>
    %280 = arith.addf %278, %279 : vector<8x32xf32>
    %281 = arith.truncf %280 : vector<8x32xf32> to vector<8x32xbf16>
    %c0_81 = arith.constant 0 : index
    %c0_82 = arith.constant 0 : index
    %282 = vector.load %arg7[%c0_81, %c0_82] : memref<32x128xbf16, #tpu.memory_space<vmem>>, vector<32x128xbf16>
    %cst_83 = arith.constant dense<0.000000e+00> : vector<8x128xf32>
    %283 = tpu.matmul %281, %282, %cst_83 {dimension_numbers = #tpu.dot_dimension_numbers<[1], [0], [0], [1], [0, 0, 1, 1], [], []>} : vector<8x32xbf16>, vector<32x128xbf16>, vector<8x128xf32> -> vector<8x128xf32>
    %284 = vector.broadcast %259 : vector<1x128xf32> to vector<8x128xf32>
    %285 = arith.addf %283, %284 : vector<8x128xf32>
    %286 = arith.mulf %285, %285 : vector<8x128xf32>
    %287 = arith.mulf %285, %286 : vector<8x128xf32>
    %cst_84 = arith.constant 4.471500e-02 : f32
    %288 = vector.broadcast %cst_84 : f32 to vector<8x128xf32>
    %289 = arith.mulf %288, %287 : vector<8x128xf32>
    %290 = arith.addf %285, %289 : vector<8x128xf32>
    %cst_85 = arith.constant 0.797884583 : f32
    %291 = vector.broadcast %cst_85 : f32 to vector<8x128xf32>
    %292 = arith.mulf %291, %290 : vector<8x128xf32>
    %293 = math.tanh %292 : vector<8x128xf32>
    %cst_86 = arith.constant 1.000000e+00 : f32
    %294 = vector.broadcast %cst_86 : f32 to vector<8x128xf32>
    %295 = arith.addf %294, %293 : vector<8x128xf32>
    %cst_87 = arith.constant 5.000000e-01 : f32
    %296 = vector.broadcast %cst_87 : f32 to vector<8x128xf32>
    %297 = arith.mulf %296, %295 : vector<8x128xf32>
    %298 = arith.mulf %285, %297 : vector<8x128xf32>
    %299 = arith.truncf %298 : vector<8x128xf32> to vector<8x128xbf16>
    %c0_88 = arith.constant 0 : index
    %c0_89 = arith.constant 0 : index
    %300 = vector.load %arg8[%c0_88, %c0_89] : memref<128x32xbf16, #tpu.memory_space<vmem>>, vector<128x32xbf16>
    %cst_90 = arith.constant dense<0.000000e+00> : vector<8x32xf32>
    %301 = tpu.matmul %299, %300, %cst_90 {dimension_numbers = #tpu.dot_dimension_numbers<[1], [0], [0], [1], [0, 0, 1, 1], [], []>} : vector<8x128xbf16>, vector<128x32xbf16>, vector<8x32xf32> -> vector<8x32xf32>
    %302 = vector.broadcast %260 : vector<1x32xf32> to vector<8x32xf32>
    %303 = arith.addf %301, %302 : vector<8x32xf32>
    %304 = arith.addf %256, %303 : vector<8x32xf32>
    %305 = arith.truncf %304 : vector<8x32xf32> to vector<8x32xbf16>
    %c0_91 = arith.constant 0 : index
    %c0_92 = arith.constant 0 : index
    %c0_93 = arith.constant 0 : index
    %306 = vector.load %arg9[%c0_91, %c0_92, %c0_93] : memref<1x8x32xbf16, #tpu.memory_space<vmem>>, vector<1x8x32xbf16>
    %307 = vector.shape_cast %306 : vector<1x8x32xbf16> to vector<8x32xbf16>
    %308 = vector.shape_cast %305 : vector<8x32xbf16> to vector<1x8x32xbf16>
    tpu.vector_store %arg9[%c0_91, %c0_92, %c0_93], %308 {strides = array<i32>} : memref<1x8x32xbf16, #tpu.memory_space<vmem>>, vector<1x8x32xbf16>,
    return
  }
  func.func @transform_0(%arg0: i32) -> (i32, i32, i32) {
    %c0_i32 = arith.constant 0 : i32
    %c0_i32_0 = arith.constant 0 : i32
    %c0_i32_1 = arith.constant 0 : i32
    return %arg0, %c0_i32, %c0_i32_0 : i32, i32, i32
  }
  func.func @transform_1(%arg0: i32) -> (i32, i32, i32) {
    %c0_i32 = arith.constant 0 : i32
    %c0_i32_0 = arith.constant 0 : i32
    %c0_i32_1 = arith.constant 0 : i32
    return %arg0, %c0_i32, %c0_i32_0 : i32, i32, i32
  }
  func.func @transform_2(%arg0: i32) -> (i32, i32) {
    %c0_i32 = arith.constant 0 : i32
    %c0_i32_0 = arith.constant 0 : i32
    %c0_i32_1 = arith.constant 0 : i32
    return %c0_i32, %c0_i32_0 : i32, i32
  }
  func.func @transform_3(%arg0: i32) -> (i32, i32) {
    %c0_i32 = arith.constant 0 : i32
    %c0_i32_0 = arith.constant 0 : i32
    %c0_i32_1 = arith.constant 0 : i32
    return %c0_i32, %c0_i32_0 : i32, i32
  }
  func.func @transform_4(%arg0: i32) -> (i32, i32) {
    %c0_i32 = arith.constant 0 : i32
    %c0_i32_0 = arith.constant 0 : i32
    %c0_i32_1 = arith.constant 0 : i32
    return %c0_i32, %c0_i32_0 : i32, i32
  }
  func.func @transform_5(%arg0: i32) -> (i32, i32) {
    %c0_i32 = arith.constant 0 : i32
    %c0_i32_0 = arith.constant 0 : i32
    %c0_i32_1 = arith.constant 0 : i32
    return %c0_i32, %c0_i32_0 : i32, i32
  }
  func.func @transform_6(%arg0: i32) -> (i32, i32) {
    %c0_i32 = arith.constant 0 : i32
    %c0_i32_0 = arith.constant 0 : i32
    %c0_i32_1 = arith.constant 0 : i32
    return %c0_i32, %c0_i32_0 : i32, i32
  }
  func.func @transform_7(%arg0: i32) -> (i32, i32) {
    %c0_i32 = arith.constant 0 : i32
    %c0_i32_0 = arith.constant 0 : i32
    %c0_i32_1 = arith.constant 0 : i32
    return %c0_i32, %c0_i32_0 : i32, i32
  }
  func.func @transform_8(%arg0: i32) -> (i32, i32, i32) {
    %c0_i32 = arith.constant 0 : i32
    %c0_i32_0 = arith.constant 0 : i32
    %c0_i32_1 = arith.constant 0 : i32
    return %arg0, %c0_i32, %c0_i32_0 : i32, i32, i32
  }
}

module attributes {stable_mosaic.version = 11 : i64} {
  func.func @_lm_layer_kernel(%arg0: i32, %arg1: memref<1x8x32xbf16, #tpu.memory_space<vmem>>, %arg2: memref<1x8x32xbf16, #tpu.memory_space<vmem>>, %arg3: memref<1x8x1xi32, #tpu.memory_space<vmem>>, %arg4: memref<1x1x8xi32, #tpu.memory_space<vmem>>, %arg5: memref<21x128xf32, #tpu.memory_space<vmem>>, %arg6: memref<32x32xbf16, #tpu.memory_space<vmem>>, %arg7: memref<32x64xbf16, #tpu.memory_space<vmem>>, %arg8: memref<32x32xbf16, #tpu.memory_space<vmem>>, %arg9: memref<32x128xbf16, #tpu.memory_space<vmem>>, %arg10: memref<128x32xbf16, #tpu.memory_space<vmem>>, %arg11: memref<32x96xbf16, #tpu.memory_space<vmem>>, %arg12: memref<32x32xbf16, #tpu.memory_space<vmem>>, %arg13: memref<32x128xbf16, #tpu.memory_space<vmem>>, %arg14: memref<128x32xbf16, #tpu.memory_space<vmem>>, %arg15: memref<32x128xbf16, #tpu.memory_space<vmem>>, %arg16: memref<1x8x128xf32, #tpu.memory_space<vmem>>) attributes {dimension_semantics = [#tpu.dimension_semantics<parallel>], iteration_bounds = array<i64: 2>, scalar_prefetch = 0 : i64, scratch_operands = 0 : i64, tpu.core_type = #tpu.core_type<tc>, window_params = [{transform_indices = @transform_0, window_bounds = array<i64: 1, 8, 32>}, {transform_indices = @transform_1, window_bounds = array<i64: 1, 8, 32>}, {transform_indices = @transform_2, window_bounds = array<i64: 1, 8, 1>}, {transform_indices = @transform_3, window_bounds = array<i64: 1, 1, 8>}, {pipeline_mode = #tpu.pipeline_mode<synchronous>, transform_indices = @transform_4, window_bounds = array<i64: 21, 128>}, {pipeline_mode = #tpu.pipeline_mode<synchronous>, transform_indices = @transform_5, window_bounds = array<i64: 32, 32>}, {pipeline_mode = #tpu.pipeline_mode<synchronous>, transform_indices = @transform_6, window_bounds = array<i64: 32, 64>}, {pipeline_mode = #tpu.pipeline_mode<synchronous>, transform_indices = @transform_7, window_bounds = array<i64: 32, 32>}, {pipeline_mode = #tpu.pipeline_mode<synchronous>, transform_indices = @transform_8, window_bounds = array<i64: 32, 128>}, {pipeline_mode = #tpu.pipeline_mode<synchronous>, transform_indices = @transform_9, window_bounds = array<i64: 128, 32>}, {pipeline_mode = #tpu.pipeline_mode<synchronous>, transform_indices = @transform_10, window_bounds = array<i64: 32, 96>}, {pipeline_mode = #tpu.pipeline_mode<synchronous>, transform_indices = @transform_11, window_bounds = array<i64: 32, 32>}, {pipeline_mode = #tpu.pipeline_mode<synchronous>, transform_indices = @transform_12, window_bounds = array<i64: 32, 128>}, {pipeline_mode = #tpu.pipeline_mode<synchronous>, transform_indices = @transform_13, window_bounds = array<i64: 128, 32>}, {pipeline_mode = #tpu.pipeline_mode<synchronous>, transform_indices = @transform_14, window_bounds = array<i64: 32, 128>}, {transform_indices = @transform_15, window_bounds = array<i64: 1, 8, 128>}]} {
    %c0 = arith.constant 0 : index
    %c0_0 = arith.constant 0 : index
    %0 = vector.load %arg5[%c0, %c0_0] : memref<21x128xf32, #tpu.memory_space<vmem>>, vector<21x128xf32>
    %c0_1 = arith.constant 0 : index
    %c0_2 = arith.constant 0 : index
    %c0_3 = arith.constant 0 : index
    %1 = vector.load %arg1[%c0_1, %c0_2, %c0_3] : memref<1x8x32xbf16, #tpu.memory_space<vmem>>, vector<1x8x32xbf16>
    %2 = vector.shape_cast %1 : vector<1x8x32xbf16> to vector<8x32xbf16>
    %3 = arith.extf %2 : vector<8x32xbf16> to vector<8x32xf32>
    %c0_4 = arith.constant 0 : index
    %c0_5 = arith.constant 0 : index
    %c0_6 = arith.constant 0 : index
    %4 = vector.load %arg2[%c0_4, %c0_5, %c0_6] : memref<1x8x32xbf16, #tpu.memory_space<vmem>>, vector<1x8x32xbf16>
    %5 = vector.shape_cast %4 : vector<1x8x32xbf16> to vector<8x32xbf16>
    %c0_7 = arith.constant 0 : index
    %c0_8 = arith.constant 0 : index
    %c0_9 = arith.constant 0 : index
    %6 = vector.load %arg3[%c0_7, %c0_8, %c0_9] : memref<1x8x1xi32, #tpu.memory_space<vmem>>, vector<1x8x1xi32>
    %7 = vector.shape_cast %6 : vector<1x8x1xi32> to vector<8x1xi32>
    %c0_10 = arith.constant 0 : index
    %c0_11 = arith.constant 0 : index
    %c0_12 = arith.constant 0 : index
    %8 = vector.load %arg4[%c0_10, %c0_11, %c0_12] : memref<1x1x8xi32, #tpu.memory_space<vmem>>, vector<1x1x8xi32>
    %9 = vector.shape_cast %8 : vector<1x1x8xi32> to vector<1x8xi32>
    %10 = vector.extract_strided_slice %0 {offsets = [0, 0], sizes = [1, 32], strides = [1, 1]} : vector<21x128xf32> to vector<1x32xf32>
    %11 = vector.extract_strided_slice %0 {offsets = [1, 0], sizes = [1, 32], strides = [1, 1]} : vector<21x128xf32> to vector<1x32xf32>
    %cst = arith.constant dense<0.000000e+00> : vector<8xf32>
    %12 = vector.multi_reduction <add>, %3, %cst [1] : vector<8x32xf32> to vector<8xf32>
    %13 = vector.shape_cast %12 : vector<8xf32> to vector<8x1xf32>
    %cst_13 = arith.constant 3.200000e+01 : f32
    %14 = vector.broadcast %cst_13 : f32 to vector<8x1xf32>
    %15 = arith.divf %13, %14 : vector<8x1xf32>
    %16 = vector.broadcast %15 : vector<8x1xf32> to vector<8x32xf32>
    %17 = arith.subf %3, %16 : vector<8x32xf32>
    %18 = arith.mulf %17, %17 : vector<8x32xf32>
    %cst_14 = arith.constant dense<0.000000e+00> : vector<8xf32>
    %19 = vector.multi_reduction <add>, %18, %cst_14 [1] : vector<8x32xf32> to vector<8xf32>
    %20 = vector.shape_cast %19 : vector<8xf32> to vector<8x1xf32>
    %cst_15 = arith.constant 3.200000e+01 : f32
    %21 = vector.broadcast %cst_15 : f32 to vector<8x1xf32>
    %22 = arith.divf %20, %21 : vector<8x1xf32>
    %cst_16 = arith.constant 9.99999974E-6 : f32
    %23 = vector.broadcast %cst_16 : f32 to vector<8x1xf32>
    %24 = arith.addf %22, %23 : vector<8x1xf32>
    %25 = math.rsqrt %24 : vector<8x1xf32>
    %26 = vector.broadcast %25 : vector<8x1xf32> to vector<8x32xf32>
    %27 = arith.mulf %17, %26 : vector<8x32xf32>
    %28 = vector.broadcast %10 : vector<1x32xf32> to vector<8x32xf32>
    %29 = arith.mulf %27, %28 : vector<8x32xf32>
    %30 = vector.broadcast %11 : vector<1x32xf32> to vector<8x32xf32>
    %31 = arith.addf %29, %30 : vector<8x32xf32>
    %32 = arith.truncf %31 : vector<8x32xf32> to vector<8x32xbf16>
    %c0_17 = arith.constant 0 : index
    %c0_18 = arith.constant 0 : index
    %33 = vector.load %arg6[%c0_17, %c0_18] : memref<32x32xbf16, #tpu.memory_space<vmem>>, vector<32x32xbf16>
    %cst_19 = arith.constant dense<0.000000e+00> : vector<8x32xf32>
    %34 = tpu.matmul %32, %33, %cst_19 {dimension_numbers = #tpu.dot_dimension_numbers<[1], [0], [0], [1], [0, 0, 1, 1], [], []>} : vector<8x32xbf16>, vector<32x32xbf16>, vector<8x32xf32> -> vector<8x32xf32>
    %35 = vector.extract_strided_slice %0 {offsets = [2, 0], sizes = [1, 32], strides = [1, 1]} : vector<21x128xf32> to vector<1x32xf32>
    %36 = vector.broadcast %35 : vector<1x32xf32> to vector<8x32xf32>
    %37 = arith.addf %34, %36 : vector<8x32xf32>
    %c0_20 = arith.constant 0 : index
    %c0_21 = arith.constant 0 : index
    %38 = vector.load %arg7[%c0_20, %c0_21] : memref<32x64xbf16, #tpu.memory_space<vmem>>, vector<32x64xbf16>
    %cst_22 = arith.constant dense<0.000000e+00> : vector<8x64xf32>
    %39 = tpu.matmul %5, %38, %cst_22 {dimension_numbers = #tpu.dot_dimension_numbers<[1], [0], [0], [1], [0, 0, 1, 1], [], []>} : vector<8x32xbf16>, vector<32x64xbf16>, vector<8x64xf32> -> vector<8x64xf32>
    %40 = vector.extract_strided_slice %0 {offsets = [3, 0], sizes = [1, 64], strides = [1, 1]} : vector<21x128xf32> to vector<1x64xf32>
    %41 = vector.broadcast %40 : vector<1x64xf32> to vector<8x64xf32>
    %42 = arith.addf %39, %41 : vector<8x64xf32>
    %43 = tpu.iota {dimensions = array<i32: 1>} : vector<8x8xi32>
    %c3_i32 = arith.constant 3 : i32
    %44 = vector.broadcast %c3_i32 : i32 to vector<8x8xi32>
    %45 = arith.shrsi %43, %44 : vector<8x8xi32>
    %c1_i32 = arith.constant 1 : i32
    %46 = vector.broadcast %c1_i32 : i32 to vector<8x8xi32>
    %47 = arith.addi %45, %46 : vector<8x8xi32>
    %48 = vector.broadcast %7 : vector<8x1xi32> to vector<8x8xi32>
    %49 = arith.cmpi sge, %48, %47 : vector<8x8xi32>
    %cst_23 = arith.constant 0.000000e+00 : f32
    %cst_24 = arith.constant -1.000000e+09 : f32
    %50 = vector.broadcast %cst_23 : f32 to vector<8x8xf32>
    %51 = vector.broadcast %cst_24 : f32 to vector<8x8xf32>
    %52 = arith.select %49, %50, %51 : vector<8x8xi1>, vector<8x8xf32>
    %53 = vector.extract_strided_slice %42 {offsets = [0, 0], sizes = [8, 32], strides = [1, 1]} : vector<8x64xf32> to vector<8x32xf32>
    %54 = vector.extract_strided_slice %42 {offsets = [0, 32], sizes = [8, 32], strides = [1, 1]} : vector<8x64xf32> to vector<8x32xf32>
    %55 = vector.extract_strided_slice %37 {offsets = [0, 0], sizes = [8, 8], strides = [1, 1]} : vector<8x32xf32> to vector<8x8xf32>
    %56 = arith.truncf %55 : vector<8x8xf32> to vector<8x8xbf16>
    %57 = vector.extract_strided_slice %53 {offsets = [0, 0], sizes = [8, 8], strides = [1, 1]} : vector<8x32xf32> to vector<8x8xf32>
    %58 = arith.truncf %57 : vector<8x8xf32> to vector<8x8xbf16>
    %cst_25 = arith.constant dense<0.000000e+00> : vector<8x8xf32>
    %59 = tpu.matmul %56, %58, %cst_25 {dimension_numbers = #tpu.dot_dimension_numbers<[1], [1], [0], [0], [0, 0, 1, 0], [], []>} : vector<8x8xbf16>, vector<8x8xbf16>, vector<8x8xf32> -> vector<8x8xf32>
    %cst_26 = arith.constant 0.353553385 : f32
    %60 = vector.broadcast %cst_26 : f32 to vector<8x8xf32>
    %61 = arith.mulf %59, %60 : vector<8x8xf32>
    %62 = arith.addf %61, %52 : vector<8x8xf32>
    %cst_27 = arith.constant dense<0xFF800000> : vector<8xf32>
    %63 = vector.multi_reduction <maximumf>, %62, %cst_27 [1] : vector<8x8xf32> to vector<8xf32>
    %64 = vector.shape_cast %63 : vector<8xf32> to vector<8x1xf32>
    %cst_28 = arith.constant 0.000000e+00 : f32
    %65 = vector.broadcast %cst_28 : f32 to vector<8x8xf32>
    %cst_29 = arith.constant 0.000000e+00 : f32
    %66 = vector.broadcast %cst_29 : f32 to vector<8x1xf32>
    %67 = vector.broadcast %64 : vector<8x1xf32> to vector<8x8xf32>
    %68 = arith.subf %62, %67 : vector<8x8xf32>
    %69 = math.exp %68 : vector<8x8xf32>
    %cst_30 = arith.constant dense<0.000000e+00> : vector<8xf32>
    %70 = vector.multi_reduction <add>, %69, %cst_30 [1] : vector<8x8xf32> to vector<8xf32>
    %71 = vector.shape_cast %70 : vector<8xf32> to vector<8x1xf32>
    %72 = arith.addf %66, %71 : vector<8x1xf32>
    %73 = arith.truncf %69 : vector<8x8xf32> to vector<8x8xbf16>
    %74 = vector.extract_strided_slice %54 {offsets = [0, 0], sizes = [8, 8], strides = [1, 1]} : vector<8x32xf32> to vector<8x8xf32>
    %75 = arith.truncf %74 : vector<8x8xf32> to vector<8x8xbf16>
    %cst_31 = arith.constant dense<0.000000e+00> : vector<8x8xf32>
    %76 = tpu.matmul %73, %75, %cst_31 {dimension_numbers = #tpu.dot_dimension_numbers<[1], [0], [0], [1], [0, 0, 1, 1], [], []>} : vector<8x8xbf16>, vector<8x8xbf16>, vector<8x8xf32> -> vector<8x8xf32>
    %77 = arith.addf %65, %76 : vector<8x8xf32>
    %78 = tpu.reciprocal %72 {approx = true} : vector<8x1xf32> -> vector<8x1xf32>
    %79 = vector.broadcast %78 : vector<8x1xf32> to vector<8x8xf32>
    %80 = arith.mulf %77, %79 : vector<8x8xf32>
    %81 = vector.extract_strided_slice %37 {offsets = [0, 8], sizes = [8, 8], strides = [1, 1]} : vector<8x32xf32> to vector<8x8xf32>
    %82 = arith.truncf %81 : vector<8x8xf32> to vector<8x8xbf16>
    %83 = vector.extract_strided_slice %53 {offsets = [0, 8], sizes = [8, 8], strides = [1, 1]} : vector<8x32xf32> to vector<8x8xf32>
    %84 = arith.truncf %83 : vector<8x8xf32> to vector<8x8xbf16>
    %cst_32 = arith.constant dense<0.000000e+00> : vector<8x8xf32>
    %85 = tpu.matmul %82, %84, %cst_32 {dimension_numbers = #tpu.dot_dimension_numbers<[1], [1], [0], [0], [0, 0, 1, 0], [], []>} : vector<8x8xbf16>, vector<8x8xbf16>, vector<8x8xf32> -> vector<8x8xf32>
    %cst_33 = arith.constant 0.353553385 : f32
    %86 = vector.broadcast %cst_33 : f32 to vector<8x8xf32>
    %87 = arith.mulf %85, %86 : vector<8x8xf32>
    %88 = arith.addf %87, %52 : vector<8x8xf32>
    %cst_34 = arith.constant dense<0xFF800000> : vector<8xf32>
    %89 = vector.multi_reduction <maximumf>, %88, %cst_34 [1] : vector<8x8xf32> to vector<8xf32>
    %90 = vector.shape_cast %89 : vector<8xf32> to vector<8x1xf32>
    %cst_35 = arith.constant 0.000000e+00 : f32
    %91 = vector.broadcast %cst_35 : f32 to vector<8x8xf32>
    %cst_36 = arith.constant 0.000000e+00 : f32
    %92 = vector.broadcast %cst_36 : f32 to vector<8x1xf32>
    %93 = vector.broadcast %90 : vector<8x1xf32> to vector<8x8xf32>
    %94 = arith.subf %88, %93 : vector<8x8xf32>
    %95 = math.exp %94 : vector<8x8xf32>
    %cst_37 = arith.constant dense<0.000000e+00> : vector<8xf32>
    %96 = vector.multi_reduction <add>, %95, %cst_37 [1] : vector<8x8xf32> to vector<8xf32>
    %97 = vector.shape_cast %96 : vector<8xf32> to vector<8x1xf32>
    %98 = arith.addf %92, %97 : vector<8x1xf32>
    %99 = arith.truncf %95 : vector<8x8xf32> to vector<8x8xbf16>
    %100 = vector.extract_strided_slice %54 {offsets = [0, 8], sizes = [8, 8], strides = [1, 1]} : vector<8x32xf32> to vector<8x8xf32>
    %101 = arith.truncf %100 : vector<8x8xf32> to vector<8x8xbf16>
    %cst_38 = arith.constant dense<0.000000e+00> : vector<8x8xf32>
    %102 = tpu.matmul %99, %101, %cst_38 {dimension_numbers = #tpu.dot_dimension_numbers<[1], [0], [0], [1], [0, 0, 1, 1], [], []>} : vector<8x8xbf16>, vector<8x8xbf16>, vector<8x8xf32> -> vector<8x8xf32>
    %103 = arith.addf %91, %102 : vector<8x8xf32>
    %104 = tpu.reciprocal %98 {approx = true} : vector<8x1xf32> -> vector<8x1xf32>
    %105 = vector.broadcast %104 : vector<8x1xf32> to vector<8x8xf32>
    %106 = arith.mulf %103, %105 : vector<8x8xf32>
    %107 = vector.extract_strided_slice %37 {offsets = [0, 16], sizes = [8, 8], strides = [1, 1]} : vector<8x32xf32> to vector<8x8xf32>
    %108 = arith.truncf %107 : vector<8x8xf32> to vector<8x8xbf16>
    %109 = vector.extract_strided_slice %53 {offsets = [0, 16], sizes = [8, 8], strides = [1, 1]} : vector<8x32xf32> to vector<8x8xf32>
    %110 = arith.truncf %109 : vector<8x8xf32> to vector<8x8xbf16>
    %cst_39 = arith.constant dense<0.000000e+00> : vector<8x8xf32>
    %111 = tpu.matmul %108, %110, %cst_39 {dimension_numbers = #tpu.dot_dimension_numbers<[1], [1], [0], [0], [0, 0, 1, 0], [], []>} : vector<8x8xbf16>, vector<8x8xbf16>, vector<8x8xf32> -> vector<8x8xf32>
    %cst_40 = arith.constant 0.353553385 : f32
    %112 = vector.broadcast %cst_40 : f32 to vector<8x8xf32>
    %113 = arith.mulf %111, %112 : vector<8x8xf32>
    %114 = arith.addf %113, %52 : vector<8x8xf32>
    %cst_41 = arith.constant dense<0xFF800000> : vector<8xf32>
    %115 = vector.multi_reduction <maximumf>, %114, %cst_41 [1] : vector<8x8xf32> to vector<8xf32>
    %116 = vector.shape_cast %115 : vector<8xf32> to vector<8x1xf32>
    %cst_42 = arith.constant 0.000000e+00 : f32
    %117 = vector.broadcast %cst_42 : f32 to vector<8x8xf32>
    %cst_43 = arith.constant 0.000000e+00 : f32
    %118 = vector.broadcast %cst_43 : f32 to vector<8x1xf32>
    %119 = vector.broadcast %116 : vector<8x1xf32> to vector<8x8xf32>
    %120 = arith.subf %114, %119 : vector<8x8xf32>
    %121 = math.exp %120 : vector<8x8xf32>
    %cst_44 = arith.constant dense<0.000000e+00> : vector<8xf32>
    %122 = vector.multi_reduction <add>, %121, %cst_44 [1] : vector<8x8xf32> to vector<8xf32>
    %123 = vector.shape_cast %122 : vector<8xf32> to vector<8x1xf32>
    %124 = arith.addf %118, %123 : vector<8x1xf32>
    %125 = arith.truncf %121 : vector<8x8xf32> to vector<8x8xbf16>
    %126 = vector.extract_strided_slice %54 {offsets = [0, 16], sizes = [8, 8], strides = [1, 1]} : vector<8x32xf32> to vector<8x8xf32>
    %127 = arith.truncf %126 : vector<8x8xf32> to vector<8x8xbf16>
    %cst_45 = arith.constant dense<0.000000e+00> : vector<8x8xf32>
    %128 = tpu.matmul %125, %127, %cst_45 {dimension_numbers = #tpu.dot_dimension_numbers<[1], [0], [0], [1], [0, 0, 1, 1], [], []>} : vector<8x8xbf16>, vector<8x8xbf16>, vector<8x8xf32> -> vector<8x8xf32>
    %129 = arith.addf %117, %128 : vector<8x8xf32>
    %130 = tpu.reciprocal %124 {approx = true} : vector<8x1xf32> -> vector<8x1xf32>
    %131 = vector.broadcast %130 : vector<8x1xf32> to vector<8x8xf32>
    %132 = arith.mulf %129, %131 : vector<8x8xf32>
    %133 = vector.extract_strided_slice %37 {offsets = [0, 24], sizes = [8, 8], strides = [1, 1]} : vector<8x32xf32> to vector<8x8xf32>
    %134 = arith.truncf %133 : vector<8x8xf32> to vector<8x8xbf16>
    %135 = vector.extract_strided_slice %53 {offsets = [0, 24], sizes = [8, 8], strides = [1, 1]} : vector<8x32xf32> to vector<8x8xf32>
    %136 = arith.truncf %135 : vector<8x8xf32> to vector<8x8xbf16>
    %cst_46 = arith.constant dense<0.000000e+00> : vector<8x8xf32>
    %137 = tpu.matmul %134, %136, %cst_46 {dimension_numbers = #tpu.dot_dimension_numbers<[1], [1], [0], [0], [0, 0, 1, 0], [], []>} : vector<8x8xbf16>, vector<8x8xbf16>, vector<8x8xf32> -> vector<8x8xf32>
    %cst_47 = arith.constant 0.353553385 : f32
    %138 = vector.broadcast %cst_47 : f32 to vector<8x8xf32>
    %139 = arith.mulf %137, %138 : vector<8x8xf32>
    %140 = arith.addf %139, %52 : vector<8x8xf32>
    %cst_48 = arith.constant dense<0xFF800000> : vector<8xf32>
    %141 = vector.multi_reduction <maximumf>, %140, %cst_48 [1] : vector<8x8xf32> to vector<8xf32>
    %142 = vector.shape_cast %141 : vector<8xf32> to vector<8x1xf32>
    %cst_49 = arith.constant 0.000000e+00 : f32
    %143 = vector.broadcast %cst_49 : f32 to vector<8x8xf32>
    %cst_50 = arith.constant 0.000000e+00 : f32
    %144 = vector.broadcast %cst_50 : f32 to vector<8x1xf32>
    %145 = vector.broadcast %142 : vector<8x1xf32> to vector<8x8xf32>
    %146 = arith.subf %140, %145 : vector<8x8xf32>
    %147 = math.exp %146 : vector<8x8xf32>
    %cst_51 = arith.constant dense<0.000000e+00> : vector<8xf32>
    %148 = vector.multi_reduction <add>, %147, %cst_51 [1] : vector<8x8xf32> to vector<8xf32>
    %149 = vector.shape_cast %148 : vector<8xf32> to vector<8x1xf32>
    %150 = arith.addf %144, %149 : vector<8x1xf32>
    %151 = arith.truncf %147 : vector<8x8xf32> to vector<8x8xbf16>
    %152 = vector.extract_strided_slice %54 {offsets = [0, 24], sizes = [8, 8], strides = [1, 1]} : vector<8x32xf32> to vector<8x8xf32>
    %153 = arith.truncf %152 : vector<8x8xf32> to vector<8x8xbf16>
    %cst_52 = arith.constant dense<0.000000e+00> : vector<8x8xf32>
    %154 = tpu.matmul %151, %153, %cst_52 {dimension_numbers = #tpu.dot_dimension_numbers<[1], [0], [0], [1], [0, 0, 1, 1], [], []>} : vector<8x8xbf16>, vector<8x8xbf16>, vector<8x8xf32> -> vector<8x8xf32>
    %155 = arith.addf %143, %154 : vector<8x8xf32>
    %156 = tpu.reciprocal %150 {approx = true} : vector<8x1xf32> -> vector<8x1xf32>
    %157 = vector.broadcast %156 : vector<8x1xf32> to vector<8x8xf32>
    %158 = arith.mulf %155, %157 : vector<8x8xf32>
    %159 = tpu.concatenate %80, %106, %132, %158 in 1 : vector<8x8xf32>, vector<8x8xf32>, vector<8x8xf32>, vector<8x8xf32> -> vector<8x32xf32>
    %160 = arith.truncf %159 : vector<8x32xf32> to vector<8x32xbf16>
    %c0_53 = arith.constant 0 : index
    %c0_54 = arith.constant 0 : index
    %161 = vector.load %arg8[%c0_53, %c0_54] : memref<32x32xbf16, #tpu.memory_space<vmem>>, vector<32x32xbf16>
    %cst_55 = arith.constant dense<0.000000e+00> : vector<8x32xf32>
    %162 = tpu.matmul %160, %161, %cst_55 {dimension_numbers = #tpu.dot_dimension_numbers<[1], [0], [0], [1], [0, 0, 1, 1], [], []>} : vector<8x32xbf16>, vector<32x32xbf16>, vector<8x32xf32> -> vector<8x32xf32>
    %163 = vector.extract_strided_slice %0 {offsets = [4, 0], sizes = [1, 32], strides = [1, 1]} : vector<21x128xf32> to vector<1x32xf32>
    %164 = vector.broadcast %163 : vector<1x32xf32> to vector<8x32xf32>
    %165 = arith.addf %162, %164 : vector<8x32xf32>
    %c0_i32 = arith.constant 0 : i32
    %166 = vector.broadcast %c0_i32 : i32 to vector<8x1xi32>
    %167 = arith.cmpi sgt, %7, %166 : vector<8x1xi32>
    %168 = arith.extui %167 : vector<8x1xi1> to vector<8x1xi32>
    %169 = arith.sitofp %168 : vector<8x1xi32> to vector<8x1xf32>
    %170 = vector.broadcast %169 : vector<8x1xf32> to vector<8x32xf32>
    %171 = arith.mulf %165, %170 : vector<8x32xf32>
    %172 = vector.extract_strided_slice %0 {offsets = [5, 0], sizes = [1, 1], strides = [1, 1]} : vector<21x128xf32> to vector<1x1xf32>
    %173 = math.tanh %172 : vector<1x1xf32>
    %174 = vector.broadcast %173 : vector<1x1xf32> to vector<8x32xf32>
    %175 = arith.mulf %174, %171 : vector<8x32xf32>
    %176 = arith.addf %3, %175 : vector<8x32xf32>
    %177 = vector.extract_strided_slice %0 {offsets = [5, 1], sizes = [1, 1], strides = [1, 1]} : vector<21x128xf32> to vector<1x1xf32>
    %178 = math.tanh %177 : vector<1x1xf32>
    %179 = vector.extract_strided_slice %0 {offsets = [6, 0], sizes = [1, 32], strides = [1, 1]} : vector<21x128xf32> to vector<1x32xf32>
    %180 = vector.extract_strided_slice %0 {offsets = [7, 0], sizes = [1, 32], strides = [1, 1]} : vector<21x128xf32> to vector<1x32xf32>
    %181 = vector.extract_strided_slice %0 {offsets = [8, 0], sizes = [1, 128], strides = [1, 1]} : vector<21x128xf32> to vector<1x128xf32>
    %182 = vector.extract_strided_slice %0 {offsets = [9, 0], sizes = [1, 32], strides = [1, 1]} : vector<21x128xf32> to vector<1x32xf32>
    %cst_56 = arith.constant dense<0.000000e+00> : vector<8xf32>
    %183 = vector.multi_reduction <add>, %176, %cst_56 [1] : vector<8x32xf32> to vector<8xf32>
    %184 = vector.shape_cast %183 : vector<8xf32> to vector<8x1xf32>
    %cst_57 = arith.constant 3.200000e+01 : f32
    %185 = vector.broadcast %cst_57 : f32 to vector<8x1xf32>
    %186 = arith.divf %184, %185 : vector<8x1xf32>
    %187 = vector.broadcast %186 : vector<8x1xf32> to vector<8x32xf32>
    %188 = arith.subf %176, %187 : vector<8x32xf32>
    %189 = arith.mulf %188, %188 : vector<8x32xf32>
    %cst_58 = arith.constant dense<0.000000e+00> : vector<8xf32>
    %190 = vector.multi_reduction <add>, %189, %cst_58 [1] : vector<8x32xf32> to vector<8xf32>
    %191 = vector.shape_cast %190 : vector<8xf32> to vector<8x1xf32>
    %cst_59 = arith.constant 3.200000e+01 : f32
    %192 = vector.broadcast %cst_59 : f32 to vector<8x1xf32>
    %193 = arith.divf %191, %192 : vector<8x1xf32>
    %cst_60 = arith.constant 9.99999974E-6 : f32
    %194 = vector.broadcast %cst_60 : f32 to vector<8x1xf32>
    %195 = arith.addf %193, %194 : vector<8x1xf32>
    %196 = math.rsqrt %195 : vector<8x1xf32>
    %197 = vector.broadcast %196 : vector<8x1xf32> to vector<8x32xf32>
    %198 = arith.mulf %188, %197 : vector<8x32xf32>
    %199 = vector.broadcast %179 : vector<1x32xf32> to vector<8x32xf32>
    %200 = arith.mulf %198, %199 : vector<8x32xf32>
    %201 = vector.broadcast %180 : vector<1x32xf32> to vector<8x32xf32>
    %202 = arith.addf %200, %201 : vector<8x32xf32>
    %203 = arith.truncf %202 : vector<8x32xf32> to vector<8x32xbf16>
    %c0_61 = arith.constant 0 : index
    %c0_62 = arith.constant 0 : index
    %204 = vector.load %arg9[%c0_61, %c0_62] : memref<32x128xbf16, #tpu.memory_space<vmem>>, vector<32x128xbf16>
    %cst_63 = arith.constant dense<0.000000e+00> : vector<8x128xf32>
    %205 = tpu.matmul %203, %204, %cst_63 {dimension_numbers = #tpu.dot_dimension_numbers<[1], [0], [0], [1], [0, 0, 1, 1], [], []>} : vector<8x32xbf16>, vector<32x128xbf16>, vector<8x128xf32> -> vector<8x128xf32>
    %206 = vector.broadcast %181 : vector<1x128xf32> to vector<8x128xf32>
    %207 = arith.addf %205, %206 : vector<8x128xf32>
    %208 = arith.mulf %207, %207 : vector<8x128xf32>
    %209 = arith.mulf %207, %208 : vector<8x128xf32>
    %cst_64 = arith.constant 4.471500e-02 : f32
    %210 = vector.broadcast %cst_64 : f32 to vector<8x128xf32>
    %211 = arith.mulf %210, %209 : vector<8x128xf32>
    %212 = arith.addf %207, %211 : vector<8x128xf32>
    %cst_65 = arith.constant 0.797884583 : f32
    %213 = vector.broadcast %cst_65 : f32 to vector<8x128xf32>
    %214 = arith.mulf %213, %212 : vector<8x128xf32>
    %215 = math.tanh %214 : vector<8x128xf32>
    %cst_66 = arith.constant 1.000000e+00 : f32
    %216 = vector.broadcast %cst_66 : f32 to vector<8x128xf32>
    %217 = arith.addf %216, %215 : vector<8x128xf32>
    %cst_67 = arith.constant 5.000000e-01 : f32
    %218 = vector.broadcast %cst_67 : f32 to vector<8x128xf32>
    %219 = arith.mulf %218, %217 : vector<8x128xf32>
    %220 = arith.mulf %207, %219 : vector<8x128xf32>
    %221 = arith.truncf %220 : vector<8x128xf32> to vector<8x128xbf16>
    %c0_68 = arith.constant 0 : index
    %c0_69 = arith.constant 0 : index
    %222 = vector.load %arg10[%c0_68, %c0_69] : memref<128x32xbf16, #tpu.memory_space<vmem>>, vector<128x32xbf16>
    %cst_70 = arith.constant dense<0.000000e+00> : vector<8x32xf32>
    %223 = tpu.matmul %221, %222, %cst_70 {dimension_numbers = #tpu.dot_dimension_numbers<[1], [0], [0], [1], [0, 0, 1, 1], [], []>} : vector<8x128xbf16>, vector<128x32xbf16>, vector<8x32xf32> -> vector<8x32xf32>
    %224 = vector.broadcast %182 : vector<1x32xf32> to vector<8x32xf32>
    %225 = arith.addf %223, %224 : vector<8x32xf32>
    %226 = vector.broadcast %178 : vector<1x1xf32> to vector<8x32xf32>
    %227 = arith.mulf %226, %225 : vector<8x32xf32>
    %228 = arith.addf %176, %227 : vector<8x32xf32>
    %229 = vector.extract_strided_slice %0 {offsets = [10, 0], sizes = [1, 32], strides = [1, 1]} : vector<21x128xf32> to vector<1x32xf32>
    %230 = vector.extract_strided_slice %0 {offsets = [11, 0], sizes = [1, 32], strides = [1, 1]} : vector<21x128xf32> to vector<1x32xf32>
    %cst_71 = arith.constant dense<0.000000e+00> : vector<8xf32>
    %231 = vector.multi_reduction <add>, %228, %cst_71 [1] : vector<8x32xf32> to vector<8xf32>
    %232 = vector.shape_cast %231 : vector<8xf32> to vector<8x1xf32>
    %cst_72 = arith.constant 3.200000e+01 : f32
    %233 = vector.broadcast %cst_72 : f32 to vector<8x1xf32>
    %234 = arith.divf %232, %233 : vector<8x1xf32>
    %235 = vector.broadcast %234 : vector<8x1xf32> to vector<8x32xf32>
    %236 = arith.subf %228, %235 : vector<8x32xf32>
    %237 = arith.mulf %236, %236 : vector<8x32xf32>
    %cst_73 = arith.constant dense<0.000000e+00> : vector<8xf32>
    %238 = vector.multi_reduction <add>, %237, %cst_73 [1] : vector<8x32xf32> to vector<8xf32>
    %239 = vector.shape_cast %238 : vector<8xf32> to vector<8x1xf32>
    %cst_74 = arith.constant 3.200000e+01 : f32
    %240 = vector.broadcast %cst_74 : f32 to vector<8x1xf32>
    %241 = arith.divf %239, %240 : vector<8x1xf32>
    %cst_75 = arith.constant 9.99999974E-6 : f32
    %242 = vector.broadcast %cst_75 : f32 to vector<8x1xf32>
    %243 = arith.addf %241, %242 : vector<8x1xf32>
    %244 = math.rsqrt %243 : vector<8x1xf32>
    %245 = vector.broadcast %244 : vector<8x1xf32> to vector<8x32xf32>
    %246 = arith.mulf %236, %245 : vector<8x32xf32>
    %247 = vector.broadcast %229 : vector<1x32xf32> to vector<8x32xf32>
    %248 = arith.mulf %246, %247 : vector<8x32xf32>
    %249 = vector.broadcast %230 : vector<1x32xf32> to vector<8x32xf32>
    %250 = arith.addf %248, %249 : vector<8x32xf32>
    %251 = arith.truncf %250 : vector<8x32xf32> to vector<8x32xbf16>
    %c0_76 = arith.constant 0 : index
    %c0_77 = arith.constant 0 : index
    %252 = vector.load %arg11[%c0_76, %c0_77] : memref<32x96xbf16, #tpu.memory_space<vmem>>, vector<32x96xbf16>
    %cst_78 = arith.constant dense<0.000000e+00> : vector<8x96xf32>
    %253 = tpu.matmul %251, %252, %cst_78 {dimension_numbers = #tpu.dot_dimension_numbers<[1], [0], [0], [1], [0, 0, 1, 1], [], []>} : vector<8x32xbf16>, vector<32x96xbf16>, vector<8x96xf32> -> vector<8x96xf32>
    %254 = vector.extract_strided_slice %0 {offsets = [12, 0], sizes = [1, 96], strides = [1, 1]} : vector<21x128xf32> to vector<1x96xf32>
    %255 = vector.broadcast %254 : vector<1x96xf32> to vector<8x96xf32>
    %256 = arith.addf %253, %255 : vector<8x96xf32>
    %257 = tpu.iota {dimensions = array<i32: 0>} : vector<8x8xi32>
    %258 = tpu.iota {dimensions = array<i32: 1>} : vector<8x8xi32>
    %259 = arith.cmpi sge, %257, %258 : vector<8x8xi32>
    %c0_i32_79 = arith.constant 0 : i32
    %260 = vector.broadcast %c0_i32_79 : i32 to vector<1x8xi32>
    %261 = arith.cmpi sgt, %9, %260 : vector<1x8xi32>
    %262 = vector.broadcast %261 : vector<1x8xi1> to vector<8x8xi1>
    %263 = arith.andi %259, %262 : vector<8x8xi1>
    %cst_80 = arith.constant 0.000000e+00 : f32
    %cst_81 = arith.constant -1.000000e+09 : f32
    %264 = vector.broadcast %cst_80 : f32 to vector<8x8xf32>
    %265 = vector.broadcast %cst_81 : f32 to vector<8x8xf32>
    %266 = arith.select %263, %264, %265 : vector<8x8xi1>, vector<8x8xf32>
    %267 = vector.extract_strided_slice %256 {offsets = [0, 0], sizes = [8, 32], strides = [1, 1]} : vector<8x96xf32> to vector<8x32xf32>
    %268 = vector.extract_strided_slice %256 {offsets = [0, 32], sizes = [8, 32], strides = [1, 1]} : vector<8x96xf32> to vector<8x32xf32>
    %269 = vector.extract_strided_slice %256 {offsets = [0, 64], sizes = [8, 32], strides = [1, 1]} : vector<8x96xf32> to vector<8x32xf32>
    %270 = vector.extract_strided_slice %267 {offsets = [0, 0], sizes = [8, 8], strides = [1, 1]} : vector<8x32xf32> to vector<8x8xf32>
    %271 = arith.truncf %270 : vector<8x8xf32> to vector<8x8xbf16>
    %272 = vector.extract_strided_slice %268 {offsets = [0, 0], sizes = [8, 8], strides = [1, 1]} : vector<8x32xf32> to vector<8x8xf32>
    %273 = arith.truncf %272 : vector<8x8xf32> to vector<8x8xbf16>
    %cst_82 = arith.constant dense<0.000000e+00> : vector<8x8xf32>
    %274 = tpu.matmul %271, %273, %cst_82 {dimension_numbers = #tpu.dot_dimension_numbers<[1], [1], [0], [0], [0, 0, 1, 0], [], []>} : vector<8x8xbf16>, vector<8x8xbf16>, vector<8x8xf32> -> vector<8x8xf32>
    %cst_83 = arith.constant 0.353553385 : f32
    %275 = vector.broadcast %cst_83 : f32 to vector<8x8xf32>
    %276 = arith.mulf %274, %275 : vector<8x8xf32>
    %277 = arith.addf %276, %266 : vector<8x8xf32>
    %cst_84 = arith.constant dense<0xFF800000> : vector<8xf32>
    %278 = vector.multi_reduction <maximumf>, %277, %cst_84 [1] : vector<8x8xf32> to vector<8xf32>
    %279 = vector.shape_cast %278 : vector<8xf32> to vector<8x1xf32>
    %cst_85 = arith.constant 0.000000e+00 : f32
    %280 = vector.broadcast %cst_85 : f32 to vector<8x8xf32>
    %cst_86 = arith.constant 0.000000e+00 : f32
    %281 = vector.broadcast %cst_86 : f32 to vector<8x1xf32>
    %282 = vector.broadcast %279 : vector<8x1xf32> to vector<8x8xf32>
    %283 = arith.subf %277, %282 : vector<8x8xf32>
    %284 = math.exp %283 : vector<8x8xf32>
    %cst_87 = arith.constant dense<0.000000e+00> : vector<8xf32>
    %285 = vector.multi_reduction <add>, %284, %cst_87 [1] : vector<8x8xf32> to vector<8xf32>
    %286 = vector.shape_cast %285 : vector<8xf32> to vector<8x1xf32>
    %287 = arith.addf %281, %286 : vector<8x1xf32>
    %288 = arith.truncf %284 : vector<8x8xf32> to vector<8x8xbf16>
    %289 = vector.extract_strided_slice %269 {offsets = [0, 0], sizes = [8, 8], strides = [1, 1]} : vector<8x32xf32> to vector<8x8xf32>
    %290 = arith.truncf %289 : vector<8x8xf32> to vector<8x8xbf16>
    %cst_88 = arith.constant dense<0.000000e+00> : vector<8x8xf32>
    %291 = tpu.matmul %288, %290, %cst_88 {dimension_numbers = #tpu.dot_dimension_numbers<[1], [0], [0], [1], [0, 0, 1, 1], [], []>} : vector<8x8xbf16>, vector<8x8xbf16>, vector<8x8xf32> -> vector<8x8xf32>
    %292 = arith.addf %280, %291 : vector<8x8xf32>
    %293 = tpu.reciprocal %287 {approx = true} : vector<8x1xf32> -> vector<8x1xf32>
    %294 = vector.broadcast %293 : vector<8x1xf32> to vector<8x8xf32>
    %295 = arith.mulf %292, %294 : vector<8x8xf32>
    %296 = vector.extract_strided_slice %267 {offsets = [0, 8], sizes = [8, 8], strides = [1, 1]} : vector<8x32xf32> to vector<8x8xf32>
    %297 = arith.truncf %296 : vector<8x8xf32> to vector<8x8xbf16>
    %298 = vector.extract_strided_slice %268 {offsets = [0, 8], sizes = [8, 8], strides = [1, 1]} : vector<8x32xf32> to vector<8x8xf32>
    %299 = arith.truncf %298 : vector<8x8xf32> to vector<8x8xbf16>
    %cst_89 = arith.constant dense<0.000000e+00> : vector<8x8xf32>
    %300 = tpu.matmul %297, %299, %cst_89 {dimension_numbers = #tpu.dot_dimension_numbers<[1], [1], [0], [0], [0, 0, 1, 0], [], []>} : vector<8x8xbf16>, vector<8x8xbf16>, vector<8x8xf32> -> vector<8x8xf32>
    %cst_90 = arith.constant 0.353553385 : f32
    %301 = vector.broadcast %cst_90 : f32 to vector<8x8xf32>
    %302 = arith.mulf %300, %301 : vector<8x8xf32>
    %303 = arith.addf %302, %266 : vector<8x8xf32>
    %cst_91 = arith.constant dense<0xFF800000> : vector<8xf32>
    %304 = vector.multi_reduction <maximumf>, %303, %cst_91 [1] : vector<8x8xf32> to vector<8xf32>
    %305 = vector.shape_cast %304 : vector<8xf32> to vector<8x1xf32>
    %cst_92 = arith.constant 0.000000e+00 : f32
    %306 = vector.broadcast %cst_92 : f32 to vector<8x8xf32>
    %cst_93 = arith.constant 0.000000e+00 : f32
    %307 = vector.broadcast %cst_93 : f32 to vector<8x1xf32>
    %308 = vector.broadcast %305 : vector<8x1xf32> to vector<8x8xf32>
    %309 = arith.subf %303, %308 : vector<8x8xf32>
    %310 = math.exp %309 : vector<8x8xf32>
    %cst_94 = arith.constant dense<0.000000e+00> : vector<8xf32>
    %311 = vector.multi_reduction <add>, %310, %cst_94 [1] : vector<8x8xf32> to vector<8xf32>
    %312 = vector.shape_cast %311 : vector<8xf32> to vector<8x1xf32>
    %313 = arith.addf %307, %312 : vector<8x1xf32>
    %314 = arith.truncf %310 : vector<8x8xf32> to vector<8x8xbf16>
    %315 = vector.extract_strided_slice %269 {offsets = [0, 8], sizes = [8, 8], strides = [1, 1]} : vector<8x32xf32> to vector<8x8xf32>
    %316 = arith.truncf %315 : vector<8x8xf32> to vector<8x8xbf16>
    %cst_95 = arith.constant dense<0.000000e+00> : vector<8x8xf32>
    %317 = tpu.matmul %314, %316, %cst_95 {dimension_numbers = #tpu.dot_dimension_numbers<[1], [0], [0], [1], [0, 0, 1, 1], [], []>} : vector<8x8xbf16>, vector<8x8xbf16>, vector<8x8xf32> -> vector<8x8xf32>
    %318 = arith.addf %306, %317 : vector<8x8xf32>
    %319 = tpu.reciprocal %313 {approx = true} : vector<8x1xf32> -> vector<8x1xf32>
    %320 = vector.broadcast %319 : vector<8x1xf32> to vector<8x8xf32>
    %321 = arith.mulf %318, %320 : vector<8x8xf32>
    %322 = vector.extract_strided_slice %267 {offsets = [0, 16], sizes = [8, 8], strides = [1, 1]} : vector<8x32xf32> to vector<8x8xf32>
    %323 = arith.truncf %322 : vector<8x8xf32> to vector<8x8xbf16>
    %324 = vector.extract_strided_slice %268 {offsets = [0, 16], sizes = [8, 8], strides = [1, 1]} : vector<8x32xf32> to vector<8x8xf32>
    %325 = arith.truncf %324 : vector<8x8xf32> to vector<8x8xbf16>
    %cst_96 = arith.constant dense<0.000000e+00> : vector<8x8xf32>
    %326 = tpu.matmul %323, %325, %cst_96 {dimension_numbers = #tpu.dot_dimension_numbers<[1], [1], [0], [0], [0, 0, 1, 0], [], []>} : vector<8x8xbf16>, vector<8x8xbf16>, vector<8x8xf32> -> vector<8x8xf32>
    %cst_97 = arith.constant 0.353553385 : f32
    %327 = vector.broadcast %cst_97 : f32 to vector<8x8xf32>
    %328 = arith.mulf %326, %327 : vector<8x8xf32>
    %329 = arith.addf %328, %266 : vector<8x8xf32>
    %cst_98 = arith.constant dense<0xFF800000> : vector<8xf32>
    %330 = vector.multi_reduction <maximumf>, %329, %cst_98 [1] : vector<8x8xf32> to vector<8xf32>
    %331 = vector.shape_cast %330 : vector<8xf32> to vector<8x1xf32>
    %cst_99 = arith.constant 0.000000e+00 : f32
    %332 = vector.broadcast %cst_99 : f32 to vector<8x8xf32>
    %cst_100 = arith.constant 0.000000e+00 : f32
    %333 = vector.broadcast %cst_100 : f32 to vector<8x1xf32>
    %334 = vector.broadcast %331 : vector<8x1xf32> to vector<8x8xf32>
    %335 = arith.subf %329, %334 : vector<8x8xf32>
    %336 = math.exp %335 : vector<8x8xf32>
    %cst_101 = arith.constant dense<0.000000e+00> : vector<8xf32>
    %337 = vector.multi_reduction <add>, %336, %cst_101 [1] : vector<8x8xf32> to vector<8xf32>
    %338 = vector.shape_cast %337 : vector<8xf32> to vector<8x1xf32>
    %339 = arith.addf %333, %338 : vector<8x1xf32>
    %340 = arith.truncf %336 : vector<8x8xf32> to vector<8x8xbf16>
    %341 = vector.extract_strided_slice %269 {offsets = [0, 16], sizes = [8, 8], strides = [1, 1]} : vector<8x32xf32> to vector<8x8xf32>
    %342 = arith.truncf %341 : vector<8x8xf32> to vector<8x8xbf16>
    %cst_102 = arith.constant dense<0.000000e+00> : vector<8x8xf32>
    %343 = tpu.matmul %340, %342, %cst_102 {dimension_numbers = #tpu.dot_dimension_numbers<[1], [0], [0], [1], [0, 0, 1, 1], [], []>} : vector<8x8xbf16>, vector<8x8xbf16>, vector<8x8xf32> -> vector<8x8xf32>
    %344 = arith.addf %332, %343 : vector<8x8xf32>
    %345 = tpu.reciprocal %339 {approx = true} : vector<8x1xf32> -> vector<8x1xf32>
    %346 = vector.broadcast %345 : vector<8x1xf32> to vector<8x8xf32>
    %347 = arith.mulf %344, %346 : vector<8x8xf32>
    %348 = vector.extract_strided_slice %267 {offsets = [0, 24], sizes = [8, 8], strides = [1, 1]} : vector<8x32xf32> to vector<8x8xf32>
    %349 = arith.truncf %348 : vector<8x8xf32> to vector<8x8xbf16>
    %350 = vector.extract_strided_slice %268 {offsets = [0, 24], sizes = [8, 8], strides = [1, 1]} : vector<8x32xf32> to vector<8x8xf32>
    %351 = arith.truncf %350 : vector<8x8xf32> to vector<8x8xbf16>
    %cst_103 = arith.constant dense<0.000000e+00> : vector<8x8xf32>
    %352 = tpu.matmul %349, %351, %cst_103 {dimension_numbers = #tpu.dot_dimension_numbers<[1], [1], [0], [0], [0, 0, 1, 0], [], []>} : vector<8x8xbf16>, vector<8x8xbf16>, vector<8x8xf32> -> vector<8x8xf32>
    %cst_104 = arith.constant 0.353553385 : f32
    %353 = vector.broadcast %cst_104 : f32 to vector<8x8xf32>
    %354 = arith.mulf %352, %353 : vector<8x8xf32>
    %355 = arith.addf %354, %266 : vector<8x8xf32>
    %cst_105 = arith.constant dense<0xFF800000> : vector<8xf32>
    %356 = vector.multi_reduction <maximumf>, %355, %cst_105 [1] : vector<8x8xf32> to vector<8xf32>
    %357 = vector.shape_cast %356 : vector<8xf32> to vector<8x1xf32>
    %cst_106 = arith.constant 0.000000e+00 : f32
    %358 = vector.broadcast %cst_106 : f32 to vector<8x8xf32>
    %cst_107 = arith.constant 0.000000e+00 : f32
    %359 = vector.broadcast %cst_107 : f32 to vector<8x1xf32>
    %360 = vector.broadcast %357 : vector<8x1xf32> to vector<8x8xf32>
    %361 = arith.subf %355, %360 : vector<8x8xf32>
    %362 = math.exp %361 : vector<8x8xf32>
    %cst_108 = arith.constant dense<0.000000e+00> : vector<8xf32>
    %363 = vector.multi_reduction <add>, %362, %cst_108 [1] : vector<8x8xf32> to vector<8xf32>
    %364 = vector.shape_cast %363 : vector<8xf32> to vector<8x1xf32>
    %365 = arith.addf %359, %364 : vector<8x1xf32>
    %366 = arith.truncf %362 : vector<8x8xf32> to vector<8x8xbf16>
    %367 = vector.extract_strided_slice %269 {offsets = [0, 24], sizes = [8, 8], strides = [1, 1]} : vector<8x32xf32> to vector<8x8xf32>
    %368 = arith.truncf %367 : vector<8x8xf32> to vector<8x8xbf16>
    %cst_109 = arith.constant dense<0.000000e+00> : vector<8x8xf32>
    %369 = tpu.matmul %366, %368, %cst_109 {dimension_numbers = #tpu.dot_dimension_numbers<[1], [0], [0], [1], [0, 0, 1, 1], [], []>} : vector<8x8xbf16>, vector<8x8xbf16>, vector<8x8xf32> -> vector<8x8xf32>
    %370 = arith.addf %358, %369 : vector<8x8xf32>
    %371 = tpu.reciprocal %365 {approx = true} : vector<8x1xf32> -> vector<8x1xf32>
    %372 = vector.broadcast %371 : vector<8x1xf32> to vector<8x8xf32>
    %373 = arith.mulf %370, %372 : vector<8x8xf32>
    %374 = tpu.concatenate %295, %321, %347, %373 in 1 : vector<8x8xf32>, vector<8x8xf32>, vector<8x8xf32>, vector<8x8xf32> -> vector<8x32xf32>
    %375 = arith.truncf %374 : vector<8x32xf32> to vector<8x32xbf16>
    %c0_110 = arith.constant 0 : index
    %c0_111 = arith.constant 0 : index
    %376 = vector.load %arg12[%c0_110, %c0_111] : memref<32x32xbf16, #tpu.memory_space<vmem>>, vector<32x32xbf16>
    %cst_112 = arith.constant dense<0.000000e+00> : vector<8x32xf32>
    %377 = tpu.matmul %375, %376, %cst_112 {dimension_numbers = #tpu.dot_dimension_numbers<[1], [0], [0], [1], [0, 0, 1, 1], [], []>} : vector<8x32xbf16>, vector<32x32xbf16>, vector<8x32xf32> -> vector<8x32xf32>
    %378 = arith.addf %228, %377 : vector<8x32xf32>
    %379 = vector.extract_strided_slice %0 {offsets = [13, 0], sizes = [1, 32], strides = [1, 1]} : vector<21x128xf32> to vector<1x32xf32>
    %380 = vector.broadcast %379 : vector<1x32xf32> to vector<8x32xf32>
    %381 = arith.addf %378, %380 : vector<8x32xf32>
    %382 = vector.extract_strided_slice %0 {offsets = [14, 0], sizes = [1, 32], strides = [1, 1]} : vector<21x128xf32> to vector<1x32xf32>
    %383 = vector.extract_strided_slice %0 {offsets = [15, 0], sizes = [1, 32], strides = [1, 1]} : vector<21x128xf32> to vector<1x32xf32>
    %384 = vector.extract_strided_slice %0 {offsets = [16, 0], sizes = [1, 128], strides = [1, 1]} : vector<21x128xf32> to vector<1x128xf32>
    %385 = vector.extract_strided_slice %0 {offsets = [17, 0], sizes = [1, 32], strides = [1, 1]} : vector<21x128xf32> to vector<1x32xf32>
    %cst_113 = arith.constant dense<0.000000e+00> : vector<8xf32>
    %386 = vector.multi_reduction <add>, %381, %cst_113 [1] : vector<8x32xf32> to vector<8xf32>
    %387 = vector.shape_cast %386 : vector<8xf32> to vector<8x1xf32>
    %cst_114 = arith.constant 3.200000e+01 : f32
    %388 = vector.broadcast %cst_114 : f32 to vector<8x1xf32>
    %389 = arith.divf %387, %388 : vector<8x1xf32>
    %390 = vector.broadcast %389 : vector<8x1xf32> to vector<8x32xf32>
    %391 = arith.subf %381, %390 : vector<8x32xf32>
    %392 = arith.mulf %391, %391 : vector<8x32xf32>
    %cst_115 = arith.constant dense<0.000000e+00> : vector<8xf32>
    %393 = vector.multi_reduction <add>, %392, %cst_115 [1] : vector<8x32xf32> to vector<8xf32>
    %394 = vector.shape_cast %393 : vector<8xf32> to vector<8x1xf32>
    %cst_116 = arith.constant 3.200000e+01 : f32
    %395 = vector.broadcast %cst_116 : f32 to vector<8x1xf32>
    %396 = arith.divf %394, %395 : vector<8x1xf32>
    %cst_117 = arith.constant 9.99999974E-6 : f32
    %397 = vector.broadcast %cst_117 : f32 to vector<8x1xf32>
    %398 = arith.addf %396, %397 : vector<8x1xf32>
    %399 = math.rsqrt %398 : vector<8x1xf32>
    %400 = vector.broadcast %399 : vector<8x1xf32> to vector<8x32xf32>
    %401 = arith.mulf %391, %400 : vector<8x32xf32>
    %402 = vector.broadcast %382 : vector<1x32xf32> to vector<8x32xf32>
    %403 = arith.mulf %401, %402 : vector<8x32xf32>
    %404 = vector.broadcast %383 : vector<1x32xf32> to vector<8x32xf32>
    %405 = arith.addf %403, %404 : vector<8x32xf32>
    %406 = arith.truncf %405 : vector<8x32xf32> to vector<8x32xbf16>
    %c0_118 = arith.constant 0 : index
    %c0_119 = arith.constant 0 : index
    %407 = vector.load %arg13[%c0_118, %c0_119] : memref<32x128xbf16, #tpu.memory_space<vmem>>, vector<32x128xbf16>
    %cst_120 = arith.constant dense<0.000000e+00> : vector<8x128xf32>
    %408 = tpu.matmul %406, %407, %cst_120 {dimension_numbers = #tpu.dot_dimension_numbers<[1], [0], [0], [1], [0, 0, 1, 1], [], []>} : vector<8x32xbf16>, vector<32x128xbf16>, vector<8x128xf32> -> vector<8x128xf32>
    %409 = vector.broadcast %384 : vector<1x128xf32> to vector<8x128xf32>
    %410 = arith.addf %408, %409 : vector<8x128xf32>
    %411 = arith.mulf %410, %410 : vector<8x128xf32>
    %412 = arith.mulf %410, %411 : vector<8x128xf32>
    %cst_121 = arith.constant 4.471500e-02 : f32
    %413 = vector.broadcast %cst_121 : f32 to vector<8x128xf32>
    %414 = arith.mulf %413, %412 : vector<8x128xf32>
    %415 = arith.addf %410, %414 : vector<8x128xf32>
    %cst_122 = arith.constant 0.797884583 : f32
    %416 = vector.broadcast %cst_122 : f32 to vector<8x128xf32>
    %417 = arith.mulf %416, %415 : vector<8x128xf32>
    %418 = math.tanh %417 : vector<8x128xf32>
    %cst_123 = arith.constant 1.000000e+00 : f32
    %419 = vector.broadcast %cst_123 : f32 to vector<8x128xf32>
    %420 = arith.addf %419, %418 : vector<8x128xf32>
    %cst_124 = arith.constant 5.000000e-01 : f32
    %421 = vector.broadcast %cst_124 : f32 to vector<8x128xf32>
    %422 = arith.mulf %421, %420 : vector<8x128xf32>
    %423 = arith.mulf %410, %422 : vector<8x128xf32>
    %424 = arith.truncf %423 : vector<8x128xf32> to vector<8x128xbf16>
    %c0_125 = arith.constant 0 : index
    %c0_126 = arith.constant 0 : index
    %425 = vector.load %arg14[%c0_125, %c0_126] : memref<128x32xbf16, #tpu.memory_space<vmem>>, vector<128x32xbf16>
    %cst_127 = arith.constant dense<0.000000e+00> : vector<8x32xf32>
    %426 = tpu.matmul %424, %425, %cst_127 {dimension_numbers = #tpu.dot_dimension_numbers<[1], [0], [0], [1], [0, 0, 1, 1], [], []>} : vector<8x128xbf16>, vector<128x32xbf16>, vector<8x32xf32> -> vector<8x32xf32>
    %427 = vector.broadcast %385 : vector<1x32xf32> to vector<8x32xf32>
    %428 = arith.addf %426, %427 : vector<8x32xf32>
    %429 = arith.addf %381, %428 : vector<8x32xf32>
    %430 = vector.extract_strided_slice %0 {offsets = [18, 0], sizes = [1, 32], strides = [1, 1]} : vector<21x128xf32> to vector<1x32xf32>
    %431 = vector.extract_strided_slice %0 {offsets = [19, 0], sizes = [1, 32], strides = [1, 1]} : vector<21x128xf32> to vector<1x32xf32>
    %cst_128 = arith.constant dense<0.000000e+00> : vector<8xf32>
    %432 = vector.multi_reduction <add>, %429, %cst_128 [1] : vector<8x32xf32> to vector<8xf32>
    %433 = vector.shape_cast %432 : vector<8xf32> to vector<8x1xf32>
    %cst_129 = arith.constant 3.200000e+01 : f32
    %434 = vector.broadcast %cst_129 : f32 to vector<8x1xf32>
    %435 = arith.divf %433, %434 : vector<8x1xf32>
    %436 = vector.broadcast %435 : vector<8x1xf32> to vector<8x32xf32>
    %437 = arith.subf %429, %436 : vector<8x32xf32>
    %438 = arith.mulf %437, %437 : vector<8x32xf32>
    %cst_130 = arith.constant dense<0.000000e+00> : vector<8xf32>
    %439 = vector.multi_reduction <add>, %438, %cst_130 [1] : vector<8x32xf32> to vector<8xf32>
    %440 = vector.shape_cast %439 : vector<8xf32> to vector<8x1xf32>
    %cst_131 = arith.constant 3.200000e+01 : f32
    %441 = vector.broadcast %cst_131 : f32 to vector<8x1xf32>
    %442 = arith.divf %440, %441 : vector<8x1xf32>
    %cst_132 = arith.constant 9.99999974E-6 : f32
    %443 = vector.broadcast %cst_132 : f32 to vector<8x1xf32>
    %444 = arith.addf %442, %443 : vector<8x1xf32>
    %445 = math.rsqrt %444 : vector<8x1xf32>
    %446 = vector.broadcast %445 : vector<8x1xf32> to vector<8x32xf32>
    %447 = arith.mulf %437, %446 : vector<8x32xf32>
    %448 = vector.broadcast %430 : vector<1x32xf32> to vector<8x32xf32>
    %449 = arith.mulf %447, %448 : vector<8x32xf32>
    %450 = vector.broadcast %431 : vector<1x32xf32> to vector<8x32xf32>
    %451 = arith.addf %449, %450 : vector<8x32xf32>
    %452 = arith.truncf %451 : vector<8x32xf32> to vector<8x32xbf16>
    %c0_133 = arith.constant 0 : index
    %c0_134 = arith.constant 0 : index
    %453 = vector.load %arg15[%c0_133, %c0_134] : memref<32x128xbf16, #tpu.memory_space<vmem>>, vector<32x128xbf16>
    %cst_135 = arith.constant dense<0.000000e+00> : vector<8x128xf32>
    %454 = tpu.matmul %452, %453, %cst_135 {dimension_numbers = #tpu.dot_dimension_numbers<[1], [0], [0], [1], [0, 0, 1, 1], [], []>} : vector<8x32xbf16>, vector<32x128xbf16>, vector<8x128xf32> -> vector<8x128xf32>
    %455 = vector.extract_strided_slice %0 {offsets = [20, 0], sizes = [1, 128], strides = [1, 1]} : vector<21x128xf32> to vector<1x128xf32>
    %456 = vector.broadcast %455 : vector<1x128xf32> to vector<8x128xf32>
    %457 = arith.addf %454, %456 : vector<8x128xf32>
    %c0_136 = arith.constant 0 : index
    %c0_137 = arith.constant 0 : index
    %c0_138 = arith.constant 0 : index
    %458 = vector.load %arg16[%c0_136, %c0_137, %c0_138] : memref<1x8x128xf32, #tpu.memory_space<vmem>>, vector<1x8x128xf32>
    %459 = vector.shape_cast %458 : vector<1x8x128xf32> to vector<8x128xf32>
    %460 = vector.shape_cast %457 : vector<8x128xf32> to vector<1x8x128xf32>
    tpu.vector_store %arg16[%c0_136, %c0_137, %c0_138], %460 {strides = array<i32>} : memref<1x8x128xf32, #tpu.memory_space<vmem>>, vector<1x8x128xf32>,
    return
  }
  func.func @transform_0(%arg0: i32) -> (i32, i32, i32) {
    %c0_i32 = arith.constant 0 : i32
    %c0_i32_0 = arith.constant 0 : i32
    %c0_i32_1 = arith.constant 0 : i32
    return %arg0, %c0_i32, %c0_i32_0 : i32, i32, i32
  }
  func.func @transform_1(%arg0: i32) -> (i32, i32, i32) {
    %c0_i32 = arith.constant 0 : i32
    %c0_i32_0 = arith.constant 0 : i32
    %c0_i32_1 = arith.constant 0 : i32
    return %arg0, %c0_i32, %c0_i32_0 : i32, i32, i32
  }
  func.func @transform_2(%arg0: i32) -> (i32, i32, i32) {
    %c0_i32 = arith.constant 0 : i32
    %c0_i32_0 = arith.constant 0 : i32
    %c0_i32_1 = arith.constant 0 : i32
    return %arg0, %c0_i32, %c0_i32_0 : i32, i32, i32
  }
  func.func @transform_3(%arg0: i32) -> (i32, i32, i32) {
    %c0_i32 = arith.constant 0 : i32
    %c0_i32_0 = arith.constant 0 : i32
    %c0_i32_1 = arith.constant 0 : i32
    return %arg0, %c0_i32, %c0_i32_0 : i32, i32, i32
  }
  func.func @transform_4(%arg0: i32) -> (i32, i32) {
    %c0_i32 = arith.constant 0 : i32
    %c0_i32_0 = arith.constant 0 : i32
    %c0_i32_1 = arith.constant 0 : i32
    return %c0_i32, %c0_i32_0 : i32, i32
  }
  func.func @transform_5(%arg0: i32) -> (i32, i32) {
    %c0_i32 = arith.constant 0 : i32
    %c0_i32_0 = arith.constant 0 : i32
    %c0_i32_1 = arith.constant 0 : i32
    return %c0_i32, %c0_i32_0 : i32, i32
  }
  func.func @transform_6(%arg0: i32) -> (i32, i32) {
    %c0_i32 = arith.constant 0 : i32
    %c0_i32_0 = arith.constant 0 : i32
    %c0_i32_1 = arith.constant 0 : i32
    return %c0_i32, %c0_i32_0 : i32, i32
  }
  func.func @transform_7(%arg0: i32) -> (i32, i32) {
    %c0_i32 = arith.constant 0 : i32
    %c0_i32_0 = arith.constant 0 : i32
    %c0_i32_1 = arith.constant 0 : i32
    return %c0_i32, %c0_i32_0 : i32, i32
  }
  func.func @transform_8(%arg0: i32) -> (i32, i32) {
    %c0_i32 = arith.constant 0 : i32
    %c0_i32_0 = arith.constant 0 : i32
    %c0_i32_1 = arith.constant 0 : i32
    return %c0_i32, %c0_i32_0 : i32, i32
  }
  func.func @transform_9(%arg0: i32) -> (i32, i32) {
    %c0_i32 = arith.constant 0 : i32
    %c0_i32_0 = arith.constant 0 : i32
    %c0_i32_1 = arith.constant 0 : i32
    return %c0_i32, %c0_i32_0 : i32, i32
  }
  func.func @transform_10(%arg0: i32) -> (i32, i32) {
    %c0_i32 = arith.constant 0 : i32
    %c0_i32_0 = arith.constant 0 : i32
    %c0_i32_1 = arith.constant 0 : i32
    return %c0_i32, %c0_i32_0 : i32, i32
  }
  func.func @transform_11(%arg0: i32) -> (i32, i32) {
    %c0_i32 = arith.constant 0 : i32
    %c0_i32_0 = arith.constant 0 : i32
    %c0_i32_1 = arith.constant 0 : i32
    return %c0_i32, %c0_i32_0 : i32, i32
  }
  func.func @transform_12(%arg0: i32) -> (i32, i32) {
    %c0_i32 = arith.constant 0 : i32
    %c0_i32_0 = arith.constant 0 : i32
    %c0_i32_1 = arith.constant 0 : i32
    return %c0_i32, %c0_i32_0 : i32, i32
  }
  func.func @transform_13(%arg0: i32) -> (i32, i32) {
    %c0_i32 = arith.constant 0 : i32
    %c0_i32_0 = arith.constant 0 : i32
    %c0_i32_1 = arith.constant 0 : i32
    return %c0_i32, %c0_i32_0 : i32, i32
  }
  func.func @transform_14(%arg0: i32) -> (i32, i32) {
    %c0_i32 = arith.constant 0 : i32
    %c0_i32_0 = arith.constant 0 : i32
    %c0_i32_1 = arith.constant 0 : i32
    return %c0_i32, %c0_i32_0 : i32, i32
  }
  func.func @transform_15(%arg0: i32) -> (i32, i32, i32) {
    %c0_i32 = arith.constant 0 : i32
    %c0_i32_0 = arith.constant 0 : i32
    %c0_i32_1 = arith.constant 0 : i32
    return %arg0, %c0_i32, %c0_i32_0 : i32, i32, i32
  }
}

</mosaic_0001>

<llo_original>
// kernel: flamingo_forward.4
$region0: #{flamingo_forward.4}
  #allocation0 [shape = 'u32[]', space=smem, size = 0x4, offset = 0x4, fixed_abs, tag = 'smem constant byte address 0x4 - core index']
  #allocation1 [shape = 'u32[144,128]{1,0:T(1,128)}', space=vmem, size = 0x12000, scoped, tag = 'internal scratch']
  %s0 = inlined_call_operand.vmem [shape: f32[8,192], index: 0, kind: input, shape index: {}]
  %s1 = inlined_call_operand.vmem [shape: bf16[192,32], index: 1, kind: input, shape index: {}]
  %s2 = inlined_call_operand.vmem [shape: f32[3,32], index: 2, kind: input, shape index: {}]
  %s3 = inlined_call_operand.vmem [shape: bf16[8,32], index: 3, kind: output, shape index: {}]
  %s4 = sld [smem:[#allocation0]]
  $region22: #{flamingo_forward.4} parent=0
    _
  %s6 = ssub.s32 1, %s4
  %s7 = scalar_select 0, %s6, %s4
  // Predicated region
  $region2: #{flamingo_forward.4} parent=0 // pred_check
    _
  $region3: #{flamingo_forward.4} parent=0 // pred_check_branch
    %9 = sbr.rel (0) target = $region5
  $region4: #{flamingo_forward.4} parent=0 // pred_region
    _
  $region5: #{flamingo_forward.4} parent=0 // pred_fallthru
    _
  // Predicated region
  $region6: #{flamingo_forward.4} parent=0 // pred_check
    _
  $region7: #{flamingo_forward.4} parent=0 // pred_check_branch
    %11 = sbr.rel (0) target = $region9
  $region8: #{flamingo_forward.4} parent=0 // pred_region
    _
  $region9: #{flamingo_forward.4} parent=0 // pred_fallthru
    _
  // Predicated region
  $region10: #{flamingo_forward.4} parent=0 // pred_check
    _
  $region11: #{flamingo_forward.4} parent=0 // pred_check_branch
    %13 = sbr.rel (0) target = $region13
  $region12: #{flamingo_forward.4} parent=0 // pred_region
    _
  $region13: #{flamingo_forward.4} parent=0 // pred_fallthru
    _
  %v15 = vld [vmem:[%s2] sm:$0x7]
  %v16 = vld [vmem:[%s0] sm:$0xff]
  %v17 = vld [vmem:[%s0 + $0x8] sm:$0xff]
  %v18 = vpack.c.bf16 %v16, %v16
  %v19 = vpack.c.bf16 %v17, %v17
  %v20 = vld [vmem:[%s1] sm:$0xf]
  %v21 = vld [vmem:[%s1 + $0x4] sm:$0xf]
  %v22 = vld [vmem:[%s1 + $0x8] sm:$0xf]
  %v23 = vld [vmem:[%s1 + $0xc] sm:$0xf]
  %v24 = vld [vmem:[%s1 + $0x10] sm:$0xf]
  %v25 = vld [vmem:[%s1 + $0x14] sm:$0xf]
  %v26 = vld [vmem:[%s1 + $0x18] sm:$0xf]
  %v27 = vld [vmem:[%s1 + $0x1c] sm:$0xf]
  %v28 = vld [vmem:[%s1 + $0x20] sm:$0xf]
  %v29 = vld [vmem:[%s1 + $0x24] sm:$0xf]
  %v30 = vld [vmem:[%s1 + $0x28] sm:$0xf]
  %v31 = vld [vmem:[%s1 + $0x2c] sm:$0xf]
  %v32 = vld [vmem:[%s1 + $0x30] sm:$0xf]
  %v33 = vld [vmem:[%s1 + $0x34] sm:$0xf]
  %v34 = vld [vmem:[%s1 + $0x38] sm:$0xf]
  %v35 = vld [vmem:[%s1 + $0x3c] sm:$0xf]
  %v36 = vld [vmem:[%s1 + $0x40] sm:$0xf]
  %v37 = vld [vmem:[%s1 + $0x44] sm:$0xf]
  %v38 = vld [vmem:[%s1 + $0x48] sm:$0xf]
  %v39 = vld [vmem:[%s1 + $0x4c] sm:$0xf]
  %v40 = vld [vmem:[%s1 + $0x50] sm:$0xf]
  %v41 = vld [vmem:[%s1 + $0x54] sm:$0xf]
  %v42 = vld [vmem:[%s1 + $0x58] sm:$0xf]
  %v43 = vld [vmem:[%s1 + $0x5c] sm:$0xf]
  %v44 = vlaneseq
  %v45 = vshrl.u32 %v44, 7
  %v46 = vsub.s32 0, %v45
  %v47 = vrot.slane %v15, %v46
  %v72 = vunpack.c.l.b16 %v20
  %v73 = vunpack.c.l.b16 %v21
  %v74 = vunpack.c.l.b16 %v22
  %v75 = vunpack.c.l.b16 %v23
  %v76 = vunpack.c.l.b16 %v24
  %v77 = vunpack.c.l.b16 %v25
  %v78 = vunpack.c.l.b16 %v26
  %v79 = vunpack.c.l.b16 %v27
  %v80 = vunpack.c.l.b16 %v28
  %v81 = vunpack.c.l.b16 %v29
  %v82 = vunpack.c.l.b16 %v30
  %v83 = vunpack.c.l.b16 %v31
  %v84 = vunpack.c.l.b16 %v32
  %v85 = vunpack.c.l.b16 %v33
  %v86 = vunpack.c.l.b16 %v34
  %v87 = vunpack.c.l.b16 %v35
  %v88 = vunpack.c.l.b16 %v36
  %v89 = vunpack.c.l.b16 %v37
  %v90 = vunpack.c.l.b16 %v38
  %v91 = vunpack.c.l.b16 %v39
  %v92 = vunpack.c.l.b16 %v40
  %v93 = vunpack.c.l.b16 %v41
  %v94 = vunpack.c.l.b16 %v42
  %v95 = vunpack.c.l.b16 %v43
  %v96 = vpack.c.b16 %v73, %v72
  %v97 = vpack.c.b16 %v75, %v74
  %v98 = vpack.c.b16 %v77, %v76
  %v99 = vpack.c.b16 %v79, %v78
  %v100 = vpack.c.b16 %v81, %v80
  %v101 = vpack.c.b16 %v83, %v82
  %v102 = vpack.c.b16 %v85, %v84
  %v103 = vpack.c.b16 %v87, %v86
  %v104 = vpack.c.b16 %v89, %v88
  %v105 = vpack.c.b16 %v91, %v90
  %v106 = vpack.c.b16 %v93, %v92
  %v107 = vpack.c.b16 %v95, %v94
  %vm120 = vcmask 523264
  %v122 = vsel %vm120, %v19, 0
  %124 = vmatprep.subr.bf16.mxu0 0
  %125 = vmatpush1.bf16.msra.mxu0 %v96
  %126 = vmatprep.subr.bf16.mxu0 0
  %127 = vmatpush1.bf16.msra.mxu0 %v97
  %128 = vmatprep.subr.bf16.mxu0 0
  %129 = vmatpush1.bf16.msra.mxu0 %v98
  %130 = vmatprep.subr.bf16.mxu0 0
  %131 = vmatpush1.bf16.msra.mxu0 %v99
  %132 = vmatprep.subr.bf16.mxu0 0
  %133 = vmatpush1.bf16.msra.mxu0 %v100
  %134 = vmatprep.subr.bf16.mxu0 0
  %135 = vmatpush1.bf16.msra.mxu0 %v101
  %136 = vmatprep.subr.bf16.mxu0 0
  %137 = vmatpush1.bf16.msra.mxu0 %v102
  %138 = vmatprep.subr.bf16.mxu0 0
  %139 = vmatpush1.bf16.msra.mxu0 %v103
  %140 = vmatprep.subr.bf16.mxu0 0
  %141 = vmatpush1.bf16.msra.mxu0 %v104
  %142 = vmatprep.subr.bf16.mxu0 0
  %143 = vmatpush1.bf16.msra.mxu0 %v105
  %144 = vmatprep.subr.bf16.mxu0 0
  %145 = vmatpush1.bf16.msra.mxu0 %v106
  %146 = vmatprep.subr.bf16.mxu0 0
  %147 = vmatpush1.bf16.msra.mxu0 %v107
  %148 = vmatprep.subr.bf16.mxu0 0
  %149 = vmatpush1.bf16.msra.mxu0 0
  %150 = vmatprep.subr.bf16.mxu0 0
  %151 = vmatpush1.bf16.msra.mxu0 0
  %152 = vmatprep.subr.bf16.mxu0 0
  %153 = vmatpush1.bf16.msra.mxu0 0
  %154 = vmatprep.subr.bf16.mxu0 0
  %155 = vmatpush1.bf16.msra.mxu0 0
  %156 = vmatprep.mubr.bf16.mxu0 %v122
  %157 = vmatmul.mubr.bf16.gmra.mrb[0].mxu0 %v18
  %v158 = vpop.f32.mrb[0].mxu0
  %v159 = vadd.f32 %v47, %v158
  %v160 = vpop.f32.mrb[0].mxu0
  %v161 = vpop.f32.mrb[0].mxu0
  %v162 = vpop.f32.mrb[0].mxu0
  %163 = vdwg.mxu0
  %vm164 = vcmask 261120
  %v165 = vsel %vm164, %v159, 0.0
  %166 = vadd.xlane.f32.xlu0 %v165
  %v167 = vpop.xlane.xlu0 %166
  %v168 = vrcp.pop 32.0
  %v169 = vmul.f32 %v167, %v168
  %v170 = vsub.f32 %v159, %v169
  %v171 = vmul.f32 %v170, %v170
  %v172 = vsel %vm164, %v171, 0.0
  %173 = vadd.xlane.f32.xlu0 %v172
  %v174 = vpop.xlane.xlu0 %173
  %v175 = vmul.f32 %v174, %v168
  %v176 = vadd.f32 %v175, 1e-05
  %v177 = vrsqrt.pop %v176
  %v178 = vmul.f32 %v170, %v177
  %v179 = vlaneseq
  %v180 = vshrl.u32 %v179, 7
  %v181 = vsub.s32 1, %v180
  %v182 = vrot.slane %v15, %v181
  %v183 = vmul.f32 %v178, %v182
  %v184 = vlaneseq
  %v185 = vshrl.u32 %v184, 7
  %v186 = vsub.s32 2, %v185
  %v187 = vrot.slane %v15, %v186
  %v188 = vadd.f32 %v183, %v187
  %v189 = vpack.c.bf16 %v188, %v188
  %vm190 = vcmask 257024
  %191 = vst.msk [vmem:[%s3] sm:$0xf] %vm190, %v189
  // Predicated region
  $region14: #{flamingo_forward.4} parent=0 // pred_check
    _
  $region15: #{flamingo_forward.4} parent=0 // pred_check_branch
    %193 = sbr.rel (0) target = $region17
  $region16: #{flamingo_forward.4} parent=0 // pred_region
    _
  $region17: #{flamingo_forward.4} parent=0 // pred_fallthru
    _
  // Predicated region
  $region18: #{flamingo_forward.4} parent=0 // pred_check
    _
  $region19: #{flamingo_forward.4} parent=0 // pred_check_branch
    %195 = sbr.rel (0) target = $region21
  $region20: #{flamingo_forward.4} parent=0 // pred_region
    _
  $region21: #{flamingo_forward.4} parent=0 // pred_fallthru
    _

// kernel: flamingo_forward.6
$region0: #{flamingo_forward.6}
  #allocation0 [shape = 'u32[]', space=smem, size = 0x4, offset = 0x4, fixed_abs, tag = 'smem constant byte address 0x4 - core index']
  #allocation1 [shape = 'u32[144,128]{1,0:T(1,128)}', space=vmem, size = 0x12000, scoped, tag = 'internal scratch']
  %s0 = inlined_call_operand.vmem [shape: bf16[2,4,32], index: 0, kind: input, shape index: {}]
  %s1 = inlined_call_operand.vmem [shape: bf16[2,8,32], index: 1, kind: input, shape index: {}]
  %s2 = inlined_call_operand.vmem [shape: f32[13,128], index: 2, kind: input, shape index: {}]
  %s3 = inlined_call_operand.vmem [shape: bf16[32,32], index: 3, kind: input, shape index: {}]
  %s4 = inlined_call_operand.vmem [shape: bf16[32,64], index: 4, kind: input, shape index: {}]
  %s5 = inlined_call_operand.vmem [shape: bf16[32,32], index: 5, kind: input, shape index: {}]
  %s6 = inlined_call_operand.vmem [shape: bf16[32,128], index: 6, kind: input, shape index: {}]
  %s7 = inlined_call_operand.vmem [shape: bf16[128,32], index: 7, kind: input, shape index: {}]
  %s8 = inlined_call_operand.vmem [shape: bf16[2,8,32], index: 8, kind: output, shape index: {}]
  %s9 = sld [smem:[#allocation0]]
  $region65: #{flamingo_forward.6} parent=0
    _
  %s11 = ssub.s32 1, %s9
  %s12 = scalar_select 0, %s11, %s9
  loop: start=0, step=1, limit=4
  $region2: #{flamingo_forward.6} parent=0 // loop_pre_header
    _
  $region3: #{flamingo_forward.6} parent=0 // loop_header
    %s14 = sphi 0, %s18
    %p15 = scmp.ge.s32.totalorder %s14, 4
    %s24 = sphi 0, %s26
    %s27 = sphi 0, %s24
    %s28 = sphi 0, %s27
    %s44 = sphi 0, %s28
    %s50 = sphi 0, %s52
    %s53 = sphi 0, %s50
    %s54 = sphi 0, %s53
    %s70 = sphi 0, %s54
    %s74 = sphi 0, %s74
    %s76 = sphi 0, %s74
    %s77 = sphi 0, %s76
    %s91 = sphi 0, %s77
    %s95 = sphi 0, %s95
    %s97 = sphi 0, %s95
    %s98 = sphi 0, %s97
    %s112 = sphi 0, %s98
    %s116 = sphi 0, %s116
    %s118 = sphi 0, %s116
    %s119 = sphi 0, %s118
    %s133 = sphi 0, %s119
    %s137 = sphi 0, %s137
    %s139 = sphi 0, %s137
    %s140 = sphi 0, %s139
    %s154 = sphi 0, %s140
    %s158 = sphi 0, %s158
    %s160 = sphi 0, %s158
    %s161 = sphi 0, %s160
    %s175 = sphi 0, %s161
    %s179 = sphi 0, %s179
    %s181 = sphi 0, %s179
    %s182 = sphi 0, %s181
    %s196 = sphi 0, %s182
    %s202 = sphi 0, %s204
    %s205 = sphi 0, %s202
    %s206 = sphi 0, %s205
    %s222 = sphi 0, %s206
  $region4: #{flamingo_forward.6} parent=0 // loop_header_branch
    %17 = sbr.rel (%p15) target = $region8
  $region5: #{flamingo_forward.6} parent=0 // loop_body
    %s19 = ssub.s32 %s14, 1
    %s20 = ssub.s32 %s14, 2
    %s21 = sadd.s32 %s14, 1
    %s22 = ssub.s32 %s14, %s21
    %p23 = scmp.eq.s32.totalorder %s22, 0
    %s25 = sadd.s32 %s24, 1
    %s26 = scalar_select %p23, %s24, %s25
    %p29 = pneg %p23
    %p30 = scmp.eq.s32.totalorder %s14, 1
    %p31 = por %p29, %p30
    %p32 = scmp.ne.s32.totalorder %s24, %s27
    %p33 = scmp.eq.s32.totalorder %s14, 0
    %p34 = por %p32, %p33
    %p35 = scmp.ne.s32.totalorder %s24, %s27
    %p36 = scmp.eq.s32.totalorder %s19, 1
    %p37 = por %p35, %p36
    %p38 = scmp.ne.s32.totalorder %s27, %s28
    %p39 = scmp.eq.s32.totalorder %s19, 0
    %p40 = por %p38, %p39
    %p41 = scmp.ne.s32.totalorder %s27, %s28
    %p42 = scmp.eq.s32.totalorder %s20, 1
    %p43 = por %p41, %p42
    %p45 = scmp.ne.s32.totalorder %s28, %s44
    %p46 = scmp.eq.s32.totalorder %s20, 0
    %p47 = por %p45, %p46
    %s48 = ssub.s32 %s14, %s21
    %p49 = scmp.eq.s32.totalorder %s48, 0
    %s51 = sadd.s32 %s50, 1
    %s52 = scalar_select %p49, %s50, %s51
    %p55 = pneg %p49
    %p56 = scmp.eq.s32.totalorder %s14, 1
    %p57 = por %p55, %p56
    %p58 = scmp.ne.s32.totalorder %s50, %s53
    %p59 = scmp.eq.s32.totalorder %s14, 0
    %p60 = por %p58, %p59
    %p61 = scmp.ne.s32.totalorder %s50, %s53
    %p62 = scmp.eq.s32.totalorder %s19, 1
    %p63 = por %p61, %p62
    %p64 = scmp.ne.s32.totalorder %s53, %s54
    %p65 = scmp.eq.s32.totalorder %s19, 0
    %p66 = por %p64, %p65
    %p67 = scmp.ne.s32.totalorder %s53, %s54
    %p68 = scmp.eq.s32.totalorder %s20, 1
    %p69 = por %p67, %p68
    %p71 = scmp.ne.s32.totalorder %s54, %s70
    %p72 = scmp.eq.s32.totalorder %s20, 0
    %p73 = por %p71, %p72
    %s75 = sadd.s32 %s74, 1
    %p78 = scmp.eq.s32.totalorder %s14, 1
    %p79 = scmp.ne.s32.totalorder %s74, %s76
    %p80 = scmp.eq.s32.totalorder %s14, 0
    %p81 = por %p79, %p80
    %p82 = scmp.ne.s32.totalorder %s74, %s76
    %p83 = scmp.eq.s32.totalorder %s19, 1
    %p84 = por %p82, %p83
    %p85 = scmp.ne.s32.totalorder %s76, %s77
    %p86 = scmp.eq.s32.totalorder %s19, 0
    %p87 = por %p85, %p86
    %p88 = scmp.ne.s32.totalorder %s76, %s77
    %p89 = scmp.eq.s32.totalorder %s20, 1
    %p90 = por %p88, %p89
    %p92 = scmp.ne.s32.totalorder %s77, %s91
    %p93 = scmp.eq.s32.totalorder %s20, 0
    %p94 = por %p92, %p93
    %s96 = sadd.s32 %s95, 1
    %p99 = scmp.eq.s32.totalorder %s14, 1
    %p100 = scmp.ne.s32.totalorder %s95, %s97
    %p101 = scmp.eq.s32.totalorder %s14, 0
    %p102 = por %p100, %p101
    %p103 = scmp.ne.s32.totalorder %s95, %s97
    %p104 = scmp.eq.s32.totalorder %s19, 1
    %p105 = por %p103, %p104
    %p106 = scmp.ne.s32.totalorder %s97, %s98
    %p107 = scmp.eq.s32.totalorder %s19, 0
    %p108 = por %p106, %p107
    %p109 = scmp.ne.s32.totalorder %s97, %s98
    %p110 = scmp.eq.s32.totalorder %s20, 1
    %p111 = por %p109, %p110
    %p113 = scmp.ne.s32.totalorder %s98, %s112
    %p114 = scmp.eq.s32.totalorder %s20, 0
    %p115 = por %p113, %p114
    %s117 = sadd.s32 %s116, 1
    %p120 = scmp.eq.s32.totalorder %s14, 1
    %p121 = scmp.ne.s32.totalorder %s116, %s118
    %p122 = scmp.eq.s32.totalorder %s14, 0
    %p123 = por %p121, %p122
    %p124 = scmp.ne.s32.totalorder %s116, %s118
    %p125 = scmp.eq.s32.totalorder %s19, 1
    %p126 = por %p124, %p125
    %p127 = scmp.ne.s32.totalorder %s118, %s119
    %p128 = scmp.eq.s32.totalorder %s19, 0
    %p129 = por %p127, %p128
    %p130 = scmp.ne.s32.totalorder %s118, %s119
    %p131 = scmp.eq.s32.totalorder %s20, 1
    %p132 = por %p130, %p131
    %p134 = scmp.ne.s32.totalorder %s119, %s133
    %p135 = scmp.eq.s32.totalorder %s20, 0
    %p136 = por %p134, %p135
    %s138 = sadd.s32 %s137, 1
    %p141 = scmp.eq.s32.totalorder %s14, 1
    %p142 = scmp.ne.s32.totalorder %s137, %s139
    %p143 = scmp.eq.s32.totalorder %s14, 0
    %p144 = por %p142, %p143
    %p145 = scmp.ne.s32.totalorder %s137, %s139
    %p146 = scmp.eq.s32.totalorder %s19, 1
    %p147 = por %p145, %p146
    %p148 = scmp.ne.s32.totalorder %s139, %s140
    %p149 = scmp.eq.s32.totalorder %s19, 0
    %p150 = por %p148, %p149
    %p151 = scmp.ne.s32.totalorder %s139, %s140
    %p152 = scmp.eq.s32.totalorder %s20, 1
    %p153 = por %p151, %p152
    %p155 = scmp.ne.s32.totalorder %s140, %s154
    %p156 = scmp.eq.s32.totalorder %s20, 0
    %p157 = por %p155, %p156
    %s159 = sadd.s32 %s158, 1
    %p162 = scmp.eq.s32.totalorder %s14, 1
    %p163 = scmp.ne.s32.totalorder %s158, %s160
    %p164 = scmp.eq.s32.totalorder %s14, 0
    %p165 = por %p163, %p164
    %p166 = scmp.ne.s32.totalorder %s158, %s160
    %p167 = scmp.eq.s32.totalorder %s19, 1
    %p168 = por %p166, %p167
    %p169 = scmp.ne.s32.totalorder %s160, %s161
    %p170 = scmp.eq.s32.totalorder %s19, 0
    %p171 = por %p169, %p170
    %p172 = scmp.ne.s32.totalorder %s160, %s161
    %p173 = scmp.eq.s32.totalorder %s20, 1
    %p174 = por %p172, %p173
    %p176 = scmp.ne.s32.totalorder %s161, %s175
    %p177 = scmp.eq.s32.totalorder %s20, 0
    %p178 = por %p176, %p177
    %s180 = sadd.s32 %s179, 1
    %p183 = scmp.eq.s32.totalorder %s14, 1
    %p184 = scmp.ne.s32.totalorder %s179, %s181
    %p185 = scmp.eq.s32.totalorder %s14, 0
    %p186 = por %p184, %p185
    %p187 = scmp.ne.s32.totalorder %s179, %s181
    %p188 = scmp.eq.s32.totalorder %s19, 1
    %p189 = por %p187, %p188
    %p190 = scmp.ne.s32.totalorder %s181, %s182
    %p191 = scmp.eq.s32.totalorder %s19, 0
    %p192 = por %p190, %p191
    %p193 = scmp.ne.s32.totalorder %s181, %s182
    %p194 = scmp.eq.s32.totalorder %s20, 1
    %p195 = por %p193, %p194
    %p197 = scmp.ne.s32.totalorder %s182, %s196
    %p198 = scmp.eq.s32.totalorder %s20, 0
    %p199 = por %p197, %p198
    %s200 = ssub.s32 %s14, %s21
    %p201 = scmp.eq.s32.totalorder %s200, 0
    %s203 = sadd.s32 %s202, 1
    %s204 = scalar_select %p201, %s202, %s203
    %p207 = pneg %p201
    %p208 = scmp.eq.s32.totalorder %s14, 1
    %p209 = por %p207, %p208
    %p210 = scmp.ne.s32.totalorder %s202, %s205
    %p211 = scmp.eq.s32.totalorder %s14, 0
    %p212 = por %p210, %p211
    %p213 = scmp.ne.s32.totalorder %s202, %s205
    %p214 = scmp.eq.s32.totalorder %s19, 1
    %p215 = por %p213, %p214
    %p216 = scmp.ne.s32.totalorder %s205, %s206
    %p217 = scmp.eq.s32.totalorder %s19, 0
    %p218 = por %p216, %p217
    %p219 = scmp.ne.s32.totalorder %s205, %s206
    %p220 = scmp.eq.s32.totalorder %s20, 1
    %p221 = por %p219, %p220
    %p223 = scmp.ne.s32.totalorder %s206, %s222
    %p224 = scmp.eq.s32.totalorder %s20, 0
    %p225 = por %p223, %p224
    %p226 = scmp.le.s32.totalorder 1, %s14
    %p227 = scmp.lt.s32.totalorder %s14, 3
    %p228 = pnand %p226, %p227
    %p229 = pneg %p228
    // Predicated region
    $region9: #{flamingo_forward.6} parent=5 // pred_check
      _
    $region10: #{flamingo_forward.6} parent=5 // pred_check_branch
      %231 = sbr.rel (%p228) target = $region12
    $region11: #{flamingo_forward.6} parent=5 // pred_region
      %s232 = ssub.s32 %s14, 1
      // Predicated region
      $region13: #{flamingo_forward.6} parent=11 // pred_check
        %p233 = pneg %p87
      $region14: #{flamingo_forward.6} parent=11 // pred_check_branch
        %235 = sbr.rel (%p233) target = $region16
      $region15: #{flamingo_forward.6} parent=11 // pred_region
        _
      $region16: #{flamingo_forward.6} parent=11 // pred_fallthru
        _
      // Predicated region
      $region17: #{flamingo_forward.6} parent=11 // pred_check
        %p236 = pneg %p108
      $region18: #{flamingo_forward.6} parent=11 // pred_check_branch
        %238 = sbr.rel (%p236) target = $region20
      $region19: #{flamingo_forward.6} parent=11 // pred_region
        _
      $region20: #{flamingo_forward.6} parent=11 // pred_fallthru
        _
      // Predicated region
      $region21: #{flamingo_forward.6} parent=11 // pred_check
        %p239 = pneg %p129
      $region22: #{flamingo_forward.6} parent=11 // pred_check_branch
        %241 = sbr.rel (%p239) target = $region24
      $region23: #{flamingo_forward.6} parent=11 // pred_region
        _
      $region24: #{flamingo_forward.6} parent=11 // pred_fallthru
        _
      // Predicated region
      $region25: #{flamingo_forward.6} parent=11 // pred_check
        %p242 = pneg %p150
      $region26: #{flamingo_forward.6} parent=11 // pred_check_branch
        %244 = sbr.rel (%p242) target = $region28
      $region27: #{flamingo_forward.6} parent=11 // pred_region
        _
      $region28: #{flamingo_forward.6} parent=11 // pred_fallthru
        _
      // Predicated region
      $region29: #{flamingo_forward.6} parent=11 // pred_check
        %p245 = pneg %p171
      $region30: #{flamingo_forward.6} parent=11 // pred_check_branch
        %247 = sbr.rel (%p245) target = $region32
      $region31: #{flamingo_forward.6} parent=11 // pred_region
        _
      $region32: #{flamingo_forward.6} parent=11 // pred_fallthru
        _
      // Predicated region
      $region33: #{flamingo_forward.6} parent=11 // pred_check
        %p248 = pneg %p192
      $region34: #{flamingo_forward.6} parent=11 // pred_check_branch
        %250 = sbr.rel (%p248) target = $region36
      $region35: #{flamingo_forward.6} parent=11 // pred_region
        _
      $region36: #{flamingo_forward.6} parent=11 // pred_fallthru
        _
    $region12: #{flamingo_forward.6} parent=5 // pred_fallthru
      _
    %p251 = scmp.lt.s32.totalorder %s14, 2
    // Predicated region
    $region37: #{flamingo_forward.6} parent=5 // pred_check
      %p252 = pneg %p251
    $region38: #{flamingo_forward.6} parent=5 // pred_check_branch
      %254 = sbr.rel (%p252) target = $region40
    $region39: #{flamingo_forward.6} parent=5 // pred_region
      // Predicated region
      $region41: #{flamingo_forward.6} parent=39 // pred_check
        %p255 = pneg %p34
      $region42: #{flamingo_forward.6} parent=39 // pred_check_branch
        %257 = sbr.rel (%p255) target = $region44
      $region43: #{flamingo_forward.6} parent=39 // pred_region
        %p258 = scmp.lt.s32.totalorder %s14, 1
        %s259 = scalar_select %p258, %s14, 1
        %s260 = smul.addr %s259, 2
        %s261 = scalar_lea.vmem %s0, %s260
      $region44: #{flamingo_forward.6} parent=39 // pred_fallthru
        _
      // Predicated region
      $region45: #{flamingo_forward.6} parent=39 // pred_check
        %p262 = pneg %p60
      $region46: #{flamingo_forward.6} parent=39 // pred_check_branch
        %264 = sbr.rel (%p262) target = $region48
      $region47: #{flamingo_forward.6} parent=39 // pred_region
        %p265 = scmp.lt.s32.totalorder %s14, 1
        %s266 = scalar_select %p265, %s14, 1
        %s267 = smul.addr %s266, 4
        %s268 = scalar_lea.vmem %s1, %s267
      $region48: #{flamingo_forward.6} parent=39 // pred_fallthru
        _
    $region40: #{flamingo_forward.6} parent=5 // pred_fallthru
      _
    %p269 = scmp.le.s32.totalorder 1, %s14
    %p270 = scmp.lt.s32.totalorder %s14, 3
    %p271 = pnand %p269, %p270
    %p272 = pneg %p271
    // Predicated region
    $region49: #{flamingo_forward.6} parent=5 // pred_check
      _
    $region50: #{flamingo_forward.6} parent=5 // pred_check_branch
      %274 = sbr.rel (%p271) target = $region52
    $region51: #{flamingo_forward.6} parent=5 // pred_region
      %s275 = ssub.s32 %s14, 1
      %p276 = scmp.lt.s32.totalorder %s19, 1
      %s277 = scalar_select %p276, %s19, 1
      %s278 = smul.addr %s277, 2
      %s279 = scalar_lea.vmem %s0, %s278
      %p280 = pneg %p40
      %p281 = pneg %p37
      %p282 = scmp.lt.s32.totalorder %s19, 1
      %s283 = scalar_select %p282, %s19, 1
      %s284 = smul.addr %s283, 4
      %s285 = scalar_lea.vmem %s1, %s284
      %p286 = pneg %p66
      %p287 = pneg %p63
      %p288 = pneg %p87
      %p289 = pneg %p84
      %p290 = pneg %p108
      %p291 = pneg %p105
      %p292 = pneg %p129
      %p293 = pneg %p126
      %p294 = pneg %p150
      %p295 = pneg %p147
      %p296 = pneg %p171
      %p297 = pneg %p168
      %p298 = pneg %p192
      %p299 = pneg %p189
      %p300 = pneg %p218
      %p301 = pneg %p215
      %p302 = scmp.lt.s32.totalorder %s19, 1
      %s303 = scalar_select %p302, %s19, 1
      %s304 = smul.addr %s303, 4
      %s305 = scalar_lea.vmem %s8, %s304
      %p306 = scmp.lt.s32.totalorder %s19, 1
      %s307 = scalar_select %p306, %s19, 1
      %s308 = smul.addr %s307, 2
      %s309 = scalar_lea.vmem %s0, %s308
      %p310 = scmp.lt.s32.totalorder %s19, 1
      %s311 = scalar_select %p310, %s19, 1
      %s312 = smul.addr %s311, 4
      %s313 = scalar_lea.vmem %s1, %s312
      %p314 = scmp.lt.s32.totalorder %s19, 1
      %s315 = scalar_select %p314, %s19, 1
      %s316 = smul.addr %s315, 4
      %s317 = scalar_lea.vmem %s8, %s316
      %v319 = vld [vmem:[%s2] sm:$0xff]
      %v320 = vld [vmem:[%s2 + $0x8] sm:$0x1f]
      %v321 = vld [vmem:[%s309] sm:$0x3]
      %v322 = vunpack.c.l.bf16 %v321
      %v323 = vld [vmem:[%s313] sm:$0xf]
      %v324 = vunpack.c.l.bf16 %v323
      %vm325 = vcmask 257024
      %v326 = vsel %vm325, %v322, 0.0
      %327 = vadd.xlane.f32.xlu0 %v326
      %v328 = vpop.xlane.xlu0 %327
      %v329 = vrcp.pop 32.0
      %v330 = vmul.f32 %v328, %v329
      %v331 = vsub.f32 %v322, %v330
      %v332 = vmul.f32 %v331, %v331
      %v333 = vsel %vm325, %v332, 0.0
      %334 = vadd.xlane.f32.xlu0 %v333
      %v335 = vpop.xlane.xlu0 %334
      %v336 = vmul.f32 %v335, %v329
      %v337 = vadd.f32 %v336, 1e-05
      %v338 = vrsqrt.pop %v337
      %v339 = vmul.f32 %v331, %v338
      %v340 = vlaneseq
      %v341 = vshrl.u32 %v340, 7
      %v342 = vsub.s32 0, %v341
      %v343 = vrot.slane %v319, %v342
      %v344 = vmul.f32 %v339, %v343
      %v345 = vlaneseq
      %v346 = vshrl.u32 %v345, 7
      %v347 = vsub.s32 1, %v346
      %v348 = vrot.slane %v319, %v347
      %v349 = vadd.f32 %v344, %v348
      %vm350 = vcmask 261120
      %v351 = vsel %vm350, %v324, 0.0
      %352 = vadd.xlane.f32.xlu0 %v351
      %v353 = vpop.xlane.xlu0 %352
      %v354 = vmul.f32 %v353, %v329
      %v355 = vsub.f32 %v324, %v354
      %v356 = vmul.f32 %v355, %v355
      %v357 = vsel %vm350, %v356, 0.0
      %358 = vadd.xlane.f32.xlu0 %v357
      %v359 = vpop.xlane.xlu0 %358
      %v360 = vmul.f32 %v359, %v329
      %v361 = vadd.f32 %v360, 1e-05
      %v362 = vrsqrt.pop %v361
      %v363 = vmul.f32 %v355, %v362
      %v364 = vlaneseq
      %v365 = vshrl.u32 %v364, 7
      %v366 = vsub.s32 2, %v365
      %v367 = vrot.slane %v319, %v366
      %v368 = vmul.f32 %v363, %v367
      %v369 = vlaneseq
      %v370 = vshrl.u32 %v369, 7
      %v371 = vsub.s32 3, %v370
      %v372 = vrot.slane %v319, %v371
      %v373 = vadd.f32 %v368, %v372
      %v374 = vpack.c.bf16 %v373, %v373
      %v375 = vld [vmem:[%s3] sm:$0xf]
      %v376 = vld [vmem:[%s3 + $0x4] sm:$0xf]
      %v377 = vld [vmem:[%s3 + $0x8] sm:$0xf]
      %v378 = vld [vmem:[%s3 + $0xc] sm:$0xf]
      %v379 = vlaneseq
      %v380 = vshrl.u32 %v379, 7
      %v381 = vsub.s32 4, %v380
      %v382 = vrot.slane %v319, %v381
      %v387 = vunpack.c.l.b16 %v375
      %v388 = vunpack.c.l.b16 %v376
      %v389 = vunpack.c.l.b16 %v377
      %v390 = vunpack.c.l.b16 %v378
      %v391 = vpack.c.b16 %v388, %v387
      %v392 = vpack.c.b16 %v390, %v389
      %v396 = vsel %vm350, %v374, 0
      %398 = vmatprep.subr.bf16.mxu0 0
      %399 = vmatpush1.bf16.msra.mxu0 %v391
      %400 = vmatprep.subr.bf16.mxu0 0
      %401 = vmatpush1.bf16.msra.mxu0 %v392
      %402 = vmatprep.subr.bf16.mxu0 0
      %403 = vmatpush1.bf16.msra.mxu0 0
      %404 = vmatprep.subr.bf16.mxu0 0
      %405 = vmatpush1.bf16.msra.mxu0 0
      %406 = vmatprep.subr.bf16.mxu0 0
      %407 = vmatpush1.bf16.msra.mxu0 0
      %408 = vmatprep.subr.bf16.mxu0 0
      %409 = vmatpush1.bf16.msra.mxu0 0
      %410 = vmatprep.subr.bf16.mxu0 0
      %411 = vmatpush1.bf16.msra.mxu0 0
      %412 = vmatprep.subr.bf16.mxu0 0
      %413 = vmatpush1.bf16.msra.mxu0 0
      %414 = vmatprep.subr.bf16.mxu0 0
      %415 = vmatpush1.bf16.msra.mxu0 0
      %416 = vmatprep.subr.bf16.mxu0 0
      %417 = vmatpush1.bf16.msra.mxu0 0
      %418 = vmatprep.subr.bf16.mxu0 0
      %419 = vmatpush1.bf16.msra.mxu0 0
      %420 = vmatprep.subr.bf16.mxu0 0
      %421 = vmatpush1.bf16.msra.mxu0 0
      %422 = vmatprep.subr.bf16.mxu0 0
      %423 = vmatpush1.bf16.msra.mxu0 0
      %424 = vmatprep.subr.bf16.mxu0 0
      %425 = vmatpush1.bf16.msra.mxu0 0
      %426 = vmatprep.subr.bf16.mxu0 0
      %427 = vmatpush1.bf16.msra.mxu0 0
      %428 = vmatprep.subr.bf16.mxu0 0
      %429 = vmatpush1.bf16.msra.mxu0 0
      %430 = vmatprep.mubr.bf16.mxu0 0
      %431 = vmatmul.mubr.bf16.gmra.mrb[0].mxu0 %v396
      %v432 = vpop.f32.mrb[0].mxu0
      %v433 = vadd.f32 %v382, %v432
      %v434 = vpop.f32.mrb[0].mxu0
      %v435 = vpop.f32.mrb[0].mxu0
      %v436 = vpop.f32.mrb[0].mxu0
      %437 = vdwg.mxu0
      %v438 = vpack.c.bf16 %v349, %v349
      %v439 = vld [vmem:[%s4] sm:$0xf]
      %v440 = vld [vmem:[%s4 + $0x4] sm:$0xf]
      %v441 = vld [vmem:[%s4 + $0x8] sm:$0xf]
      %v442 = vld [vmem:[%s4 + $0xc] sm:$0xf]
      %v443 = vlaneseq
      %v444 = vshrl.u32 %v443, 7
      %v445 = vsub.s32 5, %v444
      %v446 = vrot.slane %v319, %v445
      %v451 = vunpack.c.l.b16 %v439
      %v452 = vunpack.c.l.b16 %v440
      %v453 = vunpack.c.l.b16 %v441
      %v454 = vunpack.c.l.b16 %v442
      %v455 = vpack.c.b16 %v452, %v451
      %v456 = vpack.c.b16 %v454, %v453
      %v460 = vsel %vm350, %v438, 0
      %462 = vmatprep.subr.bf16.mxu0 0
      %463 = vmatpush1.bf16.msra.mxu0 %v455
      %464 = vmatprep.subr.bf16.mxu0 0
      %465 = vmatpush1.bf16.msra.mxu0 %v456
      %466 = vmatprep.subr.bf16.mxu0 0
      %467 = vmatpush1.bf16.msra.mxu0 0
      %468 = vmatprep.subr.bf16.mxu0 0
      %469 = vmatpush1.bf16.msra.mxu0 0
      %470 = vmatprep.subr.bf16.mxu0 0
      %471 = vmatpush1.bf16.msra.mxu0 0
      %472 = vmatprep.subr.bf16.mxu0 0
      %473 = vmatpush1.bf16.msra.mxu0 0
      %474 = vmatprep.subr.bf16.mxu0 0
      %475 = vmatpush1.bf16.msra.mxu0 0
      %476 = vmatprep.subr.bf16.mxu0 0
      %477 = vmatpush1.bf16.msra.mxu0 0
      %478 = vmatprep.subr.bf16.mxu0 0
      %479 = vmatpush1.bf16.msra.mxu0 0
      %480 = vmatprep.subr.bf16.mxu0 0
      %481 = vmatpush1.bf16.msra.mxu0 0
      %482 = vmatprep.subr.bf16.mxu0 0
      %483 = vmatpush1.bf16.msra.mxu0 0
      %484 = vmatprep.subr.bf16.mxu0 0
      %485 = vmatpush1.bf16.msra.mxu0 0
      %486 = vmatprep.subr.bf16.mxu0 0
      %487 = vmatpush1.bf16.msra.mxu0 0
      %488 = vmatprep.subr.bf16.mxu0 0
      %489 = vmatpush1.bf16.msra.mxu0 0
      %490 = vmatprep.subr.bf16.mxu0 0
      %491 = vmatpush1.bf16.msra.mxu0 0
      %492 = vmatprep.subr.bf16.mxu0 0
      %493 = vmatpush1.bf16.msra.mxu0 0
      %494 = vmatprep.mubr.bf16.mxu0 0
      %495 = vmatmul.mubr.bf16.gmra.mrb[0].mxu0 %v460
      %v496 = vpop.f32.mrb[0].mxu0
      %v497 = vadd.f32 %v446, %v496
      %v498 = vpop.f32.mrb[0].mxu0
      %v499 = vpop.f32.mrb[0].mxu0
      %v500 = vpop.f32.mrb[0].mxu0
      %501 = vdwg.mxu0
      %502 = vmatprep.subr.bf16.mxu0 0
      %503 = vmatpush1.bf16.msra.mxu0 %v455
      %504 = vmatprep.subr.bf16.mxu0 0
      %505 = vmatpush1.bf16.msra.mxu0 %v456
      %506 = vmatprep.subr.bf16.mxu0 0
      %507 = vmatpush1.bf16.msra.mxu0 0
      %508 = vmatprep.subr.bf16.mxu0 0
      %509 = vmatpush1.bf16.msra.mxu0 0
      %510 = vmatprep.subr.bf16.mxu0 0
      %511 = vmatpush1.bf16.msra.mxu0 0
      %512 = vmatprep.subr.bf16.mxu0 0
      %513 = vmatpush1.bf16.msra.mxu0 0
      %514 = vmatprep.subr.bf16.mxu0 0
      %515 = vmatpush1.bf16.msra.mxu0 0
      %516 = vmatprep.subr.bf16.mxu0 0
      %517 = vmatpush1.bf16.msra.mxu0 0
      %518 = vmatprep.subr.bf16.mxu0 0
      %519 = vmatpush1.bf16.msra.mxu0 0
      %520 = vmatprep.subr.bf16.mxu0 0
      %521 = vmatpush1.bf16.msra.mxu0 0
      %522 = vmatprep.subr.bf16.mxu0 0
      %523 = vmatpush1.bf16.msra.mxu0 0
      %524 = vmatprep.subr.bf16.mxu0 0
      %525 = vmatpush1.bf16.msra.mxu0 0
      %526 = vmatprep.subr.bf16.mxu0 0
      %527 = vmatpush1.bf16.msra.mxu0 0
      %528 = vmatprep.subr.bf16.mxu0 0
      %529 = vmatpush1.bf16.msra.mxu0 0
      %530 = vmatprep.subr.bf16.mxu0 0
      %531 = vmatpush1.bf16.msra.mxu0 0
      %532 = vmatprep.subr.bf16.mxu0 0
      %533 = vmatpush1.bf16.msra.mxu0 0
      %534 = vmatprep.mubr.bf16.mxu0 0
      %535 = vmatmul.mubr.bf16.gmra.mrb[0].mxu0 %v396
      %v536 = vpop.f32.mrb[0].mxu0
      %v537 = vadd.f32 %v446, %v536
      %v538 = vpop.f32.mrb[0].mxu0
      %v539 = vpop.f32.mrb[0].mxu0
      %v540 = vpop.f32.mrb[0].mxu0
      %541 = vdwg.mxu0
      %v542 = vpack.c.bf16 %v433, %v433
      %v543 = vpack.c.bf16 %v497, %v497
      %vm544 = vcmask 64512
      %v546 = vsel %vm544, %v542, 0
      %v549 = vsel %vm544, %v543, 0
      %551 = vmatprep.subr.bf16.mxu0 0
      %552 = vmatpush1.bf16.xpose.msra.mxu0 %v549
      %553 = vmatprep.subr.bf16.mxu0 0
      %554 = vmatpush1.bf16.xpose.msra.mxu0 0
      %555 = vmatprep.subr.bf16.mxu0 0
      %556 = vmatpush1.bf16.xpose.msra.mxu0 0
      %557 = vmatprep.subr.bf16.mxu0 0
      %558 = vmatpush1.bf16.xpose.msra.mxu0 0
      %559 = vmatprep.subr.bf16.mxu0 0
      %560 = vmatpush1.bf16.xpose.msra.mxu0 0
      %561 = vmatprep.subr.bf16.mxu0 0
      %562 = vmatpush1.bf16.xpose.msra.mxu0 0
      %563 = vmatprep.subr.bf16.mxu0 0
      %564 = vmatpush1.bf16.xpose.msra.mxu0 0
      %565 = vmatprep.subr.bf16.mxu0 0
      %566 = vmatpush1.bf16.xpose.msra.mxu0 0
      %567 = vmatprep.subr.bf16.mxu0 0
      %568 = vmatpush1.bf16.xpose.msra.mxu0 0
      %569 = vmatprep.subr.bf16.mxu0 0
      %570 = vmatpush1.bf16.xpose.msra.mxu0 0
      %571 = vmatprep.subr.bf16.mxu0 0
      %572 = vmatpush1.bf16.xpose.msra.mxu0 0
      %573 = vmatprep.subr.bf16.mxu0 0
      %574 = vmatpush1.bf16.xpose.msra.mxu0 0
      %575 = vmatprep.subr.bf16.mxu0 0
      %576 = vmatpush1.bf16.xpose.msra.mxu0 0
      %577 = vmatprep.subr.bf16.mxu0 0
      %578 = vmatpush1.bf16.xpose.msra.mxu0 0
      %579 = vmatprep.subr.bf16.mxu0 0
      %580 = vmatpush1.bf16.xpose.msra.mxu0 0
      %581 = vmatprep.subr.bf16.mxu0 0
      %582 = vmatpush1.bf16.xpose.msra.mxu0 0
      %583 = vmatprep.mubr.bf16.mxu0 0
      %584 = vmatmul.mubr.bf16.gmra.mrb[0].mxu0 %v546
      %v585 = vpop.f32.mrb[0].mxu0
      %v586 = vadd.f32 0.0, %v585
      %v587 = vpop.f32.mrb[0].mxu0
      %v588 = vpop.f32.mrb[0].mxu0
      %v589 = vpop.f32.mrb[0].mxu0
      %590 = vdwg.mxu0
      %v591 = vmul.f32 %v586, 0.35355338
      %v592 = vpack.c.bf16 %v537, %v537
      %v594 = vsel %vm544, %v592, 0
      %596 = vmatprep.subr.bf16.mxu0 0
      %597 = vmatpush1.bf16.xpose.msra.mxu0 %v594
      %598 = vmatprep.subr.bf16.mxu0 0
      %599 = vmatpush1.bf16.xpose.msra.mxu0 0
      %600 = vmatprep.subr.bf16.mxu0 0
      %601 = vmatpush1.bf16.xpose.msra.mxu0 0
      %602 = vmatprep.subr.bf16.mxu0 0
      %603 = vmatpush1.bf16.xpose.msra.mxu0 0
      %604 = vmatprep.subr.bf16.mxu0 0
      %605 = vmatpush1.bf16.xpose.msra.mxu0 0
      %606 = vmatprep.subr.bf16.mxu0 0
      %607 = vmatpush1.bf16.xpose.msra.mxu0 0
      %608 = vmatprep.subr.bf16.mxu0 0
      %609 = vmatpush1.bf16.xpose.msra.mxu0 0
      %610 = vmatprep.subr.bf16.mxu0 0
      %611 = vmatpush1.bf16.xpose.msra.mxu0 0
      %612 = vmatprep.subr.bf16.mxu0 0
      %613 = vmatpush1.bf16.xpose.msra.mxu0 0
      %614 = vmatprep.subr.bf16.mxu0 0
      %615 = vmatpush1.bf16.xpose.msra.mxu0 0
      %616 = vmatprep.subr.bf16.mxu0 0
      %617 = vmatpush1.bf16.xpose.msra.mxu0 0
      %618 = vmatprep.subr.bf16.mxu0 0
      %619 = vmatpush1.bf16.xpose.msra.mxu0 0
      %620 = vmatprep.subr.bf16.mxu0 0
      %621 = vmatpush1.bf16.xpose.msra.mxu0 0
      %622 = vmatprep.subr.bf16.mxu0 0
      %623 = vmatpush1.bf16.xpose.msra.mxu0 0
      %624 = vmatprep.subr.bf16.mxu0 0
      %625 = vmatpush1.bf16.xpose.msra.mxu0 0
      %626 = vmatprep.subr.bf16.mxu0 0
      %627 = vmatpush1.bf16.xpose.msra.mxu0 0
      %628 = vmatprep.mubr.bf16.mxu0 0
      %629 = vmatmul.mubr.bf16.gmra.mrb[0].mxu0 %v546
      %v630 = vpop.f32.mrb[0].mxu0
      %v631 = vadd.f32 0.0, %v630
      %v632 = vpop.f32.mrb[0].mxu0
      %v633 = vpop.f32.mrb[0].mxu0
      %v634 = vpop.f32.mrb[0].mxu0
      %635 = vdwg.mxu0
      %v636 = vmul.f32 %v631, 0.35355338
      %vm637 = vcmask 31744
      %v638 = vsel %vm637, %v591, -inf
      %639 = vmax.xlane.f32.xlu0 %v638
      %v640 = vpop.xlane.xlu0 %639
      %v641 = vsel %vm544, %v636, -inf
      %642 = vmax.xlane.f32.xlu0 %v641
      %v643 = vpop.xlane.xlu0 %642
      %v644 = vmax.f32 %v640, %v643
      %v645 = vsub.f32 %v591, %v644
      %v646 = vmul.f32 %v645, 1.442695
      %v647 = vpow.pop %v646
      %v648 = vsel %vm637, %v647, 0.0
      %649 = vadd.xlane.f32.xlu0 %v648
      %v650 = vpop.xlane.xlu0 %649
      %v651 = vadd.f32 %v650, 0.0
      %v652 = vpack.c.bf16 %v647, %v647
      %v653 = vsub.f32 %v636, %v644
      %v654 = vmul.f32 %v653, 1.442695
      %v655 = vpow.pop %v654
      %v656 = vsel %vm544, %v655, 0.0
      %657 = vadd.xlane.f32.xlu0 %v656
      %v658 = vpop.xlane.xlu0 %657
      %v659 = vadd.f32 %v651, %v658
      %v660 = vpack.c.bf16 %v655, %v655
      %662 = vrot.lane.b32.xlu0 %v592, 96
      %v663 = vpop.permute.xlu0 %662
      %v665 = vsel %vm544, %v660, 0
      %vm667 = vcmask 1043456
      %v669 = vsel %vm667, %v663, 0
      %671 = vmatprep.subr.bf16.mxu0 0
      %672 = vmatpush1.bf16.msra.mxu0 %v669
      %673 = vmatprep.subr.bf16.mxu0 0
      %674 = vmatpush1.bf16.msra.mxu0 0
      %675 = vmatprep.subr.bf16.mxu0 0
      %676 = vmatpush1.bf16.msra.mxu0 0
      %677 = vmatprep.subr.bf16.mxu0 0
      %678 = vmatpush1.bf16.msra.mxu0 0
      %679 = vmatprep.subr.bf16.mxu0 0
      %680 = vmatpush1.bf16.msra.mxu0 0
      %681 = vmatprep.subr.bf16.mxu0 0
      %682 = vmatpush1.bf16.msra.mxu0 0
      %683 = vmatprep.subr.bf16.mxu0 0
      %684 = vmatpush1.bf16.msra.mxu0 0
      %685 = vmatprep.subr.bf16.mxu0 0
      %686 = vmatpush1.bf16.msra.mxu0 0
      %687 = vmatprep.subr.bf16.mxu0 0
      %688 = vmatpush1.bf16.msra.mxu0 0
      %689 = vmatprep.subr.bf16.mxu0 0
      %690 = vmatpush1.bf16.msra.mxu0 0
      %691 = vmatprep.subr.bf16.mxu0 0
      %692 = vmatpush1.bf16.msra.mxu0 0
      %693 = vmatprep.subr.bf16.mxu0 0
      %694 = vmatpush1.bf16.msra.mxu0 0
      %695 = vmatprep.subr.bf16.mxu0 0
      %696 = vmatpush1.bf16.msra.mxu0 0
      %697 = vmatprep.subr.bf16.mxu0 0
      %698 = vmatpush1.bf16.msra.mxu0 0
      %699 = vmatprep.subr.bf16.mxu0 0
      %700 = vmatpush1.bf16.msra.mxu0 0
      %701 = vmatprep.subr.bf16.mxu0 0
      %702 = vmatpush1.bf16.msra.mxu0 0
      %703 = vmatprep.mubr.bf16.mxu0 0
      %704 = vmatmul.mubr.bf16.gmra.mrb[0].mxu0 %v665
      %v705 = vpop.f32.mrb[0].mxu0
      %v706 = vadd.f32 0.0, %v705
      %v707 = vpop.f32.mrb[0].mxu0
      %v708 = vpop.f32.mrb[0].mxu0
      %v709 = vpop.f32.mrb[0].mxu0
      %710 = vdwg.mxu0
      %712 = vrot.lane.b32.xlu0 %v543, 96
      %v713 = vpop.permute.xlu0 %712
      %v715 = vsel %vm637, %v652, 0
      %vm717 = vcmask 1041408
      %v719 = vsel %vm717, %v713, 0
      %721 = vmatprep.subr.bf16.mxu0 0
      %722 = vmatpush1.bf16.msra.mxu0 %v719
      %723 = vmatprep.subr.bf16.mxu0 0
      %724 = vmatpush1.bf16.msra.mxu0 0
      %725 = vmatprep.subr.bf16.mxu0 0
      %726 = vmatpush1.bf16.msra.mxu0 0
      %727 = vmatprep.subr.bf16.mxu0 0
      %728 = vmatpush1.bf16.msra.mxu0 0
      %729 = vmatprep.subr.bf16.mxu0 0
      %730 = vmatpush1.bf16.msra.mxu0 0
      %731 = vmatprep.subr.bf16.mxu0 0
      %732 = vmatpush1.bf16.msra.mxu0 0
      %733 = vmatprep.subr.bf16.mxu0 0
      %734 = vmatpush1.bf16.msra.mxu0 0
      %735 = vmatprep.subr.bf16.mxu0 0
      %736 = vmatpush1.bf16.msra.mxu0 0
      %737 = vmatprep.subr.bf16.mxu0 0
      %738 = vmatpush1.bf16.msra.mxu0 0
      %739 = vmatprep.subr.bf16.mxu0 0
      %740 = vmatpush1.bf16.msra.mxu0 0
      %741 = vmatprep.subr.bf16.mxu0 0
      %742 = vmatpush1.bf16.msra.mxu0 0
      %743 = vmatprep.subr.bf16.mxu0 0
      %744 = vmatpush1.bf16.msra.mxu0 0
      %745 = vmatprep.subr.bf16.mxu0 0
      %746 = vmatpush1.bf16.msra.mxu0 0
      %747 = vmatprep.subr.bf16.mxu0 0
      %748 = vmatpush1.bf16.msra.mxu0 0
      %749 = vmatprep.subr.bf16.mxu0 0
      %750 = vmatpush1.bf16.msra.mxu0 0
      %751 = vmatprep.subr.bf16.mxu0 0
      %752 = vmatpush1.bf16.msra.mxu0 0
      %753 = vmatprep.mubr.bf16.mxu0 0
      %754 = vmatmul.mubr.bf16.gmra.mrb[0].mxu0 %v715
      %v755 = vpop.f32.mrb[0].mxu0
      %v756 = vadd.f32 %v706, %v755
      %v757 = vpop.f32.mrb[0].mxu0
      %v758 = vpop.f32.mrb[0].mxu0
      %v759 = vpop.f32.mrb[0].mxu0
      %760 = vdwg.mxu0
      %v761 = vrcp.pop %v659
      %v762 = vmul.f32 %v756, %v761
      %764 = vrot.lane.b32.xlu0 %v542, 120
      %v765 = vpop.permute.xlu0 %764
      %766 = vrot.lane.b32.xlu0 %v543, 120
      %v767 = vpop.permute.xlu0 %766
      %v769 = vsel %vm544, %v765, 0
      %v772 = vsel %vm544, %v767, 0
      %774 = vmatprep.subr.bf16.mxu0 0
      %775 = vmatpush1.bf16.xpose.msra.mxu0 %v772
      %776 = vmatprep.subr.bf16.mxu0 0
      %777 = vmatpush1.bf16.xpose.msra.mxu0 0
      %778 = vmatprep.subr.bf16.mxu0 0
      %779 = vmatpush1.bf16.xpose.msra.mxu0 0
      %780 = vmatprep.subr.bf16.mxu0 0
      %781 = vmatpush1.bf16.xpose.msra.mxu0 0
      %782 = vmatprep.subr.bf16.mxu0 0
      %783 = vmatpush1.bf16.xpose.msra.mxu0 0
      %784 = vmatprep.subr.bf16.mxu0 0
      %785 = vmatpush1.bf16.xpose.msra.mxu0 0
      %786 = vmatprep.subr.bf16.mxu0 0
      %787 = vmatpush1.bf16.xpose.msra.mxu0 0
      %788 = vmatprep.subr.bf16.mxu0 0
      %789 = vmatpush1.bf16.xpose.msra.mxu0 0
      %790 = vmatprep.subr.bf16.mxu0 0
      %791 = vmatpush1.bf16.xpose.msra.mxu0 0
      %792 = vmatprep.subr.bf16.mxu0 0
      %793 = vmatpush1.bf16.xpose.msra.mxu0 0
      %794 = vmatprep.subr.bf16.mxu0 0
      %795 = vmatpush1.bf16.xpose.msra.mxu0 0
      %796 = vmatprep.subr.bf16.mxu0 0
      %797 = vmatpush1.bf16.xpose.msra.mxu0 0
      %798 = vmatprep.subr.bf16.mxu0 0
      %799 = vmatpush1.bf16.xpose.msra.mxu0 0
      %800 = vmatprep.subr.bf16.mxu0 0
      %801 = vmatpush1.bf16.xpose.msra.mxu0 0
      %802 = vmatprep.subr.bf16.mxu0 0
      %803 = vmatpush1.bf16.xpose.msra.mxu0 0
      %804 = vmatprep.subr.bf16.mxu0 0
      %805 = vmatpush1.bf16.xpose.msra.mxu0 0
      %806 = vmatprep.mubr.bf16.mxu0 0
      %807 = vmatmul.mubr.bf16.gmra.mrb[0].mxu0 %v769
      %v808 = vpop.f32.mrb[0].mxu0
      %v809 = vadd.f32 0.0, %v808
      %v810 = vpop.f32.mrb[0].mxu0
      %v811 = vpop.f32.mrb[0].mxu0
      %v812 = vpop.f32.mrb[0].mxu0
      %813 = vdwg.mxu0
      %v814 = vmul.f32 %v809, 0.35355338
      %815 = vrot.lane.b32.xlu0 %v592, 120
      %v816 = vpop.permute.xlu0 %815
      %v818 = vsel %vm544, %v816, 0
      %820 = vmatprep.subr.bf16.mxu0 0
      %821 = vmatpush1.bf16.xpose.msra.mxu0 %v818
      %822 = vmatprep.subr.bf16.mxu0 0
      %823 = vmatpush1.bf16.xpose.msra.mxu0 0
      %824 = vmatprep.subr.bf16.mxu0 0
      %825 = vmatpush1.bf16.xpose.msra.mxu0 0
      %826 = vmatprep.subr.bf16.mxu0 0
      %827 = vmatpush1.bf16.xpose.msra.mxu0 0
      %828 = vmatprep.subr.bf16.mxu0 0
      %829 = vmatpush1.bf16.xpose.msra.mxu0 0
      %830 = vmatprep.subr.bf16.mxu0 0
      %831 = vmatpush1.bf16.xpose.msra.mxu0 0
      %832 = vmatprep.subr.bf16.mxu0 0
      %833 = vmatpush1.bf16.xpose.msra.mxu0 0
      %834 = vmatprep.subr.bf16.mxu0 0
      %835 = vmatpush1.bf16.xpose.msra.mxu0 0
      %836 = vmatprep.subr.bf16.mxu0 0
      %837 = vmatpush1.bf16.xpose.msra.mxu0 0
      %838 = vmatprep.subr.bf16.mxu0 0
      %839 = vmatpush1.bf16.xpose.msra.mxu0 0
      %840 = vmatprep.subr.bf16.mxu0 0
      %841 = vmatpush1.bf16.xpose.msra.mxu0 0
      %842 = vmatprep.subr.bf16.mxu0 0
      %843 = vmatpush1.bf16.xpose.msra.mxu0 0
      %844 = vmatprep.subr.bf16.mxu0 0
      %845 = vmatpush1.bf16.xpose.msra.mxu0 0
      %846 = vmatprep.subr.bf16.mxu0 0
      %847 = vmatpush1.bf16.xpose.msra.mxu0 0
      %848 = vmatprep.subr.bf16.mxu0 0
      %849 = vmatpush1.bf16.xpose.msra.mxu0 0
      %850 = vmatprep.subr.bf16.mxu0 0
      %851 = vmatpush1.bf16.xpose.msra.mxu0 0
      %852 = vmatprep.mubr.bf16.mxu0 0
      %853 = vmatmul.mubr.bf16.gmra.mrb[0].mxu0 %v769
      %v854 = vpop.f32.mrb[0].mxu0
      %v855 = vadd.f32 0.0, %v854
      %v856 = vpop.f32.mrb[0].mxu0
      %v857 = vpop.f32.mrb[0].mxu0
      %v858 = vpop.f32.mrb[0].mxu0
      %859 = vdwg.mxu0
      %v860 = vmul.f32 %v855, 0.35355338
      %v861 = vsel %vm637, %v814, -inf
      %862 = vmax.xlane.f32.xlu0 %v861
      %v863 = vpop.xlane.xlu0 %862
      %v864 = vsel %vm544, %v860, -inf
      %865 = vmax.xlane.f32.xlu0 %v864
      %v866 = vpop.xlane.xlu0 %865
      %v867 = vmax.f32 %v863, %v866
      %v868 = vsub.f32 %v814, %v867
      %v869 = vmul.f32 %v868, 1.442695
      %v870 = vpow.pop %v869
      %v871 = vsel %vm637, %v870, 0.0
      %872 = vadd.xlane.f32.xlu0 %v871
      %v873 = vpop.xlane.xlu0 %872
      %v874 = vadd.f32 %v873, 0.0
      %v875 = vpack.c.bf16 %v870, %v870
      %v876 = vsub.f32 %v860, %v867
      %v877 = vmul.f32 %v876, 1.442695
      %v878 = vpow.pop %v877
      %v879 = vsel %vm544, %v878, 0.0
      %880 = vadd.xlane.f32.xlu0 %v879
      %v881 = vpop.xlane.xlu0 %880
      %v882 = vadd.f32 %v874, %v881
      %v883 = vpack.c.bf16 %v878, %v878
      %884 = vrot.lane.b32.xlu0 %v592, 88
      %v885 = vpop.permute.xlu0 %884
      %v887 = vsel %vm544, %v883, 0
      %v890 = vsel %vm667, %v885, 0
      %892 = vmatprep.subr.bf16.mxu0 0
      %893 = vmatpush1.bf16.msra.mxu0 %v890
      %894 = vmatprep.subr.bf16.mxu0 0
      %895 = vmatpush1.bf16.msra.mxu0 0
      %896 = vmatprep.subr.bf16.mxu0 0
      %897 = vmatpush1.bf16.msra.mxu0 0
      %898 = vmatprep.subr.bf16.mxu0 0
      %899 = vmatpush1.bf16.msra.mxu0 0
      %900 = vmatprep.subr.bf16.mxu0 0
      %901 = vmatpush1.bf16.msra.mxu0 0
      %902 = vmatprep.subr.bf16.mxu0 0
      %903 = vmatpush1.bf16.msra.mxu0 0
      %904 = vmatprep.subr.bf16.mxu0 0
      %905 = vmatpush1.bf16.msra.mxu0 0
      %906 = vmatprep.subr.bf16.mxu0 0
      %907 = vmatpush1.bf16.msra.mxu0 0
      %908 = vmatprep.subr.bf16.mxu0 0
      %909 = vmatpush1.bf16.msra.mxu0 0
      %910 = vmatprep.subr.bf16.mxu0 0
      %911 = vmatpush1.bf16.msra.mxu0 0
      %912 = vmatprep.subr.bf16.mxu0 0
      %913 = vmatpush1.bf16.msra.mxu0 0
      %914 = vmatprep.subr.bf16.mxu0 0
      %915 = vmatpush1.bf16.msra.mxu0 0
      %916 = vmatprep.subr.bf16.mxu0 0
      %917 = vmatpush1.bf16.msra.mxu0 0
      %918 = vmatprep.subr.bf16.mxu0 0
      %919 = vmatpush1.bf16.msra.mxu0 0
      %920 = vmatprep.subr.bf16.mxu0 0
      %921 = vmatpush1.bf16.msra.mxu0 0
      %922 = vmatprep.subr.bf16.mxu0 0
      %923 = vmatpush1.bf16.msra.mxu0 0
      %924 = vmatprep.mubr.bf16.mxu0 0
      %925 = vmatmul.mubr.bf16.gmra.mrb[0].mxu0 %v887
      %v926 = vpop.f32.mrb[0].mxu0
      %v927 = vadd.f32 0.0, %v926
      %v928 = vpop.f32.mrb[0].mxu0
      %v929 = vpop.f32.mrb[0].mxu0
      %v930 = vpop.f32.mrb[0].mxu0
      %931 = vdwg.mxu0
      %932 = vrot.lane.b32.xlu0 %v543, 88
      %v933 = vpop.permute.xlu0 %932
      %v935 = vsel %vm637, %v875, 0
      %v938 = vsel %vm717, %v933, 0
      %940 = vmatprep.subr.bf16.mxu0 0
      %941 = vmatpush1.bf16.msra.mxu0 %v938
      %942 = vmatprep.subr.bf16.mxu0 0
      %943 = vmatpush1.bf16.msra.mxu0 0
      %944 = vmatprep.subr.bf16.mxu0 0
      %945 = vmatpush1.bf16.msra.mxu0 0
      %946 = vmatprep.subr.bf16.mxu0 0
      %947 = vmatpush1.bf16.msra.mxu0 0
      %948 = vmatprep.subr.bf16.mxu0 0
      %949 = vmatpush1.bf16.msra.mxu0 0
      %950 = vmatprep.subr.bf16.mxu0 0
      %951 = vmatpush1.bf16.msra.mxu0 0
      %952 = vmatprep.subr.bf16.mxu0 0
      %953 = vmatpush1.bf16.msra.mxu0 0
      %954 = vmatprep.subr.bf16.mxu0 0
      %955 = vmatpush1.bf16.msra.mxu0 0
      %956 = vmatprep.subr.bf16.mxu0 0
      %957 = vmatpush1.bf16.msra.mxu0 0
      %958 = vmatprep.subr.bf16.mxu0 0
      %959 = vmatpush1.bf16.msra.mxu0 0
      %960 = vmatprep.subr.bf16.mxu0 0
      %961 = vmatpush1.bf16.msra.mxu0 0
      %962 = vmatprep.subr.bf16.mxu0 0
      %963 = vmatpush1.bf16.msra.mxu0 0
      %964 = vmatprep.subr.bf16.mxu0 0
      %965 = vmatpush1.bf16.msra.mxu0 0
      %966 = vmatprep.subr.bf16.mxu0 0
      %967 = vmatpush1.bf16.msra.mxu0 0
      %968 = vmatprep.subr.bf16.mxu0 0
      %969 = vmatpush1.bf16.msra.mxu0 0
      %970 = vmatprep.subr.bf16.mxu0 0
      %971 = vmatpush1.bf16.msra.mxu0 0
      %972 = vmatprep.mubr.bf16.mxu0 0
      %973 = vmatmul.mubr.bf16.gmra.mrb[0].mxu0 %v935
      %v974 = vpop.f32.mrb[0].mxu0
      %v975 = vadd.f32 %v927, %v974
      %v976 = vpop.f32.mrb[0].mxu0
      %v977 = vpop.f32.mrb[0].mxu0
      %v978 = vpop.f32.mrb[0].mxu0
      %979 = vdwg.mxu0
      %v980 = vrcp.pop %v882
      %v981 = vmul.f32 %v975, %v980
      %982 = vrot.lane.b32.xlu0 %v542, 112
      %v983 = vpop.permute.xlu0 %982
      %984 = vrot.lane.b32.xlu0 %v543, 112
      %v985 = vpop.permute.xlu0 %984
      %v987 = vsel %vm544, %v983, 0
      %v990 = vsel %vm544, %v985, 0
      %992 = vmatprep.subr.bf16.mxu0 0
      %993 = vmatpush1.bf16.xpose.msra.mxu0 %v990
      %994 = vmatprep.subr.bf16.mxu0 0
      %995 = vmatpush1.bf16.xpose.msra.mxu0 0
      %996 = vmatprep.subr.bf16.mxu0 0
      %997 = vmatpush1.bf16.xpose.msra.mxu0 0
      %998 = vmatprep.subr.bf16.mxu0 0
      %999 = vmatpush1.bf16.xpose.msra.mxu0 0
      %1000 = vmatprep.subr.bf16.mxu0 0
      %1001 = vmatpush1.bf16.xpose.msra.mxu0 0
      %1002 = vmatprep.subr.bf16.mxu0 0
      %1003 = vmatpush1.bf16.xpose.msra.mxu0 0
      %1004 = vmatprep.subr.bf16.mxu0 0
      %1005 = vmatpush1.bf16.xpose.msra.mxu0 0
      %1006 = vmatprep.subr.bf16.mxu0 0
      %1007 = vmatpush1.bf16.xpose.msra.mxu0 0
      %1008 = vmatprep.subr.bf16.mxu0 0
      %1009 = vmatpush1.bf16.xpose.msra.mxu0 0
      %1010 = vmatprep.subr.bf16.mxu0 0
      %1011 = vmatpush1.bf16.xpose.msra.mxu0 0
      %1012 = vmatprep.subr.bf16.mxu0 0
      %1013 = vmatpush1.bf16.xpose.msra.mxu0 0
      %1014 = vmatprep.subr.bf16.mxu0 0
      %1015 = vmatpush1.bf16.xpose.msra.mxu0 0
      %1016 = vmatprep.subr.bf16.mxu0 0
      %1017 = vmatpush1.bf16.xpose.msra.mxu0 0
      %1018 = vmatprep.subr.bf16.mxu0 0
      %1019 = vmatpush1.bf16.xpose.msra.mxu0 0
      %1020 = vmatprep.subr.bf16.mxu0 0
      %1021 = vmatpush1.bf16.xpose.msra.mxu0 0
      %1022 = vmatprep.subr.bf16.mxu0 0
      %1023 = vmatpush1.bf16.xpose.msra.mxu0 0
      %1024 = vmatprep.mubr.bf16.mxu0 0
      %1025 = vmatmul.mubr.bf16.gmra.mrb[0].mxu0 %v987
      %v1026 = vpop.f32.mrb[0].mxu0
      %v1027 = vadd.f32 0.0, %v1026
      %v1028 = vpop.f32.mrb[0].mxu0
      %v1029 = vpop.f32.mrb[0].mxu0
      %v1030 = vpop.f32.mrb[0].mxu0
      %1031 = vdwg.mxu0
      %v1032 = vmul.f32 %v1027, 0.35355338
      %1033 = vrot.lane.b32.xlu0 %v592, 112
      %v1034 = vpop.permute.xlu0 %1033
      %v1036 = vsel %vm544, %v1034, 0
      %1038 = vmatprep.subr.bf16.mxu0 0
      %1039 = vmatpush1.bf16.xpose.msra.mxu0 %v1036
      %1040 = vmatprep.subr.bf16.mxu0 0
      %1041 = vmatpush1.bf16.xpose.msra.mxu0 0
      %1042 = vmatprep.subr.bf16.mxu0 0
      %1043 = vmatpush1.bf16.xpose.msra.mxu0 0
      %1044 = vmatprep.subr.bf16.mxu0 0
      %1045 = vmatpush1.bf16.xpose.msra.mxu0 0
      %1046 = vmatprep.subr.bf16.mxu0 0
      %1047 = vmatpush1.bf16.xpose.msra.mxu0 0
      %1048 = vmatprep.subr.bf16.mxu0 0
      %1049 = vmatpush1.bf16.xpose.msra.mxu0 0
      %1050 = vmatprep.subr.bf16.mxu0 0
      %1051 = vmatpush1.bf16.xpose.msra.mxu0 0
      %1052 = vmatprep.subr.bf16.mxu0 0
      %1053 = vmatpush1.bf16.xpose.msra.mxu0 0
      %1054 = vmatprep.subr.bf16.mxu0 0
      %1055 = vmatpush1.bf16.xpose.msra.mxu0 0
      %1056 = vmatprep.subr.bf16.mxu0 0
      %1057 = vmatpush1.bf16.xpose.msra.mxu0 0
      %1058 = vmatprep.subr.bf16.mxu0 0
      %1059 = vmatpush1.bf16.xpose.msra.mxu0 0
      %1060 = vmatprep.subr.bf16.mxu0 0
      %1061 = vmatpush1.bf16.xpose.msra.mxu0 0
      %1062 = vmatprep.subr.bf16.mxu0 0
      %1063 = vmatpush1.bf16.xpose.msra.mxu0 0
      %1064 = vmatprep.subr.bf16.mxu0 0
      %1065 = vmatpush1.bf16.xpose.msra.mxu0 0
      %1066 = vmatprep.subr.bf16.mxu0 0
      %1067 = vmatpush1.bf16.xpose.msra.mxu0 0
      %1068 = vmatprep.subr.bf16.mxu0 0
      %1069 = vmatpush1.bf16.xpose.msra.mxu0 0
      %1070 = vmatprep.mubr.bf16.mxu0 0
      %1071 = vmatmul.mubr.bf16.gmra.mrb[0].mxu0 %v987
      %v1072 = vpop.f32.mrb[0].mxu0
      %v1073 = vadd.f32 0.0, %v1072
      %v1074 = vpop.f32.mrb[0].mxu0
      %v1075 = vpop.f32.mrb[0].mxu0
      %v1076 = vpop.f32.mrb[0].mxu0
      %1077 = vdwg.mxu0
      %v1078 = vmul.f32 %v1073, 0.35355338
      %v1079 = vsel %vm637, %v1032, -inf
      %1080 = vmax.xlane.f32.xlu0 %v1079
      %v1081 = vpop.xlane.xlu0 %1080
      %v1082 = vsel %vm544, %v1078, -inf
      %1083 = vmax.xlane.f32.xlu0 %v1082
      %v1084 = vpop.xlane.xlu0 %1083
      %v1085 = vmax.f32 %v1081, %v1084
      %v1086 = vsub.f32 %v1032, %v1085
      %v1087 = vmul.f32 %v1086, 1.442695
      %v1088 = vpow.pop %v1087
      %v1089 = vsel %vm637, %v1088, 0.0
      %1090 = vadd.xlane.f32.xlu0 %v1089
      %v1091 = vpop.xlane.xlu0 %1090
      %v1092 = vadd.f32 %v1091, 0.0
      %v1093 = vpack.c.bf16 %v1088, %v1088
      %v1094 = vsub.f32 %v1078, %v1085
      %v1095 = vmul.f32 %v1094, 1.442695
      %v1096 = vpow.pop %v1095
      %v1097 = vsel %vm544, %v1096, 0.0
      %1098 = vadd.xlane.f32.xlu0 %v1097
      %v1099 = vpop.xlane.xlu0 %1098
      %v1100 = vadd.f32 %v1092, %v1099
      %v1101 = vpack.c.bf16 %v1096, %v1096
      %1102 = vrot.lane.b32.xlu0 %v592, 80
      %v1103 = vpop.permute.xlu0 %1102
      %v1105 = vsel %vm544, %v1101, 0
      %v1108 = vsel %vm667, %v1103, 0
      %1110 = vmatprep.subr.bf16.mxu0 0
      %1111 = vmatpush1.bf16.msra.mxu0 %v1108
      %1112 = vmatprep.subr.bf16.mxu0 0
      %1113 = vmatpush1.bf16.msra.mxu0 0
      %1114 = vmatprep.subr.bf16.mxu0 0
      %1115 = vmatpush1.bf16.msra.mxu0 0
      %1116 = vmatprep.subr.bf16.mxu0 0
      %1117 = vmatpush1.bf16.msra.mxu0 0
      %1118 = vmatprep.subr.bf16.mxu0 0
      %1119 = vmatpush1.bf16.msra.mxu0 0
      %1120 = vmatprep.subr.bf16.mxu0 0
      %1121 = vmatpush1.bf16.msra.mxu0 0
      %1122 = vmatprep.subr.bf16.mxu0 0
      %1123 = vmatpush1.bf16.msra.mxu0 0
      %1124 = vmatprep.subr.bf16.mxu0 0
      %1125 = vmatpush1.bf16.msra.mxu0 0
      %1126 = vmatprep.subr.bf16.mxu0 0
      %1127 = vmatpush1.bf16.msra.mxu0 0
      %1128 = vmatprep.subr.bf16.mxu0 0
      %1129 = vmatpush1.bf16.msra.mxu0 0
      %1130 = vmatprep.subr.bf16.mxu0 0
      %1131 = vmatpush1.bf16.msra.mxu0 0
      %1132 = vmatprep.subr.bf16.mxu0 0
      %1133 = vmatpush1.bf16.msra.mxu0 0
      %1134 = vmatprep.subr.bf16.mxu0 0
      %1135 = vmatpush1.bf16.msra.mxu0 0
      %1136 = vmatprep.subr.bf16.mxu0 0
      %1137 = vmatpush1.bf16.msra.mxu0 0
      %1138 = vmatprep.subr.bf16.mxu0 0
      %1139 = vmatpush1.bf16.msra.mxu0 0
      %1140 = vmatprep.subr.bf16.mxu0 0
      %1141 = vmatpush1.bf16.msra.mxu0 0
      %1142 = vmatprep.mubr.bf16.mxu0 0
      %1143 = vmatmul.mubr.bf16.gmra.mrb[0].mxu0 %v1105
      %v1144 = vpop.f32.mrb[0].mxu0
      %v1145 = vadd.f32 0.0, %v1144
      %v1146 = vpop.f32.mrb[0].mxu0
      %v1147 = vpop.f32.mrb[0].mxu0
      %v1148 = vpop.f32.mrb[0].mxu0
      %1149 = vdwg.mxu0
      %1150 = vrot.lane.b32.xlu0 %v543, 80
      %v1151 = vpop.permute.xlu0 %1150
      %v1153 = vsel %vm637, %v1093, 0
      %v1156 = vsel %vm717, %v1151, 0
      %1158 = vmatprep.subr.bf16.mxu0 0
      %1159 = vmatpush1.bf16.msra.mxu0 %v1156
      %1160 = vmatprep.subr.bf16.mxu0 0
      %1161 = vmatpush1.bf16.msra.mxu0 0
      %1162 = vmatprep.subr.bf16.mxu0 0
      %1163 = vmatpush1.bf16.msra.mxu0 0
      %1164 = vmatprep.subr.bf16.mxu0 0
      %1165 = vmatpush1.bf16.msra.mxu0 0
      %1166 = vmatprep.subr.bf16.mxu0 0
      %1167 = vmatpush1.bf16.msra.mxu0 0
      %1168 = vmatprep.subr.bf16.mxu0 0
      %1169 = vmatpush1.bf16.msra.mxu0 0
      %1170 = vmatprep.subr.bf16.mxu0 0
      %1171 = vmatpush1.bf16.msra.mxu0 0
      %1172 = vmatprep.subr.bf16.mxu0 0
      %1173 = vmatpush1.bf16.msra.mxu0 0
      %1174 = vmatprep.subr.bf16.mxu0 0
      %1175 = vmatpush1.bf16.msra.mxu0 0
      %1176 = vmatprep.subr.bf16.mxu0 0
      %1177 = vmatpush1.bf16.msra.mxu0 0
      %1178 = vmatprep.subr.bf16.mxu0 0
      %1179 = vmatpush1.bf16.msra.mxu0 0
      %1180 = vmatprep.subr.bf16.mxu0 0
      %1181 = vmatpush1.bf16.msra.mxu0 0
      %1182 = vmatprep.subr.bf16.mxu0 0
      %1183 = vmatpush1.bf16.msra.mxu0 0
      %1184 = vmatprep.subr.bf16.mxu0 0
      %1185 = vmatpush1.bf16.msra.mxu0 0
      %1186 = vmatprep.subr.bf16.mxu0 0
      %1187 = vmatpush1.bf16.msra.mxu0 0
      %1188 = vmatprep.subr.bf16.mxu0 0
      %1189 = vmatpush1.bf16.msra.mxu0 0
      %1190 = vmatprep.mubr.bf16.mxu0 0
      %1191 = vmatmul.mubr.bf16.gmra.mrb[0].mxu0 %v1153
      %v1192 = vpop.f32.mrb[0].mxu0
      %v1193 = vadd.f32 %v1145, %v1192
      %v1194 = vpop.f32.mrb[0].mxu0
      %v1195 = vpop.f32.mrb[0].mxu0
      %v1196 = vpop.f32.mrb[0].mxu0
      %1197 = vdwg.mxu0
      %v1198 = vrcp.pop %v1100
      %v1199 = vmul.f32 %v1193, %v1198
      %1200 = vrot.lane.b32.xlu0 %v542, 104
      %v1201 = vpop.permute.xlu0 %1200
      %1202 = vrot.lane.b32.xlu0 %v543, 104
      %v1203 = vpop.permute.xlu0 %1202
      %v1205 = vsel %vm544, %v1201, 0
      %v1208 = vsel %vm544, %v1203, 0
      %1210 = vmatprep.subr.bf16.mxu0 0
      %1211 = vmatpush1.bf16.xpose.msra.mxu0 %v1208
      %1212 = vmatprep.subr.bf16.mxu0 0
      %1213 = vmatpush1.bf16.xpose.msra.mxu0 0
      %1214 = vmatprep.subr.bf16.mxu0 0
      %1215 = vmatpush1.bf16.xpose.msra.mxu0 0
      %1216 = vmatprep.subr.bf16.mxu0 0
      %1217 = vmatpush1.bf16.xpose.msra.mxu0 0
      %1218 = vmatprep.subr.bf16.mxu0 0
      %1219 = vmatpush1.bf16.xpose.msra.mxu0 0
      %1220 = vmatprep.subr.bf16.mxu0 0
      %1221 = vmatpush1.bf16.xpose.msra.mxu0 0
      %1222 = vmatprep.subr.bf16.mxu0 0
      %1223 = vmatpush1.bf16.xpose.msra.mxu0 0
      %1224 = vmatprep.subr.bf16.mxu0 0
      %1225 = vmatpush1.bf16.xpose.msra.mxu0 0
      %1226 = vmatprep.subr.bf16.mxu0 0
      %1227 = vmatpush1.bf16.xpose.msra.mxu0 0
      %1228 = vmatprep.subr.bf16.mxu0 0
      %1229 = vmatpush1.bf16.xpose.msra.mxu0 0
      %1230 = vmatprep.subr.bf16.mxu0 0
      %1231 = vmatpush1.bf16.xpose.msra.mxu0 0
      %1232 = vmatprep.subr.bf16.mxu0 0
      %1233 = vmatpush1.bf16.xpose.msra.mxu0 0
      %1234 = vmatprep.subr.bf16.mxu0 0
      %1235 = vmatpush1.bf16.xpose.msra.mxu0 0
      %1236 = vmatprep.subr.bf16.mxu0 0
      %1237 = vmatpush1.bf16.xpose.msra.mxu0 0
      %1238 = vmatprep.subr.bf16.mxu0 0
      %1239 = vmatpush1.bf16.xpose.msra.mxu0 0
      %1240 = vmatprep.subr.bf16.mxu0 0
      %1241 = vmatpush1.bf16.xpose.msra.mxu0 0
      %1242 = vmatprep.mubr.bf16.mxu0 0
      %1243 = vmatmul.mubr.bf16.gmra.mrb[0].mxu0 %v1205
      %v1244 = vpop.f32.mrb[0].mxu0
      %v1245 = vadd.f32 0.0, %v1244
      %v1246 = vpop.f32.mrb[0].mxu0
      %v1247 = vpop.f32.mrb[0].mxu0
      %v1248 = vpop.f32.mrb[0].mxu0
      %1249 = vdwg.mxu0
      %v1250 = vmul.f32 %v1245, 0.35355338
      %1251 = vrot.lane.b32.xlu0 %v592, 104
      %v1252 = vpop.permute.xlu0 %1251
      %v1254 = vsel %vm544, %v1252, 0
      %1256 = vmatprep.subr.bf16.mxu0 0
      %1257 = vmatpush1.bf16.xpose.msra.mxu0 %v1254
      %1258 = vmatprep.subr.bf16.mxu0 0
      %1259 = vmatpush1.bf16.xpose.msra.mxu0 0
      %1260 = vmatprep.subr.bf16.mxu0 0
      %1261 = vmatpush1.bf16.xpose.msra.mxu0 0
      %1262 = vmatprep.subr.bf16.mxu0 0
      %1263 = vmatpush1.bf16.xpose.msra.mxu0 0
      %1264 = vmatprep.subr.bf16.mxu0 0
      %1265 = vmatpush1.bf16.xpose.msra.mxu0 0
      %1266 = vmatprep.subr.bf16.mxu0 0
      %1267 = vmatpush1.bf16.xpose.msra.mxu0 0
      %1268 = vmatprep.subr.bf16.mxu0 0
      %1269 = vmatpush1.bf16.xpose.msra.mxu0 0
      %1270 = vmatprep.subr.bf16.mxu0 0
      %1271 = vmatpush1.bf16.xpose.msra.mxu0 0
      %1272 = vmatprep.subr.bf16.mxu0 0
      %1273 = vmatpush1.bf16.xpose.msra.mxu0 0
      %1274 = vmatprep.subr.bf16.mxu0 0
      %1275 = vmatpush1.bf16.xpose.msra.mxu0 0
      %1276 = vmatprep.subr.bf16.mxu0 0
      %1277 = vmatpush1.bf16.xpose.msra.mxu0 0
      %1278 = vmatprep.subr.bf16.mxu0 0
      %1279 = vmatpush1.bf16.xpose.msra.mxu0 0
      %1280 = vmatprep.subr.bf16.mxu0 0
      %1281 = vmatpush1.bf16.xpose.msra.mxu0 0
      %1282 = vmatprep.subr.bf16.mxu0 0
      %1283 = vmatpush1.bf16.xpose.msra.mxu0 0
      %1284 = vmatprep.subr.bf16.mxu0 0
      %1285 = vmatpush1.bf16.xpose.msra.mxu0 0
      %1286 = vmatprep.subr.bf16.mxu0 0
      %1287 = vmatpush1.bf16.xpose.msra.mxu0 0
      %1288 = vmatprep.mubr.bf16.mxu0 0
      %1289 = vmatmul.mubr.bf16.gmra.mrb[0].mxu0 %v1205
      %v1290 = vpop.f32.mrb[0].mxu0
      %v1291 = vadd.f32 0.0, %v1290
      %v1292 = vpop.f32.mrb[0].mxu0
      %v1293 = vpop.f32.mrb[0].mxu0
      %v1294 = vpop.f32.mrb[0].mxu0
      %1295 = vdwg.mxu0
      %v1296 = vmul.f32 %v1291, 0.35355338
      %v1297 = vsel %vm637, %v1250, -inf
      %1298 = vmax.xlane.f32.xlu0 %v1297
      %v1299 = vpop.xlane.xlu0 %1298
      %v1300 = vsel %vm544, %v1296, -inf
      %1301 = vmax.xlane.f32.xlu0 %v1300
      %v1302 = vpop.xlane.xlu0 %1301
      %v1303 = vmax.f32 %v1299, %v1302
      %v1304 = vsub.f32 %v1250, %v1303
      %v1305 = vmul.f32 %v1304, 1.442695
      %v1306 = vpow.pop %v1305
      %v1307 = vsel %vm637, %v1306, 0.0
      %1308 = vadd.xlane.f32.xlu0 %v1307
      %v1309 = vpop.xlane.xlu0 %1308
      %v1310 = vadd.f32 %v1309, 0.0
      %v1311 = vpack.c.bf16 %v1306, %v1306
      %v1312 = vsub.f32 %v1296, %v1303
      %v1313 = vmul.f32 %v1312, 1.442695
      %v1314 = vpow.pop %v1313
      %v1315 = vsel %vm544, %v1314, 0.0
      %1316 = vadd.xlane.f32.xlu0 %v1315
      %v1317 = vpop.xlane.xlu0 %1316
      %v1318 = vadd.f32 %v1310, %v1317
      %v1319 = vpack.c.bf16 %v1314, %v1314
      %1320 = vrot.lane.b32.xlu0 %v592, 72
      %v1321 = vpop.permute.xlu0 %1320
      %v1323 = vsel %vm544, %v1319, 0
      %v1326 = vsel %vm667, %v1321, 0
      %1328 = vmatprep.subr.bf16.mxu0 0
      %1329 = vmatpush1.bf16.msra.mxu0 %v1326
      %1330 = vmatprep.subr.bf16.mxu0 0
      %1331 = vmatpush1.bf16.msra.mxu0 0
      %1332 = vmatprep.subr.bf16.mxu0 0
      %1333 = vmatpush1.bf16.msra.mxu0 0
      %1334 = vmatprep.subr.bf16.mxu0 0
      %1335 = vmatpush1.bf16.msra.mxu0 0
      %1336 = vmatprep.subr.bf16.mxu0 0
      %1337 = vmatpush1.bf16.msra.mxu0 0
      %1338 = vmatprep.subr.bf16.mxu0 0
      %1339 = vmatpush1.bf16.msra.mxu0 0
      %1340 = vmatprep.subr.bf16.mxu0 0
      %1341 = vmatpush1.bf16.msra.mxu0 0
      %1342 = vmatprep.subr.bf16.mxu0 0
      %1343 = vmatpush1.bf16.msra.mxu0 0
      %1344 = vmatprep.subr.bf16.mxu0 0
      %1345 = vmatpush1.bf16.msra.mxu0 0
      %1346 = vmatprep.subr.bf16.mxu0 0
      %1347 = vmatpush1.bf16.msra.mxu0 0
      %1348 = vmatprep.subr.bf16.mxu0 0
      %1349 = vmatpush1.bf16.msra.mxu0 0
      %1350 = vmatprep.subr.bf16.mxu0 0
      %1351 = vmatpush1.bf16.msra.mxu0 0
      %1352 = vmatprep.subr.bf16.mxu0 0
      %1353 = vmatpush1.bf16.msra.mxu0 0
      %1354 = vmatprep.subr.bf16.mxu0 0
      %1355 = vmatpush1.bf16.msra.mxu0 0
      %1356 = vmatprep.subr.bf16.mxu0 0
      %1357 = vmatpush1.bf16.msra.mxu0 0
      %1358 = vmatprep.subr.bf16.mxu0 0
      %1359 = vmatpush1.bf16.msra.mxu0 0
      %1360 = vmatprep.mubr.bf16.mxu0 0
      %1361 = vmatmul.mubr.bf16.gmra.mrb[0].mxu0 %v1323
      %v1362 = vpop.f32.mrb[0].mxu0
      %v1363 = vadd.f32 0.0, %v1362
      %v1364 = vpop.f32.mrb[0].mxu0
      %v1365 = vpop.f32.mrb[0].mxu0
      %v1366 = vpop.f32.mrb[0].mxu0
      %1367 = vdwg.mxu0
      %1368 = vrot.lane.b32.xlu0 %v543, 72
      %v1369 = vpop.permute.xlu0 %1368
      %v1371 = vsel %vm637, %v1311, 0
      %v1374 = vsel %vm717, %v1369, 0
      %1376 = vmatprep.subr.bf16.mxu0 0
      %1377 = vmatpush1.bf16.msra.mxu0 %v1374
      %1378 = vmatprep.subr.bf16.mxu0 0
      %1379 = vmatpush1.bf16.msra.mxu0 0
      %1380 = vmatprep.subr.bf16.mxu0 0
      %1381 = vmatpush1.bf16.msra.mxu0 0
      %1382 = vmatprep.subr.bf16.mxu0 0
      %1383 = vmatpush1.bf16.msra.mxu0 0
      %1384 = vmatprep.subr.bf16.mxu0 0
      %1385 = vmatpush1.bf16.msra.mxu0 0
      %1386 = vmatprep.subr.bf16.mxu0 0
      %1387 = vmatpush1.bf16.msra.mxu0 0
      %1388 = vmatprep.subr.bf16.mxu0 0
      %1389 = vmatpush1.bf16.msra.mxu0 0
      %1390 = vmatprep.subr.bf16.mxu0 0
      %1391 = vmatpush1.bf16.msra.mxu0 0
      %1392 = vmatprep.subr.bf16.mxu0 0
      %1393 = vmatpush1.bf16.msra.mxu0 0
      %1394 = vmatprep.subr.bf16.mxu0 0
      %1395 = vmatpush1.bf16.msra.mxu0 0
      %1396 = vmatprep.subr.bf16.mxu0 0
      %1397 = vmatpush1.bf16.msra.mxu0 0
      %1398 = vmatprep.subr.bf16.mxu0 0
      %1399 = vmatpush1.bf16.msra.mxu0 0
      %1400 = vmatprep.subr.bf16.mxu0 0
      %1401 = vmatpush1.bf16.msra.mxu0 0
      %1402 = vmatprep.subr.bf16.mxu0 0
      %1403 = vmatpush1.bf16.msra.mxu0 0
      %1404 = vmatprep.subr.bf16.mxu0 0
      %1405 = vmatpush1.bf16.msra.mxu0 0
      %1406 = vmatprep.subr.bf16.mxu0 0
      %1407 = vmatpush1.bf16.msra.mxu0 0
      %1408 = vmatprep.mubr.bf16.mxu0 0
      %1409 = vmatmul.mubr.bf16.gmra.mrb[0].mxu0 %v1371
      %v1410 = vpop.f32.mrb[0].mxu0
      %v1411 = vadd.f32 %v1363, %v1410
      %v1412 = vpop.f32.mrb[0].mxu0
      %v1413 = vpop.f32.mrb[0].mxu0
      %v1414 = vpop.f32.mrb[0].mxu0
      %1415 = vdwg.mxu0
      %v1416 = vrcp.pop %v1318
      %v1417 = vmul.f32 %v1411, %v1416
      %1419 = vrot.lane.b32.xlu0 %v981, 8
      %v1420 = vpop.permute.xlu0 %1419
      %1423 = vrot.lane.b32.xlu0 %v1199, 16
      %v1424 = vpop.permute.xlu0 %1423
      %1427 = vrot.lane.b32.xlu0 %v1417, 24
      %v1428 = vpop.permute.xlu0 %1427
      %v1430 = vsel %vm544, %v762, %v1420
      %vm1431 = vcmask 130048
      %v1432 = vsel %vm1431, %v1430, %v1424
      %vm1433 = vcmask 195584
      %v1434 = vsel %vm1433, %v1432, %v1428
      %v1435 = vpack.c.bf16 %v1434, %v1434
      %v1436 = vld [vmem:[%s5] sm:$0xf]
      %v1437 = vld [vmem:[%s5 + $0x4] sm:$0xf]
      %v1438 = vld [vmem:[%s5 + $0x8] sm:$0xf]
      %v1439 = vld [vmem:[%s5 + $0xc] sm:$0xf]
      %v1444 = vunpack.c.l.b16 %v1436
      %v1445 = vunpack.c.l.b16 %v1437
      %v1446 = vunpack.c.l.b16 %v1438
      %v1447 = vunpack.c.l.b16 %v1439
      %v1448 = vpack.c.b16 %v1445, %v1444
      %v1449 = vpack.c.b16 %v1447, %v1446
      %v1453 = vsel %vm350, %v1435, 0
      %1455 = vmatprep.subr.bf16.mxu0 0
      %1456 = vmatpush1.bf16.msra.mxu0 %v1448
      %1457 = vmatprep.subr.bf16.mxu0 0
      %1458 = vmatpush1.bf16.msra.mxu0 %v1449
      %1459 = vmatprep.subr.bf16.mxu0 0
      %1460 = vmatpush1.bf16.msra.mxu0 0
      %1461 = vmatprep.subr.bf16.mxu0 0
      %1462 = vmatpush1.bf16.msra.mxu0 0
      %1463 = vmatprep.subr.bf16.mxu0 0
      %1464 = vmatpush1.bf16.msra.mxu0 0
      %1465 = vmatprep.subr.bf16.mxu0 0
      %1466 = vmatpush1.bf16.msra.mxu0 0
      %1467 = vmatprep.subr.bf16.mxu0 0
      %1468 = vmatpush1.bf16.msra.mxu0 0
      %1469 = vmatprep.subr.bf16.mxu0 0
      %1470 = vmatpush1.bf16.msra.mxu0 0
      %1471 = vmatprep.subr.bf16.mxu0 0
      %1472 = vmatpush1.bf16.msra.mxu0 0
      %1473 = vmatprep.subr.bf16.mxu0 0
      %1474 = vmatpush1.bf16.msra.mxu0 0
      %1475 = vmatprep.subr.bf16.mxu0 0
      %1476 = vmatpush1.bf16.msra.mxu0 0
      %1477 = vmatprep.subr.bf16.mxu0 0
      %1478 = vmatpush1.bf16.msra.mxu0 0
      %1479 = vmatprep.subr.bf16.mxu0 0
      %1480 = vmatpush1.bf16.msra.mxu0 0
      %1481 = vmatprep.subr.bf16.mxu0 0
      %1482 = vmatpush1.bf16.msra.mxu0 0
      %1483 = vmatprep.subr.bf16.mxu0 0
      %1484 = vmatpush1.bf16.msra.mxu0 0
      %1485 = vmatprep.subr.bf16.mxu0 0
      %1486 = vmatpush1.bf16.msra.mxu0 0
      %1487 = vmatprep.mubr.bf16.mxu0 0
      %1488 = vmatmul.mubr.bf16.gmra.mrb[0].mxu0 %v1453
      %v1489 = vpop.f32.mrb[0].mxu0
      %v1490 = vadd.f32 0.0, %v1489
      %v1491 = vpop.f32.mrb[0].mxu0
      %v1492 = vpop.f32.mrb[0].mxu0
      %v1493 = vpop.f32.mrb[0].mxu0
      %1494 = vdwg.mxu0
      %v1495 = vadd.f32 %v324, %v1490
      %v1496 = vlaneseq
      %v1497 = vshrl.u32 %v1496, 7
      %v1498 = vsub.s32 6, %v1497
      %v1499 = vrot.slane %v319, %v1498
      %v1500 = vadd.f32 %v1495, %v1499
      %v1501 = vsel %vm350, %v1500, 0.0
      %1502 = vadd.xlane.f32.xlu0 %v1501
      %v1503 = vpop.xlane.xlu0 %1502
      %v1504 = vmul.f32 %v1503, %v329
      %v1505 = vsub.f32 %v1500, %v1504
      %v1506 = vmul.f32 %v1505, %v1505
      %v1507 = vsel %vm350, %v1506, 0.0
      %1508 = vadd.xlane.f32.xlu0 %v1507
      %v1509 = vpop.xlane.xlu0 %1508
      %v1510 = vmul.f32 %v1509, %v329
      %v1511 = vadd.f32 %v1510, 1e-05
      %v1512 = vrsqrt.pop %v1511
      %v1513 = vmul.f32 %v1505, %v1512
      %v1514 = vlaneseq
      %v1515 = vshrl.u32 %v1514, 7
      %v1516 = vsub.s32 7, %v1515
      %v1517 = vrot.slane %v319, %v1516
      %v1518 = vmul.f32 %v1513, %v1517
      %v1519 = vlaneseq
      %v1520 = vshrl.u32 %v1519, 7
      %v1521 = vsub.s32 0, %v1520
      %v1522 = vrot.slane %v320, %v1521
      %v1523 = vadd.f32 %v1518, %v1522
      %v1524 = vpack.c.bf16 %v1523, %v1523
      %v1525 = vld [vmem:[%s6] sm:$0xf]
      %v1526 = vld [vmem:[%s6 + $0x4] sm:$0xf]
      %v1527 = vld [vmem:[%s6 + $0x8] sm:$0xf]
      %v1528 = vld [vmem:[%s6 + $0xc] sm:$0xf]
      %v1529 = vlaneseq
      %v1530 = vshrl.u32 %v1529, 7
      %v1531 = vsub.s32 1, %v1530
      %v1532 = vrot.slane %v320, %v1531
      %v1537 = vunpack.c.l.b16 %v1525
      %v1538 = vunpack.c.l.b16 %v1526
      %v1539 = vunpack.c.l.b16 %v1527
      %v1540 = vunpack.c.l.b16 %v1528
      %v1541 = vpack.c.b16 %v1538, %v1537
      %v1542 = vpack.c.b16 %v1540, %v1539
      %v1546 = vsel %vm350, %v1524, 0
      %1548 = vmatprep.subr.bf16.mxu0 0
      %1549 = vmatpush1.bf16.msra.mxu0 %v1541
      %1550 = vmatprep.subr.bf16.mxu0 0
      %1551 = vmatpush1.bf16.msra.mxu0 %v1542
      %1552 = vmatprep.subr.bf16.mxu0 0
      %1553 = vmatpush1.bf16.msra.mxu0 0
      %1554 = vmatprep.subr.bf16.mxu0 0
      %1555 = vmatpush1.bf16.msra.mxu0 0
      %1556 = vmatprep.subr.bf16.mxu0 0
      %1557 = vmatpush1.bf16.msra.mxu0 0
      %1558 = vmatprep.subr.bf16.mxu0 0
      %1559 = vmatpush1.bf16.msra.mxu0 0
      %1560 = vmatprep.subr.bf16.mxu0 0
      %1561 = vmatpush1.bf16.msra.mxu0 0
      %1562 = vmatprep.subr.bf16.mxu0 0
      %1563 = vmatpush1.bf16.msra.mxu0 0
      %1564 = vmatprep.subr.bf16.mxu0 0
      %1565 = vmatpush1.bf16.msra.mxu0 0
      %1566 = vmatprep.subr.bf16.mxu0 0
      %1567 = vmatpush1.bf16.msra.mxu0 0
      %1568 = vmatprep.subr.bf16.mxu0 0
      %1569 = vmatpush1.bf16.msra.mxu0 0
      %1570 = vmatprep.subr.bf16.mxu0 0
      %1571 = vmatpush1.bf16.msra.mxu0 0
      %1572 = vmatprep.subr.bf16.mxu0 0
      %1573 = vmatpush1.bf16.msra.mxu0 0
      %1574 = vmatprep.subr.bf16.mxu0 0
      %1575 = vmatpush1.bf16.msra.mxu0 0
      %1576 = vmatprep.subr.bf16.mxu0 0
      %1577 = vmatpush1.bf16.msra.mxu0 0
      %1578 = vmatprep.subr.bf16.mxu0 0
      %1579 = vmatpush1.bf16.msra.mxu0 0
      %1580 = vmatprep.mubr.bf16.mxu0 0
      %1581 = vmatmul.mubr.bf16.gmra.mrb[0].mxu0 %v1546
      %v1582 = vpop.f32.mrb[0].mxu0
      %v1583 = vadd.f32 %v1532, %v1582
      %v1584 = vpop.f32.mrb[0].mxu0
      %v1585 = vpop.f32.mrb[0].mxu0
      %v1586 = vpop.f32.mrb[0].mxu0
      %1587 = vdwg.mxu0
      %v1588 = vmul.f32 %v1583, %v1583
      %v1589 = vmul.f32 %v1583, %v1588
      %v1590 = vmul.f32 %v1589, 0.044715
      %v1591 = vadd.f32 %v1583, %v1590
      %v1592 = vmul.f32 %v1591, 0.7978846
      %v1593 = vtanh.pop %v1592
      %v1594 = vadd.f32 %v1593, 1.0
      %v1595 = vmul.f32 %v1594, 0.5
      %v1596 = vmul.f32 %v1583, %v1595
      %v1597 = vpack.c.bf16 %v1596, %v1596
      %v1598 = vld [vmem:[%s7] sm:$0xf]
      %v1599 = vld [vmem:[%s7 + $0x4] sm:$0xf]
      %v1600 = vld [vmem:[%s7 + $0x8] sm:$0xf]
      %v1601 = vld [vmem:[%s7 + $0xc] sm:$0xf]
      %v1602 = vld [vmem:[%s7 + $0x10] sm:$0xf]
      %v1603 = vld [vmem:[%s7 + $0x14] sm:$0xf]
      %v1604 = vld [vmem:[%s7 + $0x18] sm:$0xf]
      %v1605 = vld [vmem:[%s7 + $0x1c] sm:$0xf]
      %v1606 = vld [vmem:[%s7 + $0x20] sm:$0xf]
      %v1607 = vld [vmem:[%s7 + $0x24] sm:$0xf]
      %v1608 = vld [vmem:[%s7 + $0x28] sm:$0xf]
      %v1609 = vld [vmem:[%s7 + $0x2c] sm:$0xf]
      %v1610 = vld [vmem:[%s7 + $0x30] sm:$0xf]
      %v1611 = vld [vmem:[%s7 + $0x34] sm:$0xf]
      %v1612 = vld [vmem:[%s7 + $0x38] sm:$0xf]
      %v1613 = vld [vmem:[%s7 + $0x3c] sm:$0xf]
      %v1614 = vlaneseq
      %v1615 = vshrl.u32 %v1614, 7
      %v1616 = vsub.s32 2, %v1615
      %v1617 = vrot.slane %v320, %v1616
      %v1634 = vunpack.c.l.b16 %v1598
      %v1635 = vunpack.c.l.b16 %v1599
      %v1636 = vunpack.c.l.b16 %v1600
      %v1637 = vunpack.c.l.b16 %v1601
      %v1638 = vunpack.c.l.b16 %v1602
      %v1639 = vunpack.c.l.b16 %v1603
      %v1640 = vunpack.c.l.b16 %v1604
      %v1641 = vunpack.c.l.b16 %v1605
      %v1642 = vunpack.c.l.b16 %v1606
      %v1643 = vunpack.c.l.b16 %v1607
      %v1644 = vunpack.c.l.b16 %v1608
      %v1645 = vunpack.c.l.b16 %v1609
      %v1646 = vunpack.c.l.b16 %v1610
      %v1647 = vunpack.c.l.b16 %v1611
      %v1648 = vunpack.c.l.b16 %v1612
      %v1649 = vunpack.c.l.b16 %v1613
      %v1650 = vpack.c.b16 %v1635, %v1634
      %v1651 = vpack.c.b16 %v1637, %v1636
      %v1652 = vpack.c.b16 %v1639, %v1638
      %v1653 = vpack.c.b16 %v1641, %v1640
      %v1654 = vpack.c.b16 %v1643, %v1642
      %v1655 = vpack.c.b16 %v1645, %v1644
      %v1656 = vpack.c.b16 %v1647, %v1646
      %v1657 = vpack.c.b16 %v1649, %v1648
      %1666 = vmatprep.subr.bf16.mxu0 0
      %1667 = vmatpush1.bf16.msra.mxu0 %v1650
      %1668 = vmatprep.subr.bf16.mxu0 0
      %1669 = vmatpush1.bf16.msra.mxu0 %v1651
      %1670 = vmatprep.subr.bf16.mxu0 0
      %1671 = vmatpush1.bf16.msra.mxu0 %v1652
      %1672 = vmatprep.subr.bf16.mxu0 0
      %1673 = vmatpush1.bf16.msra.mxu0 %v1653
      %1674 = vmatprep.subr.bf16.mxu0 0
      %1675 = vmatpush1.bf16.msra.mxu0 %v1654
      %1676 = vmatprep.subr.bf16.mxu0 0
      %1677 = vmatpush1.bf16.msra.mxu0 %v1655
      %1678 = vmatprep.subr.bf16.mxu0 0
      %1679 = vmatpush1.bf16.msra.mxu0 %v1656
      %1680 = vmatprep.subr.bf16.mxu0 0
      %1681 = vmatpush1.bf16.msra.mxu0 %v1657
      %1682 = vmatprep.subr.bf16.mxu0 0
      %1683 = vmatpush1.bf16.msra.mxu0 0
      %1684 = vmatprep.subr.bf16.mxu0 0
      %1685 = vmatpush1.bf16.msra.mxu0 0
      %1686 = vmatprep.subr.bf16.mxu0 0
      %1687 = vmatpush1.bf16.msra.mxu0 0
      %1688 = vmatprep.subr.bf16.mxu0 0
      %1689 = vmatpush1.bf16.msra.mxu0 0
      %1690 = vmatprep.subr.bf16.mxu0 0
      %1691 = vmatpush1.bf16.msra.mxu0 0
      %1692 = vmatprep.subr.bf16.mxu0 0
      %1693 = vmatpush1.bf16.msra.mxu0 0
      %1694 = vmatprep.subr.bf16.mxu0 0
      %1695 = vmatpush1.bf16.msra.mxu0 0
      %1696 = vmatprep.subr.bf16.mxu0 0
      %1697 = vmatpush1.bf16.msra.mxu0 0
      %1698 = vmatprep.mubr.bf16.mxu0 0
      %1699 = vmatmul.mubr.bf16.gmra.mrb[0].mxu0 %v1597
      %v1700 = vpop.f32.mrb[0].mxu0
      %v1701 = vadd.f32 %v1617, %v1700
      %v1702 = vpop.f32.mrb[0].mxu0
      %v1703 = vpop.f32.mrb[0].mxu0
      %v1704 = vpop.f32.mrb[0].mxu0
      %1705 = vdwg.mxu0
      %v1706 = vadd.f32 %v1500, %v1701
      %v1707 = vsel %vm350, %v1706, 0.0
      %1708 = vadd.xlane.f32.xlu0 %v1707
      %v1709 = vpop.xlane.xlu0 %1708
      %v1710 = vmul.f32 %v1709, %v329
      %v1711 = vsub.f32 %v1706, %v1710
      %v1712 = vmul.f32 %v1711, %v1711
      %v1713 = vsel %vm350, %v1712, 0.0
      %1714 = vadd.xlane.f32.xlu0 %v1713
      %v1715 = vpop.xlane.xlu0 %1714
      %v1716 = vmul.f32 %v1715, %v329
      %v1717 = vadd.f32 %v1716, 1e-05
      %v1718 = vrsqrt.pop %v1717
      %v1719 = vmul.f32 %v1711, %v1718
      %v1720 = vlaneseq
      %v1721 = vshrl.u32 %v1720, 7
      %v1722 = vsub.s32 3, %v1721
      %v1723 = vrot.slane %v320, %v1722
      %v1724 = vmul.f32 %v1719, %v1723
      %v1725 = vlaneseq
      %v1726 = vshrl.u32 %v1725, 7
      %v1727 = vsub.s32 4, %v1726
      %v1728 = vrot.slane %v320, %v1727
      %v1729 = vadd.f32 %v1724, %v1728
      %v1730 = vpack.c.bf16 %v1729, %v1729
      %1731 = vst.msk [vmem:[%s317] sm:$0xf] %vm325, %v1730
      %p1732 = scmp.lt.s32.totalorder %s19, 1
      %s1733 = scalar_select %p1732, %s19, 1
      %s1734 = smul.addr %s1733, 4
      %s1735 = scalar_lea.vmem %s8, %s1734
      // Predicated region
      $region53: #{flamingo_forward.6} parent=51 // pred_check
        %p1736 = pneg %p215
      $region54: #{flamingo_forward.6} parent=51 // pred_check_branch
        %1738 = sbr.rel (%p1736) target = $region56
      $region55: #{flamingo_forward.6} parent=51 // pred_region
        _
      $region56: #{flamingo_forward.6} parent=51 // pred_fallthru
        _
    $region52: #{flamingo_forward.6} parent=5 // pred_fallthru
      _
    %p1739 = scmp.le.s32.totalorder 2, %s14
    // Predicated region
    $region57: #{flamingo_forward.6} parent=5 // pred_check
      %p1740 = pneg %p1739
    $region58: #{flamingo_forward.6} parent=5 // pred_check_branch
      %1742 = sbr.rel (%p1740) target = $region60
    $region59: #{flamingo_forward.6} parent=5 // pred_region
      %s1743 = ssub.s32 %s14, 2
      // Predicated region
      $region61: #{flamingo_forward.6} parent=59 // pred_check
        %p1744 = pneg %p221
      $region62: #{flamingo_forward.6} parent=59 // pred_check_branch
        %1746 = sbr.rel (%p1744) target = $region64
      $region63: #{flamingo_forward.6} parent=59 // pred_region
        %p1747 = scmp.lt.s32.totalorder %s20, 1
        %s1748 = scalar_select %p1747, %s20, 1
        %s1749 = smul.addr %s1748, 4
        %s1750 = scalar_lea.vmem %s8, %s1749
      $region64: #{flamingo_forward.6} parent=59 // pred_fallthru
        _
    $region60: #{flamingo_forward.6} parent=5 // pred_fallthru
      _
  $region6: #{flamingo_forward.6} parent=0 // loop_footer
    %s18 = sadd.s32 1, %s14
  $region7: #{flamingo_forward.6} parent=0 // loop_footer_branch
    %13 = sbr.rel target = $region3
  $region8: #{flamingo_forward.6} parent=0 // loop_exit
    _

// kernel: flamingo_forward.5
$region0: #{flamingo_forward.5}
  #allocation0 [shape = 'u32[]', space=smem, size = 0x4, offset = 0x4, fixed_abs, tag = 'smem constant byte address 0x4 - core index']
  #allocation1 [shape = 'u32[144,128]{1,0:T(1,128)}', space=vmem, size = 0x12000, scoped, tag = 'internal scratch']
  %s0 = inlined_call_operand.vmem [shape: bf16[2,4,32], index: 0, kind: input, shape index: {}]
  %s1 = inlined_call_operand.vmem [shape: bf16[2,8,32], index: 1, kind: input, shape index: {}]
  %s2 = inlined_call_operand.vmem [shape: f32[13,128], index: 2, kind: input, shape index: {}]
  %s3 = inlined_call_operand.vmem [shape: bf16[32,32], index: 3, kind: input, shape index: {}]
  %s4 = inlined_call_operand.vmem [shape: bf16[32,64], index: 4, kind: input, shape index: {}]
  %s5 = inlined_call_operand.vmem [shape: bf16[32,32], index: 5, kind: input, shape index: {}]
  %s6 = inlined_call_operand.vmem [shape: bf16[32,128], index: 6, kind: input, shape index: {}]
  %s7 = inlined_call_operand.vmem [shape: bf16[128,32], index: 7, kind: input, shape index: {}]
  %s8 = inlined_call_operand.vmem [shape: bf16[2,8,32], index: 8, kind: output, shape index: {}]
  %s9 = sld [smem:[#allocation0]]
  $region65: #{flamingo_forward.5} parent=0
    _
  %s11 = ssub.s32 1, %s9
  %s12 = scalar_select 0, %s11, %s9
  loop: start=0, step=1, limit=4
  $region2: #{flamingo_forward.5} parent=0 // loop_pre_header
    _
  $region3: #{flamingo_forward.5} parent=0 // loop_header
    %s14 = sphi 0, %s18
    %p15 = scmp.ge.s32.totalorder %s14, 4
    %s24 = sphi 0, %s26
    %s27 = sphi 0, %s24
    %s28 = sphi 0, %s27
    %s44 = sphi 0, %s28
    %s50 = sphi 0, %s52
    %s53 = sphi 0, %s50
    %s54 = sphi 0, %s53
    %s70 = sphi 0, %s54
    %s74 = sphi 0, %s74
    %s76 = sphi 0, %s74
    %s77 = sphi 0, %s76
    %s91 = sphi 0, %s77
    %s95 = sphi 0, %s95
    %s97 = sphi 0, %s95
    %s98 = sphi 0, %s97
    %s112 = sphi 0, %s98
    %s116 = sphi 0, %s116
    %s118 = sphi 0, %s116
    %s119 = sphi 0, %s118
    %s133 = sphi 0, %s119
    %s137 = sphi 0, %s137
    %s139 = sphi 0, %s137
    %s140 = sphi 0, %s139
    %s154 = sphi 0, %s140
    %s158 = sphi 0, %s158
    %s160 = sphi 0, %s158
    %s161 = sphi 0, %s160
    %s175 = sphi 0, %s161
    %s179 = sphi 0, %s179
    %s181 = sphi 0, %s179
    %s182 = sphi 0, %s181
    %s196 = sphi 0, %s182
    %s202 = sphi 0, %s204
    %s205 = sphi 0, %s202
    %s206 = sphi 0, %s205
    %s222 = sphi 0, %s206
  $region4: #{flamingo_forward.5} parent=0 // loop_header_branch
    %17 = sbr.rel (%p15) target = $region8
  $region5: #{flamingo_forward.5} parent=0 // loop_body
    %s19 = ssub.s32 %s14, 1
    %s20 = ssub.s32 %s14, 2
    %s21 = sadd.s32 %s14, 1
    %s22 = ssub.s32 %s14, %s21
    %p23 = scmp.eq.s32.totalorder %s22, 0
    %s25 = sadd.s32 %s24, 1
    %s26 = scalar_select %p23, %s24, %s25
    %p29 = pneg %p23
    %p30 = scmp.eq.s32.totalorder %s14, 1
    %p31 = por %p29, %p30
    %p32 = scmp.ne.s32.totalorder %s24, %s27
    %p33 = scmp.eq.s32.totalorder %s14, 0
    %p34 = por %p32, %p33
    %p35 = scmp.ne.s32.totalorder %s24, %s27
    %p36 = scmp.eq.s32.totalorder %s19, 1
    %p37 = por %p35, %p36
    %p38 = scmp.ne.s32.totalorder %s27, %s28
    %p39 = scmp.eq.s32.totalorder %s19, 0
    %p40 = por %p38, %p39
    %p41 = scmp.ne.s32.totalorder %s27, %s28
    %p42 = scmp.eq.s32.totalorder %s20, 1
    %p43 = por %p41, %p42
    %p45 = scmp.ne.s32.totalorder %s28, %s44
    %p46 = scmp.eq.s32.totalorder %s20, 0
    %p47 = por %p45, %p46
    %s48 = ssub.s32 %s14, %s21
    %p49 = scmp.eq.s32.totalorder %s48, 0
    %s51 = sadd.s32 %s50, 1
    %s52 = scalar_select %p49, %s50, %s51
    %p55 = pneg %p49
    %p56 = scmp.eq.s32.totalorder %s14, 1
    %p57 = por %p55, %p56
    %p58 = scmp.ne.s32.totalorder %s50, %s53
    %p59 = scmp.eq.s32.totalorder %s14, 0
    %p60 = por %p58, %p59
    %p61 = scmp.ne.s32.totalorder %s50, %s53
    %p62 = scmp.eq.s32.totalorder %s19, 1
    %p63 = por %p61, %p62
    %p64 = scmp.ne.s32.totalorder %s53, %s54
    %p65 = scmp.eq.s32.totalorder %s19, 0
    %p66 = por %p64, %p65
    %p67 = scmp.ne.s32.totalorder %s53, %s54
    %p68 = scmp.eq.s32.totalorder %s20, 1
    %p69 = por %p67, %p68
    %p71 = scmp.ne.s32.totalorder %s54, %s70
    %p72 = scmp.eq.s32.totalorder %s20, 0
    %p73 = por %p71, %p72
    %s75 = sadd.s32 %s74, 1
    %p78 = scmp.eq.s32.totalorder %s14, 1
    %p79 = scmp.ne.s32.totalorder %s74, %s76
    %p80 = scmp.eq.s32.totalorder %s14, 0
    %p81 = por %p79, %p80
    %p82 = scmp.ne.s32.totalorder %s74, %s76
    %p83 = scmp.eq.s32.totalorder %s19, 1
    %p84 = por %p82, %p83
    %p85 = scmp.ne.s32.totalorder %s76, %s77
    %p86 = scmp.eq.s32.totalorder %s19, 0
    %p87 = por %p85, %p86
    %p88 = scmp.ne.s32.totalorder %s76, %s77
    %p89 = scmp.eq.s32.totalorder %s20, 1
    %p90 = por %p88, %p89
    %p92 = scmp.ne.s32.totalorder %s77, %s91
    %p93 = scmp.eq.s32.totalorder %s20, 0
    %p94 = por %p92, %p93
    %s96 = sadd.s32 %s95, 1
    %p99 = scmp.eq.s32.totalorder %s14, 1
    %p100 = scmp.ne.s32.totalorder %s95, %s97
    %p101 = scmp.eq.s32.totalorder %s14, 0
    %p102 = por %p100, %p101
    %p103 = scmp.ne.s32.totalorder %s95, %s97
    %p104 = scmp.eq.s32.totalorder %s19, 1
    %p105 = por %p103, %p104
    %p106 = scmp.ne.s32.totalorder %s97, %s98
    %p107 = scmp.eq.s32.totalorder %s19, 0
    %p108 = por %p106, %p107
    %p109 = scmp.ne.s32.totalorder %s97, %s98
    %p110 = scmp.eq.s32.totalorder %s20, 1
    %p111 = por %p109, %p110
    %p113 = scmp.ne.s32.totalorder %s98, %s112
    %p114 = scmp.eq.s32.totalorder %s20, 0
    %p115 = por %p113, %p114
    %s117 = sadd.s32 %s116, 1
    %p120 = scmp.eq.s32.totalorder %s14, 1
    %p121 = scmp.ne.s32.totalorder %s116, %s118
    %p122 = scmp.eq.s32.totalorder %s14, 0
    %p123 = por %p121, %p122
    %p124 = scmp.ne.s32.totalorder %s116, %s118
    %p125 = scmp.eq.s32.totalorder %s19, 1
    %p126 = por %p124, %p125
    %p127 = scmp.ne.s32.totalorder %s118, %s119
    %p128 = scmp.eq.s32.totalorder %s19, 0
    %p129 = por %p127, %p128
    %p130 = scmp.ne.s32.totalorder %s118, %s119
    %p131 = scmp.eq.s32.totalorder %s20, 1
    %p132 = por %p130, %p131
    %p134 = scmp.ne.s32.totalorder %s119, %s133
    %p135 = scmp.eq.s32.totalorder %s20, 0
    %p136 = por %p134, %p135
    %s138 = sadd.s32 %s137, 1
    %p141 = scmp.eq.s32.totalorder %s14, 1
    %p142 = scmp.ne.s32.totalorder %s137, %s139
    %p143 = scmp.eq.s32.totalorder %s14, 0
    %p144 = por %p142, %p143
    %p145 = scmp.ne.s32.totalorder %s137, %s139
    %p146 = scmp.eq.s32.totalorder %s19, 1
    %p147 = por %p145, %p146
    %p148 = scmp.ne.s32.totalorder %s139, %s140
    %p149 = scmp.eq.s32.totalorder %s19, 0
    %p150 = por %p148, %p149
    %p151 = scmp.ne.s32.totalorder %s139, %s140
    %p152 = scmp.eq.s32.totalorder %s20, 1
    %p153 = por %p151, %p152
    %p155 = scmp.ne.s32.totalorder %s140, %s154
    %p156 = scmp.eq.s32.totalorder %s20, 0
    %p157 = por %p155, %p156
    %s159 = sadd.s32 %s158, 1
    %p162 = scmp.eq.s32.totalorder %s14, 1
    %p163 = scmp.ne.s32.totalorder %s158, %s160
    %p164 = scmp.eq.s32.totalorder %s14, 0
    %p165 = por %p163, %p164
    %p166 = scmp.ne.s32.totalorder %s158, %s160
    %p167 = scmp.eq.s32.totalorder %s19, 1
    %p168 = por %p166, %p167
    %p169 = scmp.ne.s32.totalorder %s160, %s161
    %p170 = scmp.eq.s32.totalorder %s19, 0
    %p171 = por %p169, %p170
    %p172 = scmp.ne.s32.totalorder %s160, %s161
    %p173 = scmp.eq.s32.totalorder %s20, 1
    %p174 = por %p172, %p173
    %p176 = scmp.ne.s32.totalorder %s161, %s175
    %p177 = scmp.eq.s32.totalorder %s20, 0
    %p178 = por %p176, %p177
    %s180 = sadd.s32 %s179, 1
    %p183 = scmp.eq.s32.totalorder %s14, 1
    %p184 = scmp.ne.s32.totalorder %s179, %s181
    %p185 = scmp.eq.s32.totalorder %s14, 0
    %p186 = por %p184, %p185
    %p187 = scmp.ne.s32.totalorder %s179, %s181
    %p188 = scmp.eq.s32.totalorder %s19, 1
    %p189 = por %p187, %p188
    %p190 = scmp.ne.s32.totalorder %s181, %s182
    %p191 = scmp.eq.s32.totalorder %s19, 0
    %p192 = por %p190, %p191
    %p193 = scmp.ne.s32.totalorder %s181, %s182
    %p194 = scmp.eq.s32.totalorder %s20, 1
    %p195 = por %p193, %p194
    %p197 = scmp.ne.s32.totalorder %s182, %s196
    %p198 = scmp.eq.s32.totalorder %s20, 0
    %p199 = por %p197, %p198
    %s200 = ssub.s32 %s14, %s21
    %p201 = scmp.eq.s32.totalorder %s200, 0
    %s203 = sadd.s32 %s202, 1
    %s204 = scalar_select %p201, %s202, %s203
    %p207 = pneg %p201
    %p208 = scmp.eq.s32.totalorder %s14, 1
    %p209 = por %p207, %p208
    %p210 = scmp.ne.s32.totalorder %s202, %s205
    %p211 = scmp.eq.s32.totalorder %s14, 0
    %p212 = por %p210, %p211
    %p213 = scmp.ne.s32.totalorder %s202, %s205
    %p214 = scmp.eq.s32.totalorder %s19, 1
    %p215 = por %p213, %p214
    %p216 = scmp.ne.s32.totalorder %s205, %s206
    %p217 = scmp.eq.s32.totalorder %s19, 0
    %p218 = por %p216, %p217
    %p219 = scmp.ne.s32.totalorder %s205, %s206
    %p220 = scmp.eq.s32.totalorder %s20, 1
    %p221 = por %p219, %p220
    %p223 = scmp.ne.s32.totalorder %s206, %s222
    %p224 = scmp.eq.s32.totalorder %s20, 0
    %p225 = por %p223, %p224
    %p226 = scmp.le.s32.totalorder 1, %s14
    %p227 = scmp.lt.s32.totalorder %s14, 3
    %p228 = pnand %p226, %p227
    %p229 = pneg %p228
    // Predicated region
    $region9: #{flamingo_forward.5} parent=5 // pred_check
      _
    $region10: #{flamingo_forward.5} parent=5 // pred_check_branch
      %231 = sbr.rel (%p228) target = $region12
    $region11: #{flamingo_forward.5} parent=5 // pred_region
      %s232 = ssub.s32 %s14, 1
      // Predicated region
      $region13: #{flamingo_forward.5} parent=11 // pred_check
        %p233 = pneg %p87
      $region14: #{flamingo_forward.5} parent=11 // pred_check_branch
        %235 = sbr.rel (%p233) target = $region16
      $region15: #{flamingo_forward.5} parent=11 // pred_region
        _
      $region16: #{flamingo_forward.5} parent=11 // pred_fallthru
        _
      // Predicated region
      $region17: #{flamingo_forward.5} parent=11 // pred_check
        %p236 = pneg %p108
      $region18: #{flamingo_forward.5} parent=11 // pred_check_branch
        %238 = sbr.rel (%p236) target = $region20
      $region19: #{flamingo_forward.5} parent=11 // pred_region
        _
      $region20: #{flamingo_forward.5} parent=11 // pred_fallthru
        _
      // Predicated region
      $region21: #{flamingo_forward.5} parent=11 // pred_check
        %p239 = pneg %p129
      $region22: #{flamingo_forward.5} parent=11 // pred_check_branch
        %241 = sbr.rel (%p239) target = $region24
      $region23: #{flamingo_forward.5} parent=11 // pred_region
        _
      $region24: #{flamingo_forward.5} parent=11 // pred_fallthru
        _
      // Predicated region
      $region25: #{flamingo_forward.5} parent=11 // pred_check
        %p242 = pneg %p150
      $region26: #{flamingo_forward.5} parent=11 // pred_check_branch
        %244 = sbr.rel (%p242) target = $region28
      $region27: #{flamingo_forward.5} parent=11 // pred_region
        _
      $region28: #{flamingo_forward.5} parent=11 // pred_fallthru
        _
      // Predicated region
      $region29: #{flamingo_forward.5} parent=11 // pred_check
        %p245 = pneg %p171
      $region30: #{flamingo_forward.5} parent=11 // pred_check_branch
        %247 = sbr.rel (%p245) target = $region32
      $region31: #{flamingo_forward.5} parent=11 // pred_region
        _
      $region32: #{flamingo_forward.5} parent=11 // pred_fallthru
        _
      // Predicated region
      $region33: #{flamingo_forward.5} parent=11 // pred_check
        %p248 = pneg %p192
      $region34: #{flamingo_forward.5} parent=11 // pred_check_branch
        %250 = sbr.rel (%p248) target = $region36
      $region35: #{flamingo_forward.5} parent=11 // pred_region
        _
      $region36: #{flamingo_forward.5} parent=11 // pred_fallthru
        _
    $region12: #{flamingo_forward.5} parent=5 // pred_fallthru
      _
    %p251 = scmp.lt.s32.totalorder %s14, 2
    // Predicated region
    $region37: #{flamingo_forward.5} parent=5 // pred_check
      %p252 = pneg %p251
    $region38: #{flamingo_forward.5} parent=5 // pred_check_branch
      %254 = sbr.rel (%p252) target = $region40
    $region39: #{flamingo_forward.5} parent=5 // pred_region
      // Predicated region
      $region41: #{flamingo_forward.5} parent=39 // pred_check
        %p255 = pneg %p34
      $region42: #{flamingo_forward.5} parent=39 // pred_check_branch
        %257 = sbr.rel (%p255) target = $region44
      $region43: #{flamingo_forward.5} parent=39 // pred_region
        %p258 = scmp.lt.s32.totalorder %s14, 1
        %s259 = scalar_select %p258, %s14, 1
        %s260 = smul.addr %s259, 2
        %s261 = scalar_lea.vmem %s0, %s260
      $region44: #{flamingo_forward.5} parent=39 // pred_fallthru
        _
      // Predicated region
      $region45: #{flamingo_forward.5} parent=39 // pred_check
        %p262 = pneg %p60
      $region46: #{flamingo_forward.5} parent=39 // pred_check_branch
        %264 = sbr.rel (%p262) target = $region48
      $region47: #{flamingo_forward.5} parent=39 // pred_region
        %p265 = scmp.lt.s32.totalorder %s14, 1
        %s266 = scalar_select %p265, %s14, 1
        %s267 = smul.addr %s266, 4
        %s268 = scalar_lea.vmem %s1, %s267
      $region48: #{flamingo_forward.5} parent=39 // pred_fallthru
        _
    $region40: #{flamingo_forward.5} parent=5 // pred_fallthru
      _
    %p269 = scmp.le.s32.totalorder 1, %s14
    %p270 = scmp.lt.s32.totalorder %s14, 3
    %p271 = pnand %p269, %p270
    %p272 = pneg %p271
    // Predicated region
    $region49: #{flamingo_forward.5} parent=5 // pred_check
      _
    $region50: #{flamingo_forward.5} parent=5 // pred_check_branch
      %274 = sbr.rel (%p271) target = $region52
    $region51: #{flamingo_forward.5} parent=5 // pred_region
      %s275 = ssub.s32 %s14, 1
      %p276 = scmp.lt.s32.totalorder %s19, 1
      %s277 = scalar_select %p276, %s19, 1
      %s278 = smul.addr %s277, 2
      %s279 = scalar_lea.vmem %s0, %s278
      %p280 = pneg %p40
      %p281 = pneg %p37
      %p282 = scmp.lt.s32.totalorder %s19, 1
      %s283 = scalar_select %p282, %s19, 1
      %s284 = smul.addr %s283, 4
      %s285 = scalar_lea.vmem %s1, %s284
      %p286 = pneg %p66
      %p287 = pneg %p63
      %p288 = pneg %p87
      %p289 = pneg %p84
      %p290 = pneg %p108
      %p291 = pneg %p105
      %p292 = pneg %p129
      %p293 = pneg %p126
      %p294 = pneg %p150
      %p295 = pneg %p147
      %p296 = pneg %p171
      %p297 = pneg %p168
      %p298 = pneg %p192
      %p299 = pneg %p189
      %p300 = pneg %p218
      %p301 = pneg %p215
      %p302 = scmp.lt.s32.totalorder %s19, 1
      %s303 = scalar_select %p302, %s19, 1
      %s304 = smul.addr %s303, 4
      %s305 = scalar_lea.vmem %s8, %s304
      %p306 = scmp.lt.s32.totalorder %s19, 1
      %s307 = scalar_select %p306, %s19, 1
      %s308 = smul.addr %s307, 2
      %s309 = scalar_lea.vmem %s0, %s308
      %p310 = scmp.lt.s32.totalorder %s19, 1
      %s311 = scalar_select %p310, %s19, 1
      %s312 = smul.addr %s311, 4
      %s313 = scalar_lea.vmem %s1, %s312
      %p314 = scmp.lt.s32.totalorder %s19, 1
      %s315 = scalar_select %p314, %s19, 1
      %s316 = smul.addr %s315, 4
      %s317 = scalar_lea.vmem %s8, %s316
      %v319 = vld [vmem:[%s2] sm:$0xff]
      %v320 = vld [vmem:[%s2 + $0x8] sm:$0x1f]
      %v321 = vld [vmem:[%s309] sm:$0x3]
      %v322 = vunpack.c.l.bf16 %v321
      %v323 = vld [vmem:[%s313] sm:$0xf]
      %v324 = vunpack.c.l.bf16 %v323
      %vm325 = vcmask 257024
      %v326 = vsel %vm325, %v322, 0.0
      %327 = vadd.xlane.f32.xlu0 %v326
      %v328 = vpop.xlane.xlu0 %327
      %v329 = vrcp.pop 32.0
      %v330 = vmul.f32 %v328, %v329
      %v331 = vsub.f32 %v322, %v330
      %v332 = vmul.f32 %v331, %v331
      %v333 = vsel %vm325, %v332, 0.0
      %334 = vadd.xlane.f32.xlu0 %v333
      %v335 = vpop.xlane.xlu0 %334
      %v336 = vmul.f32 %v335, %v329
      %v337 = vadd.f32 %v336, 1e-05
      %v338 = vrsqrt.pop %v337
      %v339 = vmul.f32 %v331, %v338
      %v340 = vlaneseq
      %v341 = vshrl.u32 %v340, 7
      %v342 = vsub.s32 0, %v341
      %v343 = vrot.slane %v319, %v342
      %v344 = vmul.f32 %v339, %v343
      %v345 = vlaneseq
      %v346 = vshrl.u32 %v345, 7
      %v347 = vsub.s32 1, %v346
      %v348 = vrot.slane %v319, %v347
      %v349 = vadd.f32 %v344, %v348
      %vm350 = vcmask 261120
      %v351 = vsel %vm350, %v324, 0.0
      %352 = vadd.xlane.f32.xlu0 %v351
      %v353 = vpop.xlane.xlu0 %352
      %v354 = vmul.f32 %v353, %v329
      %v355 = vsub.f32 %v324, %v354
      %v356 = vmul.f32 %v355, %v355
      %v357 = vsel %vm350, %v356, 0.0
      %358 = vadd.xlane.f32.xlu0 %v357
      %v359 = vpop.xlane.xlu0 %358
      %v360 = vmul.f32 %v359, %v329
      %v361 = vadd.f32 %v360, 1e-05
      %v362 = vrsqrt.pop %v361
      %v363 = vmul.f32 %v355, %v362
      %v364 = vlaneseq
      %v365 = vshrl.u32 %v364, 7
      %v366 = vsub.s32 2, %v365
      %v367 = vrot.slane %v319, %v366
      %v368 = vmul.f32 %v363, %v367
      %v369 = vlaneseq
      %v370 = vshrl.u32 %v369, 7
      %v371 = vsub.s32 3, %v370
      %v372 = vrot.slane %v319, %v371
      %v373 = vadd.f32 %v368, %v372
      %v374 = vpack.c.bf16 %v373, %v373
      %v375 = vld [vmem:[%s3] sm:$0xf]
      %v376 = vld [vmem:[%s3 + $0x4] sm:$0xf]
      %v377 = vld [vmem:[%s3 + $0x8] sm:$0xf]
      %v378 = vld [vmem:[%s3 + $0xc] sm:$0xf]
      %v379 = vlaneseq
      %v380 = vshrl.u32 %v379, 7
      %v381 = vsub.s32 4, %v380
      %v382 = vrot.slane %v319, %v381
      %v387 = vunpack.c.l.b16 %v375
      %v388 = vunpack.c.l.b16 %v376
      %v389 = vunpack.c.l.b16 %v377
      %v390 = vunpack.c.l.b16 %v378
      %v391 = vpack.c.b16 %v388, %v387
      %v392 = vpack.c.b16 %v390, %v389
      %v396 = vsel %vm350, %v374, 0
      %398 = vmatprep.subr.bf16.mxu0 0
      %399 = vmatpush1.bf16.msra.mxu0 %v391
      %400 = vmatprep.subr.bf16.mxu0 0
      %401 = vmatpush1.bf16.msra.mxu0 %v392
      %402 = vmatprep.subr.bf16.mxu0 0
      %403 = vmatpush1.bf16.msra.mxu0 0
      %404 = vmatprep.subr.bf16.mxu0 0
      %405 = vmatpush1.bf16.msra.mxu0 0
      %406 = vmatprep.subr.bf16.mxu0 0
      %407 = vmatpush1.bf16.msra.mxu0 0
      %408 = vmatprep.subr.bf16.mxu0 0
      %409 = vmatpush1.bf16.msra.mxu0 0
      %410 = vmatprep.subr.bf16.mxu0 0
      %411 = vmatpush1.bf16.msra.mxu0 0
      %412 = vmatprep.subr.bf16.mxu0 0
      %413 = vmatpush1.bf16.msra.mxu0 0
      %414 = vmatprep.subr.bf16.mxu0 0
      %415 = vmatpush1.bf16.msra.mxu0 0
      %416 = vmatprep.subr.bf16.mxu0 0
      %417 = vmatpush1.bf16.msra.mxu0 0
      %418 = vmatprep.subr.bf16.mxu0 0
      %419 = vmatpush1.bf16.msra.mxu0 0
      %420 = vmatprep.subr.bf16.mxu0 0
      %421 = vmatpush1.bf16.msra.mxu0 0
      %422 = vmatprep.subr.bf16.mxu0 0
      %423 = vmatpush1.bf16.msra.mxu0 0
      %424 = vmatprep.subr.bf16.mxu0 0
      %425 = vmatpush1.bf16.msra.mxu0 0
      %426 = vmatprep.subr.bf16.mxu0 0
      %427 = vmatpush1.bf16.msra.mxu0 0
      %428 = vmatprep.subr.bf16.mxu0 0
      %429 = vmatpush1.bf16.msra.mxu0 0
      %430 = vmatprep.mubr.bf16.mxu0 0
      %431 = vmatmul.mubr.bf16.gmra.mrb[0].mxu0 %v396
      %v432 = vpop.f32.mrb[0].mxu0
      %v433 = vadd.f32 %v382, %v432
      %v434 = vpop.f32.mrb[0].mxu0
      %v435 = vpop.f32.mrb[0].mxu0
      %v436 = vpop.f32.mrb[0].mxu0
      %437 = vdwg.mxu0
      %v438 = vpack.c.bf16 %v349, %v349
      %v439 = vld [vmem:[%s4] sm:$0xf]
      %v440 = vld [vmem:[%s4 + $0x4] sm:$0xf]
      %v441 = vld [vmem:[%s4 + $0x8] sm:$0xf]
      %v442 = vld [vmem:[%s4 + $0xc] sm:$0xf]
      %v443 = vlaneseq
      %v444 = vshrl.u32 %v443, 7
      %v445 = vsub.s32 5, %v444
      %v446 = vrot.slane %v319, %v445
      %v451 = vunpack.c.l.b16 %v439
      %v452 = vunpack.c.l.b16 %v440
      %v453 = vunpack.c.l.b16 %v441
      %v454 = vunpack.c.l.b16 %v442
      %v455 = vpack.c.b16 %v452, %v451
      %v456 = vpack.c.b16 %v454, %v453
      %v460 = vsel %vm350, %v438, 0
      %462 = vmatprep.subr.bf16.mxu0 0
      %463 = vmatpush1.bf16.msra.mxu0 %v455
      %464 = vmatprep.subr.bf16.mxu0 0
      %465 = vmatpush1.bf16.msra.mxu0 %v456
      %466 = vmatprep.subr.bf16.mxu0 0
      %467 = vmatpush1.bf16.msra.mxu0 0
      %468 = vmatprep.subr.bf16.mxu0 0
      %469 = vmatpush1.bf16.msra.mxu0 0
      %470 = vmatprep.subr.bf16.mxu0 0
      %471 = vmatpush1.bf16.msra.mxu0 0
      %472 = vmatprep.subr.bf16.mxu0 0
      %473 = vmatpush1.bf16.msra.mxu0 0
      %474 = vmatprep.subr.bf16.mxu0 0
      %475 = vmatpush1.bf16.msra.mxu0 0
      %476 = vmatprep.subr.bf16.mxu0 0
      %477 = vmatpush1.bf16.msra.mxu0 0
      %478 = vmatprep.subr.bf16.mxu0 0
      %479 = vmatpush1.bf16.msra.mxu0 0
      %480 = vmatprep.subr.bf16.mxu0 0
      %481 = vmatpush1.bf16.msra.mxu0 0
      %482 = vmatprep.subr.bf16.mxu0 0
      %483 = vmatpush1.bf16.msra.mxu0 0
      %484 = vmatprep.subr.bf16.mxu0 0
      %485 = vmatpush1.bf16.msra.mxu0 0
      %486 = vmatprep.subr.bf16.mxu0 0
      %487 = vmatpush1.bf16.msra.mxu0 0
      %488 = vmatprep.subr.bf16.mxu0 0
      %489 = vmatpush1.bf16.msra.mxu0 0
      %490 = vmatprep.subr.bf16.mxu0 0
      %491 = vmatpush1.bf16.msra.mxu0 0
      %492 = vmatprep.subr.bf16.mxu0 0
      %493 = vmatpush1.bf16.msra.mxu0 0
      %494 = vmatprep.mubr.bf16.mxu0 0
      %495 = vmatmul.mubr.bf16.gmra.mrb[0].mxu0 %v460
      %v496 = vpop.f32.mrb[0].mxu0
      %v497 = vadd.f32 %v446, %v496
      %v498 = vpop.f32.mrb[0].mxu0
      %v499 = vpop.f32.mrb[0].mxu0
      %v500 = vpop.f32.mrb[0].mxu0
      %501 = vdwg.mxu0
      %502 = vmatprep.subr.bf16.mxu0 0
      %503 = vmatpush1.bf16.msra.mxu0 %v455
      %504 = vmatprep.subr.bf16.mxu0 0
      %505 = vmatpush1.bf16.msra.mxu0 %v456
      %506 = vmatprep.subr.bf16.mxu0 0
      %507 = vmatpush1.bf16.msra.mxu0 0
      %508 = vmatprep.subr.bf16.mxu0 0
      %509 = vmatpush1.bf16.msra.mxu0 0
      %510 = vmatprep.subr.bf16.mxu0 0
      %511 = vmatpush1.bf16.msra.mxu0 0
      %512 = vmatprep.subr.bf16.mxu0 0
      %513 = vmatpush1.bf16.msra.mxu0 0
      %514 = vmatprep.subr.bf16.mxu0 0
      %515 = vmatpush1.bf16.msra.mxu0 0
      %516 = vmatprep.subr.bf16.mxu0 0
      %517 = vmatpush1.bf16.msra.mxu0 0
      %518 = vmatprep.subr.bf16.mxu0 0
      %519 = vmatpush1.bf16.msra.mxu0 0
      %520 = vmatprep.subr.bf16.mxu0 0
      %521 = vmatpush1.bf16.msra.mxu0 0
      %522 = vmatprep.subr.bf16.mxu0 0
      %523 = vmatpush1.bf16.msra.mxu0 0
      %524 = vmatprep.subr.bf16.mxu0 0
      %525 = vmatpush1.bf16.msra.mxu0 0
      %526 = vmatprep.subr.bf16.mxu0 0
      %527 = vmatpush1.bf16.msra.mxu0 0
      %528 = vmatprep.subr.bf16.mxu0 0
      %529 = vmatpush1.bf16.msra.mxu0 0
      %530 = vmatprep.subr.bf16.mxu0 0
      %531 = vmatpush1.bf16.msra.mxu0 0
      %532 = vmatprep.subr.bf16.mxu0 0
      %533 = vmatpush1.bf16.msra.mxu0 0
      %534 = vmatprep.mubr.bf16.mxu0 0
      %535 = vmatmul.mubr.bf16.gmra.mrb[0].mxu0 %v396
      %v536 = vpop.f32.mrb[0].mxu0
      %v537 = vadd.f32 %v446, %v536
      %v538 = vpop.f32.mrb[0].mxu0
      %v539 = vpop.f32.mrb[0].mxu0
      %v540 = vpop.f32.mrb[0].mxu0
      %541 = vdwg.mxu0
      %v542 = vpack.c.bf16 %v433, %v433
      %v543 = vpack.c.bf16 %v497, %v497
      %vm544 = vcmask 64512
      %v546 = vsel %vm544, %v542, 0
      %v549 = vsel %vm544, %v543, 0
      %551 = vmatprep.subr.bf16.mxu0 0
      %552 = vmatpush1.bf16.xpose.msra.mxu0 %v549
      %553 = vmatprep.subr.bf16.mxu0 0
      %554 = vmatpush1.bf16.xpose.msra.mxu0 0
      %555 = vmatprep.subr.bf16.mxu0 0
      %556 = vmatpush1.bf16.xpose.msra.mxu0 0
      %557 = vmatprep.subr.bf16.mxu0 0
      %558 = vmatpush1.bf16.xpose.msra.mxu0 0
      %559 = vmatprep.subr.bf16.mxu0 0
      %560 = vmatpush1.bf16.xpose.msra.mxu0 0
      %561 = vmatprep.subr.bf16.mxu0 0
      %562 = vmatpush1.bf16.xpose.msra.mxu0 0
      %563 = vmatprep.subr.bf16.mxu0 0
      %564 = vmatpush1.bf16.xpose.msra.mxu0 0
      %565 = vmatprep.subr.bf16.mxu0 0
      %566 = vmatpush1.bf16.xpose.msra.mxu0 0
      %567 = vmatprep.subr.bf16.mxu0 0
      %568 = vmatpush1.bf16.xpose.msra.mxu0 0
      %569 = vmatprep.subr.bf16.mxu0 0
      %570 = vmatpush1.bf16.xpose.msra.mxu0 0
      %571 = vmatprep.subr.bf16.mxu0 0
      %572 = vmatpush1.bf16.xpose.msra.mxu0 0
      %573 = vmatprep.subr.bf16.mxu0 0
      %574 = vmatpush1.bf16.xpose.msra.mxu0 0
      %575 = vmatprep.subr.bf16.mxu0 0
      %576 = vmatpush1.bf16.xpose.msra.mxu0 0
      %577 = vmatprep.subr.bf16.mxu0 0
      %578 = vmatpush1.bf16.xpose.msra.mxu0 0
      %579 = vmatprep.subr.bf16.mxu0 0
      %580 = vmatpush1.bf16.xpose.msra.mxu0 0
      %581 = vmatprep.subr.bf16.mxu0 0
      %582 = vmatpush1.bf16.xpose.msra.mxu0 0
      %583 = vmatprep.mubr.bf16.mxu0 0
      %584 = vmatmul.mubr.bf16.gmra.mrb[0].mxu0 %v546
      %v585 = vpop.f32.mrb[0].mxu0
      %v586 = vadd.f32 0.0, %v585
      %v587 = vpop.f32.mrb[0].mxu0
      %v588 = vpop.f32.mrb[0].mxu0
      %v589 = vpop.f32.mrb[0].mxu0
      %590 = vdwg.mxu0
      %v591 = vmul.f32 %v586, 0.35355338
      %v592 = vpack.c.bf16 %v537, %v537
      %v594 = vsel %vm544, %v592, 0
      %596 = vmatprep.subr.bf16.mxu0 0
      %597 = vmatpush1.bf16.xpose.msra.mxu0 %v594
      %598 = vmatprep.subr.bf16.mxu0 0
      %599 = vmatpush1.bf16.xpose.msra.mxu0 0
      %600 = vmatprep.subr.bf16.mxu0 0
      %601 = vmatpush1.bf16.xpose.msra.mxu0 0
      %602 = vmatprep.subr.bf16.mxu0 0
      %603 = vmatpush1.bf16.xpose.msra.mxu0 0
      %604 = vmatprep.subr.bf16.mxu0 0
      %605 = vmatpush1.bf16.xpose.msra.mxu0 0
      %606 = vmatprep.subr.bf16.mxu0 0
      %607 = vmatpush1.bf16.xpose.msra.mxu0 0
      %608 = vmatprep.subr.bf16.mxu0 0
      %609 = vmatpush1.bf16.xpose.msra.mxu0 0
      %610 = vmatprep.subr.bf16.mxu0 0
      %611 = vmatpush1.bf16.xpose.msra.mxu0 0
      %612 = vmatprep.subr.bf16.mxu0 0
      %613 = vmatpush1.bf16.xpose.msra.mxu0 0
      %614 = vmatprep.subr.bf16.mxu0 0
      %615 = vmatpush1.bf16.xpose.msra.mxu0 0
      %616 = vmatprep.subr.bf16.mxu0 0
      %617 = vmatpush1.bf16.xpose.msra.mxu0 0
      %618 = vmatprep.subr.bf16.mxu0 0
      %619 = vmatpush1.bf16.xpose.msra.mxu0 0
      %620 = vmatprep.subr.bf16.mxu0 0
      %621 = vmatpush1.bf16.xpose.msra.mxu0 0
      %622 = vmatprep.subr.bf16.mxu0 0
      %623 = vmatpush1.bf16.xpose.msra.mxu0 0
      %624 = vmatprep.subr.bf16.mxu0 0
      %625 = vmatpush1.bf16.xpose.msra.mxu0 0
      %626 = vmatprep.subr.bf16.mxu0 0
      %627 = vmatpush1.bf16.xpose.msra.mxu0 0
      %628 = vmatprep.mubr.bf16.mxu0 0
      %629 = vmatmul.mubr.bf16.gmra.mrb[0].mxu0 %v546
      %v630 = vpop.f32.mrb[0].mxu0
      %v631 = vadd.f32 0.0, %v630
      %v632 = vpop.f32.mrb[0].mxu0
      %v633 = vpop.f32.mrb[0].mxu0
      %v634 = vpop.f32.mrb[0].mxu0
      %635 = vdwg.mxu0
      %v636 = vmul.f32 %v631, 0.35355338
      %vm637 = vcmask 31744
      %v638 = vsel %vm637, %v591, -inf
      %639 = vmax.xlane.f32.xlu0 %v638
      %v640 = vpop.xlane.xlu0 %639
      %v641 = vsel %vm544, %v636, -inf
      %642 = vmax.xlane.f32.xlu0 %v641
      %v643 = vpop.xlane.xlu0 %642
      %v644 = vmax.f32 %v640, %v643
      %v645 = vsub.f32 %v591, %v644
      %v646 = vmul.f32 %v645, 1.442695
      %v647 = vpow.pop %v646
      %v648 = vsel %vm637, %v647, 0.0
      %649 = vadd.xlane.f32.xlu0 %v648
      %v650 = vpop.xlane.xlu0 %649
      %v651 = vadd.f32 %v650, 0.0
      %v652 = vpack.c.bf16 %v647, %v647
      %v653 = vsub.f32 %v636, %v644
      %v654 = vmul.f32 %v653, 1.442695
      %v655 = vpow.pop %v654
      %v656 = vsel %vm544, %v655, 0.0
      %657 = vadd.xlane.f32.xlu0 %v656
      %v658 = vpop.xlane.xlu0 %657
      %v659 = vadd.f32 %v651, %v658
      %v660 = vpack.c.bf16 %v655, %v655
      %662 = vrot.lane.b32.xlu0 %v592, 96
      %v663 = vpop.permute.xlu0 %662
      %v665 = vsel %vm544, %v660, 0
      %vm667 = vcmask 1043456
      %v669 = vsel %vm667, %v663, 0
      %671 = vmatprep.subr.bf16.mxu0 0
      %672 = vmatpush1.bf16.msra.mxu0 %v669
      %673 = vmatprep.subr.bf16.mxu0 0
      %674 = vmatpush1.bf16.msra.mxu0 0
      %675 = vmatprep.subr.bf16.mxu0 0
      %676 = vmatpush1.bf16.msra.mxu0 0
      %677 = vmatprep.subr.bf16.mxu0 0
      %678 = vmatpush1.bf16.msra.mxu0 0
      %679 = vmatprep.subr.bf16.mxu0 0
      %680 = vmatpush1.bf16.msra.mxu0 0
      %681 = vmatprep.subr.bf16.mxu0 0
      %682 = vmatpush1.bf16.msra.mxu0 0
      %683 = vmatprep.subr.bf16.mxu0 0
      %684 = vmatpush1.bf16.msra.mxu0 0
      %685 = vmatprep.subr.bf16.mxu0 0
      %686 = vmatpush1.bf16.msra.mxu0 0
      %687 = vmatprep.subr.bf16.mxu0 0
      %688 = vmatpush1.bf16.msra.mxu0 0
      %689 = vmatprep.subr.bf16.mxu0 0
      %690 = vmatpush1.bf16.msra.mxu0 0
      %691 = vmatprep.subr.bf16.mxu0 0
      %692 = vmatpush1.bf16.msra.mxu0 0
      %693 = vmatprep.subr.bf16.mxu0 0
      %694 = vmatpush1.bf16.msra.mxu0 0
      %695 = vmatprep.subr.bf16.mxu0 0
      %696 = vmatpush1.bf16.msra.mxu0 0
      %697 = vmatprep.subr.bf16.mxu0 0
      %698 = vmatpush1.bf16.msra.mxu0 0
      %699 = vmatprep.subr.bf16.mxu0 0
      %700 = vmatpush1.bf16.msra.mxu0 0
      %701 = vmatprep.subr.bf16.mxu0 0
      %702 = vmatpush1.bf16.msra.mxu0 0
      %703 = vmatprep.mubr.bf16.mxu0 0
      %704 = vmatmul.mubr.bf16.gmra.mrb[0].mxu0 %v665
      %v705 = vpop.f32.mrb[0].mxu0
      %v706 = vadd.f32 0.0, %v705
      %v707 = vpop.f32.mrb[0].mxu0
      %v708 = vpop.f32.mrb[0].mxu0
      %v709 = vpop.f32.mrb[0].mxu0
      %710 = vdwg.mxu0
      %712 = vrot.lane.b32.xlu0 %v543, 96
      %v713 = vpop.permute.xlu0 %712
      %v715 = vsel %vm637, %v652, 0
      %vm717 = vcmask 1041408
      %v719 = vsel %vm717, %v713, 0
      %721 = vmatprep.subr.bf16.mxu0 0
      %722 = vmatpush1.bf16.msra.mxu0 %v719
      %723 = vmatprep.subr.bf16.mxu0 0
      %724 = vmatpush1.bf16.msra.mxu0 0
      %725 = vmatprep.subr.bf16.mxu0 0
      %726 = vmatpush1.bf16.msra.mxu0 0
      %727 = vmatprep.subr.bf16.mxu0 0
      %728 = vmatpush1.bf16.msra.mxu0 0
      %729 = vmatprep.subr.bf16.mxu0 0
      %730 = vmatpush1.bf16.msra.mxu0 0
      %731 = vmatprep.subr.bf16.mxu0 0
      %732 = vmatpush1.bf16.msra.mxu0 0
      %733 = vmatprep.subr.bf16.mxu0 0
      %734 = vmatpush1.bf16.msra.mxu0 0
      %735 = vmatprep.subr.bf16.mxu0 0
      %736 = vmatpush1.bf16.msra.mxu0 0
      %737 = vmatprep.subr.bf16.mxu0 0
      %738 = vmatpush1.bf16.msra.mxu0 0
      %739 = vmatprep.subr.bf16.mxu0 0
      %740 = vmatpush1.bf16.msra.mxu0 0
      %741 = vmatprep.subr.bf16.mxu0 0
      %742 = vmatpush1.bf16.msra.mxu0 0
      %743 = vmatprep.subr.bf16.mxu0 0
      %744 = vmatpush1.bf16.msra.mxu0 0
      %745 = vmatprep.subr.bf16.mxu0 0
      %746 = vmatpush1.bf16.msra.mxu0 0
      %747 = vmatprep.subr.bf16.mxu0 0
      %748 = vmatpush1.bf16.msra.mxu0 0
      %749 = vmatprep.subr.bf16.mxu0 0
      %750 = vmatpush1.bf16.msra.mxu0 0
      %751 = vmatprep.subr.bf16.mxu0 0
      %752 = vmatpush1.bf16.msra.mxu0 0
      %753 = vmatprep.mubr.bf16.mxu0 0
      %754 = vmatmul.mubr.bf16.gmra.mrb[0].mxu0 %v715
      %v755 = vpop.f32.mrb[0].mxu0
      %v756 = vadd.f32 %v706, %v755
      %v757 = vpop.f32.mrb[0].mxu0
      %v758 = vpop.f32.mrb[0].mxu0
      %v759 = vpop.f32.mrb[0].mxu0
      %760 = vdwg.mxu0
      %v761 = vrcp.pop %v659
      %v762 = vmul.f32 %v756, %v761
      %764 = vrot.lane.b32.xlu0 %v542, 120
      %v765 = vpop.permute.xlu0 %764
      %766 = vrot.lane.b32.xlu0 %v543, 120
      %v767 = vpop.permute.xlu0 %766
      %v769 = vsel %vm544, %v765, 0
      %v772 = vsel %vm544, %v767, 0
      %774 = vmatprep.subr.bf16.mxu0 0
      %775 = vmatpush1.bf16.xpose.msra.mxu0 %v772
      %776 = vmatprep.subr.bf16.mxu0 0
      %777 = vmatpush1.bf16.xpose.msra.mxu0 0
      %778 = vmatprep.subr.bf16.mxu0 0
      %779 = vmatpush1.bf16.xpose.msra.mxu0 0
      %780 = vmatprep.subr.bf16.mxu0 0
      %781 = vmatpush1.bf16.xpose.msra.mxu0 0
      %782 = vmatprep.subr.bf16.mxu0 0
      %783 = vmatpush1.bf16.xpose.msra.mxu0 0
      %784 = vmatprep.subr.bf16.mxu0 0
      %785 = vmatpush1.bf16.xpose.msra.mxu0 0
      %786 = vmatprep.subr.bf16.mxu0 0
      %787 = vmatpush1.bf16.xpose.msra.mxu0 0
      %788 = vmatprep.subr.bf16.mxu0 0
      %789 = vmatpush1.bf16.xpose.msra.mxu0 0
      %790 = vmatprep.subr.bf16.mxu0 0
      %791 = vmatpush1.bf16.xpose.msra.mxu0 0
      %792 = vmatprep.subr.bf16.mxu0 0
      %793 = vmatpush1.bf16.xpose.msra.mxu0 0
      %794 = vmatprep.subr.bf16.mxu0 0
      %795 = vmatpush1.bf16.xpose.msra.mxu0 0
      %796 = vmatprep.subr.bf16.mxu0 0
      %797 = vmatpush1.bf16.xpose.msra.mxu0 0
      %798 = vmatprep.subr.bf16.mxu0 0
      %799 = vmatpush1.bf16.xpose.msra.mxu0 0
      %800 = vmatprep.subr.bf16.mxu0 0
      %801 = vmatpush1.bf16.xpose.msra.mxu0 0
      %802 = vmatprep.subr.bf16.mxu0 0
      %803 = vmatpush1.bf16.xpose.msra.mxu0 0
      %804 = vmatprep.subr.bf16.mxu0 0
      %805 = vmatpush1.bf16.xpose.msra.mxu0 0
      %806 = vmatprep.mubr.bf16.mxu0 0
      %807 = vmatmul.mubr.bf16.gmra.mrb[0].mxu0 %v769
      %v808 = vpop.f32.mrb[0].mxu0
      %v809 = vadd.f32 0.0, %v808
      %v810 = vpop.f32.mrb[0].mxu0
      %v811 = vpop.f32.mrb[0].mxu0
      %v812 = vpop.f32.mrb[0].mxu0
      %813 = vdwg.mxu0
      %v814 = vmul.f32 %v809, 0.35355338
      %815 = vrot.lane.b32.xlu0 %v592, 120
      %v816 = vpop.permute.xlu0 %815
      %v818 = vsel %vm544, %v816, 0
      %820 = vmatprep.subr.bf16.mxu0 0
      %821 = vmatpush1.bf16.xpose.msra.mxu0 %v818
      %822 = vmatprep.subr.bf16.mxu0 0
      %823 = vmatpush1.bf16.xpose.msra.mxu0 0
      %824 = vmatprep.subr.bf16.mxu0 0
      %825 = vmatpush1.bf16.xpose.msra.mxu0 0
      %826 = vmatprep.subr.bf16.mxu0 0
      %827 = vmatpush1.bf16.xpose.msra.mxu0 0
      %828 = vmatprep.subr.bf16.mxu0 0
      %829 = vmatpush1.bf16.xpose.msra.mxu0 0
      %830 = vmatprep.subr.bf16.mxu0 0
      %831 = vmatpush1.bf16.xpose.msra.mxu0 0
      %832 = vmatprep.subr.bf16.mxu0 0
      %833 = vmatpush1.bf16.xpose.msra.mxu0 0
      %834 = vmatprep.subr.bf16.mxu0 0
      %835 = vmatpush1.bf16.xpose.msra.mxu0 0
      %836 = vmatprep.subr.bf16.mxu0 0
      %837 = vmatpush1.bf16.xpose.msra.mxu0 0
      %838 = vmatprep.subr.bf16.mxu0 0
      %839 = vmatpush1.bf16.xpose.msra.mxu0 0
      %840 = vmatprep.subr.bf16.mxu0 0
      %841 = vmatpush1.bf16.xpose.msra.mxu0 0
      %842 = vmatprep.subr.bf16.mxu0 0
      %843 = vmatpush1.bf16.xpose.msra.mxu0 0
      %844 = vmatprep.subr.bf16.mxu0 0
      %845 = vmatpush1.bf16.xpose.msra.mxu0 0
      %846 = vmatprep.subr.bf16.mxu0 0
      %847 = vmatpush1.bf16.xpose.msra.mxu0 0
      %848 = vmatprep.subr.bf16.mxu0 0
      %849 = vmatpush1.bf16.xpose.msra.mxu0 0
      %850 = vmatprep.subr.bf16.mxu0 0
      %851 = vmatpush1.bf16.xpose.msra.mxu0 0
      %852 = vmatprep.mubr.bf16.mxu0 0
      %853 = vmatmul.mubr.bf16.gmra.mrb[0].mxu0 %v769
      %v854 = vpop.f32.mrb[0].mxu0
      %v855 = vadd.f32 0.0, %v854
      %v856 = vpop.f32.mrb[0].mxu0
      %v857 = vpop.f32.mrb[0].mxu0
      %v858 = vpop.f32.mrb[0].mxu0
      %859 = vdwg.mxu0
      %v860 = vmul.f32 %v855, 0.35355338
      %v861 = vsel %vm637, %v814, -inf
      %862 = vmax.xlane.f32.xlu0 %v861
      %v863 = vpop.xlane.xlu0 %862
      %v864 = vsel %vm544, %v860, -inf
      %865 = vmax.xlane.f32.xlu0 %v864
      %v866 = vpop.xlane.xlu0 %865
      %v867 = vmax.f32 %v863, %v866
      %v868 = vsub.f32 %v814, %v867
      %v869 = vmul.f32 %v868, 1.442695
      %v870 = vpow.pop %v869
      %v871 = vsel %vm637, %v870, 0.0
      %872 = vadd.xlane.f32.xlu0 %v871
      %v873 = vpop.xlane.xlu0 %872
      %v874 = vadd.f32 %v873, 0.0
      %v875 = vpack.c.bf16 %v870, %v870
      %v876 = vsub.f32 %v860, %v867
      %v877 = vmul.f32 %v876, 1.442695
      %v878 = vpow.pop %v877
      %v879 = vsel %vm544, %v878, 0.0
      %880 = vadd.xlane.f32.xlu0 %v879
      %v881 = vpop.xlane.xlu0 %880
      %v882 = vadd.f32 %v874, %v881
      %v883 = vpack.c.bf16 %v878, %v878
      %884 = vrot.lane.b32.xlu0 %v592, 88
      %v885 = vpop.permute.xlu0 %884
      %v887 = vsel %vm544, %v883, 0
      %v890 = vsel %vm667, %v885, 0
      %892 = vmatprep.subr.bf16.mxu0 0
      %893 = vmatpush1.bf16.msra.mxu0 %v890
      %894 = vmatprep.subr.bf16.mxu0 0
      %895 = vmatpush1.bf16.msra.mxu0 0
      %896 = vmatprep.subr.bf16.mxu0 0
      %897 = vmatpush1.bf16.msra.mxu0 0
      %898 = vmatprep.subr.bf16.mxu0 0
      %899 = vmatpush1.bf16.msra.mxu0 0
      %900 = vmatprep.subr.bf16.mxu0 0
      %901 = vmatpush1.bf16.msra.mxu0 0
      %902 = vmatprep.subr.bf16.mxu0 0
      %903 = vmatpush1.bf16.msra.mxu0 0
      %904 = vmatprep.subr.bf16.mxu0 0
      %905 = vmatpush1.bf16.msra.mxu0 0
      %906 = vmatprep.subr.bf16.mxu0 0
      %907 = vmatpush1.bf16.msra.mxu0 0
      %908 = vmatprep.subr.bf16.mxu0 0
      %909 = vmatpush1.bf16.msra.mxu0 0
      %910 = vmatprep.subr.bf16.mxu0 0
      %911 = vmatpush1.bf16.msra.mxu0 0
      %912 = vmatprep.subr.bf16.mxu0 0
      %913 = vmatpush1.bf16.msra.mxu0 0
      %914 = vmatprep.subr.bf16.mxu0 0
      %915 = vmatpush1.bf16.msra.mxu0 0
      %916 = vmatprep.subr.bf16.mxu0 0
      %917 = vmatpush1.bf16.msra.mxu0 0
      %918 = vmatprep.subr.bf16.mxu0 0
      %919 = vmatpush1.bf16.msra.mxu0 0
      %920 = vmatprep.subr.bf16.mxu0 0
      %921 = vmatpush1.bf16.msra.mxu0 0
      %922 = vmatprep.subr.bf16.mxu0 0
      %923 = vmatpush1.bf16.msra.mxu0 0
      %924 = vmatprep.mubr.bf16.mxu0 0
      %925 = vmatmul.mubr.bf16.gmra.mrb[0].mxu0 %v887
      %v926 = vpop.f32.mrb[0].mxu0
      %v927 = vadd.f32 0.0, %v926
      %v928 = vpop.f32.mrb[0].mxu0
      %v929 = vpop.f32.mrb[0].mxu0
      %v930 = vpop.f32.mrb[0].mxu0
      %931 = vdwg.mxu0
      %932 = vrot.lane.b32.xlu0 %v543, 88
      %v933 = vpop.permute.xlu0 %932
      %v935 = vsel %vm637, %v875, 0
      %v938 = vsel %vm717, %v933, 0
      %940 = vmatprep.subr.bf16.mxu0 0
      %941 = vmatpush1.bf16.msra.mxu0 %v938
      %942 = vmatprep.subr.bf16.mxu0 0
      %943 = vmatpush1.bf16.msra.mxu0 0
      %944 = vmatprep.subr.bf16.mxu0 0
      %945 = vmatpush1.bf16.msra.mxu0 0
      %946 = vmatprep.subr.bf16.mxu0 0
      %947 = vmatpush1.bf16.msra.mxu0 0
      %948 = vmatprep.subr.bf16.mxu0 0
      %949 = vmatpush1.bf16.msra.mxu0 0
      %950 = vmatprep.subr.bf16.mxu0 0
      %951 = vmatpush1.bf16.msra.mxu0 0
      %952 = vmatprep.subr.bf16.mxu0 0
      %953 = vmatpush1.bf16.msra.mxu0 0
      %954 = vmatprep.subr.bf16.mxu0 0
      %955 = vmatpush1.bf16.msra.mxu0 0
      %956 = vmatprep.subr.bf16.mxu0 0
      %957 = vmatpush1.bf16.msra.mxu0 0
      %958 = vmatprep.subr.bf16.mxu0 0
      %959 = vmatpush1.bf16.msra.mxu0 0
      %960 = vmatprep.subr.bf16.mxu0 0
      %961 = vmatpush1.bf16.msra.mxu0 0
      %962 = vmatprep.subr.bf16.mxu0 0
      %963 = vmatpush1.bf16.msra.mxu0 0
      %964 = vmatprep.subr.bf16.mxu0 0
      %965 = vmatpush1.bf16.msra.mxu0 0
      %966 = vmatprep.subr.bf16.mxu0 0
      %967 = vmatpush1.bf16.msra.mxu0 0
      %968 = vmatprep.subr.bf16.mxu0 0
      %969 = vmatpush1.bf16.msra.mxu0 0
      %970 = vmatprep.subr.bf16.mxu0 0
      %971 = vmatpush1.bf16.msra.mxu0 0
      %972 = vmatprep.mubr.bf16.mxu0 0
      %973 = vmatmul.mubr.bf16.gmra.mrb[0].mxu0 %v935
      %v974 = vpop.f32.mrb[0].mxu0
      %v975 = vadd.f32 %v927, %v974
      %v976 = vpop.f32.mrb[0].mxu0
      %v977 = vpop.f32.mrb[0].mxu0
      %v978 = vpop.f32.mrb[0].mxu0
      %979 = vdwg.mxu0
      %v980 = vrcp.pop %v882
      %v981 = vmul.f32 %v975, %v980
      %982 = vrot.lane.b32.xlu0 %v542, 112
      %v983 = vpop.permute.xlu0 %982
      %984 = vrot.lane.b32.xlu0 %v543, 112
      %v985 = vpop.permute.xlu0 %984
      %v987 = vsel %vm544, %v983, 0
      %v990 = vsel %vm544, %v985, 0
      %992 = vmatprep.subr.bf16.mxu0 0
      %993 = vmatpush1.bf16.xpose.msra.mxu0 %v990
      %994 = vmatprep.subr.bf16.mxu0 0
      %995 = vmatpush1.bf16.xpose.msra.mxu0 0
      %996 = vmatprep.subr.bf16.mxu0 0
      %997 = vmatpush1.bf16.xpose.msra.mxu0 0
      %998 = vmatprep.subr.bf16.mxu0 0
      %999 = vmatpush1.bf16.xpose.msra.mxu0 0
      %1000 = vmatprep.subr.bf16.mxu0 0
      %1001 = vmatpush1.bf16.xpose.msra.mxu0 0
      %1002 = vmatprep.subr.bf16.mxu0 0
      %1003 = vmatpush1.bf16.xpose.msra.mxu0 0
      %1004 = vmatprep.subr.bf16.mxu0 0
      %1005 = vmatpush1.bf16.xpose.msra.mxu0 0
      %1006 = vmatprep.subr.bf16.mxu0 0
      %1007 = vmatpush1.bf16.xpose.msra.mxu0 0
      %1008 = vmatprep.subr.bf16.mxu0 0
      %1009 = vmatpush1.bf16.xpose.msra.mxu0 0
      %1010 = vmatprep.subr.bf16.mxu0 0
      %1011 = vmatpush1.bf16.xpose.msra.mxu0 0
      %1012 = vmatprep.subr.bf16.mxu0 0
      %1013 = vmatpush1.bf16.xpose.msra.mxu0 0
      %1014 = vmatprep.subr.bf16.mxu0 0
      %1015 = vmatpush1.bf16.xpose.msra.mxu0 0
      %1016 = vmatprep.subr.bf16.mxu0 0
      %1017 = vmatpush1.bf16.xpose.msra.mxu0 0
      %1018 = vmatprep.subr.bf16.mxu0 0
      %1019 = vmatpush1.bf16.xpose.msra.mxu0 0
      %1020 = vmatprep.subr.bf16.mxu0 0
      %1021 = vmatpush1.bf16.xpose.msra.mxu0 0
      %1022 = vmatprep.subr.bf16.mxu0 0
      %1023 = vmatpush1.bf16.xpose.msra.mxu0 0
      %1024 = vmatprep.mubr.bf16.mxu0 0
      %1025 = vmatmul.mubr.bf16.gmra.mrb[0].mxu0 %v987
      %v1026 = vpop.f32.mrb[0].mxu0
      %v1027 = vadd.f32 0.0, %v1026
      %v1028 = vpop.f32.mrb[0].mxu0
      %v1029 = vpop.f32.mrb[0].mxu0
      %v1030 = vpop.f32.mrb[0].mxu0
      %1031 = vdwg.mxu0
      %v1032 = vmul.f32 %v1027, 0.35355338
      %1033 = vrot.lane.b32.xlu0 %v592, 112
      %v1034 = vpop.permute.xlu0 %1033
      %v1036 = vsel %vm544, %v1034, 0
      %1038 = vmatprep.subr.bf16.mxu0 0
      %1039 = vmatpush1.bf16.xpose.msra.mxu0 %v1036
      %1040 = vmatprep.subr.bf16.mxu0 0
      %1041 = vmatpush1.bf16.xpose.msra.mxu0 0
      %1042 = vmatprep.subr.bf16.mxu0 0
      %1043 = vmatpush1.bf16.xpose.msra.mxu0 0
      %1044 = vmatprep.subr.bf16.mxu0 0
      %1045 = vmatpush1.bf16.xpose.msra.mxu0 0
      %1046 = vmatprep.subr.bf16.mxu0 0
      %1047 = vmatpush1.bf16.xpose.msra.mxu0 0
      %1048 = vmatprep.subr.bf16.mxu0 0
      %1049 = vmatpush1.bf16.xpose.msra.mxu0 0
      %1050 = vmatprep.subr.bf16.mxu0 0
      %1051 = vmatpush1.bf16.xpose.msra.mxu0 0
      %1052 = vmatprep.subr.bf16.mxu0 0
      %1053 = vmatpush1.bf16.xpose.msra.mxu0 0
      %1054 = vmatprep.subr.bf16.mxu0 0
      %1055 = vmatpush1.bf16.xpose.msra.mxu0 0
      %1056 = vmatprep.subr.bf16.mxu0 0
      %1057 = vmatpush1.bf16.xpose.msra.mxu0 0
      %1058 = vmatprep.subr.bf16.mxu0 0
      %1059 = vmatpush1.bf16.xpose.msra.mxu0 0
      %1060 = vmatprep.subr.bf16.mxu0 0
      %1061 = vmatpush1.bf16.xpose.msra.mxu0 0
      %1062 = vmatprep.subr.bf16.mxu0 0
      %1063 = vmatpush1.bf16.xpose.msra.mxu0 0
      %1064 = vmatprep.subr.bf16.mxu0 0
      %1065 = vmatpush1.bf16.xpose.msra.mxu0 0
      %1066 = vmatprep.subr.bf16.mxu0 0
      %1067 = vmatpush1.bf16.xpose.msra.mxu0 0
      %1068 = vmatprep.subr.bf16.mxu0 0
      %1069 = vmatpush1.bf16.xpose.msra.mxu0 0
      %1070 = vmatprep.mubr.bf16.mxu0 0
      %1071 = vmatmul.mubr.bf16.gmra.mrb[0].mxu0 %v987
      %v1072 = vpop.f32.mrb[0].mxu0
      %v1073 = vadd.f32 0.0, %v1072
      %v1074 = vpop.f32.mrb[0].mxu0
      %v1075 = vpop.f32.mrb[0].mxu0
      %v1076 = vpop.f32.mrb[0].mxu0
      %1077 = vdwg.mxu0
      %v1078 = vmul.f32 %v1073, 0.35355338
      %v1079 = vsel %vm637, %v1032, -inf
      %1080 = vmax.xlane.f32.xlu0 %v1079
      %v1081 = vpop.xlane.xlu0 %1080
      %v1082 = vsel %vm544, %v1078, -inf
      %1083 = vmax.xlane.f32.xlu0 %v1082
      %v1084 = vpop.xlane.xlu0 %1083
      %v1085 = vmax.f32 %v1081, %v1084
      %v1086 = vsub.f32 %v1032, %v1085
      %v1087 = vmul.f32 %v1086, 1.442695
      %v1088 = vpow.pop %v1087
      %v1089 = vsel %vm637, %v1088, 0.0
      %1090 = vadd.xlane.f32.xlu0 %v1089
      %v1091 = vpop.xlane.xlu0 %1090
      %v1092 = vadd.f32 %v1091, 0.0
      %v1093 = vpack.c.bf16 %v1088, %v1088
      %v1094 = vsub.f32 %v1078, %v1085
      %v1095 = vmul.f32 %v1094, 1.442695
      %v1096 = vpow.pop %v1095
      %v1097 = vsel %vm544, %v1096, 0.0
      %1098 = vadd.xlane.f32.xlu0 %v1097
      %v1099 = vpop.xlane.xlu0 %1098
      %v1100 = vadd.f32 %v1092, %v1099
      %v1101 = vpack.c.bf16 %v1096, %v1096
      %1102 = vrot.lane.b32.xlu0 %v592, 80
      %v1103 = vpop.permute.xlu0 %1102
      %v1105 = vsel %vm544, %v1101, 0
      %v1108 = vsel %vm667, %v1103, 0
      %1110 = vmatprep.subr.bf16.mxu0 0
      %1111 = vmatpush1.bf16.msra.mxu0 %v1108
      %1112 = vmatprep.subr.bf16.mxu0 0
      %1113 = vmatpush1.bf16.msra.mxu0 0
      %1114 = vmatprep.subr.bf16.mxu0 0
      %1115 = vmatpush1.bf16.msra.mxu0 0
      %1116 = vmatprep.subr.bf16.mxu0 0
      %1117 = vmatpush1.bf16.msra.mxu0 0
      %1118 = vmatprep.subr.bf16.mxu0 0
      %1119 = vmatpush1.bf16.msra.mxu0 0
      %1120 = vmatprep.subr.bf16.mxu0 0
      %1121 = vmatpush1.bf16.msra.mxu0 0
      %1122 = vmatprep.subr.bf16.mxu0 0
      %1123 = vmatpush1.bf16.msra.mxu0 0
      %1124 = vmatprep.subr.bf16.mxu0 0
      %1125 = vmatpush1.bf16.msra.mxu0 0
      %1126 = vmatprep.subr.bf16.mxu0 0
      %1127 = vmatpush1.bf16.msra.mxu0 0
      %1128 = vmatprep.subr.bf16.mxu0 0
      %1129 = vmatpush1.bf16.msra.mxu0 0
      %1130 = vmatprep.subr.bf16.mxu0 0
      %1131 = vmatpush1.bf16.msra.mxu0 0
      %1132 = vmatprep.subr.bf16.mxu0 0
      %1133 = vmatpush1.bf16.msra.mxu0 0
      %1134 = vmatprep.subr.bf16.mxu0 0
      %1135 = vmatpush1.bf16.msra.mxu0 0
      %1136 = vmatprep.subr.bf16.mxu0 0
      %1137 = vmatpush1.bf16.msra.mxu0 0
      %1138 = vmatprep.subr.bf16.mxu0 0
      %1139 = vmatpush1.bf16.msra.mxu0 0
      %1140 = vmatprep.subr.bf16.mxu0 0
      %1141 = vmatpush1.bf16.msra.mxu0 0
      %1142 = vmatprep.mubr.bf16.mxu0 0
      %1143 = vmatmul.mubr.bf16.gmra.mrb[0].mxu0 %v1105
      %v1144 = vpop.f32.mrb[0].mxu0
      %v1145 = vadd.f32 0.0, %v1144
      %v1146 = vpop.f32.mrb[0].mxu0
      %v1147 = vpop.f32.mrb[0].mxu0
      %v1148 = vpop.f32.mrb[0].mxu0
      %1149 = vdwg.mxu0
      %1150 = vrot.lane.b32.xlu0 %v543, 80
      %v1151 = vpop.permute.xlu0 %1150
      %v1153 = vsel %vm637, %v1093, 0
      %v1156 = vsel %vm717, %v1151, 0
      %1158 = vmatprep.subr.bf16.mxu0 0
      %1159 = vmatpush1.bf16.msra.mxu0 %v1156
      %1160 = vmatprep.subr.bf16.mxu0 0
      %1161 = vmatpush1.bf16.msra.mxu0 0
      %1162 = vmatprep.subr.bf16.mxu0 0
      %1163 = vmatpush1.bf16.msra.mxu0 0
      %1164 = vmatprep.subr.bf16.mxu0 0
      %1165 = vmatpush1.bf16.msra.mxu0 0
      %1166 = vmatprep.subr.bf16.mxu0 0
      %1167 = vmatpush1.bf16.msra.mxu0 0
      %1168 = vmatprep.subr.bf16.mxu0 0
      %1169 = vmatpush1.bf16.msra.mxu0 0
      %1170 = vmatprep.subr.bf16.mxu0 0
      %1171 = vmatpush1.bf16.msra.mxu0 0
      %1172 = vmatprep.subr.bf16.mxu0 0
      %1173 = vmatpush1.bf16.msra.mxu0 0
      %1174 = vmatprep.subr.bf16.mxu0 0
      %1175 = vmatpush1.bf16.msra.mxu0 0
      %1176 = vmatprep.subr.bf16.mxu0 0
      %1177 = vmatpush1.bf16.msra.mxu0 0
      %1178 = vmatprep.subr.bf16.mxu0 0
      %1179 = vmatpush1.bf16.msra.mxu0 0
      %1180 = vmatprep.subr.bf16.mxu0 0
      %1181 = vmatpush1.bf16.msra.mxu0 0
      %1182 = vmatprep.subr.bf16.mxu0 0
      %1183 = vmatpush1.bf16.msra.mxu0 0
      %1184 = vmatprep.subr.bf16.mxu0 0
      %1185 = vmatpush1.bf16.msra.mxu0 0
      %1186 = vmatprep.subr.bf16.mxu0 0
      %1187 = vmatpush1.bf16.msra.mxu0 0
      %1188 = vmatprep.subr.bf16.mxu0 0
      %1189 = vmatpush1.bf16.msra.mxu0 0
      %1190 = vmatprep.mubr.bf16.mxu0 0
      %1191 = vmatmul.mubr.bf16.gmra.mrb[0].mxu0 %v1153
      %v1192 = vpop.f32.mrb[0].mxu0
      %v1193 = vadd.f32 %v1145, %v1192
      %v1194 = vpop.f32.mrb[0].mxu0
      %v1195 = vpop.f32.mrb[0].mxu0
      %v1196 = vpop.f32.mrb[0].mxu0
      %1197 = vdwg.mxu0
      %v1198 = vrcp.pop %v1100
      %v1199 = vmul.f32 %v1193, %v1198
      %1200 = vrot.lane.b32.xlu0 %v542, 104
      %v1201 = vpop.permute.xlu0 %1200
      %1202 = vrot.lane.b32.xlu0 %v543, 104
      %v1203 = vpop.permute.xlu0 %1202
      %v1205 = vsel %vm544, %v1201, 0
      %v1208 = vsel %vm544, %v1203, 0
      %1210 = vmatprep.subr.bf16.mxu0 0
      %1211 = vmatpush1.bf16.xpose.msra.mxu0 %v1208
      %1212 = vmatprep.subr.bf16.mxu0 0
      %1213 = vmatpush1.bf16.xpose.msra.mxu0 0
      %1214 = vmatprep.subr.bf16.mxu0 0
      %1215 = vmatpush1.bf16.xpose.msra.mxu0 0
      %1216 = vmatprep.subr.bf16.mxu0 0
      %1217 = vmatpush1.bf16.xpose.msra.mxu0 0
      %1218 = vmatprep.subr.bf16.mxu0 0
      %1219 = vmatpush1.bf16.xpose.msra.mxu0 0
      %1220 = vmatprep.subr.bf16.mxu0 0
      %1221 = vmatpush1.bf16.xpose.msra.mxu0 0
      %1222 = vmatprep.subr.bf16.mxu0 0
      %1223 = vmatpush1.bf16.xpose.msra.mxu0 0
      %1224 = vmatprep.subr.bf16.mxu0 0
      %1225 = vmatpush1.bf16.xpose.msra.mxu0 0
      %1226 = vmatprep.subr.bf16.mxu0 0
      %1227 = vmatpush1.bf16.xpose.msra.mxu0 0
      %1228 = vmatprep.subr.bf16.mxu0 0
      %1229 = vmatpush1.bf16.xpose.msra.mxu0 0
      %1230 = vmatprep.subr.bf16.mxu0 0
      %1231 = vmatpush1.bf16.xpose.msra.mxu0 0
      %1232 = vmatprep.subr.bf16.mxu0 0
      %1233 = vmatpush1.bf16.xpose.msra.mxu0 0
      %1234 = vmatprep.subr.bf16.mxu0 0
      %1235 = vmatpush1.bf16.xpose.msra.mxu0 0
      %1236 = vmatprep.subr.bf16.mxu0 0
      %1237 = vmatpush1.bf16.xpose.msra.mxu0 0
      %1238 = vmatprep.subr.bf16.mxu0 0
      %1239 = vmatpush1.bf16.xpose.msra.mxu0 0
      %1240 = vmatprep.subr.bf16.mxu0 0
      %1241 = vmatpush1.bf16.xpose.msra.mxu0 0
      %1242 = vmatprep.mubr.bf16.mxu0 0
      %1243 = vmatmul.mubr.bf16.gmra.mrb[0].mxu0 %v1205
      %v1244 = vpop.f32.mrb[0].mxu0
      %v1245 = vadd.f32 0.0, %v1244
      %v1246 = vpop.f32.mrb[0].mxu0
      %v1247 = vpop.f32.mrb[0].mxu0
      %v1248 = vpop.f32.mrb[0].mxu0
      %1249 = vdwg.mxu0
      %v1250 = vmul.f32 %v1245, 0.35355338
      %1251 = vrot.lane.b32.xlu0 %v592, 104
      %v1252 = vpop.permute.xlu0 %1251
      %v1254 = vsel %vm544, %v1252, 0
      %1256 = vmatprep.subr.bf16.mxu0 0
      %1257 = vmatpush1.bf16.xpose.msra.mxu0 %v1254
      %1258 = vmatprep.subr.bf16.mxu0 0
      %1259 = vmatpush1.bf16.xpose.msra.mxu0 0
      %1260 = vmatprep.subr.bf16.mxu0 0
      %1261 = vmatpush1.bf16.xpose.msra.mxu0 0
      %1262 = vmatprep.subr.bf16.mxu0 0
      %1263 = vmatpush1.bf16.xpose.msra.mxu0 0
      %1264 = vmatprep.subr.bf16.mxu0 0
      %1265 = vmatpush1.bf16.xpose.msra.mxu0 0
      %1266 = vmatprep.subr.bf16.mxu0 0
      %1267 = vmatpush1.bf16.xpose.msra.mxu0 0
      %1268 = vmatprep.subr.bf16.mxu0 0
      %1269 = vmatpush1.bf16.xpose.msra.mxu0 0
      %1270 = vmatprep.subr.bf16.mxu0 0
      %1271 = vmatpush1.bf16.xpose.msra.mxu0 0
      %1272 = vmatprep.subr.bf16.mxu0 0
      %1273 = vmatpush1.bf16.xpose.msra.mxu0 0
      %1274 = vmatprep.subr.bf16.mxu0 0
      %1275 = vmatpush1.bf16.xpose.msra.mxu0 0
      %1276 = vmatprep.subr.bf16.mxu0 0
      %1277 = vmatpush1.bf16.xpose.msra.mxu0 0
      %1278 = vmatprep.subr.bf16.mxu0 0
      %1279 = vmatpush1.bf16.xpose.msra.mxu0 0
      %1280 = vmatprep.subr.bf16.mxu0 0
      %1281 = vmatpush1.bf16.xpose.msra.mxu0 0
      %1282 = vmatprep.subr.bf16.mxu0 0
      %1283 = vmatpush1.bf16.xpose.msra.mxu0 0
      %1284 = vmatprep.subr.bf16.mxu0 0
      %1285 = vmatpush1.bf16.xpose.msra.mxu0 0
      %1286 = vmatprep.subr.bf16.mxu0 0
      %1287 = vmatpush1.bf16.xpose.msra.mxu0 0
      %1288 = vmatprep.mubr.bf16.mxu0 0
      %1289 = vmatmul.mubr.bf16.gmra.mrb[0].mxu0 %v1205
      %v1290 = vpop.f32.mrb[0].mxu0
      %v1291 = vadd.f32 0.0, %v1290
      %v1292 = vpop.f32.mrb[0].mxu0
      %v1293 = vpop.f32.mrb[0].mxu0
      %v1294 = vpop.f32.mrb[0].mxu0
      %1295 = vdwg.mxu0
      %v1296 = vmul.f32 %v1291, 0.35355338
      %v1297 = vsel %vm637, %v1250, -inf
      %1298 = vmax.xlane.f32.xlu0 %v1297
      %v1299 = vpop.xlane.xlu0 %1298
      %v1300 = vsel %vm544, %v1296, -inf
      %1301 = vmax.xlane.f32.xlu0 %v1300
      %v1302 = vpop.xlane.xlu0 %1301
      %v1303 = vmax.f32 %v1299, %v1302
      %v1304 = vsub.f32 %v1250, %v1303
      %v1305 = vmul.f32 %v1304, 1.442695
      %v1306 = vpow.pop %v1305
      %v1307 = vsel %vm637, %v1306, 0.0
      %1308 = vadd.xlane.f32.xlu0 %v1307
      %v1309 = vpop.xlane.xlu0 %1308
      %v1310 = vadd.f32 %v1309, 0.0
      %v1311 = vpack.c.bf16 %v1306, %v1306
      %v1312 = vsub.f32 %v1296, %v1303
      %v1313 = vmul.f32 %v1312, 1.442695
      %v1314 = vpow.pop %v1313
      %v1315 = vsel %vm544, %v1314, 0.0
      %1316 = vadd.xlane.f32.xlu0 %v1315
      %v1317 = vpop.xlane.xlu0 %1316
      %v1318 = vadd.f32 %v1310, %v1317
      %v1319 = vpack.c.bf16 %v1314, %v1314
      %1320 = vrot.lane.b32.xlu0 %v592, 72
      %v1321 = vpop.permute.xlu0 %1320
      %v1323 = vsel %vm544, %v1319, 0
      %v1326 = vsel %vm667, %v1321, 0
      %1328 = vmatprep.subr.bf16.mxu0 0
      %1329 = vmatpush1.bf16.msra.mxu0 %v1326
      %1330 = vmatprep.subr.bf16.mxu0 0
      %1331 = vmatpush1.bf16.msra.mxu0 0
      %1332 = vmatprep.subr.bf16.mxu0 0
      %1333 = vmatpush1.bf16.msra.mxu0 0
      %1334 = vmatprep.subr.bf16.mxu0 0
      %1335 = vmatpush1.bf16.msra.mxu0 0
      %1336 = vmatprep.subr.bf16.mxu0 0
      %1337 = vmatpush1.bf16.msra.mxu0 0
      %1338 = vmatprep.subr.bf16.mxu0 0
      %1339 = vmatpush1.bf16.msra.mxu0 0
      %1340 = vmatprep.subr.bf16.mxu0 0
      %1341 = vmatpush1.bf16.msra.mxu0 0
      %1342 = vmatprep.subr.bf16.mxu0 0
      %1343 = vmatpush1.bf16.msra.mxu0 0
      %1344 = vmatprep.subr.bf16.mxu0 0
      %1345 = vmatpush1.bf16.msra.mxu0 0
      %1346 = vmatprep.subr.bf16.mxu0 0
      %1347 = vmatpush1.bf16.msra.mxu0 0
      %1348 = vmatprep.subr.bf16.mxu0 0
      %1349 = vmatpush1.bf16.msra.mxu0 0
      %1350 = vmatprep.subr.bf16.mxu0 0
      %1351 = vmatpush1.bf16.msra.mxu0 0
      %1352 = vmatprep.subr.bf16.mxu0 0
      %1353 = vmatpush1.bf16.msra.mxu0 0
      %1354 = vmatprep.subr.bf16.mxu0 0
      %1355 = vmatpush1.bf16.msra.mxu0 0
      %1356 = vmatprep.subr.bf16.mxu0 0
      %1357 = vmatpush1.bf16.msra.mxu0 0
      %1358 = vmatprep.subr.bf16.mxu0 0
      %1359 = vmatpush1.bf16.msra.mxu0 0
      %1360 = vmatprep.mubr.bf16.mxu0 0
      %1361 = vmatmul.mubr.bf16.gmra.mrb[0].mxu0 %v1323
      %v1362 = vpop.f32.mrb[0].mxu0
      %v1363 = vadd.f32 0.0, %v1362
      %v1364 = vpop.f32.mrb[0].mxu0
      %v1365 = vpop.f32.mrb[0].mxu0
      %v1366 = vpop.f32.mrb[0].mxu0
      %1367 = vdwg.mxu0
      %1368 = vrot.lane.b32.xlu0 %v543, 72
      %v1369 = vpop.permute.xlu0 %1368
      %v1371 = vsel %vm637, %v1311, 0
      %v1374 = vsel %vm717, %v1369, 0
      %1376 = vmatprep.subr.bf16.mxu0 0
      %1377 = vmatpush1.bf16.msra.mxu0 %v1374
      %1378 = vmatprep.subr.bf16.mxu0 0
      %1379 = vmatpush1.bf16.msra.mxu0 0
      %1380 = vmatprep.subr.bf16.mxu0 0
      %1381 = vmatpush1.bf16.msra.mxu0 0
      %1382 = vmatprep.subr.bf16.mxu0 0
      %1383 = vmatpush1.bf16.msra.mxu0 0
      %1384 = vmatprep.subr.bf16.mxu0 0
      %1385 = vmatpush1.bf16.msra.mxu0 0
      %1386 = vmatprep.subr.bf16.mxu0 0
      %1387 = vmatpush1.bf16.msra.mxu0 0
      %1388 = vmatprep.subr.bf16.mxu0 0
      %1389 = vmatpush1.bf16.msra.mxu0 0
      %1390 = vmatprep.subr.bf16.mxu0 0
      %1391 = vmatpush1.bf16.msra.mxu0 0
      %1392 = vmatprep.subr.bf16.mxu0 0
      %1393 = vmatpush1.bf16.msra.mxu0 0
      %1394 = vmatprep.subr.bf16.mxu0 0
      %1395 = vmatpush1.bf16.msra.mxu0 0
      %1396 = vmatprep.subr.bf16.mxu0 0
      %1397 = vmatpush1.bf16.msra.mxu0 0
      %1398 = vmatprep.subr.bf16.mxu0 0
      %1399 = vmatpush1.bf16.msra.mxu0 0
      %1400 = vmatprep.subr.bf16.mxu0 0
      %1401 = vmatpush1.bf16.msra.mxu0 0
      %1402 = vmatprep.subr.bf16.mxu0 0
      %1403 = vmatpush1.bf16.msra.mxu0 0
      %1404 = vmatprep.subr.bf16.mxu0 0
      %1405 = vmatpush1.bf16.msra.mxu0 0
      %1406 = vmatprep.subr.bf16.mxu0 0
      %1407 = vmatpush1.bf16.msra.mxu0 0
      %1408 = vmatprep.mubr.bf16.mxu0 0
      %1409 = vmatmul.mubr.bf16.gmra.mrb[0].mxu0 %v1371
      %v1410 = vpop.f32.mrb[0].mxu0
      %v1411 = vadd.f32 %v1363, %v1410
      %v1412 = vpop.f32.mrb[0].mxu0
      %v1413 = vpop.f32.mrb[0].mxu0
      %v1414 = vpop.f32.mrb[0].mxu0
      %1415 = vdwg.mxu0
      %v1416 = vrcp.pop %v1318
      %v1417 = vmul.f32 %v1411, %v1416
      %1419 = vrot.lane.b32.xlu0 %v981, 8
      %v1420 = vpop.permute.xlu0 %1419
      %1423 = vrot.lane.b32.xlu0 %v1199, 16
      %v1424 = vpop.permute.xlu0 %1423
      %1427 = vrot.lane.b32.xlu0 %v1417, 24
      %v1428 = vpop.permute.xlu0 %1427
      %v1430 = vsel %vm544, %v762, %v1420
      %vm1431 = vcmask 130048
      %v1432 = vsel %vm1431, %v1430, %v1424
      %vm1433 = vcmask 195584
      %v1434 = vsel %vm1433, %v1432, %v1428
      %v1435 = vpack.c.bf16 %v1434, %v1434
      %v1436 = vld [vmem:[%s5] sm:$0xf]
      %v1437 = vld [vmem:[%s5 + $0x4] sm:$0xf]
      %v1438 = vld [vmem:[%s5 + $0x8] sm:$0xf]
      %v1439 = vld [vmem:[%s5 + $0xc] sm:$0xf]
      %v1444 = vunpack.c.l.b16 %v1436
      %v1445 = vunpack.c.l.b16 %v1437
      %v1446 = vunpack.c.l.b16 %v1438
      %v1447 = vunpack.c.l.b16 %v1439
      %v1448 = vpack.c.b16 %v1445, %v1444
      %v1449 = vpack.c.b16 %v1447, %v1446
      %v1453 = vsel %vm350, %v1435, 0
      %1455 = vmatprep.subr.bf16.mxu0 0
      %1456 = vmatpush1.bf16.msra.mxu0 %v1448
      %1457 = vmatprep.subr.bf16.mxu0 0
      %1458 = vmatpush1.bf16.msra.mxu0 %v1449
      %1459 = vmatprep.subr.bf16.mxu0 0
      %1460 = vmatpush1.bf16.msra.mxu0 0
      %1461 = vmatprep.subr.bf16.mxu0 0
      %1462 = vmatpush1.bf16.msra.mxu0 0
      %1463 = vmatprep.subr.bf16.mxu0 0
      %1464 = vmatpush1.bf16.msra.mxu0 0
      %1465 = vmatprep.subr.bf16.mxu0 0
      %1466 = vmatpush1.bf16.msra.mxu0 0
      %1467 = vmatprep.subr.bf16.mxu0 0
      %1468 = vmatpush1.bf16.msra.mxu0 0
      %1469 = vmatprep.subr.bf16.mxu0 0
      %1470 = vmatpush1.bf16.msra.mxu0 0
      %1471 = vmatprep.subr.bf16.mxu0 0
      %1472 = vmatpush1.bf16.msra.mxu0 0
      %1473 = vmatprep.subr.bf16.mxu0 0
      %1474 = vmatpush1.bf16.msra.mxu0 0
      %1475 = vmatprep.subr.bf16.mxu0 0
      %1476 = vmatpush1.bf16.msra.mxu0 0
      %1477 = vmatprep.subr.bf16.mxu0 0
      %1478 = vmatpush1.bf16.msra.mxu0 0
      %1479 = vmatprep.subr.bf16.mxu0 0
      %1480 = vmatpush1.bf16.msra.mxu0 0
      %1481 = vmatprep.subr.bf16.mxu0 0
      %1482 = vmatpush1.bf16.msra.mxu0 0
      %1483 = vmatprep.subr.bf16.mxu0 0
      %1484 = vmatpush1.bf16.msra.mxu0 0
      %1485 = vmatprep.subr.bf16.mxu0 0
      %1486 = vmatpush1.bf16.msra.mxu0 0
      %1487 = vmatprep.mubr.bf16.mxu0 0
      %1488 = vmatmul.mubr.bf16.gmra.mrb[0].mxu0 %v1453
      %v1489 = vpop.f32.mrb[0].mxu0
      %v1490 = vadd.f32 0.0, %v1489
      %v1491 = vpop.f32.mrb[0].mxu0
      %v1492 = vpop.f32.mrb[0].mxu0
      %v1493 = vpop.f32.mrb[0].mxu0
      %1494 = vdwg.mxu0
      %v1495 = vadd.f32 %v324, %v1490
      %v1496 = vlaneseq
      %v1497 = vshrl.u32 %v1496, 7
      %v1498 = vsub.s32 6, %v1497
      %v1499 = vrot.slane %v319, %v1498
      %v1500 = vadd.f32 %v1495, %v1499
      %v1501 = vsel %vm350, %v1500, 0.0
      %1502 = vadd.xlane.f32.xlu0 %v1501
      %v1503 = vpop.xlane.xlu0 %1502
      %v1504 = vmul.f32 %v1503, %v329
      %v1505 = vsub.f32 %v1500, %v1504
      %v1506 = vmul.f32 %v1505, %v1505
      %v1507 = vsel %vm350, %v1506, 0.0
      %1508 = vadd.xlane.f32.xlu0 %v1507
      %v1509 = vpop.xlane.xlu0 %1508
      %v1510 = vmul.f32 %v1509, %v329
      %v1511 = vadd.f32 %v1510, 1e-05
      %v1512 = vrsqrt.pop %v1511
      %v1513 = vmul.f32 %v1505, %v1512
      %v1514 = vlaneseq
      %v1515 = vshrl.u32 %v1514, 7
      %v1516 = vsub.s32 7, %v1515
      %v1517 = vrot.slane %v319, %v1516
      %v1518 = vmul.f32 %v1513, %v1517
      %v1519 = vlaneseq
      %v1520 = vshrl.u32 %v1519, 7
      %v1521 = vsub.s32 0, %v1520
      %v1522 = vrot.slane %v320, %v1521
      %v1523 = vadd.f32 %v1518, %v1522
      %v1524 = vpack.c.bf16 %v1523, %v1523
      %v1525 = vld [vmem:[%s6] sm:$0xf]
      %v1526 = vld [vmem:[%s6 + $0x4] sm:$0xf]
      %v1527 = vld [vmem:[%s6 + $0x8] sm:$0xf]
      %v1528 = vld [vmem:[%s6 + $0xc] sm:$0xf]
      %v1529 = vlaneseq
      %v1530 = vshrl.u32 %v1529, 7
      %v1531 = vsub.s32 1, %v1530
      %v1532 = vrot.slane %v320, %v1531
      %v1537 = vunpack.c.l.b16 %v1525
      %v1538 = vunpack.c.l.b16 %v1526
      %v1539 = vunpack.c.l.b16 %v1527
      %v1540 = vunpack.c.l.b16 %v1528
      %v1541 = vpack.c.b16 %v1538, %v1537
      %v1542 = vpack.c.b16 %v1540, %v1539
      %v1546 = vsel %vm350, %v1524, 0
      %1548 = vmatprep.subr.bf16.mxu0 0
      %1549 = vmatpush1.bf16.msra.mxu0 %v1541
      %1550 = vmatprep.subr.bf16.mxu0 0
      %1551 = vmatpush1.bf16.msra.mxu0 %v1542
      %1552 = vmatprep.subr.bf16.mxu0 0
      %1553 = vmatpush1.bf16.msra.mxu0 0
      %1554 = vmatprep.subr.bf16.mxu0 0
      %1555 = vmatpush1.bf16.msra.mxu0 0
      %1556 = vmatprep.subr.bf16.mxu0 0
      %1557 = vmatpush1.bf16.msra.mxu0 0
      %1558 = vmatprep.subr.bf16.mxu0 0
      %1559 = vmatpush1.bf16.msra.mxu0 0
      %1560 = vmatprep.subr.bf16.mxu0 0
      %1561 = vmatpush1.bf16.msra.mxu0 0
      %1562 = vmatprep.subr.bf16.mxu0 0
      %1563 = vmatpush1.bf16.msra.mxu0 0
      %1564 = vmatprep.subr.bf16.mxu0 0
      %1565 = vmatpush1.bf16.msra.mxu0 0
      %1566 = vmatprep.subr.bf16.mxu0 0
      %1567 = vmatpush1.bf16.msra.mxu0 0
      %1568 = vmatprep.subr.bf16.mxu0 0
      %1569 = vmatpush1.bf16.msra.mxu0 0
      %1570 = vmatprep.subr.bf16.mxu0 0
      %1571 = vmatpush1.bf16.msra.mxu0 0
      %1572 = vmatprep.subr.bf16.mxu0 0
      %1573 = vmatpush1.bf16.msra.mxu0 0
      %1574 = vmatprep.subr.bf16.mxu0 0
      %1575 = vmatpush1.bf16.msra.mxu0 0
      %1576 = vmatprep.subr.bf16.mxu0 0
      %1577 = vmatpush1.bf16.msra.mxu0 0
      %1578 = vmatprep.subr.bf16.mxu0 0
      %1579 = vmatpush1.bf16.msra.mxu0 0
      %1580 = vmatprep.mubr.bf16.mxu0 0
      %1581 = vmatmul.mubr.bf16.gmra.mrb[0].mxu0 %v1546
      %v1582 = vpop.f32.mrb[0].mxu0
      %v1583 = vadd.f32 %v1532, %v1582
      %v1584 = vpop.f32.mrb[0].mxu0
      %v1585 = vpop.f32.mrb[0].mxu0
      %v1586 = vpop.f32.mrb[0].mxu0
      %1587 = vdwg.mxu0
      %v1588 = vmul.f32 %v1583, %v1583
      %v1589 = vmul.f32 %v1583, %v1588
      %v1590 = vmul.f32 %v1589, 0.044715
      %v1591 = vadd.f32 %v1583, %v1590
      %v1592 = vmul.f32 %v1591, 0.7978846
      %v1593 = vtanh.pop %v1592
      %v1594 = vadd.f32 %v1593, 1.0
      %v1595 = vmul.f32 %v1594, 0.5
      %v1596 = vmul.f32 %v1583, %v1595
      %v1597 = vpack.c.bf16 %v1596, %v1596
      %v1598 = vld [vmem:[%s7] sm:$0xf]
      %v1599 = vld [vmem:[%s7 + $0x4] sm:$0xf]
      %v1600 = vld [vmem:[%s7 + $0x8] sm:$0xf]
      %v1601 = vld [vmem:[%s7 + $0xc] sm:$0xf]
      %v1602 = vld [vmem:[%s7 + $0x10] sm:$0xf]
      %v1603 = vld [vmem:[%s7 + $0x14] sm:$0xf]
      %v1604 = vld [vmem:[%s7 + $0x18] sm:$0xf]
      %v1605 = vld [vmem:[%s7 + $0x1c] sm:$0xf]
      %v1606 = vld [vmem:[%s7 + $0x20] sm:$0xf]
      %v1607 = vld [vmem:[%s7 + $0x24] sm:$0xf]
      %v1608 = vld [vmem:[%s7 + $0x28] sm:$0xf]
      %v1609 = vld [vmem:[%s7 + $0x2c] sm:$0xf]
      %v1610 = vld [vmem:[%s7 + $0x30] sm:$0xf]
      %v1611 = vld [vmem:[%s7 + $0x34] sm:$0xf]
      %v1612 = vld [vmem:[%s7 + $0x38] sm:$0xf]
      %v1613 = vld [vmem:[%s7 + $0x3c] sm:$0xf]
      %v1614 = vlaneseq
      %v1615 = vshrl.u32 %v1614, 7
      %v1616 = vsub.s32 2, %v1615
      %v1617 = vrot.slane %v320, %v1616
      %v1634 = vunpack.c.l.b16 %v1598
      %v1635 = vunpack.c.l.b16 %v1599
      %v1636 = vunpack.c.l.b16 %v1600
      %v1637 = vunpack.c.l.b16 %v1601
      %v1638 = vunpack.c.l.b16 %v1602
      %v1639 = vunpack.c.l.b16 %v1603
      %v1640 = vunpack.c.l.b16 %v1604
      %v1641 = vunpack.c.l.b16 %v1605
      %v1642 = vunpack.c.l.b16 %v1606
      %v1643 = vunpack.c.l.b16 %v1607
      %v1644 = vunpack.c.l.b16 %v1608
      %v1645 = vunpack.c.l.b16 %v1609
      %v1646 = vunpack.c.l.b16 %v1610
      %v1647 = vunpack.c.l.b16 %v1611
      %v1648 = vunpack.c.l.b16 %v1612
      %v1649 = vunpack.c.l.b16 %v1613
      %v1650 = vpack.c.b16 %v1635, %v1634
      %v1651 = vpack.c.b16 %v1637, %v1636
      %v1652 = vpack.c.b16 %v1639, %v1638
      %v1653 = vpack.c.b16 %v1641, %v1640
      %v1654 = vpack.c.b16 %v1643, %v1642
      %v1655 = vpack.c.b16 %v1645, %v1644
      %v1656 = vpack.c.b16 %v1647, %v1646
      %v1657 = vpack.c.b16 %v1649, %v1648
      %1666 = vmatprep.subr.bf16.mxu0 0
      %1667 = vmatpush1.bf16.msra.mxu0 %v1650
      %1668 = vmatprep.subr.bf16.mxu0 0
      %1669 = vmatpush1.bf16.msra.mxu0 %v1651
      %1670 = vmatprep.subr.bf16.mxu0 0
      %1671 = vmatpush1.bf16.msra.mxu0 %v1652
      %1672 = vmatprep.subr.bf16.mxu0 0
      %1673 = vmatpush1.bf16.msra.mxu0 %v1653
      %1674 = vmatprep.subr.bf16.mxu0 0
      %1675 = vmatpush1.bf16.msra.mxu0 %v1654
      %1676 = vmatprep.subr.bf16.mxu0 0
      %1677 = vmatpush1.bf16.msra.mxu0 %v1655
      %1678 = vmatprep.subr.bf16.mxu0 0
      %1679 = vmatpush1.bf16.msra.mxu0 %v1656
      %1680 = vmatprep.subr.bf16.mxu0 0
      %1681 = vmatpush1.bf16.msra.mxu0 %v1657
      %1682 = vmatprep.subr.bf16.mxu0 0
      %1683 = vmatpush1.bf16.msra.mxu0 0
      %1684 = vmatprep.subr.bf16.mxu0 0
      %1685 = vmatpush1.bf16.msra.mxu0 0
      %1686 = vmatprep.subr.bf16.mxu0 0
      %1687 = vmatpush1.bf16.msra.mxu0 0
      %1688 = vmatprep.subr.bf16.mxu0 0
      %1689 = vmatpush1.bf16.msra.mxu0 0
      %1690 = vmatprep.subr.bf16.mxu0 0
      %1691 = vmatpush1.bf16.msra.mxu0 0
      %1692 = vmatprep.subr.bf16.mxu0 0
      %1693 = vmatpush1.bf16.msra.mxu0 0
      %1694 = vmatprep.subr.bf16.mxu0 0
      %1695 = vmatpush1.bf16.msra.mxu0 0
      %1696 = vmatprep.subr.bf16.mxu0 0
      %1697 = vmatpush1.bf16.msra.mxu0 0
      %1698 = vmatprep.mubr.bf16.mxu0 0
      %1699 = vmatmul.mubr.bf16.gmra.mrb[0].mxu0 %v1597
      %v1700 = vpop.f32.mrb[0].mxu0
      %v1701 = vadd.f32 %v1617, %v1700
      %v1702 = vpop.f32.mrb[0].mxu0
      %v1703 = vpop.f32.mrb[0].mxu0
      %v1704 = vpop.f32.mrb[0].mxu0
      %1705 = vdwg.mxu0
      %v1706 = vadd.f32 %v1500, %v1701
      %v1707 = vpack.c.bf16 %v1706, %v1706
      %1708 = vst.msk [vmem:[%s317] sm:$0xf] %vm325, %v1707
      %p1709 = scmp.lt.s32.totalorder %s19, 1
      %s1710 = scalar_select %p1709, %s19, 1
      %s1711 = smul.addr %s1710, 4
      %s1712 = scalar_lea.vmem %s8, %s1711
      // Predicated region
      $region53: #{flamingo_forward.5} parent=51 // pred_check
        %p1713 = pneg %p215
      $region54: #{flamingo_forward.5} parent=51 // pred_check_branch
        %1715 = sbr.rel (%p1713) target = $region56
      $region55: #{flamingo_forward.5} parent=51 // pred_region
        _
      $region56: #{flamingo_forward.5} parent=51 // pred_fallthru
        _
    $region52: #{flamingo_forward.5} parent=5 // pred_fallthru
      _
    %p1716 = scmp.le.s32.totalorder 2, %s14
    // Predicated region
    $region57: #{flamingo_forward.5} parent=5 // pred_check
      %p1717 = pneg %p1716
    $region58: #{flamingo_forward.5} parent=5 // pred_check_branch
      %1719 = sbr.rel (%p1717) target = $region60
    $region59: #{flamingo_forward.5} parent=5 // pred_region
      %s1720 = ssub.s32 %s14, 2
      // Predicated region
      $region61: #{flamingo_forward.5} parent=59 // pred_check
        %p1721 = pneg %p221
      $region62: #{flamingo_forward.5} parent=59 // pred_check_branch
        %1723 = sbr.rel (%p1721) target = $region64
      $region63: #{flamingo_forward.5} parent=59 // pred_region
        %p1724 = scmp.lt.s32.totalorder %s20, 1
        %s1725 = scalar_select %p1724, %s20, 1
        %s1726 = smul.addr %s1725, 4
        %s1727 = scalar_lea.vmem %s8, %s1726
      $region64: #{flamingo_forward.5} parent=59 // pred_fallthru
        _
    $region60: #{flamingo_forward.5} parent=5 // pred_fallthru
      _
  $region6: #{flamingo_forward.5} parent=0 // loop_footer
    %s18 = sadd.s32 1, %s14
  $region7: #{flamingo_forward.5} parent=0 // loop_footer_branch
    %13 = sbr.rel target = $region3
  $region8: #{flamingo_forward.5} parent=0 // loop_exit
    _

// kernel: flamingo_forward.7
$region0: #{flamingo_forward.7}
  #allocation0 [shape = 'u32[]', space=smem, size = 0x4, offset = 0x4, fixed_abs, tag = 'smem constant byte address 0x4 - core index']
  #allocation1 [shape = 'u32[144,128]{1,0:T(1,128)}', space=vmem, size = 0x12000, scoped, tag = 'internal scratch']
  %s0 = inlined_call_operand.vmem [shape: bf16[2,8,32], index: 0, kind: input, shape index: {}]
  %s1 = inlined_call_operand.vmem [shape: bf16[2,8,32], index: 1, kind: input, shape index: {}]
  %s2 = inlined_call_operand.vmem [shape: s32[2,8,1], index: 2, kind: input, shape index: {}]
  %s3 = inlined_call_operand.vmem [shape: s32[2,1,8], index: 3, kind: input, shape index: {}]
  %s4 = inlined_call_operand.vmem [shape: f32[21,128], index: 4, kind: input, shape index: {}]
  %s5 = inlined_call_operand.vmem [shape: bf16[32,32], index: 5, kind: input, shape index: {}]
  %s6 = inlined_call_operand.vmem [shape: bf16[32,64], index: 6, kind: input, shape index: {}]
  %s7 = inlined_call_operand.vmem [shape: bf16[32,32], index: 7, kind: input, shape index: {}]
  %s8 = inlined_call_operand.vmem [shape: bf16[32,128], index: 8, kind: input, shape index: {}]
  %s9 = inlined_call_operand.vmem [shape: bf16[128,32], index: 9, kind: input, shape index: {}]
  %s10 = inlined_call_operand.vmem [shape: bf16[32,96], index: 10, kind: input, shape index: {}]
  %s11 = inlined_call_operand.vmem [shape: bf16[32,32], index: 11, kind: input, shape index: {}]
  %s12 = inlined_call_operand.vmem [shape: bf16[32,128], index: 12, kind: input, shape index: {}]
  %s13 = inlined_call_operand.vmem [shape: bf16[128,32], index: 13, kind: input, shape index: {}]
  %s14 = inlined_call_operand.vmem [shape: bf16[32,128], index: 14, kind: input, shape index: {}]
  %s15 = inlined_call_operand.hbm [shape: f32[2,8,128], index: 15, kind: output, shape index: {}]
  %s16 = sld [smem:[#allocation0]]
  $region93: #{flamingo_forward.7} parent=0
    _
  %s18 = ssub.s32 1, %s16
  %s19 = scalar_select 0, %s18, %s16
  $region1: #{flamingo_forward.7} parent=0
    #allocation2 [shape = 'u8[8192]{0}', space=vmem, size = 0x2000, scoped, tag = 'output window, operand 0']
    #allocation3 [shape = 's32[2]{0}', space=sflag, size = 0x8, scoped, tag = 'scoped memory for flamingo_forward.7']
    %20 = vsyncpa [#allocation3], 0
    %s21 = scalar_lea.sflag [#allocation3], 1
    %22 = vsyncpa %s21, 0
    loop: start=0, step=1, limit=4
    $region2: #{flamingo_forward.7} parent=1 // loop_pre_header
      _
    $region3: #{flamingo_forward.7} parent=1 // loop_header
      %s24 = sphi 0, %s28
      %p25 = scmp.ge.s32.totalorder %s24, 4
      %s34 = sphi 0, %s36
      %s37 = sphi 0, %s34
      %s38 = sphi 0, %s37
      %s54 = sphi 0, %s38
      %s60 = sphi 0, %s62
      %s63 = sphi 0, %s60
      %s64 = sphi 0, %s63
      %s80 = sphi 0, %s64
      %s86 = sphi 0, %s88
      %s89 = sphi 0, %s86
      %s90 = sphi 0, %s89
      %s106 = sphi 0, %s90
      %s112 = sphi 0, %s114
      %s115 = sphi 0, %s112
      %s116 = sphi 0, %s115
      %s132 = sphi 0, %s116
      %s136 = sphi 0, %s136
      %s138 = sphi 0, %s136
      %s139 = sphi 0, %s138
      %s153 = sphi 0, %s139
      %s157 = sphi 0, %s157
      %s159 = sphi 0, %s157
      %s160 = sphi 0, %s159
      %s174 = sphi 0, %s160
      %s178 = sphi 0, %s178
      %s180 = sphi 0, %s178
      %s181 = sphi 0, %s180
      %s195 = sphi 0, %s181
      %s199 = sphi 0, %s199
      %s201 = sphi 0, %s199
      %s202 = sphi 0, %s201
      %s216 = sphi 0, %s202
      %s220 = sphi 0, %s220
      %s222 = sphi 0, %s220
      %s223 = sphi 0, %s222
      %s237 = sphi 0, %s223
      %s241 = sphi 0, %s241
      %s243 = sphi 0, %s241
      %s244 = sphi 0, %s243
      %s258 = sphi 0, %s244
      %s262 = sphi 0, %s262
      %s264 = sphi 0, %s262
      %s265 = sphi 0, %s264
      %s279 = sphi 0, %s265
      %s283 = sphi 0, %s283
      %s285 = sphi 0, %s283
      %s286 = sphi 0, %s285
      %s300 = sphi 0, %s286
      %s304 = sphi 0, %s304
      %s306 = sphi 0, %s304
      %s307 = sphi 0, %s306
      %s321 = sphi 0, %s307
      %s325 = sphi 0, %s325
      %s327 = sphi 0, %s325
      %s328 = sphi 0, %s327
      %s342 = sphi 0, %s328
      %s346 = sphi 0, %s346
      %s348 = sphi 0, %s346
      %s349 = sphi 0, %s348
      %s363 = sphi 0, %s349
      %s369 = sphi 0, %s371
      %s372 = sphi 0, %s369
      %s373 = sphi 0, %s372
      %s389 = sphi 0, %s373
    $region4: #{flamingo_forward.7} parent=1 // loop_header_branch
      %27 = sbr.rel (%p25) target = $region8
    $region5: #{flamingo_forward.7} parent=1 // loop_body
      %s29 = ssub.s32 %s24, 1
      %s30 = ssub.s32 %s24, 2
      %s31 = sadd.s32 %s24, 1
      %s32 = ssub.s32 %s24, %s31
      %p33 = scmp.eq.s32.totalorder %s32, 0
      %s35 = sadd.s32 %s34, 1
      %s36 = scalar_select %p33, %s34, %s35
      %p39 = pneg %p33
      %p40 = scmp.eq.s32.totalorder %s24, 1
      %p41 = por %p39, %p40
      %p42 = scmp.ne.s32.totalorder %s34, %s37
      %p43 = scmp.eq.s32.totalorder %s24, 0
      %p44 = por %p42, %p43
      %p45 = scmp.ne.s32.totalorder %s34, %s37
      %p46 = scmp.eq.s32.totalorder %s29, 1
      %p47 = por %p45, %p46
      %p48 = scmp.ne.s32.totalorder %s37, %s38
      %p49 = scmp.eq.s32.totalorder %s29, 0
      %p50 = por %p48, %p49
      %p51 = scmp.ne.s32.totalorder %s37, %s38
      %p52 = scmp.eq.s32.totalorder %s30, 1
      %p53 = por %p51, %p52
      %p55 = scmp.ne.s32.totalorder %s38, %s54
      %p56 = scmp.eq.s32.totalorder %s30, 0
      %p57 = por %p55, %p56
      %s58 = ssub.s32 %s24, %s31
      %p59 = scmp.eq.s32.totalorder %s58, 0
      %s61 = sadd.s32 %s60, 1
      %s62 = scalar_select %p59, %s60, %s61
      %p65 = pneg %p59
      %p66 = scmp.eq.s32.totalorder %s24, 1
      %p67 = por %p65, %p66
      %p68 = scmp.ne.s32.totalorder %s60, %s63
      %p69 = scmp.eq.s32.totalorder %s24, 0
      %p70 = por %p68, %p69
      %p71 = scmp.ne.s32.totalorder %s60, %s63
      %p72 = scmp.eq.s32.totalorder %s29, 1
      %p73 = por %p71, %p72
      %p74 = scmp.ne.s32.totalorder %s63, %s64
      %p75 = scmp.eq.s32.totalorder %s29, 0
      %p76 = por %p74, %p75
      %p77 = scmp.ne.s32.totalorder %s63, %s64
      %p78 = scmp.eq.s32.totalorder %s30, 1
      %p79 = por %p77, %p78
      %p81 = scmp.ne.s32.totalorder %s64, %s80
      %p82 = scmp.eq.s32.totalorder %s30, 0
      %p83 = por %p81, %p82
      %s84 = ssub.s32 %s24, %s31
      %p85 = scmp.eq.s32.totalorder %s84, 0
      %s87 = sadd.s32 %s86, 1
      %s88 = scalar_select %p85, %s86, %s87
      %p91 = pneg %p85
      %p92 = scmp.eq.s32.totalorder %s24, 1
      %p93 = por %p91, %p92
      %p94 = scmp.ne.s32.totalorder %s86, %s89
      %p95 = scmp.eq.s32.totalorder %s24, 0
      %p96 = por %p94, %p95
      %p97 = scmp.ne.s32.totalorder %s86, %s89
      %p98 = scmp.eq.s32.totalorder %s29, 1
      %p99 = por %p97, %p98
      %p100 = scmp.ne.s32.totalorder %s89, %s90
      %p101 = scmp.eq.s32.totalorder %s29, 0
      %p102 = por %p100, %p101
      %p103 = scmp.ne.s32.totalorder %s89, %s90
      %p104 = scmp.eq.s32.totalorder %s30, 1
      %p105 = por %p103, %p104
      %p107 = scmp.ne.s32.totalorder %s90, %s106
      %p108 = scmp.eq.s32.totalorder %s30, 0
      %p109 = por %p107, %p108
      %s110 = ssub.s32 %s24, %s31
      %p111 = scmp.eq.s32.totalorder %s110, 0
      %s113 = sadd.s32 %s112, 1
      %s114 = scalar_select %p111, %s112, %s113
      %p117 = pneg %p111
      %p118 = scmp.eq.s32.totalorder %s24, 1
      %p119 = por %p117, %p118
      %p120 = scmp.ne.s32.totalorder %s112, %s115
      %p121 = scmp.eq.s32.totalorder %s24, 0
      %p122 = por %p120, %p121
      %p123 = scmp.ne.s32.totalorder %s112, %s115
      %p124 = scmp.eq.s32.totalorder %s29, 1
      %p125 = por %p123, %p124
      %p126 = scmp.ne.s32.totalorder %s115, %s116
      %p127 = scmp.eq.s32.totalorder %s29, 0
      %p128 = por %p126, %p127
      %p129 = scmp.ne.s32.totalorder %s115, %s116
      %p130 = scmp.eq.s32.totalorder %s30, 1
      %p131 = por %p129, %p130
      %p133 = scmp.ne.s32.totalorder %s116, %s132
      %p134 = scmp.eq.s32.totalorder %s30, 0
      %p135 = por %p133, %p134
      %s137 = sadd.s32 %s136, 1
      %p140 = scmp.eq.s32.totalorder %s24, 1
      %p141 = scmp.ne.s32.totalorder %s136, %s138
      %p142 = scmp.eq.s32.totalorder %s24, 0
      %p143 = por %p141, %p142
      %p144 = scmp.ne.s32.totalorder %s136, %s138
      %p145 = scmp.eq.s32.totalorder %s29, 1
      %p146 = por %p144, %p145
      %p147 = scmp.ne.s32.totalorder %s138, %s139
      %p148 = scmp.eq.s32.totalorder %s29, 0
      %p149 = por %p147, %p148
      %p150 = scmp.ne.s32.totalorder %s138, %s139
      %p151 = scmp.eq.s32.totalorder %s30, 1
      %p152 = por %p150, %p151
      %p154 = scmp.ne.s32.totalorder %s139, %s153
      %p155 = scmp.eq.s32.totalorder %s30, 0
      %p156 = por %p154, %p155
      %s158 = sadd.s32 %s157, 1
      %p161 = scmp.eq.s32.totalorder %s24, 1
      %p162 = scmp.ne.s32.totalorder %s157, %s159
      %p163 = scmp.eq.s32.totalorder %s24, 0
      %p164 = por %p162, %p163
      %p165 = scmp.ne.s32.totalorder %s157, %s159
      %p166 = scmp.eq.s32.totalorder %s29, 1
      %p167 = por %p165, %p166
      %p168 = scmp.ne.s32.totalorder %s159, %s160
      %p169 = scmp.eq.s32.totalorder %s29, 0
      %p170 = por %p168, %p169
      %p171 = scmp.ne.s32.totalorder %s159, %s160
      %p172 = scmp.eq.s32.totalorder %s30, 1
      %p173 = por %p171, %p172
      %p175 = scmp.ne.s32.totalorder %s160, %s174
      %p176 = scmp.eq.s32.totalorder %s30, 0
      %p177 = por %p175, %p176
      %s179 = sadd.s32 %s178, 1
      %p182 = scmp.eq.s32.totalorder %s24, 1
      %p183 = scmp.ne.s32.totalorder %s178, %s180
      %p184 = scmp.eq.s32.totalorder %s24, 0
      %p185 = por %p183, %p184
      %p186 = scmp.ne.s32.totalorder %s178, %s180
      %p187 = scmp.eq.s32.totalorder %s29, 1
      %p188 = por %p186, %p187
      %p189 = scmp.ne.s32.totalorder %s180, %s181
      %p190 = scmp.eq.s32.totalorder %s29, 0
      %p191 = por %p189, %p190
      %p192 = scmp.ne.s32.totalorder %s180, %s181
      %p193 = scmp.eq.s32.totalorder %s30, 1
      %p194 = por %p192, %p193
      %p196 = scmp.ne.s32.totalorder %s181, %s195
      %p197 = scmp.eq.s32.totalorder %s30, 0
      %p198 = por %p196, %p197
      %s200 = sadd.s32 %s199, 1
      %p203 = scmp.eq.s32.totalorder %s24, 1
      %p204 = scmp.ne.s32.totalorder %s199, %s201
      %p205 = scmp.eq.s32.totalorder %s24, 0
      %p206 = por %p204, %p205
      %p207 = scmp.ne.s32.totalorder %s199, %s201
      %p208 = scmp.eq.s32.totalorder %s29, 1
      %p209 = por %p207, %p208
      %p210 = scmp.ne.s32.totalorder %s201, %s202
      %p211 = scmp.eq.s32.totalorder %s29, 0
      %p212 = por %p210, %p211
      %p213 = scmp.ne.s32.totalorder %s201, %s202
      %p214 = scmp.eq.s32.totalorder %s30, 1
      %p215 = por %p213, %p214
      %p217 = scmp.ne.s32.totalorder %s202, %s216
      %p218 = scmp.eq.s32.totalorder %s30, 0
      %p219 = por %p217, %p218
      %s221 = sadd.s32 %s220, 1
      %p224 = scmp.eq.s32.totalorder %s24, 1
      %p225 = scmp.ne.s32.totalorder %s220, %s222
      %p226 = scmp.eq.s32.totalorder %s24, 0
      %p227 = por %p225, %p226
      %p228 = scmp.ne.s32.totalorder %s220, %s222
      %p229 = scmp.eq.s32.totalorder %s29, 1
      %p230 = por %p228, %p229
      %p231 = scmp.ne.s32.totalorder %s222, %s223
      %p232 = scmp.eq.s32.totalorder %s29, 0
      %p233 = por %p231, %p232
      %p234 = scmp.ne.s32.totalorder %s222, %s223
      %p235 = scmp.eq.s32.totalorder %s30, 1
      %p236 = por %p234, %p235
      %p238 = scmp.ne.s32.totalorder %s223, %s237
      %p239 = scmp.eq.s32.totalorder %s30, 0
      %p240 = por %p238, %p239
      %s242 = sadd.s32 %s241, 1
      %p245 = scmp.eq.s32.totalorder %s24, 1
      %p246 = scmp.ne.s32.totalorder %s241, %s243
      %p247 = scmp.eq.s32.totalorder %s24, 0
      %p248 = por %p246, %p247
      %p249 = scmp.ne.s32.totalorder %s241, %s243
      %p250 = scmp.eq.s32.totalorder %s29, 1
      %p251 = por %p249, %p250
      %p252 = scmp.ne.s32.totalorder %s243, %s244
      %p253 = scmp.eq.s32.totalorder %s29, 0
      %p254 = por %p252, %p253
      %p255 = scmp.ne.s32.totalorder %s243, %s244
      %p256 = scmp.eq.s32.totalorder %s30, 1
      %p257 = por %p255, %p256
      %p259 = scmp.ne.s32.totalorder %s244, %s258
      %p260 = scmp.eq.s32.totalorder %s30, 0
      %p261 = por %p259, %p260
      %s263 = sadd.s32 %s262, 1
      %p266 = scmp.eq.s32.totalorder %s24, 1
      %p267 = scmp.ne.s32.totalorder %s262, %s264
      %p268 = scmp.eq.s32.totalorder %s24, 0
      %p269 = por %p267, %p268
      %p270 = scmp.ne.s32.totalorder %s262, %s264
      %p271 = scmp.eq.s32.totalorder %s29, 1
      %p272 = por %p270, %p271
      %p273 = scmp.ne.s32.totalorder %s264, %s265
      %p274 = scmp.eq.s32.totalorder %s29, 0
      %p275 = por %p273, %p274
      %p276 = scmp.ne.s32.totalorder %s264, %s265
      %p277 = scmp.eq.s32.totalorder %s30, 1
      %p278 = por %p276, %p277
      %p280 = scmp.ne.s32.totalorder %s265, %s279
      %p281 = scmp.eq.s32.totalorder %s30, 0
      %p282 = por %p280, %p281
      %s284 = sadd.s32 %s283, 1
      %p287 = scmp.eq.s32.totalorder %s24, 1
      %p288 = scmp.ne.s32.totalorder %s283, %s285
      %p289 = scmp.eq.s32.totalorder %s24, 0
      %p290 = por %p288, %p289
      %p291 = scmp.ne.s32.totalorder %s283, %s285
      %p292 = scmp.eq.s32.totalorder %s29, 1
      %p293 = por %p291, %p292
      %p294 = scmp.ne.s32.totalorder %s285, %s286
      %p295 = scmp.eq.s32.totalorder %s29, 0
      %p296 = por %p294, %p295
      %p297 = scmp.ne.s32.totalorder %s285, %s286
      %p298 = scmp.eq.s32.totalorder %s30, 1
      %p299 = por %p297, %p298
      %p301 = scmp.ne.s32.totalorder %s286, %s300
      %p302 = scmp.eq.s32.totalorder %s30, 0
      %p303 = por %p301, %p302
      %s305 = sadd.s32 %s304, 1
      %p308 = scmp.eq.s32.totalorder %s24, 1
      %p309 = scmp.ne.s32.totalorder %s304, %s306
      %p310 = scmp.eq.s32.totalorder %s24, 0
      %p311 = por %p309, %p310
      %p312 = scmp.ne.s32.totalorder %s304, %s306
      %p313 = scmp.eq.s32.totalorder %s29, 1
      %p314 = por %p312, %p313
      %p315 = scmp.ne.s32.totalorder %s306, %s307
      %p316 = scmp.eq.s32.totalorder %s29, 0
      %p317 = por %p315, %p316
      %p318 = scmp.ne.s32.totalorder %s306, %s307
      %p319 = scmp.eq.s32.totalorder %s30, 1
      %p320 = por %p318, %p319
      %p322 = scmp.ne.s32.totalorder %s307, %s321
      %p323 = scmp.eq.s32.totalorder %s30, 0
      %p324 = por %p322, %p323
      %s326 = sadd.s32 %s325, 1
      %p329 = scmp.eq.s32.totalorder %s24, 1
      %p330 = scmp.ne.s32.totalorder %s325, %s327
      %p331 = scmp.eq.s32.totalorder %s24, 0
      %p332 = por %p330, %p331
      %p333 = scmp.ne.s32.totalorder %s325, %s327
      %p334 = scmp.eq.s32.totalorder %s29, 1
      %p335 = por %p333, %p334
      %p336 = scmp.ne.s32.totalorder %s327, %s328
      %p337 = scmp.eq.s32.totalorder %s29, 0
      %p338 = por %p336, %p337
      %p339 = scmp.ne.s32.totalorder %s327, %s328
      %p340 = scmp.eq.s32.totalorder %s30, 1
      %p341 = por %p339, %p340
      %p343 = scmp.ne.s32.totalorder %s328, %s342
      %p344 = scmp.eq.s32.totalorder %s30, 0
      %p345 = por %p343, %p344
      %s347 = sadd.s32 %s346, 1
      %p350 = scmp.eq.s32.totalorder %s24, 1
      %p351 = scmp.ne.s32.totalorder %s346, %s348
      %p352 = scmp.eq.s32.totalorder %s24, 0
      %p353 = por %p351, %p352
      %p354 = scmp.ne.s32.totalorder %s346, %s348
      %p355 = scmp.eq.s32.totalorder %s29, 1
      %p356 = por %p354, %p355
      %p357 = scmp.ne.s32.totalorder %s348, %s349
      %p358 = scmp.eq.s32.totalorder %s29, 0
      %p359 = por %p357, %p358
      %p360 = scmp.ne.s32.totalorder %s348, %s349
      %p361 = scmp.eq.s32.totalorder %s30, 1
      %p362 = por %p360, %p361
      %p364 = scmp.ne.s32.totalorder %s349, %s363
      %p365 = scmp.eq.s32.totalorder %s30, 0
      %p366 = por %p364, %p365
      %s367 = ssub.s32 %s24, %s31
      %p368 = scmp.eq.s32.totalorder %s367, 0
      %s370 = sadd.s32 %s369, 1
      %s371 = scalar_select %p368, %s369, %s370
      %p374 = pneg %p368
      %p375 = scmp.eq.s32.totalorder %s24, 1
      %p376 = por %p374, %p375
      %p377 = scmp.ne.s32.totalorder %s369, %s372
      %p378 = scmp.eq.s32.totalorder %s24, 0
      %p379 = por %p377, %p378
      %p380 = scmp.ne.s32.totalorder %s369, %s372
      %p381 = scmp.eq.s32.totalorder %s29, 1
      %p382 = por %p380, %p381
      %p383 = scmp.ne.s32.totalorder %s372, %s373
      %p384 = scmp.eq.s32.totalorder %s29, 0
      %p385 = por %p383, %p384
      %p386 = scmp.ne.s32.totalorder %s372, %s373
      %p387 = scmp.eq.s32.totalorder %s30, 1
      %p388 = por %p386, %p387
      %p390 = scmp.ne.s32.totalorder %s373, %s389
      %p391 = scmp.eq.s32.totalorder %s30, 0
      %p392 = por %p390, %p391
      %p393 = scmp.le.s32.totalorder 1, %s24
      %p394 = scmp.lt.s32.totalorder %s24, 3
      %p395 = pnand %p393, %p394
      %p396 = pneg %p395
      // Predicated region
      $region9: #{flamingo_forward.7} parent=5 // pred_check
        _
      $region10: #{flamingo_forward.7} parent=5 // pred_check_branch
        %398 = sbr.rel (%p395) target = $region12
      $region11: #{flamingo_forward.7} parent=5 // pred_region
        %s399 = ssub.s32 %s24, 1
        // Predicated region
        $region13: #{flamingo_forward.7} parent=11 // pred_check
          %p400 = pneg %p149
        $region14: #{flamingo_forward.7} parent=11 // pred_check_branch
          %402 = sbr.rel (%p400) target = $region16
        $region15: #{flamingo_forward.7} parent=11 // pred_region
          _
        $region16: #{flamingo_forward.7} parent=11 // pred_fallthru
          _
        // Predicated region
        $region17: #{flamingo_forward.7} parent=11 // pred_check
          %p403 = pneg %p170
        $region18: #{flamingo_forward.7} parent=11 // pred_check_branch
          %405 = sbr.rel (%p403) target = $region20
        $region19: #{flamingo_forward.7} parent=11 // pred_region
          _
        $region20: #{flamingo_forward.7} parent=11 // pred_fallthru
          _
        // Predicated region
        $region21: #{flamingo_forward.7} parent=11 // pred_check
          %p406 = pneg %p191
        $region22: #{flamingo_forward.7} parent=11 // pred_check_branch
          %408 = sbr.rel (%p406) target = $region24
        $region23: #{flamingo_forward.7} parent=11 // pred_region
          _
        $region24: #{flamingo_forward.7} parent=11 // pred_fallthru
          _
        // Predicated region
        $region25: #{flamingo_forward.7} parent=11 // pred_check
          %p409 = pneg %p212
        $region26: #{flamingo_forward.7} parent=11 // pred_check_branch
          %411 = sbr.rel (%p409) target = $region28
        $region27: #{flamingo_forward.7} parent=11 // pred_region
          _
        $region28: #{flamingo_forward.7} parent=11 // pred_fallthru
          _
        // Predicated region
        $region29: #{flamingo_forward.7} parent=11 // pred_check
          %p412 = pneg %p233
        $region30: #{flamingo_forward.7} parent=11 // pred_check_branch
          %414 = sbr.rel (%p412) target = $region32
        $region31: #{flamingo_forward.7} parent=11 // pred_region
          _
        $region32: #{flamingo_forward.7} parent=11 // pred_fallthru
          _
        // Predicated region
        $region33: #{flamingo_forward.7} parent=11 // pred_check
          %p415 = pneg %p254
        $region34: #{flamingo_forward.7} parent=11 // pred_check_branch
          %417 = sbr.rel (%p415) target = $region36
        $region35: #{flamingo_forward.7} parent=11 // pred_region
          _
        $region36: #{flamingo_forward.7} parent=11 // pred_fallthru
          _
        // Predicated region
        $region37: #{flamingo_forward.7} parent=11 // pred_check
          %p418 = pneg %p275
        $region38: #{flamingo_forward.7} parent=11 // pred_check_branch
          %420 = sbr.rel (%p418) target = $region40
        $region39: #{flamingo_forward.7} parent=11 // pred_region
          _
        $region40: #{flamingo_forward.7} parent=11 // pred_fallthru
          _
        // Predicated region
        $region41: #{flamingo_forward.7} parent=11 // pred_check
          %p421 = pneg %p296
        $region42: #{flamingo_forward.7} parent=11 // pred_check_branch
          %423 = sbr.rel (%p421) target = $region44
        $region43: #{flamingo_forward.7} parent=11 // pred_region
          _
        $region44: #{flamingo_forward.7} parent=11 // pred_fallthru
          _
        // Predicated region
        $region45: #{flamingo_forward.7} parent=11 // pred_check
          %p424 = pneg %p317
        $region46: #{flamingo_forward.7} parent=11 // pred_check_branch
          %426 = sbr.rel (%p424) target = $region48
        $region47: #{flamingo_forward.7} parent=11 // pred_region
          _
        $region48: #{flamingo_forward.7} parent=11 // pred_fallthru
          _
        // Predicated region
        $region49: #{flamingo_forward.7} parent=11 // pred_check
          %p427 = pneg %p338
        $region50: #{flamingo_forward.7} parent=11 // pred_check_branch
          %429 = sbr.rel (%p427) target = $region52
        $region51: #{flamingo_forward.7} parent=11 // pred_region
          _
        $region52: #{flamingo_forward.7} parent=11 // pred_fallthru
          _
        // Predicated region
        $region53: #{flamingo_forward.7} parent=11 // pred_check
          %p430 = pneg %p359
        $region54: #{flamingo_forward.7} parent=11 // pred_check_branch
          %432 = sbr.rel (%p430) target = $region56
        $region55: #{flamingo_forward.7} parent=11 // pred_region
          _
        $region56: #{flamingo_forward.7} parent=11 // pred_fallthru
          _
      $region12: #{flamingo_forward.7} parent=5 // pred_fallthru
        _
      %p433 = scmp.lt.s32.totalorder %s24, 2
      // Predicated region
      $region57: #{flamingo_forward.7} parent=5 // pred_check
        %p434 = pneg %p433
      $region58: #{flamingo_forward.7} parent=5 // pred_check_branch
        %436 = sbr.rel (%p434) target = $region60
      $region59: #{flamingo_forward.7} parent=5 // pred_region
        // Predicated region
        $region61: #{flamingo_forward.7} parent=59 // pred_check
          %p437 = pneg %p44
        $region62: #{flamingo_forward.7} parent=59 // pred_check_branch
          %439 = sbr.rel (%p437) target = $region64
        $region63: #{flamingo_forward.7} parent=59 // pred_region
          %p440 = scmp.lt.s32.totalorder %s24, 1
          %s441 = scalar_select %p440, %s24, 1
          %s442 = smul.addr %s441, 4
          %s443 = scalar_lea.vmem %s0, %s442
        $region64: #{flamingo_forward.7} parent=59 // pred_fallthru
          _
        // Predicated region
        $region65: #{flamingo_forward.7} parent=59 // pred_check
          %p444 = pneg %p70
        $region66: #{flamingo_forward.7} parent=59 // pred_check_branch
          %446 = sbr.rel (%p444) target = $region68
        $region67: #{flamingo_forward.7} parent=59 // pred_region
          %p447 = scmp.lt.s32.totalorder %s24, 1
          %s448 = scalar_select %p447, %s24, 1
          %s449 = smul.addr %s448, 4
          %s450 = scalar_lea.vmem %s1, %s449
        $region68: #{flamingo_forward.7} parent=59 // pred_fallthru
          _
        // Predicated region
        $region69: #{flamingo_forward.7} parent=59 // pred_check
          %p451 = pneg %p96
        $region70: #{flamingo_forward.7} parent=59 // pred_check_branch
          %453 = sbr.rel (%p451) target = $region72
        $region71: #{flamingo_forward.7} parent=59 // pred_region
          %p454 = scmp.lt.s32.totalorder %s24, 1
          %s455 = scalar_select %p454, %s24, 1
          %s456 = smul.addr %s455, 8
          %s457 = scalar_lea.vmem %s2, %s456
        $region72: #{flamingo_forward.7} parent=59 // pred_fallthru
          _
        // Predicated region
        $region73: #{flamingo_forward.7} parent=59 // pred_check
          %p458 = pneg %p122
        $region74: #{flamingo_forward.7} parent=59 // pred_check_branch
          %460 = sbr.rel (%p458) target = $region76
        $region75: #{flamingo_forward.7} parent=59 // pred_region
          %p461 = scmp.lt.s32.totalorder %s24, 1
          %s462 = scalar_select %p461, %s24, 1
          %s463 = scalar_lea.vmem %s3, %s462
        $region76: #{flamingo_forward.7} parent=59 // pred_fallthru
          _
      $region60: #{flamingo_forward.7} parent=5 // pred_fallthru
        _
      %p464 = scmp.le.s32.totalorder 1, %s24
      %p465 = scmp.lt.s32.totalorder %s24, 3
      %p466 = pnand %p464, %p465
      %p467 = pneg %p466
      // Predicated region
      $region77: #{flamingo_forward.7} parent=5 // pred_check
        _
      $region78: #{flamingo_forward.7} parent=5 // pred_check_branch
        %469 = sbr.rel (%p466) target = $region80
      $region79: #{flamingo_forward.7} parent=5 // pred_region
        %s470 = ssub.s32 %s24, 1
        %p471 = scmp.lt.s32.totalorder %s29, 1
        %s472 = scalar_select %p471, %s29, 1
        %s473 = smul.addr %s472, 4
        %s474 = scalar_lea.vmem %s0, %s473
        %p475 = pneg %p50
        %p476 = pneg %p47
        %p477 = scmp.lt.s32.totalorder %s29, 1
        %s478 = scalar_select %p477, %s29, 1
        %s479 = smul.addr %s478, 4
        %s480 = scalar_lea.vmem %s1, %s479
        %p481 = pneg %p76
        %p482 = pneg %p73
        %p483 = scmp.lt.s32.totalorder %s29, 1
        %s484 = scalar_select %p483, %s29, 1
        %s485 = smul.addr %s484, 8
        %s486 = scalar_lea.vmem %s2, %s485
        %p487 = pneg %p102
        %p488 = pneg %p99
        %p489 = scmp.lt.s32.totalorder %s29, 1
        %s490 = scalar_select %p489, %s29, 1
        %s491 = scalar_lea.vmem %s3, %s490
        %p492 = pneg %p128
        %p493 = pneg %p125
        %p494 = pneg %p149
        %p495 = pneg %p146
        %p496 = pneg %p170
        %p497 = pneg %p167
        %p498 = pneg %p191
        %p499 = pneg %p188
        %p500 = pneg %p212
        %p501 = pneg %p209
        %p502 = pneg %p233
        %p503 = pneg %p230
        %p504 = pneg %p254
        %p505 = pneg %p251
        %p506 = pneg %p275
        %p507 = pneg %p272
        %p508 = pneg %p296
        %p509 = pneg %p293
        %p510 = pneg %p317
        %p511 = pneg %p314
        %p512 = pneg %p338
        %p513 = pneg %p335
        %p514 = pneg %p359
        %p515 = pneg %p356
        %p516 = pneg %p385
        %p517 = pneg %p382
        %s518 = sand.u32 %s372, 1
        %s519 = scalar_lea.sflag [#allocation3], %s518
        %s520 = sand.u32 %s372, 1
        %s521 = smul.addr %s520, 8
        %s522 = scalar_lea.vmem [#allocation2], %s521
        %p523 = scmp.lt.s32.totalorder %s29, 1
        %s524 = scalar_select %p523, %s29, 1
        %s525 = smul.addr %s524, 4
        %s526 = scalar_lea.vmem %s0, %s525
        %p527 = scmp.lt.s32.totalorder %s29, 1
        %s528 = scalar_select %p527, %s29, 1
        %s529 = smul.addr %s528, 4
        %s530 = scalar_lea.vmem %s1, %s529
        %p531 = scmp.lt.s32.totalorder %s29, 1
        %s532 = scalar_select %p531, %s29, 1
        %s533 = smul.addr %s532, 8
        %s534 = scalar_lea.vmem %s2, %s533
        %p535 = scmp.lt.s32.totalorder %s29, 1
        %s536 = scalar_select %p535, %s29, 1
        %s537 = scalar_lea.vmem %s3, %s536
        %v539 = vld [vmem:[%s4] sm:$0xff]
        %v540 = vld [vmem:[%s4 + $0x8] sm:$0xff]
        %v541 = vld [vmem:[%s4 + $0x10] sm:$0x1f]
        %v542 = vld [vmem:[%s526] sm:$0xf]
        %v543 = vunpack.c.l.bf16 %v542
        %v544 = vld [vmem:[%s530] sm:$0xf]
        %v545 = vld [vmem:[%s534] sm:$0xff]
        %v546 = vld [vmem:[%s537] sm:$0x1]
        %vm547 = vcmask 261120
        %v548 = vsel %vm547, %v543, 0.0
        %549 = vadd.xlane.f32.xlu0 %v548
        %v550 = vpop.xlane.xlu0 %549
        %v551 = vrcp.pop 32.0
        %v552 = vmul.f32 %v550, %v551
        %v553 = vsub.f32 %v543, %v552
        %v554 = vmul.f32 %v553, %v553
        %v555 = vsel %vm547, %v554, 0.0
        %556 = vadd.xlane.f32.xlu0 %v555
        %v557 = vpop.xlane.xlu0 %556
        %v558 = vmul.f32 %v557, %v551
        %v559 = vadd.f32 %v558, 1e-05
        %v560 = vrsqrt.pop %v559
        %v561 = vmul.f32 %v553, %v560
        %v562 = vlaneseq
        %v563 = vshrl.u32 %v562, 7
        %v564 = vsub.s32 0, %v563
        %v565 = vrot.slane %v539, %v564
        %v566 = vmul.f32 %v561, %v565
        %v567 = vlaneseq
        %v568 = vshrl.u32 %v567, 7
        %v569 = vsub.s32 1, %v568
        %v570 = vrot.slane %v539, %v569
        %v571 = vadd.f32 %v566, %v570
        %v572 = vpack.c.bf16 %v571, %v571
        %v573 = vld [vmem:[%s5] sm:$0xf]
        %v574 = vld [vmem:[%s5 + $0x4] sm:$0xf]
        %v575 = vld [vmem:[%s5 + $0x8] sm:$0xf]
        %v576 = vld [vmem:[%s5 + $0xc] sm:$0xf]
        %v577 = vlaneseq
        %v578 = vshrl.u32 %v577, 7
        %v579 = vsub.s32 2, %v578
        %v580 = vrot.slane %v539, %v579
        %v585 = vunpack.c.l.b16 %v573
        %v586 = vunpack.c.l.b16 %v574
        %v587 = vunpack.c.l.b16 %v575
        %v588 = vunpack.c.l.b16 %v576
        %v589 = vpack.c.b16 %v586, %v585
        %v590 = vpack.c.b16 %v588, %v587
        %v594 = vsel %vm547, %v572, 0
        %596 = vmatprep.subr.bf16.mxu0 0
        %597 = vmatpush1.bf16.msra.mxu0 %v589
        %598 = vmatprep.subr.bf16.mxu0 0
        %599 = vmatpush1.bf16.msra.mxu0 %v590
        %600 = vmatprep.subr.bf16.mxu0 0
        %601 = vmatpush1.bf16.msra.mxu0 0
        %602 = vmatprep.subr.bf16.mxu0 0
        %603 = vmatpush1.bf16.msra.mxu0 0
        %604 = vmatprep.subr.bf16.mxu0 0
        %605 = vmatpush1.bf16.msra.mxu0 0
        %606 = vmatprep.subr.bf16.mxu0 0
        %607 = vmatpush1.bf16.msra.mxu0 0
        %608 = vmatprep.subr.bf16.mxu0 0
        %609 = vmatpush1.bf16.msra.mxu0 0
        %610 = vmatprep.subr.bf16.mxu0 0
        %611 = vmatpush1.bf16.msra.mxu0 0
        %612 = vmatprep.subr.bf16.mxu0 0
        %613 = vmatpush1.bf16.msra.mxu0 0
        %614 = vmatprep.subr.bf16.mxu0 0
        %615 = vmatpush1.bf16.msra.mxu0 0
        %616 = vmatprep.subr.bf16.mxu0 0
        %617 = vmatpush1.bf16.msra.mxu0 0
        %618 = vmatprep.subr.bf16.mxu0 0
        %619 = vmatpush1.bf16.msra.mxu0 0
        %620 = vmatprep.subr.bf16.mxu0 0
        %621 = vmatpush1.bf16.msra.mxu0 0
        %622 = vmatprep.subr.bf16.mxu0 0
        %623 = vmatpush1.bf16.msra.mxu0 0
        %624 = vmatprep.subr.bf16.mxu0 0
        %625 = vmatpush1.bf16.msra.mxu0 0
        %626 = vmatprep.subr.bf16.mxu0 0
        %627 = vmatpush1.bf16.msra.mxu0 0
        %628 = vmatprep.mubr.bf16.mxu0 0
        %629 = vmatmul.mubr.bf16.gmra.mrb[0].mxu0 %v594
        %v630 = vpop.f32.mrb[0].mxu0
        %v631 = vadd.f32 %v580, %v630
        %v632 = vpop.f32.mrb[0].mxu0
        %v633 = vpop.f32.mrb[0].mxu0
        %v634 = vpop.f32.mrb[0].mxu0
        %635 = vdwg.mxu0
        %v636 = vld [vmem:[%s6] sm:$0xf]
        %v637 = vld [vmem:[%s6 + $0x4] sm:$0xf]
        %v638 = vld [vmem:[%s6 + $0x8] sm:$0xf]
        %v639 = vld [vmem:[%s6 + $0xc] sm:$0xf]
        %v640 = vlaneseq
        %v641 = vshrl.u32 %v640, 7
        %v642 = vsub.s32 3, %v641
        %v643 = vrot.slane %v539, %v642
        %v648 = vunpack.c.l.b16 %v636
        %v649 = vunpack.c.l.b16 %v637
        %v650 = vunpack.c.l.b16 %v638
        %v651 = vunpack.c.l.b16 %v639
        %v652 = vpack.c.b16 %v649, %v648
        %v653 = vpack.c.b16 %v651, %v650
        %v657 = vsel %vm547, %v544, 0
        %659 = vmatprep.subr.bf16.mxu0 0
        %660 = vmatpush1.bf16.msra.mxu0 %v652
        %661 = vmatprep.subr.bf16.mxu0 0
        %662 = vmatpush1.bf16.msra.mxu0 %v653
        %663 = vmatprep.subr.bf16.mxu0 0
        %664 = vmatpush1.bf16.msra.mxu0 0
        %665 = vmatprep.subr.bf16.mxu0 0
        %666 = vmatpush1.bf16.msra.mxu0 0
        %667 = vmatprep.subr.bf16.mxu0 0
        %668 = vmatpush1.bf16.msra.mxu0 0
        %669 = vmatprep.subr.bf16.mxu0 0
        %670 = vmatpush1.bf16.msra.mxu0 0
        %671 = vmatprep.subr.bf16.mxu0 0
        %672 = vmatpush1.bf16.msra.mxu0 0
        %673 = vmatprep.subr.bf16.mxu0 0
        %674 = vmatpush1.bf16.msra.mxu0 0
        %675 = vmatprep.subr.bf16.mxu0 0
        %676 = vmatpush1.bf16.msra.mxu0 0
        %677 = vmatprep.subr.bf16.mxu0 0
        %678 = vmatpush1.bf16.msra.mxu0 0
        %679 = vmatprep.subr.bf16.mxu0 0
        %680 = vmatpush1.bf16.msra.mxu0 0
        %681 = vmatprep.subr.bf16.mxu0 0
        %682 = vmatpush1.bf16.msra.mxu0 0
        %683 = vmatprep.subr.bf16.mxu0 0
        %684 = vmatpush1.bf16.msra.mxu0 0
        %685 = vmatprep.subr.bf16.mxu0 0
        %686 = vmatpush1.bf16.msra.mxu0 0
        %687 = vmatprep.subr.bf16.mxu0 0
        %688 = vmatpush1.bf16.msra.mxu0 0
        %689 = vmatprep.subr.bf16.mxu0 0
        %690 = vmatpush1.bf16.msra.mxu0 0
        %691 = vmatprep.mubr.bf16.mxu0 0
        %692 = vmatmul.mubr.bf16.gmra.mrb[0].mxu0 %v657
        %v693 = vpop.f32.mrb[0].mxu0
        %v694 = vadd.f32 %v643, %v693
        %v695 = vpop.f32.mrb[0].mxu0
        %v696 = vpop.f32.mrb[0].mxu0
        %v697 = vpop.f32.mrb[0].mxu0
        %698 = vdwg.mxu0
        %v699 = vlaneseq
        %v700 = vand.u32 %v699, 127
        %v701 = vshra.s32 %v700, 3
        %v702 = vadd.s32 %v701, 1
        %703 = vset.pattern.permute.xlu0 0
        %704 = vperm.xlu0 %703, %v545
        %v705 = vpop.permute.xlu0 %704
        %vm706 = vcmp.ge.s32.totalorder %v705, %v702
        %v707 = vsel %vm706, 0.0, -1e+09
        %v708 = vpack.c.bf16 %v631, %v631
        %v709 = vpack.c.bf16 %v694, %v694
        %vm710 = vcmask 64512
        %v712 = vsel %vm710, %v708, 0
        %v715 = vsel %vm710, %v709, 0
        %717 = vmatprep.subr.bf16.mxu0 0
        %718 = vmatpush1.bf16.xpose.msra.mxu0 %v715
        %719 = vmatprep.subr.bf16.mxu0 0
        %720 = vmatpush1.bf16.xpose.msra.mxu0 0
        %721 = vmatprep.subr.bf16.mxu0 0
        %722 = vmatpush1.bf16.xpose.msra.mxu0 0
        %723 = vmatprep.subr.bf16.mxu0 0
        %724 = vmatpush1.bf16.xpose.msra.mxu0 0
        %725 = vmatprep.subr.bf16.mxu0 0
        %726 = vmatpush1.bf16.xpose.msra.mxu0 0
        %727 = vmatprep.subr.bf16.mxu0 0
        %728 = vmatpush1.bf16.xpose.msra.mxu0 0
        %729 = vmatprep.subr.bf16.mxu0 0
        %730 = vmatpush1.bf16.xpose.msra.mxu0 0
        %731 = vmatprep.subr.bf16.mxu0 0
        %732 = vmatpush1.bf16.xpose.msra.mxu0 0
        %733 = vmatprep.subr.bf16.mxu0 0
        %734 = vmatpush1.bf16.xpose.msra.mxu0 0
        %735 = vmatprep.subr.bf16.mxu0 0
        %736 = vmatpush1.bf16.xpose.msra.mxu0 0
        %737 = vmatprep.subr.bf16.mxu0 0
        %738 = vmatpush1.bf16.xpose.msra.mxu0 0
        %739 = vmatprep.subr.bf16.mxu0 0
        %740 = vmatpush1.bf16.xpose.msra.mxu0 0
        %741 = vmatprep.subr.bf16.mxu0 0
        %742 = vmatpush1.bf16.xpose.msra.mxu0 0
        %743 = vmatprep.subr.bf16.mxu0 0
        %744 = vmatpush1.bf16.xpose.msra.mxu0 0
        %745 = vmatprep.subr.bf16.mxu0 0
        %746 = vmatpush1.bf16.xpose.msra.mxu0 0
        %747 = vmatprep.subr.bf16.mxu0 0
        %748 = vmatpush1.bf16.xpose.msra.mxu0 0
        %749 = vmatprep.mubr.bf16.mxu0 0
        %750 = vmatmul.mubr.bf16.gmra.mrb[0].mxu0 %v712
        %v751 = vpop.f32.mrb[0].mxu0
        %v752 = vadd.f32 0.0, %v751
        %v753 = vpop.f32.mrb[0].mxu0
        %v754 = vpop.f32.mrb[0].mxu0
        %v755 = vpop.f32.mrb[0].mxu0
        %756 = vdwg.mxu0
        %v757 = vmul.f32 %v752, 0.35355338
        %v758 = vadd.f32 %v757, %v707
        %v759 = vsel %vm710, %v758, -inf
        %760 = vmax.xlane.f32.xlu0 %v759
        %v761 = vpop.xlane.xlu0 %760
        %v762 = vsub.f32 %v758, %v761
        %v763 = vmul.f32 %v762, 1.442695
        %v764 = vpow.pop %v763
        %v765 = vsel %vm710, %v764, 0.0
        %766 = vadd.xlane.f32.xlu0 %v765
        %v767 = vpop.xlane.xlu0 %766
        %v768 = vadd.f32 %v767, 0.0
        %v769 = vpack.c.bf16 %v764, %v764
        %771 = vrot.lane.b32.xlu0 %v709, 96
        %v772 = vpop.permute.xlu0 %771
        %v774 = vsel %vm710, %v769, 0
        %vm776 = vcmask 1043456
        %v778 = vsel %vm776, %v772, 0
        %780 = vmatprep.subr.bf16.mxu0 0
        %781 = vmatpush1.bf16.msra.mxu0 %v778
        %782 = vmatprep.subr.bf16.mxu0 0
        %783 = vmatpush1.bf16.msra.mxu0 0
        %784 = vmatprep.subr.bf16.mxu0 0
        %785 = vmatpush1.bf16.msra.mxu0 0
        %786 = vmatprep.subr.bf16.mxu0 0
        %787 = vmatpush1.bf16.msra.mxu0 0
        %788 = vmatprep.subr.bf16.mxu0 0
        %789 = vmatpush1.bf16.msra.mxu0 0
        %790 = vmatprep.subr.bf16.mxu0 0
        %791 = vmatpush1.bf16.msra.mxu0 0
        %792 = vmatprep.subr.bf16.mxu0 0
        %793 = vmatpush1.bf16.msra.mxu0 0
        %794 = vmatprep.subr.bf16.mxu0 0
        %795 = vmatpush1.bf16.msra.mxu0 0
        %796 = vmatprep.subr.bf16.mxu0 0
        %797 = vmatpush1.bf16.msra.mxu0 0
        %798 = vmatprep.subr.bf16.mxu0 0
        %799 = vmatpush1.bf16.msra.mxu0 0
        %800 = vmatprep.subr.bf16.mxu0 0
        %801 = vmatpush1.bf16.msra.mxu0 0
        %802 = vmatprep.subr.bf16.mxu0 0
        %803 = vmatpush1.bf16.msra.mxu0 0
        %804 = vmatprep.subr.bf16.mxu0 0
        %805 = vmatpush1.bf16.msra.mxu0 0
        %806 = vmatprep.subr.bf16.mxu0 0
        %807 = vmatpush1.bf16.msra.mxu0 0
        %808 = vmatprep.subr.bf16.mxu0 0
        %809 = vmatpush1.bf16.msra.mxu0 0
        %810 = vmatprep.subr.bf16.mxu0 0
        %811 = vmatpush1.bf16.msra.mxu0 0
        %812 = vmatprep.mubr.bf16.mxu0 0
        %813 = vmatmul.mubr.bf16.gmra.mrb[0].mxu0 %v774
        %v814 = vpop.f32.mrb[0].mxu0
        %v815 = vadd.f32 0.0, %v814
        %v816 = vpop.f32.mrb[0].mxu0
        %v817 = vpop.f32.mrb[0].mxu0
        %v818 = vpop.f32.mrb[0].mxu0
        %819 = vdwg.mxu0
        %v820 = vrcp.pop %v768
        %v821 = vmul.f32 %v815, %v820
        %823 = vrot.lane.b32.xlu0 %v708, 120
        %v824 = vpop.permute.xlu0 %823
        %825 = vrot.lane.b32.xlu0 %v709, 120
        %v826 = vpop.permute.xlu0 %825
        %v828 = vsel %vm710, %v824, 0
        %v831 = vsel %vm710, %v826, 0
        %833 = vmatprep.subr.bf16.mxu0 0
        %834 = vmatpush1.bf16.xpose.msra.mxu0 %v831
        %835 = vmatprep.subr.bf16.mxu0 0
        %836 = vmatpush1.bf16.xpose.msra.mxu0 0
        %837 = vmatprep.subr.bf16.mxu0 0
        %838 = vmatpush1.bf16.xpose.msra.mxu0 0
        %839 = vmatprep.subr.bf16.mxu0 0
        %840 = vmatpush1.bf16.xpose.msra.mxu0 0
        %841 = vmatprep.subr.bf16.mxu0 0
        %842 = vmatpush1.bf16.xpose.msra.mxu0 0
        %843 = vmatprep.subr.bf16.mxu0 0
        %844 = vmatpush1.bf16.xpose.msra.mxu0 0
        %845 = vmatprep.subr.bf16.mxu0 0
        %846 = vmatpush1.bf16.xpose.msra.mxu0 0
        %847 = vmatprep.subr.bf16.mxu0 0
        %848 = vmatpush1.bf16.xpose.msra.mxu0 0
        %849 = vmatprep.subr.bf16.mxu0 0
        %850 = vmatpush1.bf16.xpose.msra.mxu0 0
        %851 = vmatprep.subr.bf16.mxu0 0
        %852 = vmatpush1.bf16.xpose.msra.mxu0 0
        %853 = vmatprep.subr.bf16.mxu0 0
        %854 = vmatpush1.bf16.xpose.msra.mxu0 0
        %855 = vmatprep.subr.bf16.mxu0 0
        %856 = vmatpush1.bf16.xpose.msra.mxu0 0
        %857 = vmatprep.subr.bf16.mxu0 0
        %858 = vmatpush1.bf16.xpose.msra.mxu0 0
        %859 = vmatprep.subr.bf16.mxu0 0
        %860 = vmatpush1.bf16.xpose.msra.mxu0 0
        %861 = vmatprep.subr.bf16.mxu0 0
        %862 = vmatpush1.bf16.xpose.msra.mxu0 0
        %863 = vmatprep.subr.bf16.mxu0 0
        %864 = vmatpush1.bf16.xpose.msra.mxu0 0
        %865 = vmatprep.mubr.bf16.mxu0 0
        %866 = vmatmul.mubr.bf16.gmra.mrb[0].mxu0 %v828
        %v867 = vpop.f32.mrb[0].mxu0
        %v868 = vadd.f32 0.0, %v867
        %v869 = vpop.f32.mrb[0].mxu0
        %v870 = vpop.f32.mrb[0].mxu0
        %v871 = vpop.f32.mrb[0].mxu0
        %872 = vdwg.mxu0
        %v873 = vmul.f32 %v868, 0.35355338
        %v874 = vadd.f32 %v873, %v707
        %v875 = vsel %vm710, %v874, -inf
        %876 = vmax.xlane.f32.xlu0 %v875
        %v877 = vpop.xlane.xlu0 %876
        %v878 = vsub.f32 %v874, %v877
        %v879 = vmul.f32 %v878, 1.442695
        %v880 = vpow.pop %v879
        %v881 = vsel %vm710, %v880, 0.0
        %882 = vadd.xlane.f32.xlu0 %v881
        %v883 = vpop.xlane.xlu0 %882
        %v884 = vadd.f32 %v883, 0.0
        %v885 = vpack.c.bf16 %v880, %v880
        %886 = vrot.lane.b32.xlu0 %v709, 88
        %v887 = vpop.permute.xlu0 %886
        %v889 = vsel %vm710, %v885, 0
        %v892 = vsel %vm776, %v887, 0
        %894 = vmatprep.subr.bf16.mxu0 0
        %895 = vmatpush1.bf16.msra.mxu0 %v892
        %896 = vmatprep.subr.bf16.mxu0 0
        %897 = vmatpush1.bf16.msra.mxu0 0
        %898 = vmatprep.subr.bf16.mxu0 0
        %899 = vmatpush1.bf16.msra.mxu0 0
        %900 = vmatprep.subr.bf16.mxu0 0
        %901 = vmatpush1.bf16.msra.mxu0 0
        %902 = vmatprep.subr.bf16.mxu0 0
        %903 = vmatpush1.bf16.msra.mxu0 0
        %904 = vmatprep.subr.bf16.mxu0 0
        %905 = vmatpush1.bf16.msra.mxu0 0
        %906 = vmatprep.subr.bf16.mxu0 0
        %907 = vmatpush1.bf16.msra.mxu0 0
        %908 = vmatprep.subr.bf16.mxu0 0
        %909 = vmatpush1.bf16.msra.mxu0 0
        %910 = vmatprep.subr.bf16.mxu0 0
        %911 = vmatpush1.bf16.msra.mxu0 0
        %912 = vmatprep.subr.bf16.mxu0 0
        %913 = vmatpush1.bf16.msra.mxu0 0
        %914 = vmatprep.subr.bf16.mxu0 0
        %915 = vmatpush1.bf16.msra.mxu0 0
        %916 = vmatprep.subr.bf16.mxu0 0
        %917 = vmatpush1.bf16.msra.mxu0 0
        %918 = vmatprep.subr.bf16.mxu0 0
        %919 = vmatpush1.bf16.msra.mxu0 0
        %920 = vmatprep.subr.bf16.mxu0 0
        %921 = vmatpush1.bf16.msra.mxu0 0
        %922 = vmatprep.subr.bf16.mxu0 0
        %923 = vmatpush1.bf16.msra.mxu0 0
        %924 = vmatprep.subr.bf16.mxu0 0
        %925 = vmatpush1.bf16.msra.mxu0 0
        %926 = vmatprep.mubr.bf16.mxu0 0
        %927 = vmatmul.mubr.bf16.gmra.mrb[0].mxu0 %v889
        %v928 = vpop.f32.mrb[0].mxu0
        %v929 = vadd.f32 0.0, %v928
        %v930 = vpop.f32.mrb[0].mxu0
        %v931 = vpop.f32.mrb[0].mxu0
        %v932 = vpop.f32.mrb[0].mxu0
        %933 = vdwg.mxu0
        %v934 = vrcp.pop %v884
        %v935 = vmul.f32 %v929, %v934
        %936 = vrot.lane.b32.xlu0 %v708, 112
        %v937 = vpop.permute.xlu0 %936
        %938 = vrot.lane.b32.xlu0 %v709, 112
        %v939 = vpop.permute.xlu0 %938
        %v941 = vsel %vm710, %v937, 0
        %v944 = vsel %vm710, %v939, 0
        %946 = vmatprep.subr.bf16.mxu0 0
        %947 = vmatpush1.bf16.xpose.msra.mxu0 %v944
        %948 = vmatprep.subr.bf16.mxu0 0
        %949 = vmatpush1.bf16.xpose.msra.mxu0 0
        %950 = vmatprep.subr.bf16.mxu0 0
        %951 = vmatpush1.bf16.xpose.msra.mxu0 0
        %952 = vmatprep.subr.bf16.mxu0 0
        %953 = vmatpush1.bf16.xpose.msra.mxu0 0
        %954 = vmatprep.subr.bf16.mxu0 0
        %955 = vmatpush1.bf16.xpose.msra.mxu0 0
        %956 = vmatprep.subr.bf16.mxu0 0
        %957 = vmatpush1.bf16.xpose.msra.mxu0 0
        %958 = vmatprep.subr.bf16.mxu0 0
        %959 = vmatpush1.bf16.xpose.msra.mxu0 0
        %960 = vmatprep.subr.bf16.mxu0 0
        %961 = vmatpush1.bf16.xpose.msra.mxu0 0
        %962 = vmatprep.subr.bf16.mxu0 0
        %963 = vmatpush1.bf16.xpose.msra.mxu0 0
        %964 = vmatprep.subr.bf16.mxu0 0
        %965 = vmatpush1.bf16.xpose.msra.mxu0 0
        %966 = vmatprep.subr.bf16.mxu0 0
        %967 = vmatpush1.bf16.xpose.msra.mxu0 0
        %968 = vmatprep.subr.bf16.mxu0 0
        %969 = vmatpush1.bf16.xpose.msra.mxu0 0
        %970 = vmatprep.subr.bf16.mxu0 0
        %971 = vmatpush1.bf16.xpose.msra.mxu0 0
        %972 = vmatprep.subr.bf16.mxu0 0
        %973 = vmatpush1.bf16.xpose.msra.mxu0 0
        %974 = vmatprep.subr.bf16.mxu0 0
        %975 = vmatpush1.bf16.xpose.msra.mxu0 0
        %976 = vmatprep.subr.bf16.mxu0 0
        %977 = vmatpush1.bf16.xpose.msra.mxu0 0
        %978 = vmatprep.mubr.bf16.mxu0 0
        %979 = vmatmul.mubr.bf16.gmra.mrb[0].mxu0 %v941
        %v980 = vpop.f32.mrb[0].mxu0
        %v981 = vadd.f32 0.0, %v980
        %v982 = vpop.f32.mrb[0].mxu0
        %v983 = vpop.f32.mrb[0].mxu0
        %v984 = vpop.f32.mrb[0].mxu0
        %985 = vdwg.mxu0
        %v986 = vmul.f32 %v981, 0.35355338
        %v987 = vadd.f32 %v986, %v707
        %v988 = vsel %vm710, %v987, -inf
        %989 = vmax.xlane.f32.xlu0 %v988
        %v990 = vpop.xlane.xlu0 %989
        %v991 = vsub.f32 %v987, %v990
        %v992 = vmul.f32 %v991, 1.442695
        %v993 = vpow.pop %v992
        %v994 = vsel %vm710, %v993, 0.0
        %995 = vadd.xlane.f32.xlu0 %v994
        %v996 = vpop.xlane.xlu0 %995
        %v997 = vadd.f32 %v996, 0.0
        %v998 = vpack.c.bf16 %v993, %v993
        %999 = vrot.lane.b32.xlu0 %v709, 80
        %v1000 = vpop.permute.xlu0 %999
        %v1002 = vsel %vm710, %v998, 0
        %v1005 = vsel %vm776, %v1000, 0
        %1007 = vmatprep.subr.bf16.mxu0 0
        %1008 = vmatpush1.bf16.msra.mxu0 %v1005
        %1009 = vmatprep.subr.bf16.mxu0 0
        %1010 = vmatpush1.bf16.msra.mxu0 0
        %1011 = vmatprep.subr.bf16.mxu0 0
        %1012 = vmatpush1.bf16.msra.mxu0 0
        %1013 = vmatprep.subr.bf16.mxu0 0
        %1014 = vmatpush1.bf16.msra.mxu0 0
        %1015 = vmatprep.subr.bf16.mxu0 0
        %1016 = vmatpush1.bf16.msra.mxu0 0
        %1017 = vmatprep.subr.bf16.mxu0 0
        %1018 = vmatpush1.bf16.msra.mxu0 0
        %1019 = vmatprep.subr.bf16.mxu0 0
        %1020 = vmatpush1.bf16.msra.mxu0 0
        %1021 = vmatprep.subr.bf16.mxu0 0
        %1022 = vmatpush1.bf16.msra.mxu0 0
        %1023 = vmatprep.subr.bf16.mxu0 0
        %1024 = vmatpush1.bf16.msra.mxu0 0
        %1025 = vmatprep.subr.bf16.mxu0 0
        %1026 = vmatpush1.bf16.msra.mxu0 0
        %1027 = vmatprep.subr.bf16.mxu0 0
        %1028 = vmatpush1.bf16.msra.mxu0 0
        %1029 = vmatprep.subr.bf16.mxu0 0
        %1030 = vmatpush1.bf16.msra.mxu0 0
        %1031 = vmatprep.subr.bf16.mxu0 0
        %1032 = vmatpush1.bf16.msra.mxu0 0
        %1033 = vmatprep.subr.bf16.mxu0 0
        %1034 = vmatpush1.bf16.msra.mxu0 0
        %1035 = vmatprep.subr.bf16.mxu0 0
        %1036 = vmatpush1.bf16.msra.mxu0 0
        %1037 = vmatprep.subr.bf16.mxu0 0
        %1038 = vmatpush1.bf16.msra.mxu0 0
        %1039 = vmatprep.mubr.bf16.mxu0 0
        %1040 = vmatmul.mubr.bf16.gmra.mrb[0].mxu0 %v1002
        %v1041 = vpop.f32.mrb[0].mxu0
        %v1042 = vadd.f32 0.0, %v1041
        %v1043 = vpop.f32.mrb[0].mxu0
        %v1044 = vpop.f32.mrb[0].mxu0
        %v1045 = vpop.f32.mrb[0].mxu0
        %1046 = vdwg.mxu0
        %v1047 = vrcp.pop %v997
        %v1048 = vmul.f32 %v1042, %v1047
        %1049 = vrot.lane.b32.xlu0 %v708, 104
        %v1050 = vpop.permute.xlu0 %1049
        %1051 = vrot.lane.b32.xlu0 %v709, 104
        %v1052 = vpop.permute.xlu0 %1051
        %v1054 = vsel %vm710, %v1050, 0
        %v1057 = vsel %vm710, %v1052, 0
        %1059 = vmatprep.subr.bf16.mxu0 0
        %1060 = vmatpush1.bf16.xpose.msra.mxu0 %v1057
        %1061 = vmatprep.subr.bf16.mxu0 0
        %1062 = vmatpush1.bf16.xpose.msra.mxu0 0
        %1063 = vmatprep.subr.bf16.mxu0 0
        %1064 = vmatpush1.bf16.xpose.msra.mxu0 0
        %1065 = vmatprep.subr.bf16.mxu0 0
        %1066 = vmatpush1.bf16.xpose.msra.mxu0 0
        %1067 = vmatprep.subr.bf16.mxu0 0
        %1068 = vmatpush1.bf16.xpose.msra.mxu0 0
        %1069 = vmatprep.subr.bf16.mxu0 0
        %1070 = vmatpush1.bf16.xpose.msra.mxu0 0
        %1071 = vmatprep.subr.bf16.mxu0 0
        %1072 = vmatpush1.bf16.xpose.msra.mxu0 0
        %1073 = vmatprep.subr.bf16.mxu0 0
        %1074 = vmatpush1.bf16.xpose.msra.mxu0 0
        %1075 = vmatprep.subr.bf16.mxu0 0
        %1076 = vmatpush1.bf16.xpose.msra.mxu0 0
        %1077 = vmatprep.subr.bf16.mxu0 0
        %1078 = vmatpush1.bf16.xpose.msra.mxu0 0
        %1079 = vmatprep.subr.bf16.mxu0 0
        %1080 = vmatpush1.bf16.xpose.msra.mxu0 0
        %1081 = vmatprep.subr.bf16.mxu0 0
        %1082 = vmatpush1.bf16.xpose.msra.mxu0 0
        %1083 = vmatprep.subr.bf16.mxu0 0
        %1084 = vmatpush1.bf16.xpose.msra.mxu0 0
        %1085 = vmatprep.subr.bf16.mxu0 0
        %1086 = vmatpush1.bf16.xpose.msra.mxu0 0
        %1087 = vmatprep.subr.bf16.mxu0 0
        %1088 = vmatpush1.bf16.xpose.msra.mxu0 0
        %1089 = vmatprep.subr.bf16.mxu0 0
        %1090 = vmatpush1.bf16.xpose.msra.mxu0 0
        %1091 = vmatprep.mubr.bf16.mxu0 0
        %1092 = vmatmul.mubr.bf16.gmra.mrb[0].mxu0 %v1054
        %v1093 = vpop.f32.mrb[0].mxu0
        %v1094 = vadd.f32 0.0, %v1093
        %v1095 = vpop.f32.mrb[0].mxu0
        %v1096 = vpop.f32.mrb[0].mxu0
        %v1097 = vpop.f32.mrb[0].mxu0
        %1098 = vdwg.mxu0
        %v1099 = vmul.f32 %v1094, 0.35355338
        %v1100 = vadd.f32 %v1099, %v707
        %v1101 = vsel %vm710, %v1100, -inf
        %1102 = vmax.xlane.f32.xlu0 %v1101
        %v1103 = vpop.xlane.xlu0 %1102
        %v1104 = vsub.f32 %v1100, %v1103
        %v1105 = vmul.f32 %v1104, 1.442695
        %v1106 = vpow.pop %v1105
        %v1107 = vsel %vm710, %v1106, 0.0
        %1108 = vadd.xlane.f32.xlu0 %v1107
        %v1109 = vpop.xlane.xlu0 %1108
        %v1110 = vadd.f32 %v1109, 0.0
        %v1111 = vpack.c.bf16 %v1106, %v1106
        %1112 = vrot.lane.b32.xlu0 %v709, 72
        %v1113 = vpop.permute.xlu0 %1112
        %v1115 = vsel %vm710, %v1111, 0
        %v1118 = vsel %vm776, %v1113, 0
        %1120 = vmatprep.subr.bf16.mxu0 0
        %1121 = vmatpush1.bf16.msra.mxu0 %v1118
        %1122 = vmatprep.subr.bf16.mxu0 0
        %1123 = vmatpush1.bf16.msra.mxu0 0
        %1124 = vmatprep.subr.bf16.mxu0 0
        %1125 = vmatpush1.bf16.msra.mxu0 0
        %1126 = vmatprep.subr.bf16.mxu0 0
        %1127 = vmatpush1.bf16.msra.mxu0 0
        %1128 = vmatprep.subr.bf16.mxu0 0
        %1129 = vmatpush1.bf16.msra.mxu0 0
        %1130 = vmatprep.subr.bf16.mxu0 0
        %1131 = vmatpush1.bf16.msra.mxu0 0
        %1132 = vmatprep.subr.bf16.mxu0 0
        %1133 = vmatpush1.bf16.msra.mxu0 0
        %1134 = vmatprep.subr.bf16.mxu0 0
        %1135 = vmatpush1.bf16.msra.mxu0 0
        %1136 = vmatprep.subr.bf16.mxu0 0
        %1137 = vmatpush1.bf16.msra.mxu0 0
        %1138 = vmatprep.subr.bf16.mxu0 0
        %1139 = vmatpush1.bf16.msra.mxu0 0
        %1140 = vmatprep.subr.bf16.mxu0 0
        %1141 = vmatpush1.bf16.msra.mxu0 0
        %1142 = vmatprep.subr.bf16.mxu0 0
        %1143 = vmatpush1.bf16.msra.mxu0 0
        %1144 = vmatprep.subr.bf16.mxu0 0
        %1145 = vmatpush1.bf16.msra.mxu0 0
        %1146 = vmatprep.subr.bf16.mxu0 0
        %1147 = vmatpush1.bf16.msra.mxu0 0
        %1148 = vmatprep.subr.bf16.mxu0 0
        %1149 = vmatpush1.bf16.msra.mxu0 0
        %1150 = vmatprep.subr.bf16.mxu0 0
        %1151 = vmatpush1.bf16.msra.mxu0 0
        %1152 = vmatprep.mubr.bf16.mxu0 0
        %1153 = vmatmul.mubr.bf16.gmra.mrb[0].mxu0 %v1115
        %v1154 = vpop.f32.mrb[0].mxu0
        %v1155 = vadd.f32 0.0, %v1154
        %v1156 = vpop.f32.mrb[0].mxu0
        %v1157 = vpop.f32.mrb[0].mxu0
        %v1158 = vpop.f32.mrb[0].mxu0
        %1159 = vdwg.mxu0
        %v1160 = vrcp.pop %v1110
        %v1161 = vmul.f32 %v1155, %v1160
        %1163 = vrot.lane.b32.xlu0 %v935, 8
        %v1164 = vpop.permute.xlu0 %1163
        %1167 = vrot.lane.b32.xlu0 %v1048, 16
        %v1168 = vpop.permute.xlu0 %1167
        %1171 = vrot.lane.b32.xlu0 %v1161, 24
        %v1172 = vpop.permute.xlu0 %1171
        %v1174 = vsel %vm710, %v821, %v1164
        %vm1175 = vcmask 130048
        %v1176 = vsel %vm1175, %v1174, %v1168
        %vm1177 = vcmask 195584
        %v1178 = vsel %vm1177, %v1176, %v1172
        %v1179 = vpack.c.bf16 %v1178, %v1178
        %v1180 = vld [vmem:[%s7] sm:$0xf]
        %v1181 = vld [vmem:[%s7 + $0x4] sm:$0xf]
        %v1182 = vld [vmem:[%s7 + $0x8] sm:$0xf]
        %v1183 = vld [vmem:[%s7 + $0xc] sm:$0xf]
        %v1184 = vlaneseq
        %v1185 = vshrl.u32 %v1184, 7
        %v1186 = vsub.s32 4, %v1185
        %v1187 = vrot.slane %v539, %v1186
        %v1192 = vunpack.c.l.b16 %v1180
        %v1193 = vunpack.c.l.b16 %v1181
        %v1194 = vunpack.c.l.b16 %v1182
        %v1195 = vunpack.c.l.b16 %v1183
        %v1196 = vpack.c.b16 %v1193, %v1192
        %v1197 = vpack.c.b16 %v1195, %v1194
        %v1201 = vsel %vm547, %v1179, 0
        %1203 = vmatprep.subr.bf16.mxu0 0
        %1204 = vmatpush1.bf16.msra.mxu0 %v1196
        %1205 = vmatprep.subr.bf16.mxu0 0
        %1206 = vmatpush1.bf16.msra.mxu0 %v1197
        %1207 = vmatprep.subr.bf16.mxu0 0
        %1208 = vmatpush1.bf16.msra.mxu0 0
        %1209 = vmatprep.subr.bf16.mxu0 0
        %1210 = vmatpush1.bf16.msra.mxu0 0
        %1211 = vmatprep.subr.bf16.mxu0 0
        %1212 = vmatpush1.bf16.msra.mxu0 0
        %1213 = vmatprep.subr.bf16.mxu0 0
        %1214 = vmatpush1.bf16.msra.mxu0 0
        %1215 = vmatprep.subr.bf16.mxu0 0
        %1216 = vmatpush1.bf16.msra.mxu0 0
        %1217 = vmatprep.subr.bf16.mxu0 0
        %1218 = vmatpush1.bf16.msra.mxu0 0
        %1219 = vmatprep.subr.bf16.mxu0 0
        %1220 = vmatpush1.bf16.msra.mxu0 0
        %1221 = vmatprep.subr.bf16.mxu0 0
        %1222 = vmatpush1.bf16.msra.mxu0 0
        %1223 = vmatprep.subr.bf16.mxu0 0
        %1224 = vmatpush1.bf16.msra.mxu0 0
        %1225 = vmatprep.subr.bf16.mxu0 0
        %1226 = vmatpush1.bf16.msra.mxu0 0
        %1227 = vmatprep.subr.bf16.mxu0 0
        %1228 = vmatpush1.bf16.msra.mxu0 0
        %1229 = vmatprep.subr.bf16.mxu0 0
        %1230 = vmatpush1.bf16.msra.mxu0 0
        %1231 = vmatprep.subr.bf16.mxu0 0
        %1232 = vmatpush1.bf16.msra.mxu0 0
        %1233 = vmatprep.subr.bf16.mxu0 0
        %1234 = vmatpush1.bf16.msra.mxu0 0
        %1235 = vmatprep.mubr.bf16.mxu0 0
        %1236 = vmatmul.mubr.bf16.gmra.mrb[0].mxu0 %v1201
        %v1237 = vpop.f32.mrb[0].mxu0
        %v1238 = vadd.f32 %v1187, %v1237
        %v1239 = vpop.f32.mrb[0].mxu0
        %v1240 = vpop.f32.mrb[0].mxu0
        %v1241 = vpop.f32.mrb[0].mxu0
        %1242 = vdwg.mxu0
        %vm1243 = vcmp.gt.s32.totalorder %v545, 0
        %v1244 = vsel %vm1243, 1, 0
        %v1245 = vcvt.s32.f32 %v1244
        %1247 = vset.pattern.permute.xlu0 0
        %1248 = vperm.xlu0 %1247, %v1245
        %v1249 = vpop.permute.xlu0 %1248
        %v1251 = vmul.f32 %v1238, %v1249
        %v1252 = vtanh.pop %v539
        %v1254 = vrot.slane %v1252, 5
        %s1255 = vtos %v1254
        %v1256 = vstv %s1255
        %v1258 = vmul.f32 %v1256, %v1251
        %v1259 = vadd.f32 %v543, %v1258
        %v1260 = vsel %vm547, %v1259, 0.0
        %1261 = vadd.xlane.f32.xlu0 %v1260
        %v1262 = vpop.xlane.xlu0 %1261
        %v1263 = vmul.f32 %v1262, %v551
        %v1264 = vsub.f32 %v1259, %v1263
        %v1265 = vmul.f32 %v1264, %v1264
        %v1266 = vsel %vm547, %v1265, 0.0
        %1267 = vadd.xlane.f32.xlu0 %v1266
        %v1268 = vpop.xlane.xlu0 %1267
        %v1269 = vmul.f32 %v1268, %v551
        %v1270 = vadd.f32 %v1269, 1e-05
        %v1271 = vrsqrt.pop %v1270
        %v1272 = vmul.f32 %v1264, %v1271
        %v1273 = vlaneseq
        %v1274 = vshrl.u32 %v1273, 7
        %v1275 = vsub.s32 6, %v1274
        %v1276 = vrot.slane %v539, %v1275
        %v1277 = vmul.f32 %v1272, %v1276
        %v1278 = vlaneseq
        %v1279 = vshrl.u32 %v1278, 7
        %v1280 = vsub.s32 7, %v1279
        %v1281 = vrot.slane %v539, %v1280
        %v1282 = vadd.f32 %v1277, %v1281
        %v1283 = vpack.c.bf16 %v1282, %v1282
        %v1284 = vld [vmem:[%s8] sm:$0xf]
        %v1285 = vld [vmem:[%s8 + $0x4] sm:$0xf]
        %v1286 = vld [vmem:[%s8 + $0x8] sm:$0xf]
        %v1287 = vld [vmem:[%s8 + $0xc] sm:$0xf]
        %v1288 = vlaneseq
        %v1289 = vshrl.u32 %v1288, 7
        %v1290 = vsub.s32 0, %v1289
        %v1291 = vrot.slane %v540, %v1290
        %v1296 = vunpack.c.l.b16 %v1284
        %v1297 = vunpack.c.l.b16 %v1285
        %v1298 = vunpack.c.l.b16 %v1286
        %v1299 = vunpack.c.l.b16 %v1287
        %v1300 = vpack.c.b16 %v1297, %v1296
        %v1301 = vpack.c.b16 %v1299, %v1298
        %v1305 = vsel %vm547, %v1283, 0
        %1307 = vmatprep.subr.bf16.mxu0 0
        %1308 = vmatpush1.bf16.msra.mxu0 %v1300
        %1309 = vmatprep.subr.bf16.mxu0 0
        %1310 = vmatpush1.bf16.msra.mxu0 %v1301
        %1311 = vmatprep.subr.bf16.mxu0 0
        %1312 = vmatpush1.bf16.msra.mxu0 0
        %1313 = vmatprep.subr.bf16.mxu0 0
        %1314 = vmatpush1.bf16.msra.mxu0 0
        %1315 = vmatprep.subr.bf16.mxu0 0
        %1316 = vmatpush1.bf16.msra.mxu0 0
        %1317 = vmatprep.subr.bf16.mxu0 0
        %1318 = vmatpush1.bf16.msra.mxu0 0
        %1319 = vmatprep.subr.bf16.mxu0 0
        %1320 = vmatpush1.bf16.msra.mxu0 0
        %1321 = vmatprep.subr.bf16.mxu0 0
        %1322 = vmatpush1.bf16.msra.mxu0 0
        %1323 = vmatprep.subr.bf16.mxu0 0
        %1324 = vmatpush1.bf16.msra.mxu0 0
        %1325 = vmatprep.subr.bf16.mxu0 0
        %1326 = vmatpush1.bf16.msra.mxu0 0
        %1327 = vmatprep.subr.bf16.mxu0 0
        %1328 = vmatpush1.bf16.msra.mxu0 0
        %1329 = vmatprep.subr.bf16.mxu0 0
        %1330 = vmatpush1.bf16.msra.mxu0 0
        %1331 = vmatprep.subr.bf16.mxu0 0
        %1332 = vmatpush1.bf16.msra.mxu0 0
        %1333 = vmatprep.subr.bf16.mxu0 0
        %1334 = vmatpush1.bf16.msra.mxu0 0
        %1335 = vmatprep.subr.bf16.mxu0 0
        %1336 = vmatpush1.bf16.msra.mxu0 0
        %1337 = vmatprep.subr.bf16.mxu0 0
        %1338 = vmatpush1.bf16.msra.mxu0 0
        %1339 = vmatprep.mubr.bf16.mxu0 0
        %1340 = vmatmul.mubr.bf16.gmra.mrb[0].mxu0 %v1305
        %v1341 = vpop.f32.mrb[0].mxu0
        %v1342 = vadd.f32 %v1291, %v1341
        %v1343 = vpop.f32.mrb[0].mxu0
        %v1344 = vpop.f32.mrb[0].mxu0
        %v1345 = vpop.f32.mrb[0].mxu0
        %1346 = vdwg.mxu0
        %v1347 = vmul.f32 %v1342, %v1342
        %v1348 = vmul.f32 %v1342, %v1347
        %v1349 = vmul.f32 %v1348, 0.044715
        %v1350 = vadd.f32 %v1342, %v1349
        %v1351 = vmul.f32 %v1350, 0.7978846
        %v1352 = vtanh.pop %v1351
        %v1353 = vadd.f32 %v1352, 1.0
        %v1354 = vmul.f32 %v1353, 0.5
        %v1355 = vmul.f32 %v1342, %v1354
        %v1356 = vpack.c.bf16 %v1355, %v1355
        %v1357 = vld [vmem:[%s9] sm:$0xf]
        %v1358 = vld [vmem:[%s9 + $0x4] sm:$0xf]
        %v1359 = vld [vmem:[%s9 + $0x8] sm:$0xf]
        %v1360 = vld [vmem:[%s9 + $0xc] sm:$0xf]
        %v1361 = vld [vmem:[%s9 + $0x10] sm:$0xf]
        %v1362 = vld [vmem:[%s9 + $0x14] sm:$0xf]
        %v1363 = vld [vmem:[%s9 + $0x18] sm:$0xf]
        %v1364 = vld [vmem:[%s9 + $0x1c] sm:$0xf]
        %v1365 = vld [vmem:[%s9 + $0x20] sm:$0xf]
        %v1366 = vld [vmem:[%s9 + $0x24] sm:$0xf]
        %v1367 = vld [vmem:[%s9 + $0x28] sm:$0xf]
        %v1368 = vld [vmem:[%s9 + $0x2c] sm:$0xf]
        %v1369 = vld [vmem:[%s9 + $0x30] sm:$0xf]
        %v1370 = vld [vmem:[%s9 + $0x34] sm:$0xf]
        %v1371 = vld [vmem:[%s9 + $0x38] sm:$0xf]
        %v1372 = vld [vmem:[%s9 + $0x3c] sm:$0xf]
        %v1373 = vlaneseq
        %v1374 = vshrl.u32 %v1373, 7
        %v1375 = vsub.s32 1, %v1374
        %v1376 = vrot.slane %v540, %v1375
        %v1393 = vunpack.c.l.b16 %v1357
        %v1394 = vunpack.c.l.b16 %v1358
        %v1395 = vunpack.c.l.b16 %v1359
        %v1396 = vunpack.c.l.b16 %v1360
        %v1397 = vunpack.c.l.b16 %v1361
        %v1398 = vunpack.c.l.b16 %v1362
        %v1399 = vunpack.c.l.b16 %v1363
        %v1400 = vunpack.c.l.b16 %v1364
        %v1401 = vunpack.c.l.b16 %v1365
        %v1402 = vunpack.c.l.b16 %v1366
        %v1403 = vunpack.c.l.b16 %v1367
        %v1404 = vunpack.c.l.b16 %v1368
        %v1405 = vunpack.c.l.b16 %v1369
        %v1406 = vunpack.c.l.b16 %v1370
        %v1407 = vunpack.c.l.b16 %v1371
        %v1408 = vunpack.c.l.b16 %v1372
        %v1409 = vpack.c.b16 %v1394, %v1393
        %v1410 = vpack.c.b16 %v1396, %v1395
        %v1411 = vpack.c.b16 %v1398, %v1397
        %v1412 = vpack.c.b16 %v1400, %v1399
        %v1413 = vpack.c.b16 %v1402, %v1401
        %v1414 = vpack.c.b16 %v1404, %v1403
        %v1415 = vpack.c.b16 %v1406, %v1405
        %v1416 = vpack.c.b16 %v1408, %v1407
        %1425 = vmatprep.subr.bf16.mxu0 0
        %1426 = vmatpush1.bf16.msra.mxu0 %v1409
        %1427 = vmatprep.subr.bf16.mxu0 0
        %1428 = vmatpush1.bf16.msra.mxu0 %v1410
        %1429 = vmatprep.subr.bf16.mxu0 0
        %1430 = vmatpush1.bf16.msra.mxu0 %v1411
        %1431 = vmatprep.subr.bf16.mxu0 0
        %1432 = vmatpush1.bf16.msra.mxu0 %v1412
        %1433 = vmatprep.subr.bf16.mxu0 0
        %1434 = vmatpush1.bf16.msra.mxu0 %v1413
        %1435 = vmatprep.subr.bf16.mxu0 0
        %1436 = vmatpush1.bf16.msra.mxu0 %v1414
        %1437 = vmatprep.subr.bf16.mxu0 0
        %1438 = vmatpush1.bf16.msra.mxu0 %v1415
        %1439 = vmatprep.subr.bf16.mxu0 0
        %1440 = vmatpush1.bf16.msra.mxu0 %v1416
        %1441 = vmatprep.subr.bf16.mxu0 0
        %1442 = vmatpush1.bf16.msra.mxu0 0
        %1443 = vmatprep.subr.bf16.mxu0 0
        %1444 = vmatpush1.bf16.msra.mxu0 0
        %1445 = vmatprep.subr.bf16.mxu0 0
        %1446 = vmatpush1.bf16.msra.mxu0 0
        %1447 = vmatprep.subr.bf16.mxu0 0
        %1448 = vmatpush1.bf16.msra.mxu0 0
        %1449 = vmatprep.subr.bf16.mxu0 0
        %1450 = vmatpush1.bf16.msra.mxu0 0
        %1451 = vmatprep.subr.bf16.mxu0 0
        %1452 = vmatpush1.bf16.msra.mxu0 0
        %1453 = vmatprep.subr.bf16.mxu0 0
        %1454 = vmatpush1.bf16.msra.mxu0 0
        %1455 = vmatprep.subr.bf16.mxu0 0
        %1456 = vmatpush1.bf16.msra.mxu0 0
        %1457 = vmatprep.mubr.bf16.mxu0 0
        %1458 = vmatmul.mubr.bf16.gmra.mrb[0].mxu0 %v1356
        %v1459 = vpop.f32.mrb[0].mxu0
        %v1460 = vadd.f32 %v1376, %v1459
        %v1461 = vpop.f32.mrb[0].mxu0
        %v1462 = vpop.f32.mrb[0].mxu0
        %v1463 = vpop.f32.mrb[0].mxu0
        %1464 = vdwg.mxu0
        %1465 = vrot.lane.b32.xlu0 %v1254, 127
        %v1466 = vpop.permute.xlu0 %1465
        %s1467 = vtos %v1466
        %v1468 = vstv %s1467
        %v1470 = vmul.f32 %v1468, %v1460
        %v1471 = vadd.f32 %v1259, %v1470
        %v1472 = vsel %vm547, %v1471, 0.0
        %1473 = vadd.xlane.f32.xlu0 %v1472
        %v1474 = vpop.xlane.xlu0 %1473
        %v1475 = vmul.f32 %v1474, %v551
        %v1476 = vsub.f32 %v1471, %v1475
        %v1477 = vmul.f32 %v1476, %v1476
        %v1478 = vsel %vm547, %v1477, 0.0
        %1479 = vadd.xlane.f32.xlu0 %v1478
        %v1480 = vpop.xlane.xlu0 %1479
        %v1481 = vmul.f32 %v1480, %v551
        %v1482 = vadd.f32 %v1481, 1e-05
        %v1483 = vrsqrt.pop %v1482
        %v1484 = vmul.f32 %v1476, %v1483
        %v1485 = vlaneseq
        %v1486 = vshrl.u32 %v1485, 7
        %v1487 = vsub.s32 2, %v1486
        %v1488 = vrot.slane %v540, %v1487
        %v1489 = vmul.f32 %v1484, %v1488
        %v1490 = vlaneseq
        %v1491 = vshrl.u32 %v1490, 7
        %v1492 = vsub.s32 3, %v1491
        %v1493 = vrot.slane %v540, %v1492
        %v1494 = vadd.f32 %v1489, %v1493
        %v1495 = vpack.c.bf16 %v1494, %v1494
        %v1496 = vld [vmem:[%s10] sm:$0xf]
        %v1497 = vld [vmem:[%s10 + $0x4] sm:$0xf]
        %v1498 = vld [vmem:[%s10 + $0x8] sm:$0xf]
        %v1499 = vld [vmem:[%s10 + $0xc] sm:$0xf]
        %v1500 = vlaneseq
        %v1501 = vshrl.u32 %v1500, 7
        %v1502 = vsub.s32 4, %v1501
        %v1503 = vrot.slane %v540, %v1502
        %v1508 = vunpack.c.l.b16 %v1496
        %v1509 = vunpack.c.l.b16 %v1497
        %v1510 = vunpack.c.l.b16 %v1498
        %v1511 = vunpack.c.l.b16 %v1499
        %v1512 = vpack.c.b16 %v1509, %v1508
        %v1513 = vpack.c.b16 %v1511, %v1510
        %v1517 = vsel %vm547, %v1495, 0
        %1519 = vmatprep.subr.bf16.mxu0 0
        %1520 = vmatpush1.bf16.msra.mxu0 %v1512
        %1521 = vmatprep.subr.bf16.mxu0 0
        %1522 = vmatpush1.bf16.msra.mxu0 %v1513
        %1523 = vmatprep.subr.bf16.mxu0 0
        %1524 = vmatpush1.bf16.msra.mxu0 0
        %1525 = vmatprep.subr.bf16.mxu0 0
        %1526 = vmatpush1.bf16.msra.mxu0 0
        %1527 = vmatprep.subr.bf16.mxu0 0
        %1528 = vmatpush1.bf16.msra.mxu0 0
        %1529 = vmatprep.subr.bf16.mxu0 0
        %1530 = vmatpush1.bf16.msra.mxu0 0
        %1531 = vmatprep.subr.bf16.mxu0 0
        %1532 = vmatpush1.bf16.msra.mxu0 0
        %1533 = vmatprep.subr.bf16.mxu0 0
        %1534 = vmatpush1.bf16.msra.mxu0 0
        %1535 = vmatprep.subr.bf16.mxu0 0
        %1536 = vmatpush1.bf16.msra.mxu0 0
        %1537 = vmatprep.subr.bf16.mxu0 0
        %1538 = vmatpush1.bf16.msra.mxu0 0
        %1539 = vmatprep.subr.bf16.mxu0 0
        %1540 = vmatpush1.bf16.msra.mxu0 0
        %1541 = vmatprep.subr.bf16.mxu0 0
        %1542 = vmatpush1.bf16.msra.mxu0 0
        %1543 = vmatprep.subr.bf16.mxu0 0
        %1544 = vmatpush1.bf16.msra.mxu0 0
        %1545 = vmatprep.subr.bf16.mxu0 0
        %1546 = vmatpush1.bf16.msra.mxu0 0
        %1547 = vmatprep.subr.bf16.mxu0 0
        %1548 = vmatpush1.bf16.msra.mxu0 0
        %1549 = vmatprep.subr.bf16.mxu0 0
        %1550 = vmatpush1.bf16.msra.mxu0 0
        %1551 = vmatprep.mubr.bf16.mxu0 0
        %1552 = vmatmul.mubr.bf16.gmra.mrb[0].mxu0 %v1517
        %v1553 = vpop.f32.mrb[0].mxu0
        %v1554 = vadd.f32 %v1503, %v1553
        %v1555 = vpop.f32.mrb[0].mxu0
        %v1556 = vpop.f32.mrb[0].mxu0
        %v1557 = vpop.f32.mrb[0].mxu0
        %1558 = vdwg.mxu0
        %v1559 = vlaneseq
        %v1560 = vshrl.u32 %v1559, 7
        %vm1561 = vcmp.ge.s32.totalorder %v1560, %v700
        %vm1562 = vcmp.gt.s32.totalorder %v546, 0
        %v1563 = vsel %vm1562, 1, 0
        %v1564 = vlaneseq
        %v1565 = vshrl.u32 %v1564, 7
        %v1566 = vsub.s32 0, %v1565
        %v1567 = vrot.slane %v1563, %v1566
        %vm1568 = vcmp.eq.s32.totalorder %v1567, 1
        %vm1569 = vmand %vm1561, %vm1568
        %v1570 = vsel %vm1569, 0.0, -1e+09
        %v1571 = vpack.c.bf16 %v1554, %v1554
        %1573 = vrot.lane.b32.xlu0 %v1571, 96
        %v1574 = vpop.permute.xlu0 %1573
        %v1576 = vsel %vm710, %v1571, 0
        %v1579 = vsel %vm710, %v1574, 0
        %1581 = vmatprep.subr.bf16.mxu0 0
        %1582 = vmatpush1.bf16.xpose.msra.mxu0 %v1579
        %1583 = vmatprep.subr.bf16.mxu0 0
        %1584 = vmatpush1.bf16.xpose.msra.mxu0 0
        %1585 = vmatprep.subr.bf16.mxu0 0
        %1586 = vmatpush1.bf16.xpose.msra.mxu0 0
        %1587 = vmatprep.subr.bf16.mxu0 0
        %1588 = vmatpush1.bf16.xpose.msra.mxu0 0
        %1589 = vmatprep.subr.bf16.mxu0 0
        %1590 = vmatpush1.bf16.xpose.msra.mxu0 0
        %1591 = vmatprep.subr.bf16.mxu0 0
        %1592 = vmatpush1.bf16.xpose.msra.mxu0 0
        %1593 = vmatprep.subr.bf16.mxu0 0
        %1594 = vmatpush1.bf16.xpose.msra.mxu0 0
        %1595 = vmatprep.subr.bf16.mxu0 0
        %1596 = vmatpush1.bf16.xpose.msra.mxu0 0
        %1597 = vmatprep.subr.bf16.mxu0 0
        %1598 = vmatpush1.bf16.xpose.msra.mxu0 0
        %1599 = vmatprep.subr.bf16.mxu0 0
        %1600 = vmatpush1.bf16.xpose.msra.mxu0 0
        %1601 = vmatprep.subr.bf16.mxu0 0
        %1602 = vmatpush1.bf16.xpose.msra.mxu0 0
        %1603 = vmatprep.subr.bf16.mxu0 0
        %1604 = vmatpush1.bf16.xpose.msra.mxu0 0
        %1605 = vmatprep.subr.bf16.mxu0 0
        %1606 = vmatpush1.bf16.xpose.msra.mxu0 0
        %1607 = vmatprep.subr.bf16.mxu0 0
        %1608 = vmatpush1.bf16.xpose.msra.mxu0 0
        %1609 = vmatprep.subr.bf16.mxu0 0
        %1610 = vmatpush1.bf16.xpose.msra.mxu0 0
        %1611 = vmatprep.subr.bf16.mxu0 0
        %1612 = vmatpush1.bf16.xpose.msra.mxu0 0
        %1613 = vmatprep.mubr.bf16.mxu0 0
        %1614 = vmatmul.mubr.bf16.gmra.mrb[0].mxu0 %v1576
        %v1615 = vpop.f32.mrb[0].mxu0
        %v1616 = vadd.f32 0.0, %v1615
        %v1617 = vpop.f32.mrb[0].mxu0
        %v1618 = vpop.f32.mrb[0].mxu0
        %v1619 = vpop.f32.mrb[0].mxu0
        %1620 = vdwg.mxu0
        %v1621 = vmul.f32 %v1616, 0.35355338
        %v1622 = vadd.f32 %v1621, %v1570
        %v1623 = vsel %vm710, %v1622, -inf
        %1624 = vmax.xlane.f32.xlu0 %v1623
        %v1625 = vpop.xlane.xlu0 %1624
        %v1626 = vsub.f32 %v1622, %v1625
        %v1627 = vmul.f32 %v1626, 1.442695
        %v1628 = vpow.pop %v1627
        %v1629 = vsel %vm710, %v1628, 0.0
        %1630 = vadd.xlane.f32.xlu0 %v1629
        %v1631 = vpop.xlane.xlu0 %1630
        %v1632 = vadd.f32 %v1631, 0.0
        %v1633 = vpack.c.bf16 %v1628, %v1628
        %1634 = vrot.lane.b32.xlu0 %v1571, 64
        %v1635 = vpop.permute.xlu0 %1634
        %v1637 = vsel %vm710, %v1633, 0
        %v1640 = vsel %vm776, %v1635, 0
        %1642 = vmatprep.subr.bf16.mxu0 0
        %1643 = vmatpush1.bf16.msra.mxu0 %v1640
        %1644 = vmatprep.subr.bf16.mxu0 0
        %1645 = vmatpush1.bf16.msra.mxu0 0
        %1646 = vmatprep.subr.bf16.mxu0 0
        %1647 = vmatpush1.bf16.msra.mxu0 0
        %1648 = vmatprep.subr.bf16.mxu0 0
        %1649 = vmatpush1.bf16.msra.mxu0 0
        %1650 = vmatprep.subr.bf16.mxu0 0
        %1651 = vmatpush1.bf16.msra.mxu0 0
        %1652 = vmatprep.subr.bf16.mxu0 0
        %1653 = vmatpush1.bf16.msra.mxu0 0
        %1654 = vmatprep.subr.bf16.mxu0 0
        %1655 = vmatpush1.bf16.msra.mxu0 0
        %1656 = vmatprep.subr.bf16.mxu0 0
        %1657 = vmatpush1.bf16.msra.mxu0 0
        %1658 = vmatprep.subr.bf16.mxu0 0
        %1659 = vmatpush1.bf16.msra.mxu0 0
        %1660 = vmatprep.subr.bf16.mxu0 0
        %1661 = vmatpush1.bf16.msra.mxu0 0
        %1662 = vmatprep.subr.bf16.mxu0 0
        %1663 = vmatpush1.bf16.msra.mxu0 0
        %1664 = vmatprep.subr.bf16.mxu0 0
        %1665 = vmatpush1.bf16.msra.mxu0 0
        %1666 = vmatprep.subr.bf16.mxu0 0
        %1667 = vmatpush1.bf16.msra.mxu0 0
        %1668 = vmatprep.subr.bf16.mxu0 0
        %1669 = vmatpush1.bf16.msra.mxu0 0
        %1670 = vmatprep.subr.bf16.mxu0 0
        %1671 = vmatpush1.bf16.msra.mxu0 0
        %1672 = vmatprep.subr.bf16.mxu0 0
        %1673 = vmatpush1.bf16.msra.mxu0 0
        %1674 = vmatprep.mubr.bf16.mxu0 0
        %1675 = vmatmul.mubr.bf16.gmra.mrb[0].mxu0 %v1637
        %v1676 = vpop.f32.mrb[0].mxu0
        %v1677 = vadd.f32 0.0, %v1676
        %v1678 = vpop.f32.mrb[0].mxu0
        %v1679 = vpop.f32.mrb[0].mxu0
        %v1680 = vpop.f32.mrb[0].mxu0
        %1681 = vdwg.mxu0
        %v1682 = vrcp.pop %v1632
        %v1683 = vmul.f32 %v1677, %v1682
        %1684 = vrot.lane.b32.xlu0 %v1571, 120
        %v1685 = vpop.permute.xlu0 %1684
        %1686 = vrot.lane.b32.xlu0 %v1571, 88
        %v1687 = vpop.permute.xlu0 %1686
        %v1689 = vsel %vm710, %v1685, 0
        %v1692 = vsel %vm710, %v1687, 0
        %1694 = vmatprep.subr.bf16.mxu0 0
        %1695 = vmatpush1.bf16.xpose.msra.mxu0 %v1692
        %1696 = vmatprep.subr.bf16.mxu0 0
        %1697 = vmatpush1.bf16.xpose.msra.mxu0 0
        %1698 = vmatprep.subr.bf16.mxu0 0
        %1699 = vmatpush1.bf16.xpose.msra.mxu0 0
        %1700 = vmatprep.subr.bf16.mxu0 0
        %1701 = vmatpush1.bf16.xpose.msra.mxu0 0
        %1702 = vmatprep.subr.bf16.mxu0 0
        %1703 = vmatpush1.bf16.xpose.msra.mxu0 0
        %1704 = vmatprep.subr.bf16.mxu0 0
        %1705 = vmatpush1.bf16.xpose.msra.mxu0 0
        %1706 = vmatprep.subr.bf16.mxu0 0
        %1707 = vmatpush1.bf16.xpose.msra.mxu0 0
        %1708 = vmatprep.subr.bf16.mxu0 0
        %1709 = vmatpush1.bf16.xpose.msra.mxu0 0
        %1710 = vmatprep.subr.bf16.mxu0 0
        %1711 = vmatpush1.bf16.xpose.msra.mxu0 0
        %1712 = vmatprep.subr.bf16.mxu0 0
        %1713 = vmatpush1.bf16.xpose.msra.mxu0 0
        %1714 = vmatprep.subr.bf16.mxu0 0
        %1715 = vmatpush1.bf16.xpose.msra.mxu0 0
        %1716 = vmatprep.subr.bf16.mxu0 0
        %1717 = vmatpush1.bf16.xpose.msra.mxu0 0
        %1718 = vmatprep.subr.bf16.mxu0 0
        %1719 = vmatpush1.bf16.xpose.msra.mxu0 0
        %1720 = vmatprep.subr.bf16.mxu0 0
        %1721 = vmatpush1.bf16.xpose.msra.mxu0 0
        %1722 = vmatprep.subr.bf16.mxu0 0
        %1723 = vmatpush1.bf16.xpose.msra.mxu0 0
        %1724 = vmatprep.subr.bf16.mxu0 0
        %1725 = vmatpush1.bf16.xpose.msra.mxu0 0
        %1726 = vmatprep.mubr.bf16.mxu0 0
        %1727 = vmatmul.mubr.bf16.gmra.mrb[0].mxu0 %v1689
        %v1728 = vpop.f32.mrb[0].mxu0
        %v1729 = vadd.f32 0.0, %v1728
        %v1730 = vpop.f32.mrb[0].mxu0
        %v1731 = vpop.f32.mrb[0].mxu0
        %v1732 = vpop.f32.mrb[0].mxu0
        %1733 = vdwg.mxu0
        %v1734 = vmul.f32 %v1729, 0.35355338
        %v1735 = vadd.f32 %v1734, %v1570
        %v1736 = vsel %vm710, %v1735, -inf
        %1737 = vmax.xlane.f32.xlu0 %v1736
        %v1738 = vpop.xlane.xlu0 %1737
        %v1739 = vsub.f32 %v1735, %v1738
        %v1740 = vmul.f32 %v1739, 1.442695
        %v1741 = vpow.pop %v1740
        %v1742 = vsel %vm710, %v1741, 0.0
        %1743 = vadd.xlane.f32.xlu0 %v1742
        %v1744 = vpop.xlane.xlu0 %1743
        %v1745 = vadd.f32 %v1744, 0.0
        %v1746 = vpack.c.bf16 %v1741, %v1741
        %1747 = vrot.lane.b32.xlu0 %v1571, 56
        %v1748 = vpop.permute.xlu0 %1747
        %v1750 = vsel %vm710, %v1746, 0
        %v1753 = vsel %vm776, %v1748, 0
        %1755 = vmatprep.subr.bf16.mxu0 0
        %1756 = vmatpush1.bf16.msra.mxu0 %v1753
        %1757 = vmatprep.subr.bf16.mxu0 0
        %1758 = vmatpush1.bf16.msra.mxu0 0
        %1759 = vmatprep.subr.bf16.mxu0 0
        %1760 = vmatpush1.bf16.msra.mxu0 0
        %1761 = vmatprep.subr.bf16.mxu0 0
        %1762 = vmatpush1.bf16.msra.mxu0 0
        %1763 = vmatprep.subr.bf16.mxu0 0
        %1764 = vmatpush1.bf16.msra.mxu0 0
        %1765 = vmatprep.subr.bf16.mxu0 0
        %1766 = vmatpush1.bf16.msra.mxu0 0
        %1767 = vmatprep.subr.bf16.mxu0 0
        %1768 = vmatpush1.bf16.msra.mxu0 0
        %1769 = vmatprep.subr.bf16.mxu0 0
        %1770 = vmatpush1.bf16.msra.mxu0 0
        %1771 = vmatprep.subr.bf16.mxu0 0
        %1772 = vmatpush1.bf16.msra.mxu0 0
        %1773 = vmatprep.subr.bf16.mxu0 0
        %1774 = vmatpush1.bf16.msra.mxu0 0
        %1775 = vmatprep.subr.bf16.mxu0 0
        %1776 = vmatpush1.bf16.msra.mxu0 0
        %1777 = vmatprep.subr.bf16.mxu0 0
        %1778 = vmatpush1.bf16.msra.mxu0 0
        %1779 = vmatprep.subr.bf16.mxu0 0
        %1780 = vmatpush1.bf16.msra.mxu0 0
        %1781 = vmatprep.subr.bf16.mxu0 0
        %1782 = vmatpush1.bf16.msra.mxu0 0
        %1783 = vmatprep.subr.bf16.mxu0 0
        %1784 = vmatpush1.bf16.msra.mxu0 0
        %1785 = vmatprep.subr.bf16.mxu0 0
        %1786 = vmatpush1.bf16.msra.mxu0 0
        %1787 = vmatprep.mubr.bf16.mxu0 0
        %1788 = vmatmul.mubr.bf16.gmra.mrb[0].mxu0 %v1750
        %v1789 = vpop.f32.mrb[0].mxu0
        %v1790 = vadd.f32 0.0, %v1789
        %v1791 = vpop.f32.mrb[0].mxu0
        %v1792 = vpop.f32.mrb[0].mxu0
        %v1793 = vpop.f32.mrb[0].mxu0
        %1794 = vdwg.mxu0
        %v1795 = vrcp.pop %v1745
        %v1796 = vmul.f32 %v1790, %v1795
        %1797 = vrot.lane.b32.xlu0 %v1571, 112
        %v1798 = vpop.permute.xlu0 %1797
        %1799 = vrot.lane.b32.xlu0 %v1571, 80
        %v1800 = vpop.permute.xlu0 %1799
        %v1802 = vsel %vm710, %v1798, 0
        %v1805 = vsel %vm710, %v1800, 0
        %1807 = vmatprep.subr.bf16.mxu0 0
        %1808 = vmatpush1.bf16.xpose.msra.mxu0 %v1805
        %1809 = vmatprep.subr.bf16.mxu0 0
        %1810 = vmatpush1.bf16.xpose.msra.mxu0 0
        %1811 = vmatprep.subr.bf16.mxu0 0
        %1812 = vmatpush1.bf16.xpose.msra.mxu0 0
        %1813 = vmatprep.subr.bf16.mxu0 0
        %1814 = vmatpush1.bf16.xpose.msra.mxu0 0
        %1815 = vmatprep.subr.bf16.mxu0 0
        %1816 = vmatpush1.bf16.xpose.msra.mxu0 0
        %1817 = vmatprep.subr.bf16.mxu0 0
        %1818 = vmatpush1.bf16.xpose.msra.mxu0 0
        %1819 = vmatprep.subr.bf16.mxu0 0
        %1820 = vmatpush1.bf16.xpose.msra.mxu0 0
        %1821 = vmatprep.subr.bf16.mxu0 0
        %1822 = vmatpush1.bf16.xpose.msra.mxu0 0
        %1823 = vmatprep.subr.bf16.mxu0 0
        %1824 = vmatpush1.bf16.xpose.msra.mxu0 0
        %1825 = vmatprep.subr.bf16.mxu0 0
        %1826 = vmatpush1.bf16.xpose.msra.mxu0 0
        %1827 = vmatprep.subr.bf16.mxu0 0
        %1828 = vmatpush1.bf16.xpose.msra.mxu0 0
        %1829 = vmatprep.subr.bf16.mxu0 0
        %1830 = vmatpush1.bf16.xpose.msra.mxu0 0
        %1831 = vmatprep.subr.bf16.mxu0 0
        %1832 = vmatpush1.bf16.xpose.msra.mxu0 0
        %1833 = vmatprep.subr.bf16.mxu0 0
        %1834 = vmatpush1.bf16.xpose.msra.mxu0 0
        %1835 = vmatprep.subr.bf16.mxu0 0
        %1836 = vmatpush1.bf16.xpose.msra.mxu0 0
        %1837 = vmatprep.subr.bf16.mxu0 0
        %1838 = vmatpush1.bf16.xpose.msra.mxu0 0
        %1839 = vmatprep.mubr.bf16.mxu0 0
        %1840 = vmatmul.mubr.bf16.gmra.mrb[0].mxu0 %v1802
        %v1841 = vpop.f32.mrb[0].mxu0
        %v1842 = vadd.f32 0.0, %v1841
        %v1843 = vpop.f32.mrb[0].mxu0
        %v1844 = vpop.f32.mrb[0].mxu0
        %v1845 = vpop.f32.mrb[0].mxu0
        %1846 = vdwg.mxu0
        %v1847 = vmul.f32 %v1842, 0.35355338
        %v1848 = vadd.f32 %v1847, %v1570
        %v1849 = vsel %vm710, %v1848, -inf
        %1850 = vmax.xlane.f32.xlu0 %v1849
        %v1851 = vpop.xlane.xlu0 %1850
        %v1852 = vsub.f32 %v1848, %v1851
        %v1853 = vmul.f32 %v1852, 1.442695
        %v1854 = vpow.pop %v1853
        %v1855 = vsel %vm710, %v1854, 0.0
        %1856 = vadd.xlane.f32.xlu0 %v1855
        %v1857 = vpop.xlane.xlu0 %1856
        %v1858 = vadd.f32 %v1857, 0.0
        %v1859 = vpack.c.bf16 %v1854, %v1854
        %1860 = vrot.lane.b32.xlu0 %v1571, 48
        %v1861 = vpop.permute.xlu0 %1860
        %v1863 = vsel %vm710, %v1859, 0
        %v1866 = vsel %vm776, %v1861, 0
        %1868 = vmatprep.subr.bf16.mxu0 0
        %1869 = vmatpush1.bf16.msra.mxu0 %v1866
        %1870 = vmatprep.subr.bf16.mxu0 0
        %1871 = vmatpush1.bf16.msra.mxu0 0
        %1872 = vmatprep.subr.bf16.mxu0 0
        %1873 = vmatpush1.bf16.msra.mxu0 0
        %1874 = vmatprep.subr.bf16.mxu0 0
        %1875 = vmatpush1.bf16.msra.mxu0 0
        %1876 = vmatprep.subr.bf16.mxu0 0
        %1877 = vmatpush1.bf16.msra.mxu0 0
        %1878 = vmatprep.subr.bf16.mxu0 0
        %1879 = vmatpush1.bf16.msra.mxu0 0
        %1880 = vmatprep.subr.bf16.mxu0 0
        %1881 = vmatpush1.bf16.msra.mxu0 0
        %1882 = vmatprep.subr.bf16.mxu0 0
        %1883 = vmatpush1.bf16.msra.mxu0 0
        %1884 = vmatprep.subr.bf16.mxu0 0
        %1885 = vmatpush1.bf16.msra.mxu0 0
        %1886 = vmatprep.subr.bf16.mxu0 0
        %1887 = vmatpush1.bf16.msra.mxu0 0
        %1888 = vmatprep.subr.bf16.mxu0 0
        %1889 = vmatpush1.bf16.msra.mxu0 0
        %1890 = vmatprep.subr.bf16.mxu0 0
        %1891 = vmatpush1.bf16.msra.mxu0 0
        %1892 = vmatprep.subr.bf16.mxu0 0
        %1893 = vmatpush1.bf16.msra.mxu0 0
        %1894 = vmatprep.subr.bf16.mxu0 0
        %1895 = vmatpush1.bf16.msra.mxu0 0
        %1896 = vmatprep.subr.bf16.mxu0 0
        %1897 = vmatpush1.bf16.msra.mxu0 0
        %1898 = vmatprep.subr.bf16.mxu0 0
        %1899 = vmatpush1.bf16.msra.mxu0 0
        %1900 = vmatprep.mubr.bf16.mxu0 0
        %1901 = vmatmul.mubr.bf16.gmra.mrb[0].mxu0 %v1863
        %v1902 = vpop.f32.mrb[0].mxu0
        %v1903 = vadd.f32 0.0, %v1902
        %v1904 = vpop.f32.mrb[0].mxu0
        %v1905 = vpop.f32.mrb[0].mxu0
        %v1906 = vpop.f32.mrb[0].mxu0
        %1907 = vdwg.mxu0
        %v1908 = vrcp.pop %v1858
        %v1909 = vmul.f32 %v1903, %v1908
        %1910 = vrot.lane.b32.xlu0 %v1571, 104
        %v1911 = vpop.permute.xlu0 %1910
        %1912 = vrot.lane.b32.xlu0 %v1571, 72
        %v1913 = vpop.permute.xlu0 %1912
        %v1915 = vsel %vm710, %v1911, 0
        %v1918 = vsel %vm710, %v1913, 0
        %1920 = vmatprep.subr.bf16.mxu0 0
        %1921 = vmatpush1.bf16.xpose.msra.mxu0 %v1918
        %1922 = vmatprep.subr.bf16.mxu0 0
        %1923 = vmatpush1.bf16.xpose.msra.mxu0 0
        %1924 = vmatprep.subr.bf16.mxu0 0
        %1925 = vmatpush1.bf16.xpose.msra.mxu0 0
        %1926 = vmatprep.subr.bf16.mxu0 0
        %1927 = vmatpush1.bf16.xpose.msra.mxu0 0
        %1928 = vmatprep.subr.bf16.mxu0 0
        %1929 = vmatpush1.bf16.xpose.msra.mxu0 0
        %1930 = vmatprep.subr.bf16.mxu0 0
        %1931 = vmatpush1.bf16.xpose.msra.mxu0 0
        %1932 = vmatprep.subr.bf16.mxu0 0
        %1933 = vmatpush1.bf16.xpose.msra.mxu0 0
        %1934 = vmatprep.subr.bf16.mxu0 0
        %1935 = vmatpush1.bf16.xpose.msra.mxu0 0
        %1936 = vmatprep.subr.bf16.mxu0 0
        %1937 = vmatpush1.bf16.xpose.msra.mxu0 0
        %1938 = vmatprep.subr.bf16.mxu0 0
        %1939 = vmatpush1.bf16.xpose.msra.mxu0 0
        %1940 = vmatprep.subr.bf16.mxu0 0
        %1941 = vmatpush1.bf16.xpose.msra.mxu0 0
        %1942 = vmatprep.subr.bf16.mxu0 0
        %1943 = vmatpush1.bf16.xpose.msra.mxu0 0
        %1944 = vmatprep.subr.bf16.mxu0 0
        %1945 = vmatpush1.bf16.xpose.msra.mxu0 0
        %1946 = vmatprep.subr.bf16.mxu0 0
        %1947 = vmatpush1.bf16.xpose.msra.mxu0 0
        %1948 = vmatprep.subr.bf16.mxu0 0
        %1949 = vmatpush1.bf16.xpose.msra.mxu0 0
        %1950 = vmatprep.subr.bf16.mxu0 0
        %1951 = vmatpush1.bf16.xpose.msra.mxu0 0
        %1952 = vmatprep.mubr.bf16.mxu0 0
        %1953 = vmatmul.mubr.bf16.gmra.mrb[0].mxu0 %v1915
        %v1954 = vpop.f32.mrb[0].mxu0
        %v1955 = vadd.f32 0.0, %v1954
        %v1956 = vpop.f32.mrb[0].mxu0
        %v1957 = vpop.f32.mrb[0].mxu0
        %v1958 = vpop.f32.mrb[0].mxu0
        %1959 = vdwg.mxu0
        %v1960 = vmul.f32 %v1955, 0.35355338
        %v1961 = vadd.f32 %v1960, %v1570
        %v1962 = vsel %vm710, %v1961, -inf
        %1963 = vmax.xlane.f32.xlu0 %v1962
        %v1964 = vpop.xlane.xlu0 %1963
        %v1965 = vsub.f32 %v1961, %v1964
        %v1966 = vmul.f32 %v1965, 1.442695
        %v1967 = vpow.pop %v1966
        %v1968 = vsel %vm710, %v1967, 0.0
        %1969 = vadd.xlane.f32.xlu0 %v1968
        %v1970 = vpop.xlane.xlu0 %1969
        %v1971 = vadd.f32 %v1970, 0.0
        %v1972 = vpack.c.bf16 %v1967, %v1967
        %1973 = vrot.lane.b32.xlu0 %v1571, 40
        %v1974 = vpop.permute.xlu0 %1973
        %v1976 = vsel %vm710, %v1972, 0
        %v1979 = vsel %vm776, %v1974, 0
        %1981 = vmatprep.subr.bf16.mxu0 0
        %1982 = vmatpush1.bf16.msra.mxu0 %v1979
        %1983 = vmatprep.subr.bf16.mxu0 0
        %1984 = vmatpush1.bf16.msra.mxu0 0
        %1985 = vmatprep.subr.bf16.mxu0 0
        %1986 = vmatpush1.bf16.msra.mxu0 0
        %1987 = vmatprep.subr.bf16.mxu0 0
        %1988 = vmatpush1.bf16.msra.mxu0 0
        %1989 = vmatprep.subr.bf16.mxu0 0
        %1990 = vmatpush1.bf16.msra.mxu0 0
        %1991 = vmatprep.subr.bf16.mxu0 0
        %1992 = vmatpush1.bf16.msra.mxu0 0
        %1993 = vmatprep.subr.bf16.mxu0 0
        %1994 = vmatpush1.bf16.msra.mxu0 0
        %1995 = vmatprep.subr.bf16.mxu0 0
        %1996 = vmatpush1.bf16.msra.mxu0 0
        %1997 = vmatprep.subr.bf16.mxu0 0
        %1998 = vmatpush1.bf16.msra.mxu0 0
        %1999 = vmatprep.subr.bf16.mxu0 0
        %2000 = vmatpush1.bf16.msra.mxu0 0
        %2001 = vmatprep.subr.bf16.mxu0 0
        %2002 = vmatpush1.bf16.msra.mxu0 0
        %2003 = vmatprep.subr.bf16.mxu0 0
        %2004 = vmatpush1.bf16.msra.mxu0 0
        %2005 = vmatprep.subr.bf16.mxu0 0
        %2006 = vmatpush1.bf16.msra.mxu0 0
        %2007 = vmatprep.subr.bf16.mxu0 0
        %2008 = vmatpush1.bf16.msra.mxu0 0
        %2009 = vmatprep.subr.bf16.mxu0 0
        %2010 = vmatpush1.bf16.msra.mxu0 0
        %2011 = vmatprep.subr.bf16.mxu0 0
        %2012 = vmatpush1.bf16.msra.mxu0 0
        %2013 = vmatprep.mubr.bf16.mxu0 0
        %2014 = vmatmul.mubr.bf16.gmra.mrb[0].mxu0 %v1976
        %v2015 = vpop.f32.mrb[0].mxu0
        %v2016 = vadd.f32 0.0, %v2015
        %v2017 = vpop.f32.mrb[0].mxu0
        %v2018 = vpop.f32.mrb[0].mxu0
        %v2019 = vpop.f32.mrb[0].mxu0
        %2020 = vdwg.mxu0
        %v2021 = vrcp.pop %v1971
        %v2022 = vmul.f32 %v2016, %v2021
        %2024 = vrot.lane.b32.xlu0 %v1796, 8
        %v2025 = vpop.permute.xlu0 %2024
        %2028 = vrot.lane.b32.xlu0 %v1909, 16
        %v2029 = vpop.permute.xlu0 %2028
        %2032 = vrot.lane.b32.xlu0 %v2022, 24
        %v2033 = vpop.permute.xlu0 %2032
        %v2035 = vsel %vm710, %v1683, %v2025
        %v2036 = vsel %vm1175, %v2035, %v2029
        %v2037 = vsel %vm1177, %v2036, %v2033
        %v2038 = vpack.c.bf16 %v2037, %v2037
        %v2039 = vld [vmem:[%s11] sm:$0xf]
        %v2040 = vld [vmem:[%s11 + $0x4] sm:$0xf]
        %v2041 = vld [vmem:[%s11 + $0x8] sm:$0xf]
        %v2042 = vld [vmem:[%s11 + $0xc] sm:$0xf]
        %v2047 = vunpack.c.l.b16 %v2039
        %v2048 = vunpack.c.l.b16 %v2040
        %v2049 = vunpack.c.l.b16 %v2041
        %v2050 = vunpack.c.l.b16 %v2042
        %v2051 = vpack.c.b16 %v2048, %v2047
        %v2052 = vpack.c.b16 %v2050, %v2049
        %v2056 = vsel %vm547, %v2038, 0
        %2058 = vmatprep.subr.bf16.mxu0 0
        %2059 = vmatpush1.bf16.msra.mxu0 %v2051
        %2060 = vmatprep.subr.bf16.mxu0 0
        %2061 = vmatpush1.bf16.msra.mxu0 %v2052
        %2062 = vmatprep.subr.bf16.mxu0 0
        %2063 = vmatpush1.bf16.msra.mxu0 0
        %2064 = vmatprep.subr.bf16.mxu0 0
        %2065 = vmatpush1.bf16.msra.mxu0 0
        %2066 = vmatprep.subr.bf16.mxu0 0
        %2067 = vmatpush1.bf16.msra.mxu0 0
        %2068 = vmatprep.subr.bf16.mxu0 0
        %2069 = vmatpush1.bf16.msra.mxu0 0
        %2070 = vmatprep.subr.bf16.mxu0 0
        %2071 = vmatpush1.bf16.msra.mxu0 0
        %2072 = vmatprep.subr.bf16.mxu0 0
        %2073 = vmatpush1.bf16.msra.mxu0 0
        %2074 = vmatprep.subr.bf16.mxu0 0
        %2075 = vmatpush1.bf16.msra.mxu0 0
        %2076 = vmatprep.subr.bf16.mxu0 0
        %2077 = vmatpush1.bf16.msra.mxu0 0
        %2078 = vmatprep.subr.bf16.mxu0 0
        %2079 = vmatpush1.bf16.msra.mxu0 0
        %2080 = vmatprep.subr.bf16.mxu0 0
        %2081 = vmatpush1.bf16.msra.mxu0 0
        %2082 = vmatprep.subr.bf16.mxu0 0
        %2083 = vmatpush1.bf16.msra.mxu0 0
        %2084 = vmatprep.subr.bf16.mxu0 0
        %2085 = vmatpush1.bf16.msra.mxu0 0
        %2086 = vmatprep.subr.bf16.mxu0 0
        %2087 = vmatpush1.bf16.msra.mxu0 0
        %2088 = vmatprep.subr.bf16.mxu0 0
        %2089 = vmatpush1.bf16.msra.mxu0 0
        %2090 = vmatprep.mubr.bf16.mxu0 0
        %2091 = vmatmul.mubr.bf16.gmra.mrb[0].mxu0 %v2056
        %v2092 = vpop.f32.mrb[0].mxu0
        %v2093 = vadd.f32 0.0, %v2092
        %v2094 = vpop.f32.mrb[0].mxu0
        %v2095 = vpop.f32.mrb[0].mxu0
        %v2096 = vpop.f32.mrb[0].mxu0
        %2097 = vdwg.mxu0
        %v2098 = vadd.f32 %v1471, %v2093
        %v2099 = vlaneseq
        %v2100 = vshrl.u32 %v2099, 7
        %v2101 = vsub.s32 5, %v2100
        %v2102 = vrot.slane %v540, %v2101
        %v2103 = vadd.f32 %v2098, %v2102
        %v2104 = vsel %vm547, %v2103, 0.0
        %2105 = vadd.xlane.f32.xlu0 %v2104
        %v2106 = vpop.xlane.xlu0 %2105
        %v2107 = vmul.f32 %v2106, %v551
        %v2108 = vsub.f32 %v2103, %v2107
        %v2109 = vmul.f32 %v2108, %v2108
        %v2110 = vsel %vm547, %v2109, 0.0
        %2111 = vadd.xlane.f32.xlu0 %v2110
        %v2112 = vpop.xlane.xlu0 %2111
        %v2113 = vmul.f32 %v2112, %v551
        %v2114 = vadd.f32 %v2113, 1e-05
        %v2115 = vrsqrt.pop %v2114
        %v2116 = vmul.f32 %v2108, %v2115
        %v2117 = vlaneseq
        %v2118 = vshrl.u32 %v2117, 7
        %v2119 = vsub.s32 6, %v2118
        %v2120 = vrot.slane %v540, %v2119
        %v2121 = vmul.f32 %v2116, %v2120
        %v2122 = vlaneseq
        %v2123 = vshrl.u32 %v2122, 7
        %v2124 = vsub.s32 7, %v2123
        %v2125 = vrot.slane %v540, %v2124
        %v2126 = vadd.f32 %v2121, %v2125
        %v2127 = vpack.c.bf16 %v2126, %v2126
        %v2128 = vld [vmem:[%s12] sm:$0xf]
        %v2129 = vld [vmem:[%s12 + $0x4] sm:$0xf]
        %v2130 = vld [vmem:[%s12 + $0x8] sm:$0xf]
        %v2131 = vld [vmem:[%s12 + $0xc] sm:$0xf]
        %v2132 = vlaneseq
        %v2133 = vshrl.u32 %v2132, 7
        %v2134 = vsub.s32 0, %v2133
        %v2135 = vrot.slane %v541, %v2134
        %v2140 = vunpack.c.l.b16 %v2128
        %v2141 = vunpack.c.l.b16 %v2129
        %v2142 = vunpack.c.l.b16 %v2130
        %v2143 = vunpack.c.l.b16 %v2131
        %v2144 = vpack.c.b16 %v2141, %v2140
        %v2145 = vpack.c.b16 %v2143, %v2142
        %v2149 = vsel %vm547, %v2127, 0
        %2151 = vmatprep.subr.bf16.mxu0 0
        %2152 = vmatpush1.bf16.msra.mxu0 %v2144
        %2153 = vmatprep.subr.bf16.mxu0 0
        %2154 = vmatpush1.bf16.msra.mxu0 %v2145
        %2155 = vmatprep.subr.bf16.mxu0 0
        %2156 = vmatpush1.bf16.msra.mxu0 0
        %2157 = vmatprep.subr.bf16.mxu0 0
        %2158 = vmatpush1.bf16.msra.mxu0 0
        %2159 = vmatprep.subr.bf16.mxu0 0
        %2160 = vmatpush1.bf16.msra.mxu0 0
        %2161 = vmatprep.subr.bf16.mxu0 0
        %2162 = vmatpush1.bf16.msra.mxu0 0
        %2163 = vmatprep.subr.bf16.mxu0 0
        %2164 = vmatpush1.bf16.msra.mxu0 0
        %2165 = vmatprep.subr.bf16.mxu0 0
        %2166 = vmatpush1.bf16.msra.mxu0 0
        %2167 = vmatprep.subr.bf16.mxu0 0
        %2168 = vmatpush1.bf16.msra.mxu0 0
        %2169 = vmatprep.subr.bf16.mxu0 0
        %2170 = vmatpush1.bf16.msra.mxu0 0
        %2171 = vmatprep.subr.bf16.mxu0 0
        %2172 = vmatpush1.bf16.msra.mxu0 0
        %2173 = vmatprep.subr.bf16.mxu0 0
        %2174 = vmatpush1.bf16.msra.mxu0 0
        %2175 = vmatprep.subr.bf16.mxu0 0
        %2176 = vmatpush1.bf16.msra.mxu0 0
        %2177 = vmatprep.subr.bf16.mxu0 0
        %2178 = vmatpush1.bf16.msra.mxu0 0
        %2179 = vmatprep.subr.bf16.mxu0 0
        %2180 = vmatpush1.bf16.msra.mxu0 0
        %2181 = vmatprep.subr.bf16.mxu0 0
        %2182 = vmatpush1.bf16.msra.mxu0 0
        %2183 = vmatprep.mubr.bf16.mxu0 0
        %2184 = vmatmul.mubr.bf16.gmra.mrb[0].mxu0 %v2149
        %v2185 = vpop.f32.mrb[0].mxu0
        %v2186 = vadd.f32 %v2135, %v2185
        %v2187 = vpop.f32.mrb[0].mxu0
        %v2188 = vpop.f32.mrb[0].mxu0
        %v2189 = vpop.f32.mrb[0].mxu0
        %2190 = vdwg.mxu0
        %v2191 = vmul.f32 %v2186, %v2186
        %v2192 = vmul.f32 %v2186, %v2191
        %v2193 = vmul.f32 %v2192, 0.044715
        %v2194 = vadd.f32 %v2186, %v2193
        %v2195 = vmul.f32 %v2194, 0.7978846
        %v2196 = vtanh.pop %v2195
        %v2197 = vadd.f32 %v2196, 1.0
        %v2198 = vmul.f32 %v2197, 0.5
        %v2199 = vmul.f32 %v2186, %v2198
        %v2200 = vpack.c.bf16 %v2199, %v2199
        %v2201 = vld [vmem:[%s13] sm:$0xf]
        %v2202 = vld [vmem:[%s13 + $0x4] sm:$0xf]
        %v2203 = vld [vmem:[%s13 + $0x8] sm:$0xf]
        %v2204 = vld [vmem:[%s13 + $0xc] sm:$0xf]
        %v2205 = vld [vmem:[%s13 + $0x10] sm:$0xf]
        %v2206 = vld [vmem:[%s13 + $0x14] sm:$0xf]
        %v2207 = vld [vmem:[%s13 + $0x18] sm:$0xf]
        %v2208 = vld [vmem:[%s13 + $0x1c] sm:$0xf]
        %v2209 = vld [vmem:[%s13 + $0x20] sm:$0xf]
        %v2210 = vld [vmem:[%s13 + $0x24] sm:$0xf]
        %v2211 = vld [vmem:[%s13 + $0x28] sm:$0xf]
        %v2212 = vld [vmem:[%s13 + $0x2c] sm:$0xf]
        %v2213 = vld [vmem:[%s13 + $0x30] sm:$0xf]
        %v2214 = vld [vmem:[%s13 + $0x34] sm:$0xf]
        %v2215 = vld [vmem:[%s13 + $0x38] sm:$0xf]
        %v2216 = vld [vmem:[%s13 + $0x3c] sm:$0xf]
        %v2217 = vlaneseq
        %v2218 = vshrl.u32 %v2217, 7
        %v2219 = vsub.s32 1, %v2218
        %v2220 = vrot.slane %v541, %v2219
        %v2237 = vunpack.c.l.b16 %v2201
        %v2238 = vunpack.c.l.b16 %v2202
        %v2239 = vunpack.c.l.b16 %v2203
        %v2240 = vunpack.c.l.b16 %v2204
        %v2241 = vunpack.c.l.b16 %v2205
        %v2242 = vunpack.c.l.b16 %v2206
        %v2243 = vunpack.c.l.b16 %v2207
        %v2244 = vunpack.c.l.b16 %v2208
        %v2245 = vunpack.c.l.b16 %v2209
        %v2246 = vunpack.c.l.b16 %v2210
        %v2247 = vunpack.c.l.b16 %v2211
        %v2248 = vunpack.c.l.b16 %v2212
        %v2249 = vunpack.c.l.b16 %v2213
        %v2250 = vunpack.c.l.b16 %v2214
        %v2251 = vunpack.c.l.b16 %v2215
        %v2252 = vunpack.c.l.b16 %v2216
        %v2253 = vpack.c.b16 %v2238, %v2237
        %v2254 = vpack.c.b16 %v2240, %v2239
        %v2255 = vpack.c.b16 %v2242, %v2241
        %v2256 = vpack.c.b16 %v2244, %v2243
        %v2257 = vpack.c.b16 %v2246, %v2245
        %v2258 = vpack.c.b16 %v2248, %v2247
        %v2259 = vpack.c.b16 %v2250, %v2249
        %v2260 = vpack.c.b16 %v2252, %v2251
        %2269 = vmatprep.subr.bf16.mxu0 0
        %2270 = vmatpush1.bf16.msra.mxu0 %v2253
        %2271 = vmatprep.subr.bf16.mxu0 0
        %2272 = vmatpush1.bf16.msra.mxu0 %v2254
        %2273 = vmatprep.subr.bf16.mxu0 0
        %2274 = vmatpush1.bf16.msra.mxu0 %v2255
        %2275 = vmatprep.subr.bf16.mxu0 0
        %2276 = vmatpush1.bf16.msra.mxu0 %v2256
        %2277 = vmatprep.subr.bf16.mxu0 0
        %2278 = vmatpush1.bf16.msra.mxu0 %v2257
        %2279 = vmatprep.subr.bf16.mxu0 0
        %2280 = vmatpush1.bf16.msra.mxu0 %v2258
        %2281 = vmatprep.subr.bf16.mxu0 0
        %2282 = vmatpush1.bf16.msra.mxu0 %v2259
        %2283 = vmatprep.subr.bf16.mxu0 0
        %2284 = vmatpush1.bf16.msra.mxu0 %v2260
        %2285 = vmatprep.subr.bf16.mxu0 0
        %2286 = vmatpush1.bf16.msra.mxu0 0
        %2287 = vmatprep.subr.bf16.mxu0 0
        %2288 = vmatpush1.bf16.msra.mxu0 0
        %2289 = vmatprep.subr.bf16.mxu0 0
        %2290 = vmatpush1.bf16.msra.mxu0 0
        %2291 = vmatprep.subr.bf16.mxu0 0
        %2292 = vmatpush1.bf16.msra.mxu0 0
        %2293 = vmatprep.subr.bf16.mxu0 0
        %2294 = vmatpush1.bf16.msra.mxu0 0
        %2295 = vmatprep.subr.bf16.mxu0 0
        %2296 = vmatpush1.bf16.msra.mxu0 0
        %2297 = vmatprep.subr.bf16.mxu0 0
        %2298 = vmatpush1.bf16.msra.mxu0 0
        %2299 = vmatprep.subr.bf16.mxu0 0
        %2300 = vmatpush1.bf16.msra.mxu0 0
        %2301 = vmatprep.mubr.bf16.mxu0 0
        %2302 = vmatmul.mubr.bf16.gmra.mrb[0].mxu0 %v2200
        %v2303 = vpop.f32.mrb[0].mxu0
        %v2304 = vadd.f32 %v2220, %v2303
        %v2305 = vpop.f32.mrb[0].mxu0
        %v2306 = vpop.f32.mrb[0].mxu0
        %v2307 = vpop.f32.mrb[0].mxu0
        %2308 = vdwg.mxu0
        %v2309 = vadd.f32 %v2103, %v2304
        %v2310 = vsel %vm547, %v2309, 0.0
        %2311 = vadd.xlane.f32.xlu0 %v2310
        %v2312 = vpop.xlane.xlu0 %2311
        %v2313 = vmul.f32 %v2312, %v551
        %v2314 = vsub.f32 %v2309, %v2313
        %v2315 = vmul.f32 %v2314, %v2314
        %v2316 = vsel %vm547, %v2315, 0.0
        %2317 = vadd.xlane.f32.xlu0 %v2316
        %v2318 = vpop.xlane.xlu0 %2317
        %v2319 = vmul.f32 %v2318, %v551
        %v2320 = vadd.f32 %v2319, 1e-05
        %v2321 = vrsqrt.pop %v2320
        %v2322 = vmul.f32 %v2314, %v2321
        %v2323 = vlaneseq
        %v2324 = vshrl.u32 %v2323, 7
        %v2325 = vsub.s32 2, %v2324
        %v2326 = vrot.slane %v541, %v2325
        %v2327 = vmul.f32 %v2322, %v2326
        %v2328 = vlaneseq
        %v2329 = vshrl.u32 %v2328, 7
        %v2330 = vsub.s32 3, %v2329
        %v2331 = vrot.slane %v541, %v2330
        %v2332 = vadd.f32 %v2327, %v2331
        %v2333 = vpack.c.bf16 %v2332, %v2332
        %v2334 = vld [vmem:[%s14] sm:$0xf]
        %v2335 = vld [vmem:[%s14 + $0x4] sm:$0xf]
        %v2336 = vld [vmem:[%s14 + $0x8] sm:$0xf]
        %v2337 = vld [vmem:[%s14 + $0xc] sm:$0xf]
        %v2338 = vlaneseq
        %v2339 = vshrl.u32 %v2338, 7
        %v2340 = vsub.s32 4, %v2339
        %v2341 = vrot.slane %v541, %v2340
        %v2346 = vunpack.c.l.b16 %v2334
        %v2347 = vunpack.c.l.b16 %v2335
        %v2348 = vunpack.c.l.b16 %v2336
        %v2349 = vunpack.c.l.b16 %v2337
        %v2350 = vpack.c.b16 %v2347, %v2346
        %v2351 = vpack.c.b16 %v2349, %v2348
        %v2355 = vsel %vm547, %v2333, 0
        %2357 = vmatprep.subr.bf16.mxu0 0
        %2358 = vmatpush1.bf16.msra.mxu0 %v2350
        %2359 = vmatprep.subr.bf16.mxu0 0
        %2360 = vmatpush1.bf16.msra.mxu0 %v2351
        %2361 = vmatprep.subr.bf16.mxu0 0
        %2362 = vmatpush1.bf16.msra.mxu0 0
        %2363 = vmatprep.subr.bf16.mxu0 0
        %2364 = vmatpush1.bf16.msra.mxu0 0
        %2365 = vmatprep.subr.bf16.mxu0 0
        %2366 = vmatpush1.bf16.msra.mxu0 0
        %2367 = vmatprep.subr.bf16.mxu0 0
        %2368 = vmatpush1.bf16.msra.mxu0 0
        %2369 = vmatprep.subr.bf16.mxu0 0
        %2370 = vmatpush1.bf16.msra.mxu0 0
        %2371 = vmatprep.subr.bf16.mxu0 0
        %2372 = vmatpush1.bf16.msra.mxu0 0
        %2373 = vmatprep.subr.bf16.mxu0 0
        %2374 = vmatpush1.bf16.msra.mxu0 0
        %2375 = vmatprep.subr.bf16.mxu0 0
        %2376 = vmatpush1.bf16.msra.mxu0 0
        %2377 = vmatprep.subr.bf16.mxu0 0
        %2378 = vmatpush1.bf16.msra.mxu0 0
        %2379 = vmatprep.subr.bf16.mxu0 0
        %2380 = vmatpush1.bf16.msra.mxu0 0
        %2381 = vmatprep.subr.bf16.mxu0 0
        %2382 = vmatpush1.bf16.msra.mxu0 0
        %2383 = vmatprep.subr.bf16.mxu0 0
        %2384 = vmatpush1.bf16.msra.mxu0 0
        %2385 = vmatprep.subr.bf16.mxu0 0
        %2386 = vmatpush1.bf16.msra.mxu0 0
        %2387 = vmatprep.subr.bf16.mxu0 0
        %2388 = vmatpush1.bf16.msra.mxu0 0
        %2389 = vmatprep.mubr.bf16.mxu0 0
        %2390 = vmatmul.mubr.bf16.gmra.mrb[0].mxu0 %v2355
        %v2391 = vpop.f32.mrb[0].mxu0
        %v2392 = vadd.f32 %v2341, %v2391
        %v2393 = vpop.f32.mrb[0].mxu0
        %v2394 = vpop.f32.mrb[0].mxu0
        %v2395 = vpop.f32.mrb[0].mxu0
        %2396 = vdwg.mxu0
        %2397 = vst [vmem:[%s522] sm:$0xff] %v2392
        %s2398 = sand.u32 %s372, 1
        %s2399 = scalar_lea.sflag [#allocation3], %s2398
        %s2400 = sand.u32 %s372, 1
        %s2401 = smul.addr %s2400, 8
        %s2402 = scalar_lea.vmem [#allocation2], %s2401
        // Predicated region
        $region81: #{flamingo_forward.7} parent=79 // pred_check
          %p2403 = pneg %p382
        $region82: #{flamingo_forward.7} parent=79 // pred_check_branch
          %2405 = sbr.rel (%p2403) target = $region84
        $region83: #{flamingo_forward.7} parent=79 // pred_region
          %s2407 = ssub.s32 128, 128
          %2408 = vsyncadd %s2399, %s2407
          %s2409 = smul.addr %s29, 128
          %s2410 = scalar_lea.hbm %s15, %s2409
          %s2412 = sshll.u32 %s2402, 4
          %s2413 = int_to_ptr.vmem [resolvable:$true] %s2412
          %2415 = dma.vmem_to_hbm [thread:$0]  %s2413, 128, %s2410, %s2399
        $region84: #{flamingo_forward.7} parent=79 // pred_fallthru
          _
      $region80: #{flamingo_forward.7} parent=5 // pred_fallthru
        _
      %p2416 = scmp.le.s32.totalorder 2, %s24
      // Predicated region
      $region85: #{flamingo_forward.7} parent=5 // pred_check
        %p2417 = pneg %p2416
      $region86: #{flamingo_forward.7} parent=5 // pred_check_branch
        %2419 = sbr.rel (%p2417) target = $region88
      $region87: #{flamingo_forward.7} parent=5 // pred_region
        %s2420 = ssub.s32 %s24, 2
        // Predicated region
        $region89: #{flamingo_forward.7} parent=87 // pred_check
          %p2421 = pneg %p388
        $region90: #{flamingo_forward.7} parent=87 // pred_check_branch
          %2423 = sbr.rel (%p2421) target = $region92
        $region91: #{flamingo_forward.7} parent=87 // pred_region
          %s2424 = sand.u32 %s373, 1
          %s2425 = scalar_lea.sflag [#allocation3], %s2424
          %s2426 = sand.u32 %s373, 1
          %s2427 = smul.addr %s2426, 8
          %s2428 = scalar_lea.vmem [#allocation2], %s2427
          %2429 = dma.done %s2425, 128
        $region92: #{flamingo_forward.7} parent=87 // pred_fallthru
          _
      $region88: #{flamingo_forward.7} parent=5 // pred_fallthru
        _
    $region6: #{flamingo_forward.7} parent=1 // loop_footer
      %s28 = sadd.s32 1, %s24
    $region7: #{flamingo_forward.7} parent=1 // loop_footer_branch
      %23 = sbr.rel target = $region3
    $region8: #{flamingo_forward.7} parent=1 // loop_exit
      _
    %2430 = vsyncpa [#allocation3], 1
    %s2431 = scalar_lea.sflag [#allocation3], 1
    %2432 = vsyncpa %s2431, 1

</llo_original>
